<compile_context>
chip_gen: v6e
topology: v6e:2x2x1
jax: 0.10.0
libtpu: 0.0.40
codegen_flags: <defaults>
</compile_context>

<pallas_src>
import math
import functools

import jax
import jax.numpy as jnp
from jax.experimental import pallas as pl
from jax.experimental.pallas import tpu as pltpu


# ----------------------------- model config ---------------------------------
B, S = 2, 8              # batch, sequence length
IN_DIM = 16              # input feature dim
D_MODEL = 32             # model hidden dim
NHEAD = 4                # attention heads
NUM_LAYERS = 2           # encoder layers
DIM_FF = 64              # feedforward hidden dim
OUT_DIM = 3              # output classes
LN_EPS = 1e-5

BS = B * S
DH = D_MODEL // NHEAD
OUT_PAD = 128            # lane-dense padded output width


def _gelu(x):
    # TODO(synk): PyTorch activation='gelu' is the exact erf GELU; Mosaic-safe
    # tanh approximation is used here (difference ~1e-3 max vs erf).
    return jax.nn.gelu(x, approximate=True)


def _layernorm(x, w, b):
    mu = jnp.mean(x, axis=-1, keepdims=True)
    var = jnp.mean((x - mu) ** 2, axis=-1, keepdims=True)
    return (x - mu) * jax.lax.rsqrt(var + LN_EPS) * w + b


# ------------------------------- kernel --------------------------------------
def transformer_kernel(x_ref, emb_wT_ref, emb_bpe_ref,
                       wq_ref, wk_ref, wv_ref, qkvb_ref,
                       woT_ref, vecd_ref,
                       lin1T_ref, lin1b_ref, lin2T_ref,
                       outT_ref, outb_ref,
                       o_ref,
                       attn_scr,
                       *, num_layers, nhead, d_model, seq, batch):
    dh = d_model // nhead

    # embedding; positional encoding is pre-folded into the bias (emb_bpe)
    h = jnp.dot(x_ref[...], emb_wT_ref[...],
                preferred_element_type=jnp.float32) + emb_bpe_ref[...]

    for l in range(num_layers):                      # static unroll over layers
        vl = vecd_ref[l]                             # (6, D) packed per-layer vectors
        wo_b, ln1_w, ln1_b = vl[0:1], vl[1:2], vl[2:3]
        lin2_b, ln2_w, ln2_b = vl[3:4], vl[4:5], vl[5:6]

        # ---------------- self attention (post-LN block) ----------------
        for b in range(batch):                       # static unroll over batch
            r0 = b * seq
            hb = h[r0:r0 + seq, :]                   # (S, D) sublane slice
            for hd in range(nhead):                  # static unroll over heads
                idx = l * nhead + hd
                bqkv = qkvb_ref[idx]                 # (3, dh) packed q/k/v biases
                qh = jnp.dot(hb, wq_ref[idx],        # Wq pre-scaled by 1/sqrt(dh)
                             preferred_element_type=jnp.float32) + bqkv[0:1]
                kh = jnp.dot(hb, wk_ref[idx],
                             preferred_element_type=jnp.float32) + bqkv[1:2]
                vh = jnp.dot(hb, wv_ref[idx],
                             preferred_element_type=jnp.float32) + bqkv[2:3]
                # scores: contract the dh axis directly (no in-kernel transpose)
                sc = jax.lax.dot_general(qh, kh, (((1,), (1,)), ((), ())),
                                         preferred_element_type=jnp.float32)
                sc = sc - jnp.max(sc, axis=-1, keepdims=True)
                p = jnp.exp(sc)
                p = p * pl.reciprocal(jnp.sum(p, axis=-1, keepdims=True),
                                      approx=True)
                oh = jnp.dot(p, vh, preferred_element_type=jnp.float32)   # (S, dh)
                # head-concat directly into VMEM scratch at its lane offset
                attn_scr[r0:r0 + seq, hd * dh:(hd + 1) * dh] = oh

        # single out-projection matmul over the whole (B*S, D) head-concat
        sa = jnp.dot(attn_scr[...], woT_ref[l],
                     preferred_element_type=jnp.float32) + wo_b
        h = _layernorm(h + sa, ln1_w, ln1_b)

        # ---------------------- feed-forward block ----------------------
        f = jnp.dot(h, lin1T_ref[l],
                    preferred_element_type=jnp.float32) + lin1b_ref[l]
        f = _gelu(f)
        f = jnp.dot(f, lin2T_ref[l],
                    preferred_element_type=jnp.float32) + lin2_b
        h = _layernorm(h + f, ln2_w, ln2_b)

    # lane-dense padded output head (sliced to OUT_DIM in the wrapper)
    o_ref[...] = jnp.dot(h, outT_ref[...],
                         preferred_element_type=jnp.float32) + outb_ref[...]


# ------------------------------- wrapper --------------------------------------
def _full_spec(shape):
    n = len(shape)
    return pl.BlockSpec(shape, lambda g, _n=n: (0,) * _n)


def prepare_operands(x, pe, params):
    """Host-side layout work: flatten batch, transpose / head-split / pack weights."""
    scale = 1.0 / math.sqrt(DH)

    x_flat = x.reshape(BS, IN_DIM)
    emb_wT = params["emb_w"].T                                   # (IN_DIM, D)
    emb_bpe = jnp.tile(pe, (B, 1)) + params["emb_b"]             # (B*S, D)

    ipw = params["in_proj_w"]                                    # (L, 3D, D)
    ipb = params["in_proj_b"][:, 0, :]                           # (L, 3D)
    wq = ipw[:, :D_MODEL, :] * scale                             # fold 1/sqrt(dh)
    wk = ipw[:, D_MODEL:2 * D_MODEL, :]
    wv = ipw[:, 2 * D_MODEL:, :]

    def per_head_T(w):                                           # (L,D,D) -> (L*H, D_in, dh)
        return (w.reshape(NUM_LAYERS, NHEAD, DH, D_MODEL)
                 .transpose(0, 1, 3, 2)
                 .reshape(NUM_LAYERS * NHEAD, D_MODEL, DH))

    wq_h, wk_h, wv_h = per_head_T(wq), per_head_T(wk), per_head_T(wv)

    bq = (ipb[:, :D_MODEL] * scale).reshape(NUM_LAYERS, NHEAD, 1, DH)
    bk = ipb[:, D_MODEL:2 * D_MODEL].reshape(NUM_LAYERS, NHEAD, 1, DH)
    bv = ipb[:, 2 * D_MODEL:].reshape(NUM_LAYERS, NHEAD, 1, DH)
    qkv_b = jnp.concatenate([bq, bk, bv], axis=2).reshape(NUM_LAYERS * NHEAD, 3, DH)

    woT = params["out_proj_w"].transpose(0, 2, 1)                # (L, D, D)
    vec_d = jnp.concatenate(
        [params["out_proj_b"], params["ln1_w"], params["ln1_b"],
         params["lin2_b"], params["ln2_w"], params["ln2_b"]], axis=1)  # (L, 6, D)

    lin1_wT = params["lin1_w"].transpose(0, 2, 1)                # (L, D, FF)
    lin1_b = params["lin1_b"]                                    # (L, 1, FF)
    lin2_wT = params["lin2_w"].transpose(0, 2, 1)                # (L, FF, D)

    out_wT_pad = jnp.zeros((D_MODEL, OUT_PAD), jnp.float32).at[:, :OUT_DIM].set(
        params["out_w"].T)
    out_b_pad = jnp.zeros((1, OUT_PAD), jnp.float32).at[:, :OUT_DIM].set(
        params["out_b"])

    return [x_flat, emb_wT, emb_bpe, wq_h, wk_h, wv_h, qkv_b, woT, vec_d,
            lin1_wT, lin1_b, lin2_wT, out_wT_pad, out_b_pad]


def transformer_forward(x, pe, params):
    operands = prepare_operands(x, pe, params)
    kernel = functools.partial(transformer_kernel,
                               num_layers=NUM_LAYERS, nhead=NHEAD,
                               d_model=D_MODEL, seq=S, batch=B)
    out_pad = pl.pallas_call(
        kernel,
        out_shape=jax.ShapeDtypeStruct((BS, OUT_PAD), jnp.float32),
        grid_spec=pltpu.PrefetchScalarGridSpec(
            num_scalar_prefetch=0,
            grid=(1,),                               # whole batch in one invocation
            in_specs=[_full_spec(a.shape) for a in operands],
            out_specs=_full_spec((BS, OUT_PAD)),
            scratch_shapes=[pltpu.VMEM((BS, D_MODEL), jnp.float32)],
        ),
        compiler_params=pltpu.CompilerParams(dimension_semantics=("arbitrary",)),
    )(*operands)
    # slice off the lane padding, restore (B, S, OUT_DIM)
    return out_pad[:, :OUT_DIM].reshape(B, S, OUT_DIM)


# ------------------------- params / positional enc ----------------------------
def positional_encoding(seq_len, d_model):
    position = jnp.arange(seq_len, dtype=jnp.float32)[:, None]
    div_term = jnp.exp(jnp.arange(0, d_model, 2, dtype=jnp.float32)
                       * (-math.log(10000.0) / d_model))
    pe = jnp.zeros((seq_len, d_model), jnp.float32)
    pe = pe.at[:, 0::2].set(jnp.sin(position * div_term))
    pe = pe.at[:, 1::2].set(jnp.cos(position * div_term))
    return pe


def init_params(key):
    ks = jax.random.split(key, 16)
    scale = 0.05
    p = {
        "emb_w": scale * jax.random.normal(ks[0], (D_MODEL, IN_DIM), jnp.float32),
        "emb_b": scale * jax.random.normal(ks[1], (1, D_MODEL), jnp.float32),
        "in_proj_w": scale * jax.random.normal(ks[2], (NUM_LAYERS, 3 * D_MODEL, D_MODEL), jnp.float32),
        "in_proj_b": scale * jax.random.normal(ks[3], (NUM_LAYERS, 1, 3 * D_MODEL), jnp.float32),
        "out_proj_w": scale * jax.random.normal(ks[4], (NUM_LAYERS, D_MODEL, D_MODEL), jnp.float32),
        "out_proj_b": scale * jax.random.normal(ks[5], (NUM_LAYERS, 1, D_MODEL), jnp.float32),
        "ln1_w": jnp.ones((NUM_LAYERS, 1, D_MODEL), jnp.float32),
        "ln1_b": jnp.zeros((NUM_LAYERS, 1, D_MODEL), jnp.float32),
        "lin1_w": scale * jax.random.normal(ks[6], (NUM_LAYERS, DIM_FF, D_MODEL), jnp.float32),
        "lin1_b": scale * jax.random.normal(ks[7], (NUM_LAYERS, 1, DIM_FF), jnp.float32),
        "lin2_w": scale * jax.random.normal(ks[8], (NUM_LAYERS, D_MODEL, DIM_FF), jnp.float32),
        "lin2_b": scale * jax.random.normal(ks[9], (NUM_LAYERS, 1, D_MODEL), jnp.float32),
        "ln2_w": jnp.ones((NUM_LAYERS, 1, D_MODEL), jnp.float32),
        "ln2_b": jnp.zeros((NUM_LAYERS, 1, D_MODEL), jnp.float32),
        "out_w": scale * jax.random.normal(ks[10], (OUT_DIM, D_MODEL), jnp.float32),
        "out_b": scale * jax.random.normal(ks[11], (1, OUT_DIM), jnp.float32),
    }
    return p


# ---------------------------- pure-JAX reference ------------------------------
def reference_forward(x, pe, params):
    dh = D_MODEL // NHEAD
    scale = 1.0 / math.sqrt(dh)

    def one(xb):
        h = xb @ params["emb_w"].T + params["emb_b"][0]
        h = h + pe
        for l in range(NUM_LAYERS):
            qkv = h @ params["in_proj_w"][l].T + params["in_proj_b"][l, 0]
            q, k, v = qkv[:, :D_MODEL], qkv[:, D_MODEL:2 * D_MODEL], qkv[:, 2 * D_MODEL:]
            wo = params["out_proj_w"][l]
            sa = jnp.zeros_like(h)
            for hd in range(NHEAD):
                s0, s1 = hd * dh, (hd + 1) * dh
                sc = (q[:, s0:s1] * scale) @ k[:, s0:s1].T
                p = jax.nn.softmax(sc, axis=-1)
                sa = sa + (p @ v[:, s0:s1]) @ wo[:, s0:s1].T
            sa = sa + params["out_proj_b"][l, 0]
            h = _layernorm(h + sa, params["ln1_w"][l, 0], params["ln1_b"][l, 0])
            f = _gelu(h @ params["lin1_w"][l].T + params["lin1_b"][l, 0])
            f = f @ params["lin2_w"][l].T + params["lin2_b"][l, 0]
            h = _layernorm(h + f, params["ln2_w"][l, 0], params["ln2_b"][l, 0])
        return h @ params["out_w"].T + params["out_b"][0]

    return jax.vmap(one)(x)


# ----------------------------------- main --------------------------------------
if __name__ == "__main__":
    key = jax.random.PRNGKey(0)
    kx, kp = jax.random.split(key)
    x = jax.random.normal(kx, (B, S, IN_DIM), jnp.float32)
    params = init_params(kp)
    pe = positional_encoding(S, D_MODEL)

    out = transformer_forward(x, pe, params)
    out = jax.block_until_ready(out)

    ref = reference_forward(x, pe, params)
    assert out.shape == (B, S, OUT_DIM), out.shape
    # tolerance covers the EUP approx-reciprocal used in the softmax normalization
    assert jnp.allclose(out, ref, atol=2e-3, rtol=2e-3), float(jnp.max(jnp.abs(out - ref)))

    print("KERNEL_OK")
</pallas_src>

<mosaic_0001>
module attributes {stable_mosaic.version = 11 : i64} {
  func.func @transformer_kernel(%arg0: i32, %arg1: memref<16x16xf32, #tpu.memory_space<vmem>>, %arg2: memref<16x32xf32, #tpu.memory_space<vmem>>, %arg3: memref<16x32xf32, #tpu.memory_space<vmem>>, %arg4: memref<8x32x8xf32, #tpu.memory_space<vmem>>, %arg5: memref<8x32x8xf32, #tpu.memory_space<vmem>>, %arg6: memref<8x32x8xf32, #tpu.memory_space<vmem>>, %arg7: memref<8x3x8xf32, #tpu.memory_space<vmem>>, %arg8: memref<2x32x32xf32, #tpu.memory_space<vmem>>, %arg9: memref<2x6x32xf32, #tpu.memory_space<vmem>>, %arg10: memref<2x32x64xf32, #tpu.memory_space<vmem>>, %arg11: memref<2x1x64xf32, #tpu.memory_space<vmem>>, %arg12: memref<2x64x32xf32, #tpu.memory_space<vmem>>, %arg13: memref<32x128xf32, #tpu.memory_space<vmem>>, %arg14: memref<1x128xf32, #tpu.memory_space<vmem>>, %arg15: memref<16x128xf32, #tpu.memory_space<vmem>>, %arg16: memref<16x32xf32, #tpu.memory_space<vmem>>) attributes {dimension_semantics = [#tpu.dimension_semantics<arbitrary>], iteration_bounds = array<i64: 1>, scalar_prefetch = 0 : i64, scratch_operands = 1 : i64, tpu.core_type = #tpu.core_type<tc>, window_params = [{pipeline_mode = #tpu.pipeline_mode<synchronous>, transform_indices = @transform_0, window_bounds = array<i64: 16, 16>}, {pipeline_mode = #tpu.pipeline_mode<synchronous>, transform_indices = @transform_1, window_bounds = array<i64: 16, 32>}, {pipeline_mode = #tpu.pipeline_mode<synchronous>, transform_indices = @transform_2, window_bounds = array<i64: 16, 32>}, {pipeline_mode = #tpu.pipeline_mode<synchronous>, transform_indices = @transform_3, window_bounds = array<i64: 8, 32, 8>}, {pipeline_mode = #tpu.pipeline_mode<synchronous>, transform_indices = @transform_4, window_bounds = array<i64: 8, 32, 8>}, {pipeline_mode = #tpu.pipeline_mode<synchronous>, transform_indices = @transform_5, window_bounds = array<i64: 8, 32, 8>}, {pipeline_mode = #tpu.pipeline_mode<synchronous>, transform_indices = @transform_6, window_bounds = array<i64: 8, 3, 8>}, {pipeline_mode = #tpu.pipeline_mode<synchronous>, transform_indices = @transform_7, window_bounds = array<i64: 2, 32, 32>}, {pipeline_mode = #tpu.pipeline_mode<synchronous>, transform_indices = @transform_8, window_bounds = array<i64: 2, 6, 32>}, {pipeline_mode = #tpu.pipeline_mode<synchronous>, transform_indices = @transform_9, window_bounds = array<i64: 2, 32, 64>}, {pipeline_mode = #tpu.pipeline_mode<synchronous>, transform_indices = @transform_10, window_bounds = array<i64: 2, 1, 64>}, {pipeline_mode = #tpu.pipeline_mode<synchronous>, transform_indices = @transform_11, window_bounds = array<i64: 2, 64, 32>}, {pipeline_mode = #tpu.pipeline_mode<synchronous>, transform_indices = @transform_12, window_bounds = array<i64: 32, 128>}, {pipeline_mode = #tpu.pipeline_mode<synchronous>, transform_indices = @transform_13, window_bounds = array<i64: 1, 128>}, {pipeline_mode = #tpu.pipeline_mode<synchronous>, transform_indices = @transform_14, window_bounds = array<i64: 16, 128>}]} {
    %c0 = arith.constant 0 : index
    %c0_0 = arith.constant 0 : index
    %0 = vector.load %arg1[%c0, %c0_0] : memref<16x16xf32, #tpu.memory_space<vmem>>, vector<16x16xf32>
    %c0_1 = arith.constant 0 : index
    %c0_2 = arith.constant 0 : index
    %1 = vector.load %arg2[%c0_1, %c0_2] : memref<16x32xf32, #tpu.memory_space<vmem>>, vector<16x32xf32>
    %cst = arith.constant dense<0.000000e+00> : vector<16x32xf32>
    %2 = tpu.matmul %0, %1, %cst {dimension_numbers = #tpu.dot_dimension_numbers<[1], [0], [0], [1], [0, 0, 1, 1], [], []>} : vector<16x16xf32>, vector<16x32xf32>, vector<16x32xf32> -> vector<16x32xf32>
    %c0_3 = arith.constant 0 : index
    %c0_4 = arith.constant 0 : index
    %3 = vector.load %arg3[%c0_3, %c0_4] : memref<16x32xf32, #tpu.memory_space<vmem>>, vector<16x32xf32>
    %4 = arith.addf %2, %3 : vector<16x32xf32>
    %c0_5 = arith.constant 0 : index
    %c0_6 = arith.constant 0 : index
    %c0_7 = arith.constant 0 : index
    %5 = vector.load %arg9[%c0_5, %c0_6, %c0_7] : memref<2x6x32xf32, #tpu.memory_space<vmem>>, vector<1x6x32xf32>
    %6 = vector.shape_cast %5 : vector<1x6x32xf32> to vector<6x32xf32>
    %7 = vector.extract_strided_slice %6 {offsets = [0, 0], sizes = [1, 32], strides = [1, 1]} : vector<6x32xf32> to vector<1x32xf32>
    %8 = vector.extract_strided_slice %6 {offsets = [1, 0], sizes = [1, 32], strides = [1, 1]} : vector<6x32xf32> to vector<1x32xf32>
    %9 = vector.extract_strided_slice %6 {offsets = [2, 0], sizes = [1, 32], strides = [1, 1]} : vector<6x32xf32> to vector<1x32xf32>
    %10 = vector.extract_strided_slice %6 {offsets = [3, 0], sizes = [1, 32], strides = [1, 1]} : vector<6x32xf32> to vector<1x32xf32>
    %11 = vector.extract_strided_slice %6 {offsets = [4, 0], sizes = [1, 32], strides = [1, 1]} : vector<6x32xf32> to vector<1x32xf32>
    %12 = vector.extract_strided_slice %6 {offsets = [5, 0], sizes = [1, 32], strides = [1, 1]} : vector<6x32xf32> to vector<1x32xf32>
    %13 = vector.extract_strided_slice %4 {offsets = [0, 0], sizes = [8, 32], strides = [1, 1]} : vector<16x32xf32> to vector<8x32xf32>
    %c0_8 = arith.constant 0 : index
    %c0_9 = arith.constant 0 : index
    %c0_10 = arith.constant 0 : index
    %14 = vector.load %arg7[%c0_8, %c0_9, %c0_10] : memref<8x3x8xf32, #tpu.memory_space<vmem>>, vector<1x3x8xf32>
    %15 = vector.shape_cast %14 : vector<1x3x8xf32> to vector<3x8xf32>
    %c0_11 = arith.constant 0 : index
    %c0_12 = arith.constant 0 : index
    %c0_13 = arith.constant 0 : index
    %16 = vector.load %arg4[%c0_11, %c0_12, %c0_13] : memref<8x32x8xf32, #tpu.memory_space<vmem>>, vector<1x32x8xf32>
    %17 = vector.shape_cast %16 : vector<1x32x8xf32> to vector<32x8xf32>
    %cst_14 = arith.constant dense<0.000000e+00> : vector<8x8xf32>
    %18 = tpu.matmul %13, %17, %cst_14 {dimension_numbers = #tpu.dot_dimension_numbers<[1], [0], [0], [1], [0, 0, 1, 1], [], []>} : vector<8x32xf32>, vector<32x8xf32>, vector<8x8xf32> -> vector<8x8xf32>
    %19 = vector.extract_strided_slice %15 {offsets = [0, 0], sizes = [1, 8], strides = [1, 1]} : vector<3x8xf32> to vector<1x8xf32>
    %20 = vector.broadcast %19 : vector<1x8xf32> to vector<8x8xf32>
    %21 = arith.addf %18, %20 : vector<8x8xf32>
    %c0_15 = arith.constant 0 : index
    %c0_16 = arith.constant 0 : index
    %c0_17 = arith.constant 0 : index
    %22 = vector.load %arg5[%c0_15, %c0_16, %c0_17] : memref<8x32x8xf32, #tpu.memory_space<vmem>>, vector<1x32x8xf32>
    %23 = vector.shape_cast %22 : vector<1x32x8xf32> to vector<32x8xf32>
    %cst_18 = arith.constant dense<0.000000e+00> : vector<8x8xf32>
    %24 = tpu.matmul %13, %23, %cst_18 {dimension_numbers = #tpu.dot_dimension_numbers<[1], [0], [0], [1], [0, 0, 1, 1], [], []>} : vector<8x32xf32>, vector<32x8xf32>, vector<8x8xf32> -> vector<8x8xf32>
    %25 = vector.extract_strided_slice %15 {offsets = [1, 0], sizes = [1, 8], strides = [1, 1]} : vector<3x8xf32> to vector<1x8xf32>
    %26 = vector.broadcast %25 : vector<1x8xf32> to vector<8x8xf32>
    %27 = arith.addf %24, %26 : vector<8x8xf32>
    %c0_19 = arith.constant 0 : index
    %c0_20 = arith.constant 0 : index
    %c0_21 = arith.constant 0 : index
    %28 = vector.load %arg6[%c0_19, %c0_20, %c0_21] : memref<8x32x8xf32, #tpu.memory_space<vmem>>, vector<1x32x8xf32>
    %29 = vector.shape_cast %28 : vector<1x32x8xf32> to vector<32x8xf32>
    %cst_22 = arith.constant dense<0.000000e+00> : vector<8x8xf32>
    %30 = tpu.matmul %13, %29, %cst_22 {dimension_numbers = #tpu.dot_dimension_numbers<[1], [0], [0], [1], [0, 0, 1, 1], [], []>} : vector<8x32xf32>, vector<32x8xf32>, vector<8x8xf32> -> vector<8x8xf32>
    %31 = vector.extract_strided_slice %15 {offsets = [2, 0], sizes = [1, 8], strides = [1, 1]} : vector<3x8xf32> to vector<1x8xf32>
    %32 = vector.broadcast %31 : vector<1x8xf32> to vector<8x8xf32>
    %33 = arith.addf %30, %32 : vector<8x8xf32>
    %cst_23 = arith.constant dense<0.000000e+00> : vector<8x8xf32>
    %34 = tpu.matmul %21, %27, %cst_23 {dimension_numbers = #tpu.dot_dimension_numbers<[1], [1], [0], [0], [0, 0, 1, 0], [], []>} : vector<8x8xf32>, vector<8x8xf32>, vector<8x8xf32> -> vector<8x8xf32>
    %cst_24 = arith.constant dense<0xFF800000> : vector<8xf32>
    %35 = vector.multi_reduction <maximumf>, %34, %cst_24 [1] : vector<8x8xf32> to vector<8xf32>
    %36 = vector.shape_cast %35 : vector<8xf32> to vector<8x1xf32>
    %37 = vector.broadcast %36 : vector<8x1xf32> to vector<8x8xf32>
    %38 = arith.subf %34, %37 : vector<8x8xf32>
    %39 = math.exp %38 : vector<8x8xf32>
    %cst_25 = arith.constant dense<0.000000e+00> : vector<8xf32>
    %40 = vector.multi_reduction <add>, %39, %cst_25 [1] : vector<8x8xf32> to vector<8xf32>
    %41 = vector.shape_cast %40 : vector<8xf32> to vector<8x1xf32>
    %42 = tpu.reciprocal %41 {approx = true} : vector<8x1xf32> -> vector<8x1xf32>
    %43 = vector.broadcast %42 : vector<8x1xf32> to vector<8x8xf32>
    %44 = arith.mulf %39, %43 : vector<8x8xf32>
    %cst_26 = arith.constant dense<0.000000e+00> : vector<8x8xf32>
    %45 = tpu.matmul %44, %33, %cst_26 {dimension_numbers = #tpu.dot_dimension_numbers<[1], [0], [0], [1], [0, 0, 1, 1], [], []>} : vector<8x8xf32>, vector<8x8xf32>, vector<8x8xf32> -> vector<8x8xf32>
    %c0_27 = arith.constant 0 : index
    %c0_28 = arith.constant 0 : index
    %46 = vector.load %arg16[%c0_27, %c0_28] : memref<16x32xf32, #tpu.memory_space<vmem>>, vector<8x8xf32>
    tpu.vector_store %arg16[%c0_27, %c0_28], %45 {strides = array<i32>} : memref<16x32xf32, #tpu.memory_space<vmem>>, vector<8x8xf32>,
    %c1 = arith.constant 1 : index
    %c0_29 = arith.constant 0 : index
    %c0_30 = arith.constant 0 : index
    %47 = vector.load %arg7[%c1, %c0_29, %c0_30] : memref<8x3x8xf32, #tpu.memory_space<vmem>>, vector<1x3x8xf32>
    %48 = vector.shape_cast %47 : vector<1x3x8xf32> to vector<3x8xf32>
    %c1_31 = arith.constant 1 : index
    %c0_32 = arith.constant 0 : index
    %c0_33 = arith.constant 0 : index
    %49 = vector.load %arg4[%c1_31, %c0_32, %c0_33] : memref<8x32x8xf32, #tpu.memory_space<vmem>>, vector<1x32x8xf32>
    %50 = vector.shape_cast %49 : vector<1x32x8xf32> to vector<32x8xf32>
    %cst_34 = arith.constant dense<0.000000e+00> : vector<8x8xf32>
    %51 = tpu.matmul %13, %50, %cst_34 {dimension_numbers = #tpu.dot_dimension_numbers<[1], [0], [0], [1], [0, 0, 1, 1], [], []>} : vector<8x32xf32>, vector<32x8xf32>, vector<8x8xf32> -> vector<8x8xf32>
    %52 = vector.extract_strided_slice %48 {offsets = [0, 0], sizes = [1, 8], strides = [1, 1]} : vector<3x8xf32> to vector<1x8xf32>
    %53 = vector.broadcast %52 : vector<1x8xf32> to vector<8x8xf32>
    %54 = arith.addf %51, %53 : vector<8x8xf32>
    %c1_35 = arith.constant 1 : index
    %c0_36 = arith.constant 0 : index
    %c0_37 = arith.constant 0 : index
    %55 = vector.load %arg5[%c1_35, %c0_36, %c0_37] : memref<8x32x8xf32, #tpu.memory_space<vmem>>, vector<1x32x8xf32>
    %56 = vector.shape_cast %55 : vector<1x32x8xf32> to vector<32x8xf32>
    %cst_38 = arith.constant dense<0.000000e+00> : vector<8x8xf32>
    %57 = tpu.matmul %13, %56, %cst_38 {dimension_numbers = #tpu.dot_dimension_numbers<[1], [0], [0], [1], [0, 0, 1, 1], [], []>} : vector<8x32xf32>, vector<32x8xf32>, vector<8x8xf32> -> vector<8x8xf32>
    %58 = vector.extract_strided_slice %48 {offsets = [1, 0], sizes = [1, 8], strides = [1, 1]} : vector<3x8xf32> to vector<1x8xf32>
    %59 = vector.broadcast %58 : vector<1x8xf32> to vector<8x8xf32>
    %60 = arith.addf %57, %59 : vector<8x8xf32>
    %c1_39 = arith.constant 1 : index
    %c0_40 = arith.constant 0 : index
    %c0_41 = arith.constant 0 : index
    %61 = vector.load %arg6[%c1_39, %c0_40, %c0_41] : memref<8x32x8xf32, #tpu.memory_space<vmem>>, vector<1x32x8xf32>
    %62 = vector.shape_cast %61 : vector<1x32x8xf32> to vector<32x8xf32>
    %cst_42 = arith.constant dense<0.000000e+00> : vector<8x8xf32>
    %63 = tpu.matmul %13, %62, %cst_42 {dimension_numbers = #tpu.dot_dimension_numbers<[1], [0], [0], [1], [0, 0, 1, 1], [], []>} : vector<8x32xf32>, vector<32x8xf32>, vector<8x8xf32> -> vector<8x8xf32>
    %64 = vector.extract_strided_slice %48 {offsets = [2, 0], sizes = [1, 8], strides = [1, 1]} : vector<3x8xf32> to vector<1x8xf32>
    %65 = vector.broadcast %64 : vector<1x8xf32> to vector<8x8xf32>
    %66 = arith.addf %63, %65 : vector<8x8xf32>
    %cst_43 = arith.constant dense<0.000000e+00> : vector<8x8xf32>
    %67 = tpu.matmul %54, %60, %cst_43 {dimension_numbers = #tpu.dot_dimension_numbers<[1], [1], [0], [0], [0, 0, 1, 0], [], []>} : vector<8x8xf32>, vector<8x8xf32>, vector<8x8xf32> -> vector<8x8xf32>
    %cst_44 = arith.constant dense<0xFF800000> : vector<8xf32>
    %68 = vector.multi_reduction <maximumf>, %67, %cst_44 [1] : vector<8x8xf32> to vector<8xf32>
    %69 = vector.shape_cast %68 : vector<8xf32> to vector<8x1xf32>
    %70 = vector.broadcast %69 : vector<8x1xf32> to vector<8x8xf32>
    %71 = arith.subf %67, %70 : vector<8x8xf32>
    %72 = math.exp %71 : vector<8x8xf32>
    %cst_45 = arith.constant dense<0.000000e+00> : vector<8xf32>
    %73 = vector.multi_reduction <add>, %72, %cst_45 [1] : vector<8x8xf32> to vector<8xf32>
    %74 = vector.shape_cast %73 : vector<8xf32> to vector<8x1xf32>
    %75 = tpu.reciprocal %74 {approx = true} : vector<8x1xf32> -> vector<8x1xf32>
    %76 = vector.broadcast %75 : vector<8x1xf32> to vector<8x8xf32>
    %77 = arith.mulf %72, %76 : vector<8x8xf32>
    %cst_46 = arith.constant dense<0.000000e+00> : vector<8x8xf32>
    %78 = tpu.matmul %77, %66, %cst_46 {dimension_numbers = #tpu.dot_dimension_numbers<[1], [0], [0], [1], [0, 0, 1, 1], [], []>} : vector<8x8xf32>, vector<8x8xf32>, vector<8x8xf32> -> vector<8x8xf32>
    %c0_47 = arith.constant 0 : index
    %c8 = arith.constant 8 : index
    %79 = vector.load %arg16[%c0_47, %c8] : memref<16x32xf32, #tpu.memory_space<vmem>>, vector<8x8xf32>
    tpu.vector_store %arg16[%c0_47, %c8], %78 {strides = array<i32>} : memref<16x32xf32, #tpu.memory_space<vmem>>, vector<8x8xf32>,
    %c2 = arith.constant 2 : index
    %c0_48 = arith.constant 0 : index
    %c0_49 = arith.constant 0 : index
    %80 = vector.load %arg7[%c2, %c0_48, %c0_49] : memref<8x3x8xf32, #tpu.memory_space<vmem>>, vector<1x3x8xf32>
    %81 = vector.shape_cast %80 : vector<1x3x8xf32> to vector<3x8xf32>
    %c2_50 = arith.constant 2 : index
    %c0_51 = arith.constant 0 : index
    %c0_52 = arith.constant 0 : index
    %82 = vector.load %arg4[%c2_50, %c0_51, %c0_52] : memref<8x32x8xf32, #tpu.memory_space<vmem>>, vector<1x32x8xf32>
    %83 = vector.shape_cast %82 : vector<1x32x8xf32> to vector<32x8xf32>
    %cst_53 = arith.constant dense<0.000000e+00> : vector<8x8xf32>
    %84 = tpu.matmul %13, %83, %cst_53 {dimension_numbers = #tpu.dot_dimension_numbers<[1], [0], [0], [1], [0, 0, 1, 1], [], []>} : vector<8x32xf32>, vector<32x8xf32>, vector<8x8xf32> -> vector<8x8xf32>
    %85 = vector.extract_strided_slice %81 {offsets = [0, 0], sizes = [1, 8], strides = [1, 1]} : vector<3x8xf32> to vector<1x8xf32>
    %86 = vector.broadcast %85 : vector<1x8xf32> to vector<8x8xf32>
    %87 = arith.addf %84, %86 : vector<8x8xf32>
    %c2_54 = arith.constant 2 : index
    %c0_55 = arith.constant 0 : index
    %c0_56 = arith.constant 0 : index
    %88 = vector.load %arg5[%c2_54, %c0_55, %c0_56] : memref<8x32x8xf32, #tpu.memory_space<vmem>>, vector<1x32x8xf32>
    %89 = vector.shape_cast %88 : vector<1x32x8xf32> to vector<32x8xf32>
    %cst_57 = arith.constant dense<0.000000e+00> : vector<8x8xf32>
    %90 = tpu.matmul %13, %89, %cst_57 {dimension_numbers = #tpu.dot_dimension_numbers<[1], [0], [0], [1], [0, 0, 1, 1], [], []>} : vector<8x32xf32>, vector<32x8xf32>, vector<8x8xf32> -> vector<8x8xf32>
    %91 = vector.extract_strided_slice %81 {offsets = [1, 0], sizes = [1, 8], strides = [1, 1]} : vector<3x8xf32> to vector<1x8xf32>
    %92 = vector.broadcast %91 : vector<1x8xf32> to vector<8x8xf32>
    %93 = arith.addf %90, %92 : vector<8x8xf32>
    %c2_58 = arith.constant 2 : index
    %c0_59 = arith.constant 0 : index
    %c0_60 = arith.constant 0 : index
    %94 = vector.load %arg6[%c2_58, %c0_59, %c0_60] : memref<8x32x8xf32, #tpu.memory_space<vmem>>, vector<1x32x8xf32>
    %95 = vector.shape_cast %94 : vector<1x32x8xf32> to vector<32x8xf32>
    %cst_61 = arith.constant dense<0.000000e+00> : vector<8x8xf32>
    %96 = tpu.matmul %13, %95, %cst_61 {dimension_numbers = #tpu.dot_dimension_numbers<[1], [0], [0], [1], [0, 0, 1, 1], [], []>} : vector<8x32xf32>, vector<32x8xf32>, vector<8x8xf32> -> vector<8x8xf32>
    %97 = vector.extract_strided_slice %81 {offsets = [2, 0], sizes = [1, 8], strides = [1, 1]} : vector<3x8xf32> to vector<1x8xf32>
    %98 = vector.broadcast %97 : vector<1x8xf32> to vector<8x8xf32>
    %99 = arith.addf %96, %98 : vector<8x8xf32>
    %cst_62 = arith.constant dense<0.000000e+00> : vector<8x8xf32>
    %100 = tpu.matmul %87, %93, %cst_62 {dimension_numbers = #tpu.dot_dimension_numbers<[1], [1], [0], [0], [0, 0, 1, 0], [], []>} : vector<8x8xf32>, vector<8x8xf32>, vector<8x8xf32> -> vector<8x8xf32>
    %cst_63 = arith.constant dense<0xFF800000> : vector<8xf32>
    %101 = vector.multi_reduction <maximumf>, %100, %cst_63 [1] : vector<8x8xf32> to vector<8xf32>
    %102 = vector.shape_cast %101 : vector<8xf32> to vector<8x1xf32>
    %103 = vector.broadcast %102 : vector<8x1xf32> to vector<8x8xf32>
    %104 = arith.subf %100, %103 : vector<8x8xf32>
    %105 = math.exp %104 : vector<8x8xf32>
    %cst_64 = arith.constant dense<0.000000e+00> : vector<8xf32>
    %106 = vector.multi_reduction <add>, %105, %cst_64 [1] : vector<8x8xf32> to vector<8xf32>
    %107 = vector.shape_cast %106 : vector<8xf32> to vector<8x1xf32>
    %108 = tpu.reciprocal %107 {approx = true} : vector<8x1xf32> -> vector<8x1xf32>
    %109 = vector.broadcast %108 : vector<8x1xf32> to vector<8x8xf32>
    %110 = arith.mulf %105, %109 : vector<8x8xf32>
    %cst_65 = arith.constant dense<0.000000e+00> : vector<8x8xf32>
    %111 = tpu.matmul %110, %99, %cst_65 {dimension_numbers = #tpu.dot_dimension_numbers<[1], [0], [0], [1], [0, 0, 1, 1], [], []>} : vector<8x8xf32>, vector<8x8xf32>, vector<8x8xf32> -> vector<8x8xf32>
    %c0_66 = arith.constant 0 : index
    %c16 = arith.constant 16 : index
    %112 = vector.load %arg16[%c0_66, %c16] : memref<16x32xf32, #tpu.memory_space<vmem>>, vector<8x8xf32>
    tpu.vector_store %arg16[%c0_66, %c16], %111 {strides = array<i32>} : memref<16x32xf32, #tpu.memory_space<vmem>>, vector<8x8xf32>,
    %c3 = arith.constant 3 : index
    %c0_67 = arith.constant 0 : index
    %c0_68 = arith.constant 0 : index
    %113 = vector.load %arg7[%c3, %c0_67, %c0_68] : memref<8x3x8xf32, #tpu.memory_space<vmem>>, vector<1x3x8xf32>
    %114 = vector.shape_cast %113 : vector<1x3x8xf32> to vector<3x8xf32>
    %c3_69 = arith.constant 3 : index
    %c0_70 = arith.constant 0 : index
    %c0_71 = arith.constant 0 : index
    %115 = vector.load %arg4[%c3_69, %c0_70, %c0_71] : memref<8x32x8xf32, #tpu.memory_space<vmem>>, vector<1x32x8xf32>
    %116 = vector.shape_cast %115 : vector<1x32x8xf32> to vector<32x8xf32>
    %cst_72 = arith.constant dense<0.000000e+00> : vector<8x8xf32>
    %117 = tpu.matmul %13, %116, %cst_72 {dimension_numbers = #tpu.dot_dimension_numbers<[1], [0], [0], [1], [0, 0, 1, 1], [], []>} : vector<8x32xf32>, vector<32x8xf32>, vector<8x8xf32> -> vector<8x8xf32>
    %118 = vector.extract_strided_slice %114 {offsets = [0, 0], sizes = [1, 8], strides = [1, 1]} : vector<3x8xf32> to vector<1x8xf32>
    %119 = vector.broadcast %118 : vector<1x8xf32> to vector<8x8xf32>
    %120 = arith.addf %117, %119 : vector<8x8xf32>
    %c3_73 = arith.constant 3 : index
    %c0_74 = arith.constant 0 : index
    %c0_75 = arith.constant 0 : index
    %121 = vector.load %arg5[%c3_73, %c0_74, %c0_75] : memref<8x32x8xf32, #tpu.memory_space<vmem>>, vector<1x32x8xf32>
    %122 = vector.shape_cast %121 : vector<1x32x8xf32> to vector<32x8xf32>
    %cst_76 = arith.constant dense<0.000000e+00> : vector<8x8xf32>
    %123 = tpu.matmul %13, %122, %cst_76 {dimension_numbers = #tpu.dot_dimension_numbers<[1], [0], [0], [1], [0, 0, 1, 1], [], []>} : vector<8x32xf32>, vector<32x8xf32>, vector<8x8xf32> -> vector<8x8xf32>
    %124 = vector.extract_strided_slice %114 {offsets = [1, 0], sizes = [1, 8], strides = [1, 1]} : vector<3x8xf32> to vector<1x8xf32>
    %125 = vector.broadcast %124 : vector<1x8xf32> to vector<8x8xf32>
    %126 = arith.addf %123, %125 : vector<8x8xf32>
    %c3_77 = arith.constant 3 : index
    %c0_78 = arith.constant 0 : index
    %c0_79 = arith.constant 0 : index
    %127 = vector.load %arg6[%c3_77, %c0_78, %c0_79] : memref<8x32x8xf32, #tpu.memory_space<vmem>>, vector<1x32x8xf32>
    %128 = vector.shape_cast %127 : vector<1x32x8xf32> to vector<32x8xf32>
    %cst_80 = arith.constant dense<0.000000e+00> : vector<8x8xf32>
    %129 = tpu.matmul %13, %128, %cst_80 {dimension_numbers = #tpu.dot_dimension_numbers<[1], [0], [0], [1], [0, 0, 1, 1], [], []>} : vector<8x32xf32>, vector<32x8xf32>, vector<8x8xf32> -> vector<8x8xf32>
    %130 = vector.extract_strided_slice %114 {offsets = [2, 0], sizes = [1, 8], strides = [1, 1]} : vector<3x8xf32> to vector<1x8xf32>
    %131 = vector.broadcast %130 : vector<1x8xf32> to vector<8x8xf32>
    %132 = arith.addf %129, %131 : vector<8x8xf32>
    %cst_81 = arith.constant dense<0.000000e+00> : vector<8x8xf32>
    %133 = tpu.matmul %120, %126, %cst_81 {dimension_numbers = #tpu.dot_dimension_numbers<[1], [1], [0], [0], [0, 0, 1, 0], [], []>} : vector<8x8xf32>, vector<8x8xf32>, vector<8x8xf32> -> vector<8x8xf32>
    %cst_82 = arith.constant dense<0xFF800000> : vector<8xf32>
    %134 = vector.multi_reduction <maximumf>, %133, %cst_82 [1] : vector<8x8xf32> to vector<8xf32>
    %135 = vector.shape_cast %134 : vector<8xf32> to vector<8x1xf32>
    %136 = vector.broadcast %135 : vector<8x1xf32> to vector<8x8xf32>
    %137 = arith.subf %133, %136 : vector<8x8xf32>
    %138 = math.exp %137 : vector<8x8xf32>
    %cst_83 = arith.constant dense<0.000000e+00> : vector<8xf32>
    %139 = vector.multi_reduction <add>, %138, %cst_83 [1] : vector<8x8xf32> to vector<8xf32>
    %140 = vector.shape_cast %139 : vector<8xf32> to vector<8x1xf32>
    %141 = tpu.reciprocal %140 {approx = true} : vector<8x1xf32> -> vector<8x1xf32>
    %142 = vector.broadcast %141 : vector<8x1xf32> to vector<8x8xf32>
    %143 = arith.mulf %138, %142 : vector<8x8xf32>
    %cst_84 = arith.constant dense<0.000000e+00> : vector<8x8xf32>
    %144 = tpu.matmul %143, %132, %cst_84 {dimension_numbers = #tpu.dot_dimension_numbers<[1], [0], [0], [1], [0, 0, 1, 1], [], []>} : vector<8x8xf32>, vector<8x8xf32>, vector<8x8xf32> -> vector<8x8xf32>
    %c0_85 = arith.constant 0 : index
    %c24 = arith.constant 24 : index
    %145 = vector.load %arg16[%c0_85, %c24] : memref<16x32xf32, #tpu.memory_space<vmem>>, vector<8x8xf32>
    tpu.vector_store %arg16[%c0_85, %c24], %144 {strides = array<i32>} : memref<16x32xf32, #tpu.memory_space<vmem>>, vector<8x8xf32>,
    %146 = vector.extract_strided_slice %4 {offsets = [8, 0], sizes = [8, 32], strides = [1, 1]} : vector<16x32xf32> to vector<8x32xf32>
    %c0_86 = arith.constant 0 : index
    %c0_87 = arith.constant 0 : index
    %c0_88 = arith.constant 0 : index
    %147 = vector.load %arg7[%c0_86, %c0_87, %c0_88] : memref<8x3x8xf32, #tpu.memory_space<vmem>>, vector<1x3x8xf32>
    %148 = vector.shape_cast %147 : vector<1x3x8xf32> to vector<3x8xf32>
    %c0_89 = arith.constant 0 : index
    %c0_90 = arith.constant 0 : index
    %c0_91 = arith.constant 0 : index
    %149 = vector.load %arg4[%c0_89, %c0_90, %c0_91] : memref<8x32x8xf32, #tpu.memory_space<vmem>>, vector<1x32x8xf32>
    %150 = vector.shape_cast %149 : vector<1x32x8xf32> to vector<32x8xf32>
    %cst_92 = arith.constant dense<0.000000e+00> : vector<8x8xf32>
    %151 = tpu.matmul %146, %150, %cst_92 {dimension_numbers = #tpu.dot_dimension_numbers<[1], [0], [0], [1], [0, 0, 1, 1], [], []>} : vector<8x32xf32>, vector<32x8xf32>, vector<8x8xf32> -> vector<8x8xf32>
    %152 = vector.extract_strided_slice %148 {offsets = [0, 0], sizes = [1, 8], strides = [1, 1]} : vector<3x8xf32> to vector<1x8xf32>
    %153 = vector.broadcast %152 : vector<1x8xf32> to vector<8x8xf32>
    %154 = arith.addf %151, %153 : vector<8x8xf32>
    %c0_93 = arith.constant 0 : index
    %c0_94 = arith.constant 0 : index
    %c0_95 = arith.constant 0 : index
    %155 = vector.load %arg5[%c0_93, %c0_94, %c0_95] : memref<8x32x8xf32, #tpu.memory_space<vmem>>, vector<1x32x8xf32>
    %156 = vector.shape_cast %155 : vector<1x32x8xf32> to vector<32x8xf32>
    %cst_96 = arith.constant dense<0.000000e+00> : vector<8x8xf32>
    %157 = tpu.matmul %146, %156, %cst_96 {dimension_numbers = #tpu.dot_dimension_numbers<[1], [0], [0], [1], [0, 0, 1, 1], [], []>} : vector<8x32xf32>, vector<32x8xf32>, vector<8x8xf32> -> vector<8x8xf32>
    %158 = vector.extract_strided_slice %148 {offsets = [1, 0], sizes = [1, 8], strides = [1, 1]} : vector<3x8xf32> to vector<1x8xf32>
    %159 = vector.broadcast %158 : vector<1x8xf32> to vector<8x8xf32>
    %160 = arith.addf %157, %159 : vector<8x8xf32>
    %c0_97 = arith.constant 0 : index
    %c0_98 = arith.constant 0 : index
    %c0_99 = arith.constant 0 : index
    %161 = vector.load %arg6[%c0_97, %c0_98, %c0_99] : memref<8x32x8xf32, #tpu.memory_space<vmem>>, vector<1x32x8xf32>
    %162 = vector.shape_cast %161 : vector<1x32x8xf32> to vector<32x8xf32>
    %cst_100 = arith.constant dense<0.000000e+00> : vector<8x8xf32>
    %163 = tpu.matmul %146, %162, %cst_100 {dimension_numbers = #tpu.dot_dimension_numbers<[1], [0], [0], [1], [0, 0, 1, 1], [], []>} : vector<8x32xf32>, vector<32x8xf32>, vector<8x8xf32> -> vector<8x8xf32>
    %164 = vector.extract_strided_slice %148 {offsets = [2, 0], sizes = [1, 8], strides = [1, 1]} : vector<3x8xf32> to vector<1x8xf32>
    %165 = vector.broadcast %164 : vector<1x8xf32> to vector<8x8xf32>
    %166 = arith.addf %163, %165 : vector<8x8xf32>
    %cst_101 = arith.constant dense<0.000000e+00> : vector<8x8xf32>
    %167 = tpu.matmul %154, %160, %cst_101 {dimension_numbers = #tpu.dot_dimension_numbers<[1], [1], [0], [0], [0, 0, 1, 0], [], []>} : vector<8x8xf32>, vector<8x8xf32>, vector<8x8xf32> -> vector<8x8xf32>
    %cst_102 = arith.constant dense<0xFF800000> : vector<8xf32>
    %168 = vector.multi_reduction <maximumf>, %167, %cst_102 [1] : vector<8x8xf32> to vector<8xf32>
    %169 = vector.shape_cast %168 : vector<8xf32> to vector<8x1xf32>
    %170 = vector.broadcast %169 : vector<8x1xf32> to vector<8x8xf32>
    %171 = arith.subf %167, %170 : vector<8x8xf32>
    %172 = math.exp %171 : vector<8x8xf32>
    %cst_103 = arith.constant dense<0.000000e+00> : vector<8xf32>
    %173 = vector.multi_reduction <add>, %172, %cst_103 [1] : vector<8x8xf32> to vector<8xf32>
    %174 = vector.shape_cast %173 : vector<8xf32> to vector<8x1xf32>
    %175 = tpu.reciprocal %174 {approx = true} : vector<8x1xf32> -> vector<8x1xf32>
    %176 = vector.broadcast %175 : vector<8x1xf32> to vector<8x8xf32>
    %177 = arith.mulf %172, %176 : vector<8x8xf32>
    %cst_104 = arith.constant dense<0.000000e+00> : vector<8x8xf32>
    %178 = tpu.matmul %177, %166, %cst_104 {dimension_numbers = #tpu.dot_dimension_numbers<[1], [0], [0], [1], [0, 0, 1, 1], [], []>} : vector<8x8xf32>, vector<8x8xf32>, vector<8x8xf32> -> vector<8x8xf32>
    %c8_105 = arith.constant 8 : index
    %c0_106 = arith.constant 0 : index
    %179 = vector.load %arg16[%c8_105, %c0_106] : memref<16x32xf32, #tpu.memory_space<vmem>>, vector<8x8xf32>
    tpu.vector_store %arg16[%c8_105, %c0_106], %178 {strides = array<i32>} : memref<16x32xf32, #tpu.memory_space<vmem>>, vector<8x8xf32>,
    %c1_107 = arith.constant 1 : index
    %c0_108 = arith.constant 0 : index
    %c0_109 = arith.constant 0 : index
    %180 = vector.load %arg7[%c1_107, %c0_108, %c0_109] : memref<8x3x8xf32, #tpu.memory_space<vmem>>, vector<1x3x8xf32>
    %181 = vector.shape_cast %180 : vector<1x3x8xf32> to vector<3x8xf32>
    %c1_110 = arith.constant 1 : index
    %c0_111 = arith.constant 0 : index
    %c0_112 = arith.constant 0 : index
    %182 = vector.load %arg4[%c1_110, %c0_111, %c0_112] : memref<8x32x8xf32, #tpu.memory_space<vmem>>, vector<1x32x8xf32>
    %183 = vector.shape_cast %182 : vector<1x32x8xf32> to vector<32x8xf32>
    %cst_113 = arith.constant dense<0.000000e+00> : vector<8x8xf32>
    %184 = tpu.matmul %146, %183, %cst_113 {dimension_numbers = #tpu.dot_dimension_numbers<[1], [0], [0], [1], [0, 0, 1, 1], [], []>} : vector<8x32xf32>, vector<32x8xf32>, vector<8x8xf32> -> vector<8x8xf32>
    %185 = vector.extract_strided_slice %181 {offsets = [0, 0], sizes = [1, 8], strides = [1, 1]} : vector<3x8xf32> to vector<1x8xf32>
    %186 = vector.broadcast %185 : vector<1x8xf32> to vector<8x8xf32>
    %187 = arith.addf %184, %186 : vector<8x8xf32>
    %c1_114 = arith.constant 1 : index
    %c0_115 = arith.constant 0 : index
    %c0_116 = arith.constant 0 : index
    %188 = vector.load %arg5[%c1_114, %c0_115, %c0_116] : memref<8x32x8xf32, #tpu.memory_space<vmem>>, vector<1x32x8xf32>
    %189 = vector.shape_cast %188 : vector<1x32x8xf32> to vector<32x8xf32>
    %cst_117 = arith.constant dense<0.000000e+00> : vector<8x8xf32>
    %190 = tpu.matmul %146, %189, %cst_117 {dimension_numbers = #tpu.dot_dimension_numbers<[1], [0], [0], [1], [0, 0, 1, 1], [], []>} : vector<8x32xf32>, vector<32x8xf32>, vector<8x8xf32> -> vector<8x8xf32>
    %191 = vector.extract_strided_slice %181 {offsets = [1, 0], sizes = [1, 8], strides = [1, 1]} : vector<3x8xf32> to vector<1x8xf32>
    %192 = vector.broadcast %191 : vector<1x8xf32> to vector<8x8xf32>
    %193 = arith.addf %190, %192 : vector<8x8xf32>
    %c1_118 = arith.constant 1 : index
    %c0_119 = arith.constant 0 : index
    %c0_120 = arith.constant 0 : index
    %194 = vector.load %arg6[%c1_118, %c0_119, %c0_120] : memref<8x32x8xf32, #tpu.memory_space<vmem>>, vector<1x32x8xf32>
    %195 = vector.shape_cast %194 : vector<1x32x8xf32> to vector<32x8xf32>
    %cst_121 = arith.constant dense<0.000000e+00> : vector<8x8xf32>
    %196 = tpu.matmul %146, %195, %cst_121 {dimension_numbers = #tpu.dot_dimension_numbers<[1], [0], [0], [1], [0, 0, 1, 1], [], []>} : vector<8x32xf32>, vector<32x8xf32>, vector<8x8xf32> -> vector<8x8xf32>
    %197 = vector.extract_strided_slice %181 {offsets = [2, 0], sizes = [1, 8], strides = [1, 1]} : vector<3x8xf32> to vector<1x8xf32>
    %198 = vector.broadcast %197 : vector<1x8xf32> to vector<8x8xf32>
    %199 = arith.addf %196, %198 : vector<8x8xf32>
    %cst_122 = arith.constant dense<0.000000e+00> : vector<8x8xf32>
    %200 = tpu.matmul %187, %193, %cst_122 {dimension_numbers = #tpu.dot_dimension_numbers<[1], [1], [0], [0], [0, 0, 1, 0], [], []>} : vector<8x8xf32>, vector<8x8xf32>, vector<8x8xf32> -> vector<8x8xf32>
    %cst_123 = arith.constant dense<0xFF800000> : vector<8xf32>
    %201 = vector.multi_reduction <maximumf>, %200, %cst_123 [1] : vector<8x8xf32> to vector<8xf32>
    %202 = vector.shape_cast %201 : vector<8xf32> to vector<8x1xf32>
    %203 = vector.broadcast %202 : vector<8x1xf32> to vector<8x8xf32>
    %204 = arith.subf %200, %203 : vector<8x8xf32>
    %205 = math.exp %204 : vector<8x8xf32>
    %cst_124 = arith.constant dense<0.000000e+00> : vector<8xf32>
    %206 = vector.multi_reduction <add>, %205, %cst_124 [1] : vector<8x8xf32> to vector<8xf32>
    %207 = vector.shape_cast %206 : vector<8xf32> to vector<8x1xf32>
    %208 = tpu.reciprocal %207 {approx = true} : vector<8x1xf32> -> vector<8x1xf32>
    %209 = vector.broadcast %208 : vector<8x1xf32> to vector<8x8xf32>
    %210 = arith.mulf %205, %209 : vector<8x8xf32>
    %cst_125 = arith.constant dense<0.000000e+00> : vector<8x8xf32>
    %211 = tpu.matmul %210, %199, %cst_125 {dimension_numbers = #tpu.dot_dimension_numbers<[1], [0], [0], [1], [0, 0, 1, 1], [], []>} : vector<8x8xf32>, vector<8x8xf32>, vector<8x8xf32> -> vector<8x8xf32>
    %c8_126 = arith.constant 8 : index
    %c8_127 = arith.constant 8 : index
    %212 = vector.load %arg16[%c8_126, %c8_127] : memref<16x32xf32, #tpu.memory_space<vmem>>, vector<8x8xf32>
    tpu.vector_store %arg16[%c8_126, %c8_127], %211 {strides = array<i32>} : memref<16x32xf32, #tpu.memory_space<vmem>>, vector<8x8xf32>,
    %c2_128 = arith.constant 2 : index
    %c0_129 = arith.constant 0 : index
    %c0_130 = arith.constant 0 : index
    %213 = vector.load %arg7[%c2_128, %c0_129, %c0_130] : memref<8x3x8xf32, #tpu.memory_space<vmem>>, vector<1x3x8xf32>
    %214 = vector.shape_cast %213 : vector<1x3x8xf32> to vector<3x8xf32>
    %c2_131 = arith.constant 2 : index
    %c0_132 = arith.constant 0 : index
    %c0_133 = arith.constant 0 : index
    %215 = vector.load %arg4[%c2_131, %c0_132, %c0_133] : memref<8x32x8xf32, #tpu.memory_space<vmem>>, vector<1x32x8xf32>
    %216 = vector.shape_cast %215 : vector<1x32x8xf32> to vector<32x8xf32>
    %cst_134 = arith.constant dense<0.000000e+00> : vector<8x8xf32>
    %217 = tpu.matmul %146, %216, %cst_134 {dimension_numbers = #tpu.dot_dimension_numbers<[1], [0], [0], [1], [0, 0, 1, 1], [], []>} : vector<8x32xf32>, vector<32x8xf32>, vector<8x8xf32> -> vector<8x8xf32>
    %218 = vector.extract_strided_slice %214 {offsets = [0, 0], sizes = [1, 8], strides = [1, 1]} : vector<3x8xf32> to vector<1x8xf32>
    %219 = vector.broadcast %218 : vector<1x8xf32> to vector<8x8xf32>
    %220 = arith.addf %217, %219 : vector<8x8xf32>
    %c2_135 = arith.constant 2 : index
    %c0_136 = arith.constant 0 : index
    %c0_137 = arith.constant 0 : index
    %221 = vector.load %arg5[%c2_135, %c0_136, %c0_137] : memref<8x32x8xf32, #tpu.memory_space<vmem>>, vector<1x32x8xf32>
    %222 = vector.shape_cast %221 : vector<1x32x8xf32> to vector<32x8xf32>
    %cst_138 = arith.constant dense<0.000000e+00> : vector<8x8xf32>
    %223 = tpu.matmul %146, %222, %cst_138 {dimension_numbers = #tpu.dot_dimension_numbers<[1], [0], [0], [1], [0, 0, 1, 1], [], []>} : vector<8x32xf32>, vector<32x8xf32>, vector<8x8xf32> -> vector<8x8xf32>
    %224 = vector.extract_strided_slice %214 {offsets = [1, 0], sizes = [1, 8], strides = [1, 1]} : vector<3x8xf32> to vector<1x8xf32>
    %225 = vector.broadcast %224 : vector<1x8xf32> to vector<8x8xf32>
    %226 = arith.addf %223, %225 : vector<8x8xf32>
    %c2_139 = arith.constant 2 : index
    %c0_140 = arith.constant 0 : index
    %c0_141 = arith.constant 0 : index
    %227 = vector.load %arg6[%c2_139, %c0_140, %c0_141] : memref<8x32x8xf32, #tpu.memory_space<vmem>>, vector<1x32x8xf32>
    %228 = vector.shape_cast %227 : vector<1x32x8xf32> to vector<32x8xf32>
    %cst_142 = arith.constant dense<0.000000e+00> : vector<8x8xf32>
    %229 = tpu.matmul %146, %228, %cst_142 {dimension_numbers = #tpu.dot_dimension_numbers<[1], [0], [0], [1], [0, 0, 1, 1], [], []>} : vector<8x32xf32>, vector<32x8xf32>, vector<8x8xf32> -> vector<8x8xf32>
    %230 = vector.extract_strided_slice %214 {offsets = [2, 0], sizes = [1, 8], strides = [1, 1]} : vector<3x8xf32> to vector<1x8xf32>
    %231 = vector.broadcast %230 : vector<1x8xf32> to vector<8x8xf32>
    %232 = arith.addf %229, %231 : vector<8x8xf32>
    %cst_143 = arith.constant dense<0.000000e+00> : vector<8x8xf32>
    %233 = tpu.matmul %220, %226, %cst_143 {dimension_numbers = #tpu.dot_dimension_numbers<[1], [1], [0], [0], [0, 0, 1, 0], [], []>} : vector<8x8xf32>, vector<8x8xf32>, vector<8x8xf32> -> vector<8x8xf32>
    %cst_144 = arith.constant dense<0xFF800000> : vector<8xf32>
    %234 = vector.multi_reduction <maximumf>, %233, %cst_144 [1] : vector<8x8xf32> to vector<8xf32>
    %235 = vector.shape_cast %234 : vector<8xf32> to vector<8x1xf32>
    %236 = vector.broadcast %235 : vector<8x1xf32> to vector<8x8xf32>
    %237 = arith.subf %233, %236 : vector<8x8xf32>
    %238 = math.exp %237 : vector<8x8xf32>
    %cst_145 = arith.constant dense<0.000000e+00> : vector<8xf32>
    %239 = vector.multi_reduction <add>, %238, %cst_145 [1] : vector<8x8xf32> to vector<8xf32>
    %240 = vector.shape_cast %239 : vector<8xf32> to vector<8x1xf32>
    %241 = tpu.reciprocal %240 {approx = true} : vector<8x1xf32> -> vector<8x1xf32>
    %242 = vector.broadcast %241 : vector<8x1xf32> to vector<8x8xf32>
    %243 = arith.mulf %238, %242 : vector<8x8xf32>
    %cst_146 = arith.constant dense<0.000000e+00> : vector<8x8xf32>
    %244 = tpu.matmul %243, %232, %cst_146 {dimension_numbers = #tpu.dot_dimension_numbers<[1], [0], [0], [1], [0, 0, 1, 1], [], []>} : vector<8x8xf32>, vector<8x8xf32>, vector<8x8xf32> -> vector<8x8xf32>
    %c8_147 = arith.constant 8 : index
    %c16_148 = arith.constant 16 : index
    %245 = vector.load %arg16[%c8_147, %c16_148] : memref<16x32xf32, #tpu.memory_space<vmem>>, vector<8x8xf32>
    tpu.vector_store %arg16[%c8_147, %c16_148], %244 {strides = array<i32>} : memref<16x32xf32, #tpu.memory_space<vmem>>, vector<8x8xf32>,
    %c3_149 = arith.constant 3 : index
    %c0_150 = arith.constant 0 : index
    %c0_151 = arith.constant 0 : index
    %246 = vector.load %arg7[%c3_149, %c0_150, %c0_151] : memref<8x3x8xf32, #tpu.memory_space<vmem>>, vector<1x3x8xf32>
    %247 = vector.shape_cast %246 : vector<1x3x8xf32> to vector<3x8xf32>
    %c3_152 = arith.constant 3 : index
    %c0_153 = arith.constant 0 : index
    %c0_154 = arith.constant 0 : index
    %248 = vector.load %arg4[%c3_152, %c0_153, %c0_154] : memref<8x32x8xf32, #tpu.memory_space<vmem>>, vector<1x32x8xf32>
    %249 = vector.shape_cast %248 : vector<1x32x8xf32> to vector<32x8xf32>
    %cst_155 = arith.constant dense<0.000000e+00> : vector<8x8xf32>
    %250 = tpu.matmul %146, %249, %cst_155 {dimension_numbers = #tpu.dot_dimension_numbers<[1], [0], [0], [1], [0, 0, 1, 1], [], []>} : vector<8x32xf32>, vector<32x8xf32>, vector<8x8xf32> -> vector<8x8xf32>
    %251 = vector.extract_strided_slice %247 {offsets = [0, 0], sizes = [1, 8], strides = [1, 1]} : vector<3x8xf32> to vector<1x8xf32>
    %252 = vector.broadcast %251 : vector<1x8xf32> to vector<8x8xf32>
    %253 = arith.addf %250, %252 : vector<8x8xf32>
    %c3_156 = arith.constant 3 : index
    %c0_157 = arith.constant 0 : index
    %c0_158 = arith.constant 0 : index
    %254 = vector.load %arg5[%c3_156, %c0_157, %c0_158] : memref<8x32x8xf32, #tpu.memory_space<vmem>>, vector<1x32x8xf32>
    %255 = vector.shape_cast %254 : vector<1x32x8xf32> to vector<32x8xf32>
    %cst_159 = arith.constant dense<0.000000e+00> : vector<8x8xf32>
    %256 = tpu.matmul %146, %255, %cst_159 {dimension_numbers = #tpu.dot_dimension_numbers<[1], [0], [0], [1], [0, 0, 1, 1], [], []>} : vector<8x32xf32>, vector<32x8xf32>, vector<8x8xf32> -> vector<8x8xf32>
    %257 = vector.extract_strided_slice %247 {offsets = [1, 0], sizes = [1, 8], strides = [1, 1]} : vector<3x8xf32> to vector<1x8xf32>
    %258 = vector.broadcast %257 : vector<1x8xf32> to vector<8x8xf32>
    %259 = arith.addf %256, %258 : vector<8x8xf32>
    %c3_160 = arith.constant 3 : index
    %c0_161 = arith.constant 0 : index
    %c0_162 = arith.constant 0 : index
    %260 = vector.load %arg6[%c3_160, %c0_161, %c0_162] : memref<8x32x8xf32, #tpu.memory_space<vmem>>, vector<1x32x8xf32>
    %261 = vector.shape_cast %260 : vector<1x32x8xf32> to vector<32x8xf32>
    %cst_163 = arith.constant dense<0.000000e+00> : vector<8x8xf32>
    %262 = tpu.matmul %146, %261, %cst_163 {dimension_numbers = #tpu.dot_dimension_numbers<[1], [0], [0], [1], [0, 0, 1, 1], [], []>} : vector<8x32xf32>, vector<32x8xf32>, vector<8x8xf32> -> vector<8x8xf32>
    %263 = vector.extract_strided_slice %247 {offsets = [2, 0], sizes = [1, 8], strides = [1, 1]} : vector<3x8xf32> to vector<1x8xf32>
    %264 = vector.broadcast %263 : vector<1x8xf32> to vector<8x8xf32>
    %265 = arith.addf %262, %264 : vector<8x8xf32>
    %cst_164 = arith.constant dense<0.000000e+00> : vector<8x8xf32>
    %266 = tpu.matmul %253, %259, %cst_164 {dimension_numbers = #tpu.dot_dimension_numbers<[1], [1], [0], [0], [0, 0, 1, 0], [], []>} : vector<8x8xf32>, vector<8x8xf32>, vector<8x8xf32> -> vector<8x8xf32>
    %cst_165 = arith.constant dense<0xFF800000> : vector<8xf32>
    %267 = vector.multi_reduction <maximumf>, %266, %cst_165 [1] : vector<8x8xf32> to vector<8xf32>
    %268 = vector.shape_cast %267 : vector<8xf32> to vector<8x1xf32>
    %269 = vector.broadcast %268 : vector<8x1xf32> to vector<8x8xf32>
    %270 = arith.subf %266, %269 : vector<8x8xf32>
    %271 = math.exp %270 : vector<8x8xf32>
    %cst_166 = arith.constant dense<0.000000e+00> : vector<8xf32>
    %272 = vector.multi_reduction <add>, %271, %cst_166 [1] : vector<8x8xf32> to vector<8xf32>
    %273 = vector.shape_cast %272 : vector<8xf32> to vector<8x1xf32>
    %274 = tpu.reciprocal %273 {approx = true} : vector<8x1xf32> -> vector<8x1xf32>
    %275 = vector.broadcast %274 : vector<8x1xf32> to vector<8x8xf32>
    %276 = arith.mulf %271, %275 : vector<8x8xf32>
    %cst_167 = arith.constant dense<0.000000e+00> : vector<8x8xf32>
    %277 = tpu.matmul %276, %265, %cst_167 {dimension_numbers = #tpu.dot_dimension_numbers<[1], [0], [0], [1], [0, 0, 1, 1], [], []>} : vector<8x8xf32>, vector<8x8xf32>, vector<8x8xf32> -> vector<8x8xf32>
    %c8_168 = arith.constant 8 : index
    %c24_169 = arith.constant 24 : index
    %278 = vector.load %arg16[%c8_168, %c24_169] : memref<16x32xf32, #tpu.memory_space<vmem>>, vector<8x8xf32>
    tpu.vector_store %arg16[%c8_168, %c24_169], %277 {strides = array<i32>} : memref<16x32xf32, #tpu.memory_space<vmem>>, vector<8x8xf32>,
    %c0_170 = arith.constant 0 : index
    %c0_171 = arith.constant 0 : index
    %279 = vector.load %arg16[%c0_170, %c0_171] : memref<16x32xf32, #tpu.memory_space<vmem>>, vector<16x32xf32>
    %c0_172 = arith.constant 0 : index
    %c0_173 = arith.constant 0 : index
    %c0_174 = arith.constant 0 : index
    %280 = vector.load %arg8[%c0_172, %c0_173, %c0_174] : memref<2x32x32xf32, #tpu.memory_space<vmem>>, vector<1x32x32xf32>
    %281 = vector.shape_cast %280 : vector<1x32x32xf32> to vector<32x32xf32>
    %cst_175 = arith.constant dense<0.000000e+00> : vector<16x32xf32>
    %282 = tpu.matmul %279, %281, %cst_175 {dimension_numbers = #tpu.dot_dimension_numbers<[1], [0], [0], [1], [0, 0, 1, 1], [], []>} : vector<16x32xf32>, vector<32x32xf32>, vector<16x32xf32> -> vector<16x32xf32>
    %283 = vector.broadcast %7 : vector<1x32xf32> to vector<16x32xf32>
    %284 = arith.addf %282, %283 : vector<16x32xf32>
    %285 = arith.addf %4, %284 : vector<16x32xf32>
    %cst_176 = arith.constant dense<0.000000e+00> : vector<16xf32>
    %286 = vector.multi_reduction <add>, %285, %cst_176 [1] : vector<16x32xf32> to vector<16xf32>
    %287 = vector.shape_cast %286 : vector<16xf32> to vector<16x1xf32>
    %cst_177 = arith.constant 3.200000e+01 : f32
    %288 = vector.broadcast %cst_177 : f32 to vector<16x1xf32>
    %289 = arith.divf %287, %288 : vector<16x1xf32>
    %290 = vector.broadcast %289 : vector<16x1xf32> to vector<16x32xf32>
    %291 = arith.subf %285, %290 : vector<16x32xf32>
    %292 = arith.mulf %291, %291 : vector<16x32xf32>
    %cst_178 = arith.constant dense<0.000000e+00> : vector<16xf32>
    %293 = vector.multi_reduction <add>, %292, %cst_178 [1] : vector<16x32xf32> to vector<16xf32>
    %294 = vector.shape_cast %293 : vector<16xf32> to vector<16x1xf32>
    %cst_179 = arith.constant 3.200000e+01 : f32
    %295 = vector.broadcast %cst_179 : f32 to vector<16x1xf32>
    %296 = arith.divf %294, %295 : vector<16x1xf32>
    %297 = vector.broadcast %289 : vector<16x1xf32> to vector<16x32xf32>
    %298 = arith.subf %285, %297 : vector<16x32xf32>
    %cst_180 = arith.constant 9.99999974E-6 : f32
    %299 = vector.broadcast %cst_180 : f32 to vector<16x1xf32>
    %300 = arith.addf %296, %299 : vector<16x1xf32>
    %301 = math.rsqrt %300 : vector<16x1xf32>
    %302 = vector.broadcast %301 : vector<16x1xf32> to vector<16x32xf32>
    %303 = arith.mulf %298, %302 : vector<16x32xf32>
    %304 = vector.broadcast %8 : vector<1x32xf32> to vector<16x32xf32>
    %305 = arith.mulf %303, %304 : vector<16x32xf32>
    %306 = vector.broadcast %9 : vector<1x32xf32> to vector<16x32xf32>
    %307 = arith.addf %305, %306 : vector<16x32xf32>
    %c0_181 = arith.constant 0 : index
    %c0_182 = arith.constant 0 : index
    %c0_183 = arith.constant 0 : index
    %308 = vector.load %arg10[%c0_181, %c0_182, %c0_183] : memref<2x32x64xf32, #tpu.memory_space<vmem>>, vector<1x32x64xf32>
    %309 = vector.shape_cast %308 : vector<1x32x64xf32> to vector<32x64xf32>
    %cst_184 = arith.constant dense<0.000000e+00> : vector<16x64xf32>
    %310 = tpu.matmul %307, %309, %cst_184 {dimension_numbers = #tpu.dot_dimension_numbers<[1], [0], [0], [1], [0, 0, 1, 1], [], []>} : vector<16x32xf32>, vector<32x64xf32>, vector<16x64xf32> -> vector<16x64xf32>
    %c0_185 = arith.constant 0 : index
    %c0_186 = arith.constant 0 : index
    %c0_187 = arith.constant 0 : index
    %311 = vector.load %arg11[%c0_185, %c0_186, %c0_187] : memref<2x1x64xf32, #tpu.memory_space<vmem>>, vector<1x1x64xf32>
    %312 = vector.shape_cast %311 : vector<1x1x64xf32> to vector<1x64xf32>
    %313 = vector.broadcast %312 : vector<1x64xf32> to vector<16x64xf32>
    %314 = arith.addf %310, %313 : vector<16x64xf32>
    %315 = arith.mulf %314, %314 : vector<16x64xf32>
    %316 = arith.mulf %314, %315 : vector<16x64xf32>
    %cst_188 = arith.constant 4.471500e-02 : f32
    %317 = vector.broadcast %cst_188 : f32 to vector<16x64xf32>
    %318 = arith.mulf %317, %316 : vector<16x64xf32>
    %319 = arith.addf %314, %318 : vector<16x64xf32>
    %cst_189 = arith.constant 0.797884583 : f32
    %320 = vector.broadcast %cst_189 : f32 to vector<16x64xf32>
    %321 = arith.mulf %320, %319 : vector<16x64xf32>
    %322 = math.tanh %321 : vector<16x64xf32>
    %cst_190 = arith.constant 1.000000e+00 : f32
    %323 = vector.broadcast %cst_190 : f32 to vector<16x64xf32>
    %324 = arith.addf %323, %322 : vector<16x64xf32>
    %cst_191 = arith.constant 5.000000e-01 : f32
    %325 = vector.broadcast %cst_191 : f32 to vector<16x64xf32>
    %326 = arith.mulf %325, %324 : vector<16x64xf32>
    %327 = arith.mulf %314, %326 : vector<16x64xf32>
    %c0_192 = arith.constant 0 : index
    %c0_193 = arith.constant 0 : index
    %c0_194 = arith.constant 0 : index
    %328 = vector.load %arg12[%c0_192, %c0_193, %c0_194] : memref<2x64x32xf32, #tpu.memory_space<vmem>>, vector<1x64x32xf32>
    %329 = vector.shape_cast %328 : vector<1x64x32xf32> to vector<64x32xf32>
    %cst_195 = arith.constant dense<0.000000e+00> : vector<16x32xf32>
    %330 = tpu.matmul %327, %329, %cst_195 {dimension_numbers = #tpu.dot_dimension_numbers<[1], [0], [0], [1], [0, 0, 1, 1], [], []>} : vector<16x64xf32>, vector<64x32xf32>, vector<16x32xf32> -> vector<16x32xf32>
    %331 = vector.broadcast %10 : vector<1x32xf32> to vector<16x32xf32>
    %332 = arith.addf %330, %331 : vector<16x32xf32>
    %333 = arith.addf %307, %332 : vector<16x32xf32>
    %cst_196 = arith.constant dense<0.000000e+00> : vector<16xf32>
    %334 = vector.multi_reduction <add>, %333, %cst_196 [1] : vector<16x32xf32> to vector<16xf32>
    %335 = vector.shape_cast %334 : vector<16xf32> to vector<16x1xf32>
    %cst_197 = arith.constant 3.200000e+01 : f32
    %336 = vector.broadcast %cst_197 : f32 to vector<16x1xf32>
    %337 = arith.divf %335, %336 : vector<16x1xf32>
    %338 = vector.broadcast %337 : vector<16x1xf32> to vector<16x32xf32>
    %339 = arith.subf %333, %338 : vector<16x32xf32>
    %340 = arith.mulf %339, %339 : vector<16x32xf32>
    %cst_198 = arith.constant dense<0.000000e+00> : vector<16xf32>
    %341 = vector.multi_reduction <add>, %340, %cst_198 [1] : vector<16x32xf32> to vector<16xf32>
    %342 = vector.shape_cast %341 : vector<16xf32> to vector<16x1xf32>
    %cst_199 = arith.constant 3.200000e+01 : f32
    %343 = vector.broadcast %cst_199 : f32 to vector<16x1xf32>
    %344 = arith.divf %342, %343 : vector<16x1xf32>
    %345 = vector.broadcast %337 : vector<16x1xf32> to vector<16x32xf32>
    %346 = arith.subf %333, %345 : vector<16x32xf32>
    %cst_200 = arith.constant 9.99999974E-6 : f32
    %347 = vector.broadcast %cst_200 : f32 to vector<16x1xf32>
    %348 = arith.addf %344, %347 : vector<16x1xf32>
    %349 = math.rsqrt %348 : vector<16x1xf32>
    %350 = vector.broadcast %349 : vector<16x1xf32> to vector<16x32xf32>
    %351 = arith.mulf %346, %350 : vector<16x32xf32>
    %352 = vector.broadcast %11 : vector<1x32xf32> to vector<16x32xf32>
    %353 = arith.mulf %351, %352 : vector<16x32xf32>
    %354 = vector.broadcast %12 : vector<1x32xf32> to vector<16x32xf32>
    %355 = arith.addf %353, %354 : vector<16x32xf32>
    %c1_201 = arith.constant 1 : index
    %c0_202 = arith.constant 0 : index
    %c0_203 = arith.constant 0 : index
    %356 = vector.load %arg9[%c1_201, %c0_202, %c0_203] : memref<2x6x32xf32, #tpu.memory_space<vmem>>, vector<1x6x32xf32>
    %357 = vector.shape_cast %356 : vector<1x6x32xf32> to vector<6x32xf32>
    %358 = vector.extract_strided_slice %357 {offsets = [0, 0], sizes = [1, 32], strides = [1, 1]} : vector<6x32xf32> to vector<1x32xf32>
    %359 = vector.extract_strided_slice %357 {offsets = [1, 0], sizes = [1, 32], strides = [1, 1]} : vector<6x32xf32> to vector<1x32xf32>
    %360 = vector.extract_strided_slice %357 {offsets = [2, 0], sizes = [1, 32], strides = [1, 1]} : vector<6x32xf32> to vector<1x32xf32>
    %361 = vector.extract_strided_slice %357 {offsets = [3, 0], sizes = [1, 32], strides = [1, 1]} : vector<6x32xf32> to vector<1x32xf32>
    %362 = vector.extract_strided_slice %357 {offsets = [4, 0], sizes = [1, 32], strides = [1, 1]} : vector<6x32xf32> to vector<1x32xf32>
    %363 = vector.extract_strided_slice %357 {offsets = [5, 0], sizes = [1, 32], strides = [1, 1]} : vector<6x32xf32> to vector<1x32xf32>
    %364 = vector.extract_strided_slice %355 {offsets = [0, 0], sizes = [8, 32], strides = [1, 1]} : vector<16x32xf32> to vector<8x32xf32>
    %c4 = arith.constant 4 : index
    %c0_204 = arith.constant 0 : index
    %c0_205 = arith.constant 0 : index
    %365 = vector.load %arg7[%c4, %c0_204, %c0_205] : memref<8x3x8xf32, #tpu.memory_space<vmem>>, vector<1x3x8xf32>
    %366 = vector.shape_cast %365 : vector<1x3x8xf32> to vector<3x8xf32>
    %c4_206 = arith.constant 4 : index
    %c0_207 = arith.constant 0 : index
    %c0_208 = arith.constant 0 : index
    %367 = vector.load %arg4[%c4_206, %c0_207, %c0_208] : memref<8x32x8xf32, #tpu.memory_space<vmem>>, vector<1x32x8xf32>
    %368 = vector.shape_cast %367 : vector<1x32x8xf32> to vector<32x8xf32>
    %cst_209 = arith.constant dense<0.000000e+00> : vector<8x8xf32>
    %369 = tpu.matmul %364, %368, %cst_209 {dimension_numbers = #tpu.dot_dimension_numbers<[1], [0], [0], [1], [0, 0, 1, 1], [], []>} : vector<8x32xf32>, vector<32x8xf32>, vector<8x8xf32> -> vector<8x8xf32>
    %370 = vector.extract_strided_slice %366 {offsets = [0, 0], sizes = [1, 8], strides = [1, 1]} : vector<3x8xf32> to vector<1x8xf32>
    %371 = vector.broadcast %370 : vector<1x8xf32> to vector<8x8xf32>
    %372 = arith.addf %369, %371 : vector<8x8xf32>
    %c4_210 = arith.constant 4 : index
    %c0_211 = arith.constant 0 : index
    %c0_212 = arith.constant 0 : index
    %373 = vector.load %arg5[%c4_210, %c0_211, %c0_212] : memref<8x32x8xf32, #tpu.memory_space<vmem>>, vector<1x32x8xf32>
    %374 = vector.shape_cast %373 : vector<1x32x8xf32> to vector<32x8xf32>
    %cst_213 = arith.constant dense<0.000000e+00> : vector<8x8xf32>
    %375 = tpu.matmul %364, %374, %cst_213 {dimension_numbers = #tpu.dot_dimension_numbers<[1], [0], [0], [1], [0, 0, 1, 1], [], []>} : vector<8x32xf32>, vector<32x8xf32>, vector<8x8xf32> -> vector<8x8xf32>
    %376 = vector.extract_strided_slice %366 {offsets = [1, 0], sizes = [1, 8], strides = [1, 1]} : vector<3x8xf32> to vector<1x8xf32>
    %377 = vector.broadcast %376 : vector<1x8xf32> to vector<8x8xf32>
    %378 = arith.addf %375, %377 : vector<8x8xf32>
    %c4_214 = arith.constant 4 : index
    %c0_215 = arith.constant 0 : index
    %c0_216 = arith.constant 0 : index
    %379 = vector.load %arg6[%c4_214, %c0_215, %c0_216] : memref<8x32x8xf32, #tpu.memory_space<vmem>>, vector<1x32x8xf32>
    %380 = vector.shape_cast %379 : vector<1x32x8xf32> to vector<32x8xf32>
    %cst_217 = arith.constant dense<0.000000e+00> : vector<8x8xf32>
    %381 = tpu.matmul %364, %380, %cst_217 {dimension_numbers = #tpu.dot_dimension_numbers<[1], [0], [0], [1], [0, 0, 1, 1], [], []>} : vector<8x32xf32>, vector<32x8xf32>, vector<8x8xf32> -> vector<8x8xf32>
    %382 = vector.extract_strided_slice %366 {offsets = [2, 0], sizes = [1, 8], strides = [1, 1]} : vector<3x8xf32> to vector<1x8xf32>
    %383 = vector.broadcast %382 : vector<1x8xf32> to vector<8x8xf32>
    %384 = arith.addf %381, %383 : vector<8x8xf32>
    %cst_218 = arith.constant dense<0.000000e+00> : vector<8x8xf32>
    %385 = tpu.matmul %372, %378, %cst_218 {dimension_numbers = #tpu.dot_dimension_numbers<[1], [1], [0], [0], [0, 0, 1, 0], [], []>} : vector<8x8xf32>, vector<8x8xf32>, vector<8x8xf32> -> vector<8x8xf32>
    %cst_219 = arith.constant dense<0xFF800000> : vector<8xf32>
    %386 = vector.multi_reduction <maximumf>, %385, %cst_219 [1] : vector<8x8xf32> to vector<8xf32>
    %387 = vector.shape_cast %386 : vector<8xf32> to vector<8x1xf32>
    %388 = vector.broadcast %387 : vector<8x1xf32> to vector<8x8xf32>
    %389 = arith.subf %385, %388 : vector<8x8xf32>
    %390 = math.exp %389 : vector<8x8xf32>
    %cst_220 = arith.constant dense<0.000000e+00> : vector<8xf32>
    %391 = vector.multi_reduction <add>, %390, %cst_220 [1] : vector<8x8xf32> to vector<8xf32>
    %392 = vector.shape_cast %391 : vector<8xf32> to vector<8x1xf32>
    %393 = tpu.reciprocal %392 {approx = true} : vector<8x1xf32> -> vector<8x1xf32>
    %394 = vector.broadcast %393 : vector<8x1xf32> to vector<8x8xf32>
    %395 = arith.mulf %390, %394 : vector<8x8xf32>
    %cst_221 = arith.constant dense<0.000000e+00> : vector<8x8xf32>
    %396 = tpu.matmul %395, %384, %cst_221 {dimension_numbers = #tpu.dot_dimension_numbers<[1], [0], [0], [1], [0, 0, 1, 1], [], []>} : vector<8x8xf32>, vector<8x8xf32>, vector<8x8xf32> -> vector<8x8xf32>
    %c0_222 = arith.constant 0 : index
    %c0_223 = arith.constant 0 : index
    %397 = vector.load %arg16[%c0_222, %c0_223] : memref<16x32xf32, #tpu.memory_space<vmem>>, vector<8x8xf32>
    tpu.vector_store %arg16[%c0_222, %c0_223], %396 {strides = array<i32>} : memref<16x32xf32, #tpu.memory_space<vmem>>, vector<8x8xf32>,
    %c5 = arith.constant 5 : index
    %c0_224 = arith.constant 0 : index
    %c0_225 = arith.constant 0 : index
    %398 = vector.load %arg7[%c5, %c0_224, %c0_225] : memref<8x3x8xf32, #tpu.memory_space<vmem>>, vector<1x3x8xf32>
    %399 = vector.shape_cast %398 : vector<1x3x8xf32> to vector<3x8xf32>
    %c5_226 = arith.constant 5 : index
    %c0_227 = arith.constant 0 : index
    %c0_228 = arith.constant 0 : index
    %400 = vector.load %arg4[%c5_226, %c0_227, %c0_228] : memref<8x32x8xf32, #tpu.memory_space<vmem>>, vector<1x32x8xf32>
    %401 = vector.shape_cast %400 : vector<1x32x8xf32> to vector<32x8xf32>
    %cst_229 = arith.constant dense<0.000000e+00> : vector<8x8xf32>
    %402 = tpu.matmul %364, %401, %cst_229 {dimension_numbers = #tpu.dot_dimension_numbers<[1], [0], [0], [1], [0, 0, 1, 1], [], []>} : vector<8x32xf32>, vector<32x8xf32>, vector<8x8xf32> -> vector<8x8xf32>
    %403 = vector.extract_strided_slice %399 {offsets = [0, 0], sizes = [1, 8], strides = [1, 1]} : vector<3x8xf32> to vector<1x8xf32>
    %404 = vector.broadcast %403 : vector<1x8xf32> to vector<8x8xf32>
    %405 = arith.addf %402, %404 : vector<8x8xf32>
    %c5_230 = arith.constant 5 : index
    %c0_231 = arith.constant 0 : index
    %c0_232 = arith.constant 0 : index
    %406 = vector.load %arg5[%c5_230, %c0_231, %c0_232] : memref<8x32x8xf32, #tpu.memory_space<vmem>>, vector<1x32x8xf32>
    %407 = vector.shape_cast %406 : vector<1x32x8xf32> to vector<32x8xf32>
    %cst_233 = arith.constant dense<0.000000e+00> : vector<8x8xf32>
    %408 = tpu.matmul %364, %407, %cst_233 {dimension_numbers = #tpu.dot_dimension_numbers<[1], [0], [0], [1], [0, 0, 1, 1], [], []>} : vector<8x32xf32>, vector<32x8xf32>, vector<8x8xf32> -> vector<8x8xf32>
    %409 = vector.extract_strided_slice %399 {offsets = [1, 0], sizes = [1, 8], strides = [1, 1]} : vector<3x8xf32> to vector<1x8xf32>
    %410 = vector.broadcast %409 : vector<1x8xf32> to vector<8x8xf32>
    %411 = arith.addf %408, %410 : vector<8x8xf32>
    %c5_234 = arith.constant 5 : index
    %c0_235 = arith.constant 0 : index
    %c0_236 = arith.constant 0 : index
    %412 = vector.load %arg6[%c5_234, %c0_235, %c0_236] : memref<8x32x8xf32, #tpu.memory_space<vmem>>, vector<1x32x8xf32>
    %413 = vector.shape_cast %412 : vector<1x32x8xf32> to vector<32x8xf32>
    %cst_237 = arith.constant dense<0.000000e+00> : vector<8x8xf32>
    %414 = tpu.matmul %364, %413, %cst_237 {dimension_numbers = #tpu.dot_dimension_numbers<[1], [0], [0], [1], [0, 0, 1, 1], [], []>} : vector<8x32xf32>, vector<32x8xf32>, vector<8x8xf32> -> vector<8x8xf32>
    %415 = vector.extract_strided_slice %399 {offsets = [2, 0], sizes = [1, 8], strides = [1, 1]} : vector<3x8xf32> to vector<1x8xf32>
    %416 = vector.broadcast %415 : vector<1x8xf32> to vector<8x8xf32>
    %417 = arith.addf %414, %416 : vector<8x8xf32>
    %cst_238 = arith.constant dense<0.000000e+00> : vector<8x8xf32>
    %418 = tpu.matmul %405, %411, %cst_238 {dimension_numbers = #tpu.dot_dimension_numbers<[1], [1], [0], [0], [0, 0, 1, 0], [], []>} : vector<8x8xf32>, vector<8x8xf32>, vector<8x8xf32> -> vector<8x8xf32>
    %cst_239 = arith.constant dense<0xFF800000> : vector<8xf32>
    %419 = vector.multi_reduction <maximumf>, %418, %cst_239 [1] : vector<8x8xf32> to vector<8xf32>
    %420 = vector.shape_cast %419 : vector<8xf32> to vector<8x1xf32>
    %421 = vector.broadcast %420 : vector<8x1xf32> to vector<8x8xf32>
    %422 = arith.subf %418, %421 : vector<8x8xf32>
    %423 = math.exp %422 : vector<8x8xf32>
    %cst_240 = arith.constant dense<0.000000e+00> : vector<8xf32>
    %424 = vector.multi_reduction <add>, %423, %cst_240 [1] : vector<8x8xf32> to vector<8xf32>
    %425 = vector.shape_cast %424 : vector<8xf32> to vector<8x1xf32>
    %426 = tpu.reciprocal %425 {approx = true} : vector<8x1xf32> -> vector<8x1xf32>
    %427 = vector.broadcast %426 : vector<8x1xf32> to vector<8x8xf32>
    %428 = arith.mulf %423, %427 : vector<8x8xf32>
    %cst_241 = arith.constant dense<0.000000e+00> : vector<8x8xf32>
    %429 = tpu.matmul %428, %417, %cst_241 {dimension_numbers = #tpu.dot_dimension_numbers<[1], [0], [0], [1], [0, 0, 1, 1], [], []>} : vector<8x8xf32>, vector<8x8xf32>, vector<8x8xf32> -> vector<8x8xf32>
    %c0_242 = arith.constant 0 : index
    %c8_243 = arith.constant 8 : index
    %430 = vector.load %arg16[%c0_242, %c8_243] : memref<16x32xf32, #tpu.memory_space<vmem>>, vector<8x8xf32>
    tpu.vector_store %arg16[%c0_242, %c8_243], %429 {strides = array<i32>} : memref<16x32xf32, #tpu.memory_space<vmem>>, vector<8x8xf32>,
    %c6 = arith.constant 6 : index
    %c0_244 = arith.constant 0 : index
    %c0_245 = arith.constant 0 : index
    %431 = vector.load %arg7[%c6, %c0_244, %c0_245] : memref<8x3x8xf32, #tpu.memory_space<vmem>>, vector<1x3x8xf32>
    %432 = vector.shape_cast %431 : vector<1x3x8xf32> to vector<3x8xf32>
    %c6_246 = arith.constant 6 : index
    %c0_247 = arith.constant 0 : index
    %c0_248 = arith.constant 0 : index
    %433 = vector.load %arg4[%c6_246, %c0_247, %c0_248] : memref<8x32x8xf32, #tpu.memory_space<vmem>>, vector<1x32x8xf32>
    %434 = vector.shape_cast %433 : vector<1x32x8xf32> to vector<32x8xf32>
    %cst_249 = arith.constant dense<0.000000e+00> : vector<8x8xf32>
    %435 = tpu.matmul %364, %434, %cst_249 {dimension_numbers = #tpu.dot_dimension_numbers<[1], [0], [0], [1], [0, 0, 1, 1], [], []>} : vector<8x32xf32>, vector<32x8xf32>, vector<8x8xf32> -> vector<8x8xf32>
    %436 = vector.extract_strided_slice %432 {offsets = [0, 0], sizes = [1, 8], strides = [1, 1]} : vector<3x8xf32> to vector<1x8xf32>
    %437 = vector.broadcast %436 : vector<1x8xf32> to vector<8x8xf32>
    %438 = arith.addf %435, %437 : vector<8x8xf32>
    %c6_250 = arith.constant 6 : index
    %c0_251 = arith.constant 0 : index
    %c0_252 = arith.constant 0 : index
    %439 = vector.load %arg5[%c6_250, %c0_251, %c0_252] : memref<8x32x8xf32, #tpu.memory_space<vmem>>, vector<1x32x8xf32>
    %440 = vector.shape_cast %439 : vector<1x32x8xf32> to vector<32x8xf32>
    %cst_253 = arith.constant dense<0.000000e+00> : vector<8x8xf32>
    %441 = tpu.matmul %364, %440, %cst_253 {dimension_numbers = #tpu.dot_dimension_numbers<[1], [0], [0], [1], [0, 0, 1, 1], [], []>} : vector<8x32xf32>, vector<32x8xf32>, vector<8x8xf32> -> vector<8x8xf32>
    %442 = vector.extract_strided_slice %432 {offsets = [1, 0], sizes = [1, 8], strides = [1, 1]} : vector<3x8xf32> to vector<1x8xf32>
    %443 = vector.broadcast %442 : vector<1x8xf32> to vector<8x8xf32>
    %444 = arith.addf %441, %443 : vector<8x8xf32>
    %c6_254 = arith.constant 6 : index
    %c0_255 = arith.constant 0 : index
    %c0_256 = arith.constant 0 : index
    %445 = vector.load %arg6[%c6_254, %c0_255, %c0_256] : memref<8x32x8xf32, #tpu.memory_space<vmem>>, vector<1x32x8xf32>
    %446 = vector.shape_cast %445 : vector<1x32x8xf32> to vector<32x8xf32>
    %cst_257 = arith.constant dense<0.000000e+00> : vector<8x8xf32>
    %447 = tpu.matmul %364, %446, %cst_257 {dimension_numbers = #tpu.dot_dimension_numbers<[1], [0], [0], [1], [0, 0, 1, 1], [], []>} : vector<8x32xf32>, vector<32x8xf32>, vector<8x8xf32> -> vector<8x8xf32>
    %448 = vector.extract_strided_slice %432 {offsets = [2, 0], sizes = [1, 8], strides = [1, 1]} : vector<3x8xf32> to vector<1x8xf32>
    %449 = vector.broadcast %448 : vector<1x8xf32> to vector<8x8xf32>
    %450 = arith.addf %447, %449 : vector<8x8xf32>
    %cst_258 = arith.constant dense<0.000000e+00> : vector<8x8xf32>
    %451 = tpu.matmul %438, %444, %cst_258 {dimension_numbers = #tpu.dot_dimension_numbers<[1], [1], [0], [0], [0, 0, 1, 0], [], []>} : vector<8x8xf32>, vector<8x8xf32>, vector<8x8xf32> -> vector<8x8xf32>
    %cst_259 = arith.constant dense<0xFF800000> : vector<8xf32>
    %452 = vector.multi_reduction <maximumf>, %451, %cst_259 [1] : vector<8x8xf32> to vector<8xf32>
    %453 = vector.shape_cast %452 : vector<8xf32> to vector<8x1xf32>
    %454 = vector.broadcast %453 : vector<8x1xf32> to vector<8x8xf32>
    %455 = arith.subf %451, %454 : vector<8x8xf32>
    %456 = math.exp %455 : vector<8x8xf32>
    %cst_260 = arith.constant dense<0.000000e+00> : vector<8xf32>
    %457 = vector.multi_reduction <add>, %456, %cst_260 [1] : vector<8x8xf32> to vector<8xf32>
    %458 = vector.shape_cast %457 : vector<8xf32> to vector<8x1xf32>
    %459 = tpu.reciprocal %458 {approx = true} : vector<8x1xf32> -> vector<8x1xf32>
    %460 = vector.broadcast %459 : vector<8x1xf32> to vector<8x8xf32>
    %461 = arith.mulf %456, %460 : vector<8x8xf32>
    %cst_261 = arith.constant dense<0.000000e+00> : vector<8x8xf32>
    %462 = tpu.matmul %461, %450, %cst_261 {dimension_numbers = #tpu.dot_dimension_numbers<[1], [0], [0], [1], [0, 0, 1, 1], [], []>} : vector<8x8xf32>, vector<8x8xf32>, vector<8x8xf32> -> vector<8x8xf32>
    %c0_262 = arith.constant 0 : index
    %c16_263 = arith.constant 16 : index
    %463 = vector.load %arg16[%c0_262, %c16_263] : memref<16x32xf32, #tpu.memory_space<vmem>>, vector<8x8xf32>
    tpu.vector_store %arg16[%c0_262, %c16_263], %462 {strides = array<i32>} : memref<16x32xf32, #tpu.memory_space<vmem>>, vector<8x8xf32>,
    %c7 = arith.constant 7 : index
    %c0_264 = arith.constant 0 : index
    %c0_265 = arith.constant 0 : index
    %464 = vector.load %arg7[%c7, %c0_264, %c0_265] : memref<8x3x8xf32, #tpu.memory_space<vmem>>, vector<1x3x8xf32>
    %465 = vector.shape_cast %464 : vector<1x3x8xf32> to vector<3x8xf32>
    %c7_266 = arith.constant 7 : index
    %c0_267 = arith.constant 0 : index
    %c0_268 = arith.constant 0 : index
    %466 = vector.load %arg4[%c7_266, %c0_267, %c0_268] : memref<8x32x8xf32, #tpu.memory_space<vmem>>, vector<1x32x8xf32>
    %467 = vector.shape_cast %466 : vector<1x32x8xf32> to vector<32x8xf32>
    %cst_269 = arith.constant dense<0.000000e+00> : vector<8x8xf32>
    %468 = tpu.matmul %364, %467, %cst_269 {dimension_numbers = #tpu.dot_dimension_numbers<[1], [0], [0], [1], [0, 0, 1, 1], [], []>} : vector<8x32xf32>, vector<32x8xf32>, vector<8x8xf32> -> vector<8x8xf32>
    %469 = vector.extract_strided_slice %465 {offsets = [0, 0], sizes = [1, 8], strides = [1, 1]} : vector<3x8xf32> to vector<1x8xf32>
    %470 = vector.broadcast %469 : vector<1x8xf32> to vector<8x8xf32>
    %471 = arith.addf %468, %470 : vector<8x8xf32>
    %c7_270 = arith.constant 7 : index
    %c0_271 = arith.constant 0 : index
    %c0_272 = arith.constant 0 : index
    %472 = vector.load %arg5[%c7_270, %c0_271, %c0_272] : memref<8x32x8xf32, #tpu.memory_space<vmem>>, vector<1x32x8xf32>
    %473 = vector.shape_cast %472 : vector<1x32x8xf32> to vector<32x8xf32>
    %cst_273 = arith.constant dense<0.000000e+00> : vector<8x8xf32>
    %474 = tpu.matmul %364, %473, %cst_273 {dimension_numbers = #tpu.dot_dimension_numbers<[1], [0], [0], [1], [0, 0, 1, 1], [], []>} : vector<8x32xf32>, vector<32x8xf32>, vector<8x8xf32> -> vector<8x8xf32>
    %475 = vector.extract_strided_slice %465 {offsets = [1, 0], sizes = [1, 8], strides = [1, 1]} : vector<3x8xf32> to vector<1x8xf32>
    %476 = vector.broadcast %475 : vector<1x8xf32> to vector<8x8xf32>
    %477 = arith.addf %474, %476 : vector<8x8xf32>
    %c7_274 = arith.constant 7 : index
    %c0_275 = arith.constant 0 : index
    %c0_276 = arith.constant 0 : index
    %478 = vector.load %arg6[%c7_274, %c0_275, %c0_276] : memref<8x32x8xf32, #tpu.memory_space<vmem>>, vector<1x32x8xf32>
    %479 = vector.shape_cast %478 : vector<1x32x8xf32> to vector<32x8xf32>
    %cst_277 = arith.constant dense<0.000000e+00> : vector<8x8xf32>
    %480 = tpu.matmul %364, %479, %cst_277 {dimension_numbers = #tpu.dot_dimension_numbers<[1], [0], [0], [1], [0, 0, 1, 1], [], []>} : vector<8x32xf32>, vector<32x8xf32>, vector<8x8xf32> -> vector<8x8xf32>
    %481 = vector.extract_strided_slice %465 {offsets = [2, 0], sizes = [1, 8], strides = [1, 1]} : vector<3x8xf32> to vector<1x8xf32>
    %482 = vector.broadcast %481 : vector<1x8xf32> to vector<8x8xf32>
    %483 = arith.addf %480, %482 : vector<8x8xf32>
    %cst_278 = arith.constant dense<0.000000e+00> : vector<8x8xf32>
    %484 = tpu.matmul %471, %477, %cst_278 {dimension_numbers = #tpu.dot_dimension_numbers<[1], [1], [0], [0], [0, 0, 1, 0], [], []>} : vector<8x8xf32>, vector<8x8xf32>, vector<8x8xf32> -> vector<8x8xf32>
    %cst_279 = arith.constant dense<0xFF800000> : vector<8xf32>
    %485 = vector.multi_reduction <maximumf>, %484, %cst_279 [1] : vector<8x8xf32> to vector<8xf32>
    %486 = vector.shape_cast %485 : vector<8xf32> to vector<8x1xf32>
    %487 = vector.broadcast %486 : vector<8x1xf32> to vector<8x8xf32>
    %488 = arith.subf %484, %487 : vector<8x8xf32>
    %489 = math.exp %488 : vector<8x8xf32>
    %cst_280 = arith.constant dense<0.000000e+00> : vector<8xf32>
    %490 = vector.multi_reduction <add>, %489, %cst_280 [1] : vector<8x8xf32> to vector<8xf32>
    %491 = vector.shape_cast %490 : vector<8xf32> to vector<8x1xf32>
    %492 = tpu.reciprocal %491 {approx = true} : vector<8x1xf32> -> vector<8x1xf32>
    %493 = vector.broadcast %492 : vector<8x1xf32> to vector<8x8xf32>
    %494 = arith.mulf %489, %493 : vector<8x8xf32>
    %cst_281 = arith.constant dense<0.000000e+00> : vector<8x8xf32>
    %495 = tpu.matmul %494, %483, %cst_281 {dimension_numbers = #tpu.dot_dimension_numbers<[1], [0], [0], [1], [0, 0, 1, 1], [], []>} : vector<8x8xf32>, vector<8x8xf32>, vector<8x8xf32> -> vector<8x8xf32>
    %c0_282 = arith.constant 0 : index
    %c24_283 = arith.constant 24 : index
    %496 = vector.load %arg16[%c0_282, %c24_283] : memref<16x32xf32, #tpu.memory_space<vmem>>, vector<8x8xf32>
    tpu.vector_store %arg16[%c0_282, %c24_283], %495 {strides = array<i32>} : memref<16x32xf32, #tpu.memory_space<vmem>>, vector<8x8xf32>,
    %497 = vector.extract_strided_slice %355 {offsets = [8, 0], sizes = [8, 32], strides = [1, 1]} : vector<16x32xf32> to vector<8x32xf32>
    %c4_284 = arith.constant 4 : index
    %c0_285 = arith.constant 0 : index
    %c0_286 = arith.constant 0 : index
    %498 = vector.load %arg7[%c4_284, %c0_285, %c0_286] : memref<8x3x8xf32, #tpu.memory_space<vmem>>, vector<1x3x8xf32>
    %499 = vector.shape_cast %498 : vector<1x3x8xf32> to vector<3x8xf32>
    %c4_287 = arith.constant 4 : index
    %c0_288 = arith.constant 0 : index
    %c0_289 = arith.constant 0 : index
    %500 = vector.load %arg4[%c4_287, %c0_288, %c0_289] : memref<8x32x8xf32, #tpu.memory_space<vmem>>, vector<1x32x8xf32>
    %501 = vector.shape_cast %500 : vector<1x32x8xf32> to vector<32x8xf32>
    %cst_290 = arith.constant dense<0.000000e+00> : vector<8x8xf32>
    %502 = tpu.matmul %497, %501, %cst_290 {dimension_numbers = #tpu.dot_dimension_numbers<[1], [0], [0], [1], [0, 0, 1, 1], [], []>} : vector<8x32xf32>, vector<32x8xf32>, vector<8x8xf32> -> vector<8x8xf32>
    %503 = vector.extract_strided_slice %499 {offsets = [0, 0], sizes = [1, 8], strides = [1, 1]} : vector<3x8xf32> to vector<1x8xf32>
    %504 = vector.broadcast %503 : vector<1x8xf32> to vector<8x8xf32>
    %505 = arith.addf %502, %504 : vector<8x8xf32>
    %c4_291 = arith.constant 4 : index
    %c0_292 = arith.constant 0 : index
    %c0_293 = arith.constant 0 : index
    %506 = vector.load %arg5[%c4_291, %c0_292, %c0_293] : memref<8x32x8xf32, #tpu.memory_space<vmem>>, vector<1x32x8xf32>
    %507 = vector.shape_cast %506 : vector<1x32x8xf32> to vector<32x8xf32>
    %cst_294 = arith.constant dense<0.000000e+00> : vector<8x8xf32>
    %508 = tpu.matmul %497, %507, %cst_294 {dimension_numbers = #tpu.dot_dimension_numbers<[1], [0], [0], [1], [0, 0, 1, 1], [], []>} : vector<8x32xf32>, vector<32x8xf32>, vector<8x8xf32> -> vector<8x8xf32>
    %509 = vector.extract_strided_slice %499 {offsets = [1, 0], sizes = [1, 8], strides = [1, 1]} : vector<3x8xf32> to vector<1x8xf32>
    %510 = vector.broadcast %509 : vector<1x8xf32> to vector<8x8xf32>
    %511 = arith.addf %508, %510 : vector<8x8xf32>
    %c4_295 = arith.constant 4 : index
    %c0_296 = arith.constant 0 : index
    %c0_297 = arith.constant 0 : index
    %512 = vector.load %arg6[%c4_295, %c0_296, %c0_297] : memref<8x32x8xf32, #tpu.memory_space<vmem>>, vector<1x32x8xf32>
    %513 = vector.shape_cast %512 : vector<1x32x8xf32> to vector<32x8xf32>
    %cst_298 = arith.constant dense<0.000000e+00> : vector<8x8xf32>
    %514 = tpu.matmul %497, %513, %cst_298 {dimension_numbers = #tpu.dot_dimension_numbers<[1], [0], [0], [1], [0, 0, 1, 1], [], []>} : vector<8x32xf32>, vector<32x8xf32>, vector<8x8xf32> -> vector<8x8xf32>
    %515 = vector.extract_strided_slice %499 {offsets = [2, 0], sizes = [1, 8], strides = [1, 1]} : vector<3x8xf32> to vector<1x8xf32>
    %516 = vector.broadcast %515 : vector<1x8xf32> to vector<8x8xf32>
    %517 = arith.addf %514, %516 : vector<8x8xf32>
    %cst_299 = arith.constant dense<0.000000e+00> : vector<8x8xf32>
    %518 = tpu.matmul %505, %511, %cst_299 {dimension_numbers = #tpu.dot_dimension_numbers<[1], [1], [0], [0], [0, 0, 1, 0], [], []>} : vector<8x8xf32>, vector<8x8xf32>, vector<8x8xf32> -> vector<8x8xf32>
    %cst_300 = arith.constant dense<0xFF800000> : vector<8xf32>
    %519 = vector.multi_reduction <maximumf>, %518, %cst_300 [1] : vector<8x8xf32> to vector<8xf32>
    %520 = vector.shape_cast %519 : vector<8xf32> to vector<8x1xf32>
    %521 = vector.broadcast %520 : vector<8x1xf32> to vector<8x8xf32>
    %522 = arith.subf %518, %521 : vector<8x8xf32>
    %523 = math.exp %522 : vector<8x8xf32>
    %cst_301 = arith.constant dense<0.000000e+00> : vector<8xf32>
    %524 = vector.multi_reduction <add>, %523, %cst_301 [1] : vector<8x8xf32> to vector<8xf32>
    %525 = vector.shape_cast %524 : vector<8xf32> to vector<8x1xf32>
    %526 = tpu.reciprocal %525 {approx = true} : vector<8x1xf32> -> vector<8x1xf32>
    %527 = vector.broadcast %526 : vector<8x1xf32> to vector<8x8xf32>
    %528 = arith.mulf %523, %527 : vector<8x8xf32>
    %cst_302 = arith.constant dense<0.000000e+00> : vector<8x8xf32>
    %529 = tpu.matmul %528, %517, %cst_302 {dimension_numbers = #tpu.dot_dimension_numbers<[1], [0], [0], [1], [0, 0, 1, 1], [], []>} : vector<8x8xf32>, vector<8x8xf32>, vector<8x8xf32> -> vector<8x8xf32>
    %c8_303 = arith.constant 8 : index
    %c0_304 = arith.constant 0 : index
    %530 = vector.load %arg16[%c8_303, %c0_304] : memref<16x32xf32, #tpu.memory_space<vmem>>, vector<8x8xf32>
    tpu.vector_store %arg16[%c8_303, %c0_304], %529 {strides = array<i32>} : memref<16x32xf32, #tpu.memory_space<vmem>>, vector<8x8xf32>,
    %c5_305 = arith.constant 5 : index
    %c0_306 = arith.constant 0 : index
    %c0_307 = arith.constant 0 : index
    %531 = vector.load %arg7[%c5_305, %c0_306, %c0_307] : memref<8x3x8xf32, #tpu.memory_space<vmem>>, vector<1x3x8xf32>
    %532 = vector.shape_cast %531 : vector<1x3x8xf32> to vector<3x8xf32>
    %c5_308 = arith.constant 5 : index
    %c0_309 = arith.constant 0 : index
    %c0_310 = arith.constant 0 : index
    %533 = vector.load %arg4[%c5_308, %c0_309, %c0_310] : memref<8x32x8xf32, #tpu.memory_space<vmem>>, vector<1x32x8xf32>
    %534 = vector.shape_cast %533 : vector<1x32x8xf32> to vector<32x8xf32>
    %cst_311 = arith.constant dense<0.000000e+00> : vector<8x8xf32>
    %535 = tpu.matmul %497, %534, %cst_311 {dimension_numbers = #tpu.dot_dimension_numbers<[1], [0], [0], [1], [0, 0, 1, 1], [], []>} : vector<8x32xf32>, vector<32x8xf32>, vector<8x8xf32> -> vector<8x8xf32>
    %536 = vector.extract_strided_slice %532 {offsets = [0, 0], sizes = [1, 8], strides = [1, 1]} : vector<3x8xf32> to vector<1x8xf32>
    %537 = vector.broadcast %536 : vector<1x8xf32> to vector<8x8xf32>
    %538 = arith.addf %535, %537 : vector<8x8xf32>
    %c5_312 = arith.constant 5 : index
    %c0_313 = arith.constant 0 : index
    %c0_314 = arith.constant 0 : index
    %539 = vector.load %arg5[%c5_312, %c0_313, %c0_314] : memref<8x32x8xf32, #tpu.memory_space<vmem>>, vector<1x32x8xf32>
    %540 = vector.shape_cast %539 : vector<1x32x8xf32> to vector<32x8xf32>
    %cst_315 = arith.constant dense<0.000000e+00> : vector<8x8xf32>
    %541 = tpu.matmul %497, %540, %cst_315 {dimension_numbers = #tpu.dot_dimension_numbers<[1], [0], [0], [1], [0, 0, 1, 1], [], []>} : vector<8x32xf32>, vector<32x8xf32>, vector<8x8xf32> -> vector<8x8xf32>
    %542 = vector.extract_strided_slice %532 {offsets = [1, 0], sizes = [1, 8], strides = [1, 1]} : vector<3x8xf32> to vector<1x8xf32>
    %543 = vector.broadcast %542 : vector<1x8xf32> to vector<8x8xf32>
    %544 = arith.addf %541, %543 : vector<8x8xf32>
    %c5_316 = arith.constant 5 : index
    %c0_317 = arith.constant 0 : index
    %c0_318 = arith.constant 0 : index
    %545 = vector.load %arg6[%c5_316, %c0_317, %c0_318] : memref<8x32x8xf32, #tpu.memory_space<vmem>>, vector<1x32x8xf32>
    %546 = vector.shape_cast %545 : vector<1x32x8xf32> to vector<32x8xf32>
    %cst_319 = arith.constant dense<0.000000e+00> : vector<8x8xf32>
    %547 = tpu.matmul %497, %546, %cst_319 {dimension_numbers = #tpu.dot_dimension_numbers<[1], [0], [0], [1], [0, 0, 1, 1], [], []>} : vector<8x32xf32>, vector<32x8xf32>, vector<8x8xf32> -> vector<8x8xf32>
    %548 = vector.extract_strided_slice %532 {offsets = [2, 0], sizes = [1, 8], strides = [1, 1]} : vector<3x8xf32> to vector<1x8xf32>
    %549 = vector.broadcast %548 : vector<1x8xf32> to vector<8x8xf32>
    %550 = arith.addf %547, %549 : vector<8x8xf32>
    %cst_320 = arith.constant dense<0.000000e+00> : vector<8x8xf32>
    %551 = tpu.matmul %538, %544, %cst_320 {dimension_numbers = #tpu.dot_dimension_numbers<[1], [1], [0], [0], [0, 0, 1, 0], [], []>} : vector<8x8xf32>, vector<8x8xf32>, vector<8x8xf32> -> vector<8x8xf32>
    %cst_321 = arith.constant dense<0xFF800000> : vector<8xf32>
    %552 = vector.multi_reduction <maximumf>, %551, %cst_321 [1] : vector<8x8xf32> to vector<8xf32>
    %553 = vector.shape_cast %552 : vector<8xf32> to vector<8x1xf32>
    %554 = vector.broadcast %553 : vector<8x1xf32> to vector<8x8xf32>
    %555 = arith.subf %551, %554 : vector<8x8xf32>
    %556 = math.exp %555 : vector<8x8xf32>
    %cst_322 = arith.constant dense<0.000000e+00> : vector<8xf32>
    %557 = vector.multi_reduction <add>, %556, %cst_322 [1] : vector<8x8xf32> to vector<8xf32>
    %558 = vector.shape_cast %557 : vector<8xf32> to vector<8x1xf32>
    %559 = tpu.reciprocal %558 {approx = true} : vector<8x1xf32> -> vector<8x1xf32>
    %560 = vector.broadcast %559 : vector<8x1xf32> to vector<8x8xf32>
    %561 = arith.mulf %556, %560 : vector<8x8xf32>
    %cst_323 = arith.constant dense<0.000000e+00> : vector<8x8xf32>
    %562 = tpu.matmul %561, %550, %cst_323 {dimension_numbers = #tpu.dot_dimension_numbers<[1], [0], [0], [1], [0, 0, 1, 1], [], []>} : vector<8x8xf32>, vector<8x8xf32>, vector<8x8xf32> -> vector<8x8xf32>
    %c8_324 = arith.constant 8 : index
    %c8_325 = arith.constant 8 : index
    %563 = vector.load %arg16[%c8_324, %c8_325] : memref<16x32xf32, #tpu.memory_space<vmem>>, vector<8x8xf32>
    tpu.vector_store %arg16[%c8_324, %c8_325], %562 {strides = array<i32>} : memref<16x32xf32, #tpu.memory_space<vmem>>, vector<8x8xf32>,
    %c6_326 = arith.constant 6 : index
    %c0_327 = arith.constant 0 : index
    %c0_328 = arith.constant 0 : index
    %564 = vector.load %arg7[%c6_326, %c0_327, %c0_328] : memref<8x3x8xf32, #tpu.memory_space<vmem>>, vector<1x3x8xf32>
    %565 = vector.shape_cast %564 : vector<1x3x8xf32> to vector<3x8xf32>
    %c6_329 = arith.constant 6 : index
    %c0_330 = arith.constant 0 : index
    %c0_331 = arith.constant 0 : index
    %566 = vector.load %arg4[%c6_329, %c0_330, %c0_331] : memref<8x32x8xf32, #tpu.memory_space<vmem>>, vector<1x32x8xf32>
    %567 = vector.shape_cast %566 : vector<1x32x8xf32> to vector<32x8xf32>
    %cst_332 = arith.constant dense<0.000000e+00> : vector<8x8xf32>
    %568 = tpu.matmul %497, %567, %cst_332 {dimension_numbers = #tpu.dot_dimension_numbers<[1], [0], [0], [1], [0, 0, 1, 1], [], []>} : vector<8x32xf32>, vector<32x8xf32>, vector<8x8xf32> -> vector<8x8xf32>
    %569 = vector.extract_strided_slice %565 {offsets = [0, 0], sizes = [1, 8], strides = [1, 1]} : vector<3x8xf32> to vector<1x8xf32>
    %570 = vector.broadcast %569 : vector<1x8xf32> to vector<8x8xf32>
    %571 = arith.addf %568, %570 : vector<8x8xf32>
    %c6_333 = arith.constant 6 : index
    %c0_334 = arith.constant 0 : index
    %c0_335 = arith.constant 0 : index
    %572 = vector.load %arg5[%c6_333, %c0_334, %c0_335] : memref<8x32x8xf32, #tpu.memory_space<vmem>>, vector<1x32x8xf32>
    %573 = vector.shape_cast %572 : vector<1x32x8xf32> to vector<32x8xf32>
    %cst_336 = arith.constant dense<0.000000e+00> : vector<8x8xf32>
    %574 = tpu.matmul %497, %573, %cst_336 {dimension_numbers = #tpu.dot_dimension_numbers<[1], [0], [0], [1], [0, 0, 1, 1], [], []>} : vector<8x32xf32>, vector<32x8xf32>, vector<8x8xf32> -> vector<8x8xf32>
    %575 = vector.extract_strided_slice %565 {offsets = [1, 0], sizes = [1, 8], strides = [1, 1]} : vector<3x8xf32> to vector<1x8xf32>
    %576 = vector.broadcast %575 : vector<1x8xf32> to vector<8x8xf32>
    %577 = arith.addf %574, %576 : vector<8x8xf32>
    %c6_337 = arith.constant 6 : index
    %c0_338 = arith.constant 0 : index
    %c0_339 = arith.constant 0 : index
    %578 = vector.load %arg6[%c6_337, %c0_338, %c0_339] : memref<8x32x8xf32, #tpu.memory_space<vmem>>, vector<1x32x8xf32>
    %579 = vector.shape_cast %578 : vector<1x32x8xf32> to vector<32x8xf32>
    %cst_340 = arith.constant dense<0.000000e+00> : vector<8x8xf32>
    %580 = tpu.matmul %497, %579, %cst_340 {dimension_numbers = #tpu.dot_dimension_numbers<[1], [0], [0], [1], [0, 0, 1, 1], [], []>} : vector<8x32xf32>, vector<32x8xf32>, vector<8x8xf32> -> vector<8x8xf32>
    %581 = vector.extract_strided_slice %565 {offsets = [2, 0], sizes = [1, 8], strides = [1, 1]} : vector<3x8xf32> to vector<1x8xf32>
    %582 = vector.broadcast %581 : vector<1x8xf32> to vector<8x8xf32>
    %583 = arith.addf %580, %582 : vector<8x8xf32>
    %cst_341 = arith.constant dense<0.000000e+00> : vector<8x8xf32>
    %584 = tpu.matmul %571, %577, %cst_341 {dimension_numbers = #tpu.dot_dimension_numbers<[1], [1], [0], [0], [0, 0, 1, 0], [], []>} : vector<8x8xf32>, vector<8x8xf32>, vector<8x8xf32> -> vector<8x8xf32>
    %cst_342 = arith.constant dense<0xFF800000> : vector<8xf32>
    %585 = vector.multi_reduction <maximumf>, %584, %cst_342 [1] : vector<8x8xf32> to vector<8xf32>
    %586 = vector.shape_cast %585 : vector<8xf32> to vector<8x1xf32>
    %587 = vector.broadcast %586 : vector<8x1xf32> to vector<8x8xf32>
    %588 = arith.subf %584, %587 : vector<8x8xf32>
    %589 = math.exp %588 : vector<8x8xf32>
    %cst_343 = arith.constant dense<0.000000e+00> : vector<8xf32>
    %590 = vector.multi_reduction <add>, %589, %cst_343 [1] : vector<8x8xf32> to vector<8xf32>
    %591 = vector.shape_cast %590 : vector<8xf32> to vector<8x1xf32>
    %592 = tpu.reciprocal %591 {approx = true} : vector<8x1xf32> -> vector<8x1xf32>
    %593 = vector.broadcast %592 : vector<8x1xf32> to vector<8x8xf32>
    %594 = arith.mulf %589, %593 : vector<8x8xf32>
    %cst_344 = arith.constant dense<0.000000e+00> : vector<8x8xf32>
    %595 = tpu.matmul %594, %583, %cst_344 {dimension_numbers = #tpu.dot_dimension_numbers<[1], [0], [0], [1], [0, 0, 1, 1], [], []>} : vector<8x8xf32>, vector<8x8xf32>, vector<8x8xf32> -> vector<8x8xf32>
    %c8_345 = arith.constant 8 : index
    %c16_346 = arith.constant 16 : index
    %596 = vector.load %arg16[%c8_345, %c16_346] : memref<16x32xf32, #tpu.memory_space<vmem>>, vector<8x8xf32>
    tpu.vector_store %arg16[%c8_345, %c16_346], %595 {strides = array<i32>} : memref<16x32xf32, #tpu.memory_space<vmem>>, vector<8x8xf32>,
    %c7_347 = arith.constant 7 : index
    %c0_348 = arith.constant 0 : index
    %c0_349 = arith.constant 0 : index
    %597 = vector.load %arg7[%c7_347, %c0_348, %c0_349] : memref<8x3x8xf32, #tpu.memory_space<vmem>>, vector<1x3x8xf32>
    %598 = vector.shape_cast %597 : vector<1x3x8xf32> to vector<3x8xf32>
    %c7_350 = arith.constant 7 : index
    %c0_351 = arith.constant 0 : index
    %c0_352 = arith.constant 0 : index
    %599 = vector.load %arg4[%c7_350, %c0_351, %c0_352] : memref<8x32x8xf32, #tpu.memory_space<vmem>>, vector<1x32x8xf32>
    %600 = vector.shape_cast %599 : vector<1x32x8xf32> to vector<32x8xf32>
    %cst_353 = arith.constant dense<0.000000e+00> : vector<8x8xf32>
    %601 = tpu.matmul %497, %600, %cst_353 {dimension_numbers = #tpu.dot_dimension_numbers<[1], [0], [0], [1], [0, 0, 1, 1], [], []>} : vector<8x32xf32>, vector<32x8xf32>, vector<8x8xf32> -> vector<8x8xf32>
    %602 = vector.extract_strided_slice %598 {offsets = [0, 0], sizes = [1, 8], strides = [1, 1]} : vector<3x8xf32> to vector<1x8xf32>
    %603 = vector.broadcast %602 : vector<1x8xf32> to vector<8x8xf32>
    %604 = arith.addf %601, %603 : vector<8x8xf32>
    %c7_354 = arith.constant 7 : index
    %c0_355 = arith.constant 0 : index
    %c0_356 = arith.constant 0 : index
    %605 = vector.load %arg5[%c7_354, %c0_355, %c0_356] : memref<8x32x8xf32, #tpu.memory_space<vmem>>, vector<1x32x8xf32>
    %606 = vector.shape_cast %605 : vector<1x32x8xf32> to vector<32x8xf32>
    %cst_357 = arith.constant dense<0.000000e+00> : vector<8x8xf32>
    %607 = tpu.matmul %497, %606, %cst_357 {dimension_numbers = #tpu.dot_dimension_numbers<[1], [0], [0], [1], [0, 0, 1, 1], [], []>} : vector<8x32xf32>, vector<32x8xf32>, vector<8x8xf32> -> vector<8x8xf32>
    %608 = vector.extract_strided_slice %598 {offsets = [1, 0], sizes = [1, 8], strides = [1, 1]} : vector<3x8xf32> to vector<1x8xf32>
    %609 = vector.broadcast %608 : vector<1x8xf32> to vector<8x8xf32>
    %610 = arith.addf %607, %609 : vector<8x8xf32>
    %c7_358 = arith.constant 7 : index
    %c0_359 = arith.constant 0 : index
    %c0_360 = arith.constant 0 : index
    %611 = vector.load %arg6[%c7_358, %c0_359, %c0_360] : memref<8x32x8xf32, #tpu.memory_space<vmem>>, vector<1x32x8xf32>
    %612 = vector.shape_cast %611 : vector<1x32x8xf32> to vector<32x8xf32>
    %cst_361 = arith.constant dense<0.000000e+00> : vector<8x8xf32>
    %613 = tpu.matmul %497, %612, %cst_361 {dimension_numbers = #tpu.dot_dimension_numbers<[1], [0], [0], [1], [0, 0, 1, 1], [], []>} : vector<8x32xf32>, vector<32x8xf32>, vector<8x8xf32> -> vector<8x8xf32>
    %614 = vector.extract_strided_slice %598 {offsets = [2, 0], sizes = [1, 8], strides = [1, 1]} : vector<3x8xf32> to vector<1x8xf32>
    %615 = vector.broadcast %614 : vector<1x8xf32> to vector<8x8xf32>
    %616 = arith.addf %613, %615 : vector<8x8xf32>
    %cst_362 = arith.constant dense<0.000000e+00> : vector<8x8xf32>
    %617 = tpu.matmul %604, %610, %cst_362 {dimension_numbers = #tpu.dot_dimension_numbers<[1], [1], [0], [0], [0, 0, 1, 0], [], []>} : vector<8x8xf32>, vector<8x8xf32>, vector<8x8xf32> -> vector<8x8xf32>
    %cst_363 = arith.constant dense<0xFF800000> : vector<8xf32>
    %618 = vector.multi_reduction <maximumf>, %617, %cst_363 [1] : vector<8x8xf32> to vector<8xf32>
    %619 = vector.shape_cast %618 : vector<8xf32> to vector<8x1xf32>
    %620 = vector.broadcast %619 : vector<8x1xf32> to vector<8x8xf32>
    %621 = arith.subf %617, %620 : vector<8x8xf32>
    %622 = math.exp %621 : vector<8x8xf32>
    %cst_364 = arith.constant dense<0.000000e+00> : vector<8xf32>
    %623 = vector.multi_reduction <add>, %622, %cst_364 [1] : vector<8x8xf32> to vector<8xf32>
    %624 = vector.shape_cast %623 : vector<8xf32> to vector<8x1xf32>
    %625 = tpu.reciprocal %624 {approx = true} : vector<8x1xf32> -> vector<8x1xf32>
    %626 = vector.broadcast %625 : vector<8x1xf32> to vector<8x8xf32>
    %627 = arith.mulf %622, %626 : vector<8x8xf32>
    %cst_365 = arith.constant dense<0.000000e+00> : vector<8x8xf32>
    %628 = tpu.matmul %627, %616, %cst_365 {dimension_numbers = #tpu.dot_dimension_numbers<[1], [0], [0], [1], [0, 0, 1, 1], [], []>} : vector<8x8xf32>, vector<8x8xf32>, vector<8x8xf32> -> vector<8x8xf32>
    %c8_366 = arith.constant 8 : index
    %c24_367 = arith.constant 24 : index
    %629 = vector.load %arg16[%c8_366, %c24_367] : memref<16x32xf32, #tpu.memory_space<vmem>>, vector<8x8xf32>
    tpu.vector_store %arg16[%c8_366, %c24_367], %628 {strides = array<i32>} : memref<16x32xf32, #tpu.memory_space<vmem>>, vector<8x8xf32>,
    %c0_368 = arith.constant 0 : index
    %c0_369 = arith.constant 0 : index
    %630 = vector.load %arg16[%c0_368, %c0_369] : memref<16x32xf32, #tpu.memory_space<vmem>>, vector<16x32xf32>
    %c1_370 = arith.constant 1 : index
    %c0_371 = arith.constant 0 : index
    %c0_372 = arith.constant 0 : index
    %631 = vector.load %arg8[%c1_370, %c0_371, %c0_372] : memref<2x32x32xf32, #tpu.memory_space<vmem>>, vector<1x32x32xf32>
    %632 = vector.shape_cast %631 : vector<1x32x32xf32> to vector<32x32xf32>
    %cst_373 = arith.constant dense<0.000000e+00> : vector<16x32xf32>
    %633 = tpu.matmul %630, %632, %cst_373 {dimension_numbers = #tpu.dot_dimension_numbers<[1], [0], [0], [1], [0, 0, 1, 1], [], []>} : vector<16x32xf32>, vector<32x32xf32>, vector<16x32xf32> -> vector<16x32xf32>
    %634 = vector.broadcast %358 : vector<1x32xf32> to vector<16x32xf32>
    %635 = arith.addf %633, %634 : vector<16x32xf32>
    %636 = arith.addf %355, %635 : vector<16x32xf32>
    %cst_374 = arith.constant dense<0.000000e+00> : vector<16xf32>
    %637 = vector.multi_reduction <add>, %636, %cst_374 [1] : vector<16x32xf32> to vector<16xf32>
    %638 = vector.shape_cast %637 : vector<16xf32> to vector<16x1xf32>
    %cst_375 = arith.constant 3.200000e+01 : f32
    %639 = vector.broadcast %cst_375 : f32 to vector<16x1xf32>
    %640 = arith.divf %638, %639 : vector<16x1xf32>
    %641 = vector.broadcast %640 : vector<16x1xf32> to vector<16x32xf32>
    %642 = arith.subf %636, %641 : vector<16x32xf32>
    %643 = arith.mulf %642, %642 : vector<16x32xf32>
    %cst_376 = arith.constant dense<0.000000e+00> : vector<16xf32>
    %644 = vector.multi_reduction <add>, %643, %cst_376 [1] : vector<16x32xf32> to vector<16xf32>
    %645 = vector.shape_cast %644 : vector<16xf32> to vector<16x1xf32>
    %cst_377 = arith.constant 3.200000e+01 : f32
    %646 = vector.broadcast %cst_377 : f32 to vector<16x1xf32>
    %647 = arith.divf %645, %646 : vector<16x1xf32>
    %648 = vector.broadcast %640 : vector<16x1xf32> to vector<16x32xf32>
    %649 = arith.subf %636, %648 : vector<16x32xf32>
    %cst_378 = arith.constant 9.99999974E-6 : f32
    %650 = vector.broadcast %cst_378 : f32 to vector<16x1xf32>
    %651 = arith.addf %647, %650 : vector<16x1xf32>
    %652 = math.rsqrt %651 : vector<16x1xf32>
    %653 = vector.broadcast %652 : vector<16x1xf32> to vector<16x32xf32>
    %654 = arith.mulf %649, %653 : vector<16x32xf32>
    %655 = vector.broadcast %359 : vector<1x32xf32> to vector<16x32xf32>
    %656 = arith.mulf %654, %655 : vector<16x32xf32>
    %657 = vector.broadcast %360 : vector<1x32xf32> to vector<16x32xf32>
    %658 = arith.addf %656, %657 : vector<16x32xf32>
    %c1_379 = arith.constant 1 : index
    %c0_380 = arith.constant 0 : index
    %c0_381 = arith.constant 0 : index
    %659 = vector.load %arg10[%c1_379, %c0_380, %c0_381] : memref<2x32x64xf32, #tpu.memory_space<vmem>>, vector<1x32x64xf32>
    %660 = vector.shape_cast %659 : vector<1x32x64xf32> to vector<32x64xf32>
    %cst_382 = arith.constant dense<0.000000e+00> : vector<16x64xf32>
    %661 = tpu.matmul %658, %660, %cst_382 {dimension_numbers = #tpu.dot_dimension_numbers<[1], [0], [0], [1], [0, 0, 1, 1], [], []>} : vector<16x32xf32>, vector<32x64xf32>, vector<16x64xf32> -> vector<16x64xf32>
    %c1_383 = arith.constant 1 : index
    %c0_384 = arith.constant 0 : index
    %c0_385 = arith.constant 0 : index
    %662 = vector.load %arg11[%c1_383, %c0_384, %c0_385] : memref<2x1x64xf32, #tpu.memory_space<vmem>>, vector<1x1x64xf32>
    %663 = vector.shape_cast %662 : vector<1x1x64xf32> to vector<1x64xf32>
    %664 = vector.broadcast %663 : vector<1x64xf32> to vector<16x64xf32>
    %665 = arith.addf %661, %664 : vector<16x64xf32>
    %666 = arith.mulf %665, %665 : vector<16x64xf32>
    %667 = arith.mulf %665, %666 : vector<16x64xf32>
    %cst_386 = arith.constant 4.471500e-02 : f32
    %668 = vector.broadcast %cst_386 : f32 to vector<16x64xf32>
    %669 = arith.mulf %668, %667 : vector<16x64xf32>
    %670 = arith.addf %665, %669 : vector<16x64xf32>
    %cst_387 = arith.constant 0.797884583 : f32
    %671 = vector.broadcast %cst_387 : f32 to vector<16x64xf32>
    %672 = arith.mulf %671, %670 : vector<16x64xf32>
    %673 = math.tanh %672 : vector<16x64xf32>
    %cst_388 = arith.constant 1.000000e+00 : f32
    %674 = vector.broadcast %cst_388 : f32 to vector<16x64xf32>
    %675 = arith.addf %674, %673 : vector<16x64xf32>
    %cst_389 = arith.constant 5.000000e-01 : f32
    %676 = vector.broadcast %cst_389 : f32 to vector<16x64xf32>
    %677 = arith.mulf %676, %675 : vector<16x64xf32>
    %678 = arith.mulf %665, %677 : vector<16x64xf32>
    %c1_390 = arith.constant 1 : index
    %c0_391 = arith.constant 0 : index
    %c0_392 = arith.constant 0 : index
    %679 = vector.load %arg12[%c1_390, %c0_391, %c0_392] : memref<2x64x32xf32, #tpu.memory_space<vmem>>, vector<1x64x32xf32>
    %680 = vector.shape_cast %679 : vector<1x64x32xf32> to vector<64x32xf32>
    %cst_393 = arith.constant dense<0.000000e+00> : vector<16x32xf32>
    %681 = tpu.matmul %678, %680, %cst_393 {dimension_numbers = #tpu.dot_dimension_numbers<[1], [0], [0], [1], [0, 0, 1, 1], [], []>} : vector<16x64xf32>, vector<64x32xf32>, vector<16x32xf32> -> vector<16x32xf32>
    %682 = vector.broadcast %361 : vector<1x32xf32> to vector<16x32xf32>
    %683 = arith.addf %681, %682 : vector<16x32xf32>
    %684 = arith.addf %658, %683 : vector<16x32xf32>
    %cst_394 = arith.constant dense<0.000000e+00> : vector<16xf32>
    %685 = vector.multi_reduction <add>, %684, %cst_394 [1] : vector<16x32xf32> to vector<16xf32>
    %686 = vector.shape_cast %685 : vector<16xf32> to vector<16x1xf32>
    %cst_395 = arith.constant 3.200000e+01 : f32
    %687 = vector.broadcast %cst_395 : f32 to vector<16x1xf32>
    %688 = arith.divf %686, %687 : vector<16x1xf32>
    %689 = vector.broadcast %688 : vector<16x1xf32> to vector<16x32xf32>
    %690 = arith.subf %684, %689 : vector<16x32xf32>
    %691 = arith.mulf %690, %690 : vector<16x32xf32>
    %cst_396 = arith.constant dense<0.000000e+00> : vector<16xf32>
    %692 = vector.multi_reduction <add>, %691, %cst_396 [1] : vector<16x32xf32> to vector<16xf32>
    %693 = vector.shape_cast %692 : vector<16xf32> to vector<16x1xf32>
    %cst_397 = arith.constant 3.200000e+01 : f32
    %694 = vector.broadcast %cst_397 : f32 to vector<16x1xf32>
    %695 = arith.divf %693, %694 : vector<16x1xf32>
    %696 = vector.broadcast %688 : vector<16x1xf32> to vector<16x32xf32>
    %697 = arith.subf %684, %696 : vector<16x32xf32>
    %cst_398 = arith.constant 9.99999974E-6 : f32
    %698 = vector.broadcast %cst_398 : f32 to vector<16x1xf32>
    %699 = arith.addf %695, %698 : vector<16x1xf32>
    %700 = math.rsqrt %699 : vector<16x1xf32>
    %701 = vector.broadcast %700 : vector<16x1xf32> to vector<16x32xf32>
    %702 = arith.mulf %697, %701 : vector<16x32xf32>
    %703 = vector.broadcast %362 : vector<1x32xf32> to vector<16x32xf32>
    %704 = arith.mulf %702, %703 : vector<16x32xf32>
    %705 = vector.broadcast %363 : vector<1x32xf32> to vector<16x32xf32>
    %706 = arith.addf %704, %705 : vector<16x32xf32>
    %c0_399 = arith.constant 0 : index
    %c0_400 = arith.constant 0 : index
    %707 = vector.load %arg13[%c0_399, %c0_400] : memref<32x128xf32, #tpu.memory_space<vmem>>, vector<32x128xf32>
    %cst_401 = arith.constant dense<0.000000e+00> : vector<16x128xf32>
    %708 = tpu.matmul %706, %707, %cst_401 {dimension_numbers = #tpu.dot_dimension_numbers<[1], [0], [0], [1], [0, 0, 1, 1], [], []>} : vector<16x32xf32>, vector<32x128xf32>, vector<16x128xf32> -> vector<16x128xf32>
    %c0_402 = arith.constant 0 : index
    %c0_403 = arith.constant 0 : index
    %709 = vector.load %arg14[%c0_402, %c0_403] : memref<1x128xf32, #tpu.memory_space<vmem>>, vector<1x128xf32>
    %710 = vector.broadcast %709 : vector<1x128xf32> to vector<16x128xf32>
    %711 = arith.addf %708, %710 : vector<16x128xf32>
    %c0_404 = arith.constant 0 : index
    %c0_405 = arith.constant 0 : index
    %712 = vector.load %arg15[%c0_404, %c0_405] : memref<16x128xf32, #tpu.memory_space<vmem>>, vector<16x128xf32>
    tpu.vector_store %arg15[%c0_404, %c0_405], %711 {strides = array<i32>} : memref<16x128xf32, #tpu.memory_space<vmem>>, vector<16x128xf32>,
    return
  }
  func.func @transform_0(%arg0: i32) -> (i32, i32) {
    %c0_i32 = arith.constant 0 : i32
    %c0_i32_0 = arith.constant 0 : i32
    %c0_i32_1 = arith.constant 0 : i32
    return %c0_i32, %c0_i32_0 : i32, i32
  }
  func.func @transform_1(%arg0: i32) -> (i32, i32) {
    %c0_i32 = arith.constant 0 : i32
    %c0_i32_0 = arith.constant 0 : i32
    %c0_i32_1 = arith.constant 0 : i32
    return %c0_i32, %c0_i32_0 : i32, i32
  }
  func.func @transform_2(%arg0: i32) -> (i32, i32) {
    %c0_i32 = arith.constant 0 : i32
    %c0_i32_0 = arith.constant 0 : i32
    %c0_i32_1 = arith.constant 0 : i32
    return %c0_i32, %c0_i32_0 : i32, i32
  }
  func.func @transform_3(%arg0: i32) -> (i32, i32, i32) {
    %c0_i32 = arith.constant 0 : i32
    %c0_i32_0 = arith.constant 0 : i32
    %c0_i32_1 = arith.constant 0 : i32
    %c0_i32_2 = arith.constant 0 : i32
    return %c0_i32, %c0_i32_0, %c0_i32_1 : i32, i32, i32
  }
  func.func @transform_4(%arg0: i32) -> (i32, i32, i32) {
    %c0_i32 = arith.constant 0 : i32
    %c0_i32_0 = arith.constant 0 : i32
    %c0_i32_1 = arith.constant 0 : i32
    %c0_i32_2 = arith.constant 0 : i32
    return %c0_i32, %c0_i32_0, %c0_i32_1 : i32, i32, i32
  }
  func.func @transform_5(%arg0: i32) -> (i32, i32, i32) {
    %c0_i32 = arith.constant 0 : i32
    %c0_i32_0 = arith.constant 0 : i32
    %c0_i32_1 = arith.constant 0 : i32
    %c0_i32_2 = arith.constant 0 : i32
    return %c0_i32, %c0_i32_0, %c0_i32_1 : i32, i32, i32
  }
  func.func @transform_6(%arg0: i32) -> (i32, i32, i32) {
    %c0_i32 = arith.constant 0 : i32
    %c0_i32_0 = arith.constant 0 : i32
    %c0_i32_1 = arith.constant 0 : i32
    %c0_i32_2 = arith.constant 0 : i32
    return %c0_i32, %c0_i32_0, %c0_i32_1 : i32, i32, i32
  }
  func.func @transform_7(%arg0: i32) -> (i32, i32, i32) {
    %c0_i32 = arith.constant 0 : i32
    %c0_i32_0 = arith.constant 0 : i32
    %c0_i32_1 = arith.constant 0 : i32
    %c0_i32_2 = arith.constant 0 : i32
    return %c0_i32, %c0_i32_0, %c0_i32_1 : i32, i32, i32
  }
  func.func @transform_8(%arg0: i32) -> (i32, i32, i32) {
    %c0_i32 = arith.constant 0 : i32
    %c0_i32_0 = arith.constant 0 : i32
    %c0_i32_1 = arith.constant 0 : i32
    %c0_i32_2 = arith.constant 0 : i32
    return %c0_i32, %c0_i32_0, %c0_i32_1 : i32, i32, i32
  }
  func.func @transform_9(%arg0: i32) -> (i32, i32, i32) {
    %c0_i32 = arith.constant 0 : i32
    %c0_i32_0 = arith.constant 0 : i32
    %c0_i32_1 = arith.constant 0 : i32
    %c0_i32_2 = arith.constant 0 : i32
    return %c0_i32, %c0_i32_0, %c0_i32_1 : i32, i32, i32
  }
  func.func @transform_10(%arg0: i32) -> (i32, i32, i32) {
    %c0_i32 = arith.constant 0 : i32
    %c0_i32_0 = arith.constant 0 : i32
    %c0_i32_1 = arith.constant 0 : i32
    %c0_i32_2 = arith.constant 0 : i32
    return %c0_i32, %c0_i32_0, %c0_i32_1 : i32, i32, i32
  }
  func.func @transform_11(%arg0: i32) -> (i32, i32, i32) {
    %c0_i32 = arith.constant 0 : i32
    %c0_i32_0 = arith.constant 0 : i32
    %c0_i32_1 = arith.constant 0 : i32
    %c0_i32_2 = arith.constant 0 : i32
    return %c0_i32, %c0_i32_0, %c0_i32_1 : i32, i32, i32
  }
  func.func @transform_12(%arg0: i32) -> (i32, i32) {
    %c0_i32 = arith.constant 0 : i32
    %c0_i32_0 = arith.constant 0 : i32
    %c0_i32_1 = arith.constant 0 : i32
    return %c0_i32, %c0_i32_0 : i32, i32
  }
  func.func @transform_13(%arg0: i32) -> (i32, i32) {
    %c0_i32 = arith.constant 0 : i32
    %c0_i32_0 = arith.constant 0 : i32
    %c0_i32_1 = arith.constant 0 : i32
    return %c0_i32, %c0_i32_0 : i32, i32
  }
  func.func @transform_14(%arg0: i32) -> (i32, i32) {
    %c0_i32 = arith.constant 0 : i32
    %c0_i32_0 = arith.constant 0 : i32
    %c0_i32_1 = arith.constant 0 : i32
    return %c0_i32, %c0_i32_0 : i32, i32
  }
}

</mosaic_0001>

<llo_original>
// kernel: tpu_custom_call.1
$region0: #{tpu_custom_call.1}
  #allocation0 [shape = 'u32[]', space=smem, size = 0x4, offset = 0x4, fixed_abs, tag = 'smem constant byte address 0x4 - core index']
  #allocation1 [shape = 'u32[144,128]{1,0:T(1,128)}', space=vmem, size = 0x12000, scoped, tag = 'internal scratch']
  #allocation2 [shape = 'f32[16,32]{1,0:T(8,128)}', space=vmem, size = 0x2000, scoped, tag = 'scratch operand']
  %s0 = inlined_call_operand.vmem [shape: f32[16,16], index: 0, kind: input, shape index: {}]
  %s1 = inlined_call_operand.vmem [shape: f32[16,32], index: 1, kind: input, shape index: {}]
  %s2 = inlined_call_operand.vmem [shape: f32[16,32], index: 2, kind: input, shape index: {}]
  %s3 = inlined_call_operand.vmem [shape: f32[8,32,8], index: 3, kind: input, shape index: {}]
  %s4 = inlined_call_operand.vmem [shape: f32[8,32,8], index: 4, kind: input, shape index: {}]
  %s5 = inlined_call_operand.vmem [shape: f32[8,32,8], index: 5, kind: input, shape index: {}]
  %s6 = inlined_call_operand.vmem [shape: f32[8,3,8], index: 6, kind: input, shape index: {}]
  %s7 = inlined_call_operand.vmem [shape: f32[2,32,32], index: 7, kind: input, shape index: {}]
  %s8 = inlined_call_operand.vmem [shape: f32[2,6,32], index: 8, kind: input, shape index: {}]
  %s9 = inlined_call_operand.vmem [shape: f32[2,32,64], index: 9, kind: input, shape index: {}]
  %s10 = inlined_call_operand.vmem [shape: f32[2,1,64], index: 10, kind: input, shape index: {}]
  %s11 = inlined_call_operand.vmem [shape: f32[2,64,32], index: 11, kind: input, shape index: {}]
  %s12 = inlined_call_operand.vmem [shape: f32[32,128], index: 12, kind: input, shape index: {}]
  %s13 = inlined_call_operand.vmem [shape: f32[1,128], index: 13, kind: input, shape index: {}]
  %s14 = inlined_call_operand.hbm [shape: f32[16,128], index: 14, kind: output, shape index: {}]
  %s15 = sld [smem:[#allocation0]]
  $region66: #{tpu_custom_call.1} parent=0
    _
  %s17 = ssub.s32 1, %s15
  %s18 = scalar_select 0, %s17, %s15
  $region1: #{tpu_custom_call.1} parent=0
    #allocation3 [shape = 'u8[8192]{0}', space=vmem, size = 0x2000, scoped, tag = 'output window, operand 0, single buffered']
    #allocation4 [shape = 's32[1]{0}', space=sflag, size = 0x4, scoped, tag = 'scoped memory for tpu_custom_call.1']
    %19 = vsyncpa [#allocation4], 0
    // Predicated region
    $region2: #{tpu_custom_call.1} parent=1 // pred_check
      _
    $region3: #{tpu_custom_call.1} parent=1 // pred_check_branch
      %21 = sbr.rel (0) target = $region5
    $region4: #{tpu_custom_call.1} parent=1 // pred_region
      _
    $region5: #{tpu_custom_call.1} parent=1 // pred_fallthru
      _
    // Predicated region
    $region6: #{tpu_custom_call.1} parent=1 // pred_check
      _
    $region7: #{tpu_custom_call.1} parent=1 // pred_check_branch
      %23 = sbr.rel (0) target = $region9
    $region8: #{tpu_custom_call.1} parent=1 // pred_region
      _
    $region9: #{tpu_custom_call.1} parent=1 // pred_fallthru
      _
    // Predicated region
    $region10: #{tpu_custom_call.1} parent=1 // pred_check
      _
    $region11: #{tpu_custom_call.1} parent=1 // pred_check_branch
      %25 = sbr.rel (0) target = $region13
    $region12: #{tpu_custom_call.1} parent=1 // pred_region
      _
    $region13: #{tpu_custom_call.1} parent=1 // pred_fallthru
      _
    // Predicated region
    $region14: #{tpu_custom_call.1} parent=1 // pred_check
      _
    $region15: #{tpu_custom_call.1} parent=1 // pred_check_branch
      %27 = sbr.rel (0) target = $region17
    $region16: #{tpu_custom_call.1} parent=1 // pred_region
      _
    $region17: #{tpu_custom_call.1} parent=1 // pred_fallthru
      _
    // Predicated region
    $region18: #{tpu_custom_call.1} parent=1 // pred_check
      _
    $region19: #{tpu_custom_call.1} parent=1 // pred_check_branch
      %29 = sbr.rel (0) target = $region21
    $region20: #{tpu_custom_call.1} parent=1 // pred_region
      _
    $region21: #{tpu_custom_call.1} parent=1 // pred_fallthru
      _
    // Predicated region
    $region22: #{tpu_custom_call.1} parent=1 // pred_check
      _
    $region23: #{tpu_custom_call.1} parent=1 // pred_check_branch
      %31 = sbr.rel (0) target = $region25
    $region24: #{tpu_custom_call.1} parent=1 // pred_region
      _
    $region25: #{tpu_custom_call.1} parent=1 // pred_fallthru
      _
    // Predicated region
    $region26: #{tpu_custom_call.1} parent=1 // pred_check
      _
    $region27: #{tpu_custom_call.1} parent=1 // pred_check_branch
      %33 = sbr.rel (0) target = $region29
    $region28: #{tpu_custom_call.1} parent=1 // pred_region
      _
    $region29: #{tpu_custom_call.1} parent=1 // pred_fallthru
      _
    // Predicated region
    $region30: #{tpu_custom_call.1} parent=1 // pred_check
      _
    $region31: #{tpu_custom_call.1} parent=1 // pred_check_branch
      %35 = sbr.rel (0) target = $region33
    $region32: #{tpu_custom_call.1} parent=1 // pred_region
      _
    $region33: #{tpu_custom_call.1} parent=1 // pred_fallthru
      _
    // Predicated region
    $region34: #{tpu_custom_call.1} parent=1 // pred_check
      _
    $region35: #{tpu_custom_call.1} parent=1 // pred_check_branch
      %37 = sbr.rel (0) target = $region37
    $region36: #{tpu_custom_call.1} parent=1 // pred_region
      _
    $region37: #{tpu_custom_call.1} parent=1 // pred_fallthru
      _
    // Predicated region
    $region38: #{tpu_custom_call.1} parent=1 // pred_check
      _
    $region39: #{tpu_custom_call.1} parent=1 // pred_check_branch
      %39 = sbr.rel (0) target = $region41
    $region40: #{tpu_custom_call.1} parent=1 // pred_region
      _
    $region41: #{tpu_custom_call.1} parent=1 // pred_fallthru
      _
    // Predicated region
    $region42: #{tpu_custom_call.1} parent=1 // pred_check
      _
    $region43: #{tpu_custom_call.1} parent=1 // pred_check_branch
      %41 = sbr.rel (0) target = $region45
    $region44: #{tpu_custom_call.1} parent=1 // pred_region
      _
    $region45: #{tpu_custom_call.1} parent=1 // pred_fallthru
      _
    // Predicated region
    $region46: #{tpu_custom_call.1} parent=1 // pred_check
      _
    $region47: #{tpu_custom_call.1} parent=1 // pred_check_branch
      %43 = sbr.rel (0) target = $region49
    $region48: #{tpu_custom_call.1} parent=1 // pred_region
      _
    $region49: #{tpu_custom_call.1} parent=1 // pred_fallthru
      _
    // Predicated region
    $region50: #{tpu_custom_call.1} parent=1 // pred_check
      _
    $region51: #{tpu_custom_call.1} parent=1 // pred_check_branch
      %45 = sbr.rel (0) target = $region53
    $region52: #{tpu_custom_call.1} parent=1 // pred_region
      _
    $region53: #{tpu_custom_call.1} parent=1 // pred_fallthru
      _
    // Predicated region
    $region54: #{tpu_custom_call.1} parent=1 // pred_check
      _
    $region55: #{tpu_custom_call.1} parent=1 // pred_check_branch
      %47 = sbr.rel (0) target = $region57
    $region56: #{tpu_custom_call.1} parent=1 // pred_region
      _
    $region57: #{tpu_custom_call.1} parent=1 // pred_fallthru
      _
    %v48 = vld [vmem:[%s0] sm:$0xff]
    %v49 = vld [vmem:[%s0 + $0x8] sm:$0xff]
    %v50 = vld [vmem:[%s1] sm:$0xff]
    %v51 = vld [vmem:[%s1 + $0x8] sm:$0xff]
    %v52 = vld [vmem:[%s2] sm:$0xff]
    %v53 = vld [vmem:[%s2 + $0x8] sm:$0xff]
    %vm54 = vcmask 130048
    %v56 = vsel %vm54, %v48, 0
    %v59 = vsel %vm54, %v49, 0
    %61 = vmatprep.subr.mxu0 0.0
    %62 = vmatpush1.msra.mxu0 0.0
    %63 = vmatprep.subr.mxu0 0.0
    %64 = vmatpush1.msra.mxu0 0.0
    %65 = vmatprep.subr.mxu0 0.0
    %66 = vmatpush1.msra.mxu0 0.0
    %67 = vmatprep.subr.mxu0 0.0
    %68 = vmatpush1.msra.mxu0 0.0
    %69 = vmatprep.subr.mxu0 0.0
    %70 = vmatpush1.msra.mxu0 0.0
    %71 = vmatprep.subr.mxu0 0.0
    %72 = vmatpush1.msra.mxu0 0.0
    %73 = vmatprep.subr.mxu0 0.0
    %74 = vmatpush1.msra.mxu0 0.0
    %75 = vmatprep.subr.mxu0 0.0
    %76 = vmatpush1.msra.mxu0 0.0
    %77 = vmatprep.subr.mxu0 0.0
    %78 = vmatpush1.msra.mxu0 0.0
    %79 = vmatprep.subr.mxu0 0.0
    %80 = vmatpush1.msra.mxu0 0.0
    %81 = vmatprep.subr.mxu0 0.0
    %82 = vmatpush1.msra.mxu0 0.0
    %83 = vmatprep.subr.mxu0 0.0
    %84 = vmatpush1.msra.mxu0 0.0
    %85 = vmatprep.subr.mxu0 0.0
    %86 = vmatpush1.msra.mxu0 0.0
    %87 = vmatprep.subr.mxu0 0.0
    %88 = vmatpush1.msra.mxu0 0.0
    %89 = vmatprep.subr.mxu0 0.0
    %90 = vmatpush1.msra.mxu0 %v51
    %91 = vmatprep.subr.mxu0 0.0
    %92 = vmatpush1.msra.mxu0 %v50
    %93 = vmatprep.subr.mxu0 0.0
    %94 = vmatpush2.msra.mxu0 0.0
    %95 = vmatprep.subr.mxu0 0.0
    %96 = vmatpush2.msra.mxu0 0.0
    %97 = vmatprep.subr.mxu0 0.0
    %98 = vmatpush2.msra.mxu0 0.0
    %99 = vmatprep.subr.mxu0 0.0
    %100 = vmatpush2.msra.mxu0 0.0
    %101 = vmatprep.subr.mxu0 0.0
    %102 = vmatpush2.msra.mxu0 0.0
    %103 = vmatprep.subr.mxu0 0.0
    %104 = vmatpush2.msra.mxu0 0.0
    %105 = vmatprep.subr.mxu0 0.0
    %106 = vmatpush2.msra.mxu0 0.0
    %107 = vmatprep.subr.mxu0 0.0
    %108 = vmatpush2.msra.mxu0 0.0
    %109 = vmatprep.subr.mxu0 0.0
    %110 = vmatpush2.msra.mxu0 0.0
    %111 = vmatprep.subr.mxu0 0.0
    %112 = vmatpush2.msra.mxu0 0.0
    %113 = vmatprep.subr.mxu0 0.0
    %114 = vmatpush2.msra.mxu0 0.0
    %115 = vmatprep.subr.mxu0 0.0
    %116 = vmatpush2.msra.mxu0 0.0
    %117 = vmatprep.subr.mxu0 0.0
    %118 = vmatpush2.msra.mxu0 0.0
    %119 = vmatprep.subr.mxu0 0.0
    %120 = vmatpush2.msra.mxu0 0.0
    %121 = vmatprep.subr.mxu0 0.0
    %122 = vmatpush2.msra.mxu0 0.0
    %123 = vmatprep.subr.mxu0 0.0
    %124 = vmatpush2.msra.mxu0 0.0
    %125 = vmatprep.mubr.f32.mxu0 0.0
    %126 = vmatmul.mubr.f32.gmra.mxu0 %v56
    %v127 = vpop.f32.mrf.mxu0
    %v128 = vadd.f32 %v52, %v127
    %v129 = vpop.f32.mrf.mxu0
    %130 = vmatprep.mubr.f32.mxu0 0.0
    %131 = vmatmul.mubr.f32.gmra.mxu0 %v59
    %v132 = vpop.f32.mrf.mxu0
    %v133 = vadd.f32 %v53, %v132
    %v134 = vpop.f32.mrf.mxu0
    %135 = vdwg.mxu0
    %v136 = vld [vmem:[%s8] sm:$0x3f]
    %v137 = vld [vmem:[%s6] sm:$0x7]
    %v138 = vld [vmem:[%s3] sm:$0xff]
    %v139 = vld [vmem:[%s3 + $0x8] sm:$0xff]
    %v140 = vld [vmem:[%s3 + $0x10] sm:$0xff]
    %v141 = vld [vmem:[%s3 + $0x18] sm:$0xff]
    %v142 = vlaneseq
    %v143 = vshrl.u32 %v142, 7
    %v144 = vsub.s32 0, %v143
    %v145 = vrot.slane %v137, %v144
    %vm146 = vcmask 261120
    %v148 = vsel %vm146, %v128, 0
    %150 = vmatprep.subr.mxu0 0.0
    %151 = vmatpush1.msra.mxu0 0.0
    %152 = vmatprep.subr.mxu0 0.0
    %153 = vmatpush1.msra.mxu0 0.0
    %154 = vmatprep.subr.mxu0 0.0
    %155 = vmatpush1.msra.mxu0 0.0
    %156 = vmatprep.subr.mxu0 0.0
    %157 = vmatpush1.msra.mxu0 0.0
    %158 = vmatprep.subr.mxu0 0.0
    %159 = vmatpush1.msra.mxu0 0.0
    %160 = vmatprep.subr.mxu0 0.0
    %161 = vmatpush1.msra.mxu0 0.0
    %162 = vmatprep.subr.mxu0 0.0
    %163 = vmatpush1.msra.mxu0 0.0
    %164 = vmatprep.subr.mxu0 0.0
    %165 = vmatpush1.msra.mxu0 0.0
    %166 = vmatprep.subr.mxu0 0.0
    %167 = vmatpush1.msra.mxu0 0.0
    %168 = vmatprep.subr.mxu0 0.0
    %169 = vmatpush1.msra.mxu0 0.0
    %170 = vmatprep.subr.mxu0 0.0
    %171 = vmatpush1.msra.mxu0 0.0
    %172 = vmatprep.subr.mxu0 0.0
    %173 = vmatpush1.msra.mxu0 0.0
    %174 = vmatprep.subr.mxu0 0.0
    %175 = vmatpush1.msra.mxu0 %v141
    %176 = vmatprep.subr.mxu0 0.0
    %177 = vmatpush1.msra.mxu0 %v140
    %178 = vmatprep.subr.mxu0 0.0
    %179 = vmatpush1.msra.mxu0 %v139
    %180 = vmatprep.subr.mxu0 0.0
    %181 = vmatpush1.msra.mxu0 %v138
    %182 = vmatprep.subr.mxu0 0.0
    %183 = vmatpush2.msra.mxu0 0.0
    %184 = vmatprep.subr.mxu0 0.0
    %185 = vmatpush2.msra.mxu0 0.0
    %186 = vmatprep.subr.mxu0 0.0
    %187 = vmatpush2.msra.mxu0 0.0
    %188 = vmatprep.subr.mxu0 0.0
    %189 = vmatpush2.msra.mxu0 0.0
    %190 = vmatprep.subr.mxu0 0.0
    %191 = vmatpush2.msra.mxu0 0.0
    %192 = vmatprep.subr.mxu0 0.0
    %193 = vmatpush2.msra.mxu0 0.0
    %194 = vmatprep.subr.mxu0 0.0
    %195 = vmatpush2.msra.mxu0 0.0
    %196 = vmatprep.subr.mxu0 0.0
    %197 = vmatpush2.msra.mxu0 0.0
    %198 = vmatprep.subr.mxu0 0.0
    %199 = vmatpush2.msra.mxu0 0.0
    %200 = vmatprep.subr.mxu0 0.0
    %201 = vmatpush2.msra.mxu0 0.0
    %202 = vmatprep.subr.mxu0 0.0
    %203 = vmatpush2.msra.mxu0 0.0
    %204 = vmatprep.subr.mxu0 0.0
    %205 = vmatpush2.msra.mxu0 0.0
    %206 = vmatprep.subr.mxu0 0.0
    %207 = vmatpush2.msra.mxu0 0.0
    %208 = vmatprep.subr.mxu0 0.0
    %209 = vmatpush2.msra.mxu0 0.0
    %210 = vmatprep.subr.mxu0 0.0
    %211 = vmatpush2.msra.mxu0 0.0
    %212 = vmatprep.subr.mxu0 0.0
    %213 = vmatpush2.msra.mxu0 0.0
    %214 = vmatprep.mubr.f32.mxu0 0.0
    %215 = vmatmul.mubr.f32.gmra.mxu0 %v148
    %v216 = vpop.f32.mrf.mxu0
    %v217 = vadd.f32 %v145, %v216
    %v218 = vpop.f32.mrf.mxu0
    %219 = vdwg.mxu0
    %v220 = vld [vmem:[%s4] sm:$0xff]
    %v221 = vld [vmem:[%s4 + $0x8] sm:$0xff]
    %v222 = vld [vmem:[%s4 + $0x10] sm:$0xff]
    %v223 = vld [vmem:[%s4 + $0x18] sm:$0xff]
    %v224 = vlaneseq
    %v225 = vshrl.u32 %v224, 7
    %v226 = vsub.s32 1, %v225
    %v227 = vrot.slane %v137, %v226
    %228 = vmatprep.subr.mxu0 0.0
    %229 = vmatpush1.msra.mxu0 0.0
    %230 = vmatprep.subr.mxu0 0.0
    %231 = vmatpush1.msra.mxu0 0.0
    %232 = vmatprep.subr.mxu0 0.0
    %233 = vmatpush1.msra.mxu0 0.0
    %234 = vmatprep.subr.mxu0 0.0
    %235 = vmatpush1.msra.mxu0 0.0
    %236 = vmatprep.subr.mxu0 0.0
    %237 = vmatpush1.msra.mxu0 0.0
    %238 = vmatprep.subr.mxu0 0.0
    %239 = vmatpush1.msra.mxu0 0.0
    %240 = vmatprep.subr.mxu0 0.0
    %241 = vmatpush1.msra.mxu0 0.0
    %242 = vmatprep.subr.mxu0 0.0
    %243 = vmatpush1.msra.mxu0 0.0
    %244 = vmatprep.subr.mxu0 0.0
    %245 = vmatpush1.msra.mxu0 0.0
    %246 = vmatprep.subr.mxu0 0.0
    %247 = vmatpush1.msra.mxu0 0.0
    %248 = vmatprep.subr.mxu0 0.0
    %249 = vmatpush1.msra.mxu0 0.0
    %250 = vmatprep.subr.mxu0 0.0
    %251 = vmatpush1.msra.mxu0 0.0
    %252 = vmatprep.subr.mxu0 0.0
    %253 = vmatpush1.msra.mxu0 %v223
    %254 = vmatprep.subr.mxu0 0.0
    %255 = vmatpush1.msra.mxu0 %v222
    %256 = vmatprep.subr.mxu0 0.0
    %257 = vmatpush1.msra.mxu0 %v221
    %258 = vmatprep.subr.mxu0 0.0
    %259 = vmatpush1.msra.mxu0 %v220
    %260 = vmatprep.subr.mxu0 0.0
    %261 = vmatpush2.msra.mxu0 0.0
    %262 = vmatprep.subr.mxu0 0.0
    %263 = vmatpush2.msra.mxu0 0.0
    %264 = vmatprep.subr.mxu0 0.0
    %265 = vmatpush2.msra.mxu0 0.0
    %266 = vmatprep.subr.mxu0 0.0
    %267 = vmatpush2.msra.mxu0 0.0
    %268 = vmatprep.subr.mxu0 0.0
    %269 = vmatpush2.msra.mxu0 0.0
    %270 = vmatprep.subr.mxu0 0.0
    %271 = vmatpush2.msra.mxu0 0.0
    %272 = vmatprep.subr.mxu0 0.0
    %273 = vmatpush2.msra.mxu0 0.0
    %274 = vmatprep.subr.mxu0 0.0
    %275 = vmatpush2.msra.mxu0 0.0
    %276 = vmatprep.subr.mxu0 0.0
    %277 = vmatpush2.msra.mxu0 0.0
    %278 = vmatprep.subr.mxu0 0.0
    %279 = vmatpush2.msra.mxu0 0.0
    %280 = vmatprep.subr.mxu0 0.0
    %281 = vmatpush2.msra.mxu0 0.0
    %282 = vmatprep.subr.mxu0 0.0
    %283 = vmatpush2.msra.mxu0 0.0
    %284 = vmatprep.subr.mxu0 0.0
    %285 = vmatpush2.msra.mxu0 0.0
    %286 = vmatprep.subr.mxu0 0.0
    %287 = vmatpush2.msra.mxu0 0.0
    %288 = vmatprep.subr.mxu0 0.0
    %289 = vmatpush2.msra.mxu0 0.0
    %290 = vmatprep.subr.mxu0 0.0
    %291 = vmatpush2.msra.mxu0 0.0
    %292 = vmatprep.mubr.f32.mxu0 0.0
    %293 = vmatmul.mubr.f32.gmra.mxu0 %v148
    %v294 = vpop.f32.mrf.mxu0
    %v295 = vadd.f32 %v227, %v294
    %v296 = vpop.f32.mrf.mxu0
    %297 = vdwg.mxu0
    %v298 = vld [vmem:[%s5] sm:$0xff]
    %v299 = vld [vmem:[%s5 + $0x8] sm:$0xff]
    %v300 = vld [vmem:[%s5 + $0x10] sm:$0xff]
    %v301 = vld [vmem:[%s5 + $0x18] sm:$0xff]
    %v302 = vlaneseq
    %v303 = vshrl.u32 %v302, 7
    %v304 = vsub.s32 2, %v303
    %v305 = vrot.slane %v137, %v304
    %306 = vmatprep.subr.mxu0 0.0
    %307 = vmatpush1.msra.mxu0 0.0
    %308 = vmatprep.subr.mxu0 0.0
    %309 = vmatpush1.msra.mxu0 0.0
    %310 = vmatprep.subr.mxu0 0.0
    %311 = vmatpush1.msra.mxu0 0.0
    %312 = vmatprep.subr.mxu0 0.0
    %313 = vmatpush1.msra.mxu0 0.0
    %314 = vmatprep.subr.mxu0 0.0
    %315 = vmatpush1.msra.mxu0 0.0
    %316 = vmatprep.subr.mxu0 0.0
    %317 = vmatpush1.msra.mxu0 0.0
    %318 = vmatprep.subr.mxu0 0.0
    %319 = vmatpush1.msra.mxu0 0.0
    %320 = vmatprep.subr.mxu0 0.0
    %321 = vmatpush1.msra.mxu0 0.0
    %322 = vmatprep.subr.mxu0 0.0
    %323 = vmatpush1.msra.mxu0 0.0
    %324 = vmatprep.subr.mxu0 0.0
    %325 = vmatpush1.msra.mxu0 0.0
    %326 = vmatprep.subr.mxu0 0.0
    %327 = vmatpush1.msra.mxu0 0.0
    %328 = vmatprep.subr.mxu0 0.0
    %329 = vmatpush1.msra.mxu0 0.0
    %330 = vmatprep.subr.mxu0 0.0
    %331 = vmatpush1.msra.mxu0 %v301
    %332 = vmatprep.subr.mxu0 0.0
    %333 = vmatpush1.msra.mxu0 %v300
    %334 = vmatprep.subr.mxu0 0.0
    %335 = vmatpush1.msra.mxu0 %v299
    %336 = vmatprep.subr.mxu0 0.0
    %337 = vmatpush1.msra.mxu0 %v298
    %338 = vmatprep.subr.mxu0 0.0
    %339 = vmatpush2.msra.mxu0 0.0
    %340 = vmatprep.subr.mxu0 0.0
    %341 = vmatpush2.msra.mxu0 0.0
    %342 = vmatprep.subr.mxu0 0.0
    %343 = vmatpush2.msra.mxu0 0.0
    %344 = vmatprep.subr.mxu0 0.0
    %345 = vmatpush2.msra.mxu0 0.0
    %346 = vmatprep.subr.mxu0 0.0
    %347 = vmatpush2.msra.mxu0 0.0
    %348 = vmatprep.subr.mxu0 0.0
    %349 = vmatpush2.msra.mxu0 0.0
    %350 = vmatprep.subr.mxu0 0.0
    %351 = vmatpush2.msra.mxu0 0.0
    %352 = vmatprep.subr.mxu0 0.0
    %353 = vmatpush2.msra.mxu0 0.0
    %354 = vmatprep.subr.mxu0 0.0
    %355 = vmatpush2.msra.mxu0 0.0
    %356 = vmatprep.subr.mxu0 0.0
    %357 = vmatpush2.msra.mxu0 0.0
    %358 = vmatprep.subr.mxu0 0.0
    %359 = vmatpush2.msra.mxu0 0.0
    %360 = vmatprep.subr.mxu0 0.0
    %361 = vmatpush2.msra.mxu0 0.0
    %362 = vmatprep.subr.mxu0 0.0
    %363 = vmatpush2.msra.mxu0 0.0
    %364 = vmatprep.subr.mxu0 0.0
    %365 = vmatpush2.msra.mxu0 0.0
    %366 = vmatprep.subr.mxu0 0.0
    %367 = vmatpush2.msra.mxu0 0.0
    %368 = vmatprep.subr.mxu0 0.0
    %369 = vmatpush2.msra.mxu0 0.0
    %370 = vmatprep.mubr.f32.mxu0 0.0
    %371 = vmatmul.mubr.f32.gmra.mxu0 %v148
    %v372 = vpop.f32.mrf.mxu0
    %v373 = vadd.f32 %v305, %v372
    %v374 = vpop.f32.mrf.mxu0
    %375 = vdwg.mxu0
    %vm376 = vcmask 64512
    %v378 = vsel %vm376, %v217, 0
    %v381 = vsel %vm376, %v295, 0
    %383 = vmatprep.subr.mxu0 0.0
    %384 = vmatpush1.xpose.msra.mxu0 0.0
    %385 = vmatprep.subr.mxu0 0.0
    %386 = vmatpush1.xpose.msra.mxu0 0.0
    %387 = vmatprep.subr.mxu0 0.0
    %388 = vmatpush1.xpose.msra.mxu0 0.0
    %389 = vmatprep.subr.mxu0 0.0
    %390 = vmatpush1.xpose.msra.mxu0 0.0
    %391 = vmatprep.subr.mxu0 0.0
    %392 = vmatpush1.xpose.msra.mxu0 0.0
    %393 = vmatprep.subr.mxu0 0.0
    %394 = vmatpush1.xpose.msra.mxu0 0.0
    %395 = vmatprep.subr.mxu0 0.0
    %396 = vmatpush1.xpose.msra.mxu0 0.0
    %397 = vmatprep.subr.mxu0 0.0
    %398 = vmatpush1.xpose.msra.mxu0 0.0
    %399 = vmatprep.subr.mxu0 0.0
    %400 = vmatpush1.xpose.msra.mxu0 0.0
    %401 = vmatprep.subr.mxu0 0.0
    %402 = vmatpush1.xpose.msra.mxu0 0.0
    %403 = vmatprep.subr.mxu0 0.0
    %404 = vmatpush1.xpose.msra.mxu0 0.0
    %405 = vmatprep.subr.mxu0 0.0
    %406 = vmatpush1.xpose.msra.mxu0 0.0
    %407 = vmatprep.subr.mxu0 0.0
    %408 = vmatpush1.xpose.msra.mxu0 0.0
    %409 = vmatprep.subr.mxu0 0.0
    %410 = vmatpush1.xpose.msra.mxu0 0.0
    %411 = vmatprep.subr.mxu0 0.0
    %412 = vmatpush1.xpose.msra.mxu0 0.0
    %413 = vmatprep.subr.mxu0 0.0
    %414 = vmatpush1.xpose.msra.mxu0 %v381
    %415 = vmatprep.subr.mxu0 0.0
    %416 = vmatpush2.xpose.msra.mxu0 0.0
    %417 = vmatprep.subr.mxu0 0.0
    %418 = vmatpush2.xpose.msra.mxu0 0.0
    %419 = vmatprep.subr.mxu0 0.0
    %420 = vmatpush2.xpose.msra.mxu0 0.0
    %421 = vmatprep.subr.mxu0 0.0
    %422 = vmatpush2.xpose.msra.mxu0 0.0
    %423 = vmatprep.subr.mxu0 0.0
    %424 = vmatpush2.xpose.msra.mxu0 0.0
    %425 = vmatprep.subr.mxu0 0.0
    %426 = vmatpush2.xpose.msra.mxu0 0.0
    %427 = vmatprep.subr.mxu0 0.0
    %428 = vmatpush2.xpose.msra.mxu0 0.0
    %429 = vmatprep.subr.mxu0 0.0
    %430 = vmatpush2.xpose.msra.mxu0 0.0
    %431 = vmatprep.subr.mxu0 0.0
    %432 = vmatpush2.xpose.msra.mxu0 0.0
    %433 = vmatprep.subr.mxu0 0.0
    %434 = vmatpush2.xpose.msra.mxu0 0.0
    %435 = vmatprep.subr.mxu0 0.0
    %436 = vmatpush2.xpose.msra.mxu0 0.0
    %437 = vmatprep.subr.mxu0 0.0
    %438 = vmatpush2.xpose.msra.mxu0 0.0
    %439 = vmatprep.subr.mxu0 0.0
    %440 = vmatpush2.xpose.msra.mxu0 0.0
    %441 = vmatprep.subr.mxu0 0.0
    %442 = vmatpush2.xpose.msra.mxu0 0.0
    %443 = vmatprep.subr.mxu0 0.0
    %444 = vmatpush2.xpose.msra.mxu0 0.0
    %445 = vmatprep.subr.mxu0 0.0
    %446 = vmatpush2.xpose.msra.mxu0 0.0
    %447 = vmatprep.mubr.f32.mxu0 0.0
    %448 = vmatmul.mubr.f32.gmra.mxu0 %v378
    %v449 = vpop.f32.mrf.mxu0
    %v450 = vadd.f32 0.0, %v449
    %v451 = vpop.f32.mrf.mxu0
    %452 = vdwg.mxu0
    %v453 = vsel %vm376, %v450, -inf
    %454 = vmax.xlane.f32.xlu0 %v453
    %v455 = vpop.xlane.xlu0 %454
    %v456 = vsub.f32 %v450, %v455
    %v457 = vmul.f32 %v456, 1.442695
    %v458 = vpow.pop %v457
    %v459 = vsel %vm376, %v458, 0.0
    %460 = vadd.xlane.f32.xlu0 %v459
    %v461 = vpop.xlane.xlu0 %460
    %v462 = vrcp.pop %v461
    %v463 = vmul.f32 %v458, %v462
    %v465 = vsel %vm376, %v463, 0
    %467 = vmatprep.subr.mxu0 0.0
    %468 = vmatpush1.msra.mxu0 0.0
    %469 = vmatprep.subr.mxu0 0.0
    %470 = vmatpush1.msra.mxu0 0.0
    %471 = vmatprep.subr.mxu0 0.0
    %472 = vmatpush1.msra.mxu0 0.0
    %473 = vmatprep.subr.mxu0 0.0
    %474 = vmatpush1.msra.mxu0 0.0
    %475 = vmatprep.subr.mxu0 0.0
    %476 = vmatpush1.msra.mxu0 0.0
    %477 = vmatprep.subr.mxu0 0.0
    %478 = vmatpush1.msra.mxu0 0.0
    %479 = vmatprep.subr.mxu0 0.0
    %480 = vmatpush1.msra.mxu0 0.0
    %481 = vmatprep.subr.mxu0 0.0
    %482 = vmatpush1.msra.mxu0 0.0
    %483 = vmatprep.subr.mxu0 0.0
    %484 = vmatpush1.msra.mxu0 0.0
    %485 = vmatprep.subr.mxu0 0.0
    %486 = vmatpush1.msra.mxu0 0.0
    %487 = vmatprep.subr.mxu0 0.0
    %488 = vmatpush1.msra.mxu0 0.0
    %489 = vmatprep.subr.mxu0 0.0
    %490 = vmatpush1.msra.mxu0 0.0
    %491 = vmatprep.subr.mxu0 0.0
    %492 = vmatpush1.msra.mxu0 0.0
    %493 = vmatprep.subr.mxu0 0.0
    %494 = vmatpush1.msra.mxu0 0.0
    %495 = vmatprep.subr.mxu0 0.0
    %496 = vmatpush1.msra.mxu0 0.0
    %497 = vmatprep.subr.mxu0 0.0
    %498 = vmatpush1.msra.mxu0 %v373
    %499 = vmatprep.subr.mxu0 0.0
    %500 = vmatpush2.msra.mxu0 0.0
    %501 = vmatprep.subr.mxu0 0.0
    %502 = vmatpush2.msra.mxu0 0.0
    %503 = vmatprep.subr.mxu0 0.0
    %504 = vmatpush2.msra.mxu0 0.0
    %505 = vmatprep.subr.mxu0 0.0
    %506 = vmatpush2.msra.mxu0 0.0
    %507 = vmatprep.subr.mxu0 0.0
    %508 = vmatpush2.msra.mxu0 0.0
    %509 = vmatprep.subr.mxu0 0.0
    %510 = vmatpush2.msra.mxu0 0.0
    %511 = vmatprep.subr.mxu0 0.0
    %512 = vmatpush2.msra.mxu0 0.0
    %513 = vmatprep.subr.mxu0 0.0
    %514 = vmatpush2.msra.mxu0 0.0
    %515 = vmatprep.subr.mxu0 0.0
    %516 = vmatpush2.msra.mxu0 0.0
    %517 = vmatprep.subr.mxu0 0.0
    %518 = vmatpush2.msra.mxu0 0.0
    %519 = vmatprep.subr.mxu0 0.0
    %520 = vmatpush2.msra.mxu0 0.0
    %521 = vmatprep.subr.mxu0 0.0
    %522 = vmatpush2.msra.mxu0 0.0
    %523 = vmatprep.subr.mxu0 0.0
    %524 = vmatpush2.msra.mxu0 0.0
    %525 = vmatprep.subr.mxu0 0.0
    %526 = vmatpush2.msra.mxu0 0.0
    %527 = vmatprep.subr.mxu0 0.0
    %528 = vmatpush2.msra.mxu0 0.0
    %529 = vmatprep.subr.mxu0 0.0
    %530 = vmatpush2.msra.mxu0 0.0
    %531 = vmatprep.mubr.f32.mxu0 0.0
    %532 = vmatmul.mubr.f32.gmra.mxu0 %v465
    %v533 = vpop.f32.mrf.mxu0
    %v534 = vadd.f32 0.0, %v533
    %v535 = vpop.f32.mrf.mxu0
    %536 = vdwg.mxu0
    %537 = vst.msk [vmem:[#allocation2] sm:$0xff] %vm376, %v534
    %s538 = scalar_lea.vmem %s6, 4
    %v539 = vld [vmem:[%s538] sm:$0x7]
    %s540 = scalar_lea.vmem %s3, 32
    %v541 = vld [vmem:[%s540] sm:$0xff]
    %v542 = vld [vmem:[%s540 + $0x8] sm:$0xff]
    %v543 = vld [vmem:[%s540 + $0x10] sm:$0xff]
    %v544 = vld [vmem:[%s540 + $0x18] sm:$0xff]
    %v545 = vlaneseq
    %v546 = vshrl.u32 %v545, 7
    %v547 = vsub.s32 0, %v546
    %v548 = vrot.slane %v539, %v547
    %549 = vmatprep.subr.mxu0 0.0
    %550 = vmatpush1.msra.mxu0 0.0
    %551 = vmatprep.subr.mxu0 0.0
    %552 = vmatpush1.msra.mxu0 0.0
    %553 = vmatprep.subr.mxu0 0.0
    %554 = vmatpush1.msra.mxu0 0.0
    %555 = vmatprep.subr.mxu0 0.0
    %556 = vmatpush1.msra.mxu0 0.0
    %557 = vmatprep.subr.mxu0 0.0
    %558 = vmatpush1.msra.mxu0 0.0
    %559 = vmatprep.subr.mxu0 0.0
    %560 = vmatpush1.msra.mxu0 0.0
    %561 = vmatprep.subr.mxu0 0.0
    %562 = vmatpush1.msra.mxu0 0.0
    %563 = vmatprep.subr.mxu0 0.0
    %564 = vmatpush1.msra.mxu0 0.0
    %565 = vmatprep.subr.mxu0 0.0
    %566 = vmatpush1.msra.mxu0 0.0
    %567 = vmatprep.subr.mxu0 0.0
    %568 = vmatpush1.msra.mxu0 0.0
    %569 = vmatprep.subr.mxu0 0.0
    %570 = vmatpush1.msra.mxu0 0.0
    %571 = vmatprep.subr.mxu0 0.0
    %572 = vmatpush1.msra.mxu0 0.0
    %573 = vmatprep.subr.mxu0 0.0
    %574 = vmatpush1.msra.mxu0 %v544
    %575 = vmatprep.subr.mxu0 0.0
    %576 = vmatpush1.msra.mxu0 %v543
    %577 = vmatprep.subr.mxu0 0.0
    %578 = vmatpush1.msra.mxu0 %v542
    %579 = vmatprep.subr.mxu0 0.0
    %580 = vmatpush1.msra.mxu0 %v541
    %581 = vmatprep.subr.mxu0 0.0
    %582 = vmatpush2.msra.mxu0 0.0
    %583 = vmatprep.subr.mxu0 0.0
    %584 = vmatpush2.msra.mxu0 0.0
    %585 = vmatprep.subr.mxu0 0.0
    %586 = vmatpush2.msra.mxu0 0.0
    %587 = vmatprep.subr.mxu0 0.0
    %588 = vmatpush2.msra.mxu0 0.0
    %589 = vmatprep.subr.mxu0 0.0
    %590 = vmatpush2.msra.mxu0 0.0
    %591 = vmatprep.subr.mxu0 0.0
    %592 = vmatpush2.msra.mxu0 0.0
    %593 = vmatprep.subr.mxu0 0.0
    %594 = vmatpush2.msra.mxu0 0.0
    %595 = vmatprep.subr.mxu0 0.0
    %596 = vmatpush2.msra.mxu0 0.0
    %597 = vmatprep.subr.mxu0 0.0
    %598 = vmatpush2.msra.mxu0 0.0
    %599 = vmatprep.subr.mxu0 0.0
    %600 = vmatpush2.msra.mxu0 0.0
    %601 = vmatprep.subr.mxu0 0.0
    %602 = vmatpush2.msra.mxu0 0.0
    %603 = vmatprep.subr.mxu0 0.0
    %604 = vmatpush2.msra.mxu0 0.0
    %605 = vmatprep.subr.mxu0 0.0
    %606 = vmatpush2.msra.mxu0 0.0
    %607 = vmatprep.subr.mxu0 0.0
    %608 = vmatpush2.msra.mxu0 0.0
    %609 = vmatprep.subr.mxu0 0.0
    %610 = vmatpush2.msra.mxu0 0.0
    %611 = vmatprep.subr.mxu0 0.0
    %612 = vmatpush2.msra.mxu0 0.0
    %613 = vmatprep.mubr.f32.mxu0 0.0
    %614 = vmatmul.mubr.f32.gmra.mxu0 %v148
    %v615 = vpop.f32.mrf.mxu0
    %v616 = vadd.f32 %v548, %v615
    %v617 = vpop.f32.mrf.mxu0
    %618 = vdwg.mxu0
    %s619 = scalar_lea.vmem %s4, 32
    %v620 = vld [vmem:[%s619] sm:$0xff]
    %v621 = vld [vmem:[%s619 + $0x8] sm:$0xff]
    %v622 = vld [vmem:[%s619 + $0x10] sm:$0xff]
    %v623 = vld [vmem:[%s619 + $0x18] sm:$0xff]
    %v624 = vlaneseq
    %v625 = vshrl.u32 %v624, 7
    %v626 = vsub.s32 1, %v625
    %v627 = vrot.slane %v539, %v626
    %628 = vmatprep.subr.mxu0 0.0
    %629 = vmatpush1.msra.mxu0 0.0
    %630 = vmatprep.subr.mxu0 0.0
    %631 = vmatpush1.msra.mxu0 0.0
    %632 = vmatprep.subr.mxu0 0.0
    %633 = vmatpush1.msra.mxu0 0.0
    %634 = vmatprep.subr.mxu0 0.0
    %635 = vmatpush1.msra.mxu0 0.0
    %636 = vmatprep.subr.mxu0 0.0
    %637 = vmatpush1.msra.mxu0 0.0
    %638 = vmatprep.subr.mxu0 0.0
    %639 = vmatpush1.msra.mxu0 0.0
    %640 = vmatprep.subr.mxu0 0.0
    %641 = vmatpush1.msra.mxu0 0.0
    %642 = vmatprep.subr.mxu0 0.0
    %643 = vmatpush1.msra.mxu0 0.0
    %644 = vmatprep.subr.mxu0 0.0
    %645 = vmatpush1.msra.mxu0 0.0
    %646 = vmatprep.subr.mxu0 0.0
    %647 = vmatpush1.msra.mxu0 0.0
    %648 = vmatprep.subr.mxu0 0.0
    %649 = vmatpush1.msra.mxu0 0.0
    %650 = vmatprep.subr.mxu0 0.0
    %651 = vmatpush1.msra.mxu0 0.0
    %652 = vmatprep.subr.mxu0 0.0
    %653 = vmatpush1.msra.mxu0 %v623
    %654 = vmatprep.subr.mxu0 0.0
    %655 = vmatpush1.msra.mxu0 %v622
    %656 = vmatprep.subr.mxu0 0.0
    %657 = vmatpush1.msra.mxu0 %v621
    %658 = vmatprep.subr.mxu0 0.0
    %659 = vmatpush1.msra.mxu0 %v620
    %660 = vmatprep.subr.mxu0 0.0
    %661 = vmatpush2.msra.mxu0 0.0
    %662 = vmatprep.subr.mxu0 0.0
    %663 = vmatpush2.msra.mxu0 0.0
    %664 = vmatprep.subr.mxu0 0.0
    %665 = vmatpush2.msra.mxu0 0.0
    %666 = vmatprep.subr.mxu0 0.0
    %667 = vmatpush2.msra.mxu0 0.0
    %668 = vmatprep.subr.mxu0 0.0
    %669 = vmatpush2.msra.mxu0 0.0
    %670 = vmatprep.subr.mxu0 0.0
    %671 = vmatpush2.msra.mxu0 0.0
    %672 = vmatprep.subr.mxu0 0.0
    %673 = vmatpush2.msra.mxu0 0.0
    %674 = vmatprep.subr.mxu0 0.0
    %675 = vmatpush2.msra.mxu0 0.0
    %676 = vmatprep.subr.mxu0 0.0
    %677 = vmatpush2.msra.mxu0 0.0
    %678 = vmatprep.subr.mxu0 0.0
    %679 = vmatpush2.msra.mxu0 0.0
    %680 = vmatprep.subr.mxu0 0.0
    %681 = vmatpush2.msra.mxu0 0.0
    %682 = vmatprep.subr.mxu0 0.0
    %683 = vmatpush2.msra.mxu0 0.0
    %684 = vmatprep.subr.mxu0 0.0
    %685 = vmatpush2.msra.mxu0 0.0
    %686 = vmatprep.subr.mxu0 0.0
    %687 = vmatpush2.msra.mxu0 0.0
    %688 = vmatprep.subr.mxu0 0.0
    %689 = vmatpush2.msra.mxu0 0.0
    %690 = vmatprep.subr.mxu0 0.0
    %691 = vmatpush2.msra.mxu0 0.0
    %692 = vmatprep.mubr.f32.mxu0 0.0
    %693 = vmatmul.mubr.f32.gmra.mxu0 %v148
    %v694 = vpop.f32.mrf.mxu0
    %v695 = vadd.f32 %v627, %v694
    %v696 = vpop.f32.mrf.mxu0
    %697 = vdwg.mxu0
    %s698 = scalar_lea.vmem %s5, 32
    %v699 = vld [vmem:[%s698] sm:$0xff]
    %v700 = vld [vmem:[%s698 + $0x8] sm:$0xff]
    %v701 = vld [vmem:[%s698 + $0x10] sm:$0xff]
    %v702 = vld [vmem:[%s698 + $0x18] sm:$0xff]
    %v703 = vlaneseq
    %v704 = vshrl.u32 %v703, 7
    %v705 = vsub.s32 2, %v704
    %v706 = vrot.slane %v539, %v705
    %707 = vmatprep.subr.mxu0 0.0
    %708 = vmatpush1.msra.mxu0 0.0
    %709 = vmatprep.subr.mxu0 0.0
    %710 = vmatpush1.msra.mxu0 0.0
    %711 = vmatprep.subr.mxu0 0.0
    %712 = vmatpush1.msra.mxu0 0.0
    %713 = vmatprep.subr.mxu0 0.0
    %714 = vmatpush1.msra.mxu0 0.0
    %715 = vmatprep.subr.mxu0 0.0
    %716 = vmatpush1.msra.mxu0 0.0
    %717 = vmatprep.subr.mxu0 0.0
    %718 = vmatpush1.msra.mxu0 0.0
    %719 = vmatprep.subr.mxu0 0.0
    %720 = vmatpush1.msra.mxu0 0.0
    %721 = vmatprep.subr.mxu0 0.0
    %722 = vmatpush1.msra.mxu0 0.0
    %723 = vmatprep.subr.mxu0 0.0
    %724 = vmatpush1.msra.mxu0 0.0
    %725 = vmatprep.subr.mxu0 0.0
    %726 = vmatpush1.msra.mxu0 0.0
    %727 = vmatprep.subr.mxu0 0.0
    %728 = vmatpush1.msra.mxu0 0.0
    %729 = vmatprep.subr.mxu0 0.0
    %730 = vmatpush1.msra.mxu0 0.0
    %731 = vmatprep.subr.mxu0 0.0
    %732 = vmatpush1.msra.mxu0 %v702
    %733 = vmatprep.subr.mxu0 0.0
    %734 = vmatpush1.msra.mxu0 %v701
    %735 = vmatprep.subr.mxu0 0.0
    %736 = vmatpush1.msra.mxu0 %v700
    %737 = vmatprep.subr.mxu0 0.0
    %738 = vmatpush1.msra.mxu0 %v699
    %739 = vmatprep.subr.mxu0 0.0
    %740 = vmatpush2.msra.mxu0 0.0
    %741 = vmatprep.subr.mxu0 0.0
    %742 = vmatpush2.msra.mxu0 0.0
    %743 = vmatprep.subr.mxu0 0.0
    %744 = vmatpush2.msra.mxu0 0.0
    %745 = vmatprep.subr.mxu0 0.0
    %746 = vmatpush2.msra.mxu0 0.0
    %747 = vmatprep.subr.mxu0 0.0
    %748 = vmatpush2.msra.mxu0 0.0
    %749 = vmatprep.subr.mxu0 0.0
    %750 = vmatpush2.msra.mxu0 0.0
    %751 = vmatprep.subr.mxu0 0.0
    %752 = vmatpush2.msra.mxu0 0.0
    %753 = vmatprep.subr.mxu0 0.0
    %754 = vmatpush2.msra.mxu0 0.0
    %755 = vmatprep.subr.mxu0 0.0
    %756 = vmatpush2.msra.mxu0 0.0
    %757 = vmatprep.subr.mxu0 0.0
    %758 = vmatpush2.msra.mxu0 0.0
    %759 = vmatprep.subr.mxu0 0.0
    %760 = vmatpush2.msra.mxu0 0.0
    %761 = vmatprep.subr.mxu0 0.0
    %762 = vmatpush2.msra.mxu0 0.0
    %763 = vmatprep.subr.mxu0 0.0
    %764 = vmatpush2.msra.mxu0 0.0
    %765 = vmatprep.subr.mxu0 0.0
    %766 = vmatpush2.msra.mxu0 0.0
    %767 = vmatprep.subr.mxu0 0.0
    %768 = vmatpush2.msra.mxu0 0.0
    %769 = vmatprep.subr.mxu0 0.0
    %770 = vmatpush2.msra.mxu0 0.0
    %771 = vmatprep.mubr.f32.mxu0 0.0
    %772 = vmatmul.mubr.f32.gmra.mxu0 %v148
    %v773 = vpop.f32.mrf.mxu0
    %v774 = vadd.f32 %v706, %v773
    %v775 = vpop.f32.mrf.mxu0
    %776 = vdwg.mxu0
    %v778 = vsel %vm376, %v616, 0
    %v781 = vsel %vm376, %v695, 0
    %783 = vmatprep.subr.mxu0 0.0
    %784 = vmatpush1.xpose.msra.mxu0 0.0
    %785 = vmatprep.subr.mxu0 0.0
    %786 = vmatpush1.xpose.msra.mxu0 0.0
    %787 = vmatprep.subr.mxu0 0.0
    %788 = vmatpush1.xpose.msra.mxu0 0.0
    %789 = vmatprep.subr.mxu0 0.0
    %790 = vmatpush1.xpose.msra.mxu0 0.0
    %791 = vmatprep.subr.mxu0 0.0
    %792 = vmatpush1.xpose.msra.mxu0 0.0
    %793 = vmatprep.subr.mxu0 0.0
    %794 = vmatpush1.xpose.msra.mxu0 0.0
    %795 = vmatprep.subr.mxu0 0.0
    %796 = vmatpush1.xpose.msra.mxu0 0.0
    %797 = vmatprep.subr.mxu0 0.0
    %798 = vmatpush1.xpose.msra.mxu0 0.0
    %799 = vmatprep.subr.mxu0 0.0
    %800 = vmatpush1.xpose.msra.mxu0 0.0
    %801 = vmatprep.subr.mxu0 0.0
    %802 = vmatpush1.xpose.msra.mxu0 0.0
    %803 = vmatprep.subr.mxu0 0.0
    %804 = vmatpush1.xpose.msra.mxu0 0.0
    %805 = vmatprep.subr.mxu0 0.0
    %806 = vmatpush1.xpose.msra.mxu0 0.0
    %807 = vmatprep.subr.mxu0 0.0
    %808 = vmatpush1.xpose.msra.mxu0 0.0
    %809 = vmatprep.subr.mxu0 0.0
    %810 = vmatpush1.xpose.msra.mxu0 0.0
    %811 = vmatprep.subr.mxu0 0.0
    %812 = vmatpush1.xpose.msra.mxu0 0.0
    %813 = vmatprep.subr.mxu0 0.0
    %814 = vmatpush1.xpose.msra.mxu0 %v781
    %815 = vmatprep.subr.mxu0 0.0
    %816 = vmatpush2.xpose.msra.mxu0 0.0
    %817 = vmatprep.subr.mxu0 0.0
    %818 = vmatpush2.xpose.msra.mxu0 0.0
    %819 = vmatprep.subr.mxu0 0.0
    %820 = vmatpush2.xpose.msra.mxu0 0.0
    %821 = vmatprep.subr.mxu0 0.0
    %822 = vmatpush2.xpose.msra.mxu0 0.0
    %823 = vmatprep.subr.mxu0 0.0
    %824 = vmatpush2.xpose.msra.mxu0 0.0
    %825 = vmatprep.subr.mxu0 0.0
    %826 = vmatpush2.xpose.msra.mxu0 0.0
    %827 = vmatprep.subr.mxu0 0.0
    %828 = vmatpush2.xpose.msra.mxu0 0.0
    %829 = vmatprep.subr.mxu0 0.0
    %830 = vmatpush2.xpose.msra.mxu0 0.0
    %831 = vmatprep.subr.mxu0 0.0
    %832 = vmatpush2.xpose.msra.mxu0 0.0
    %833 = vmatprep.subr.mxu0 0.0
    %834 = vmatpush2.xpose.msra.mxu0 0.0
    %835 = vmatprep.subr.mxu0 0.0
    %836 = vmatpush2.xpose.msra.mxu0 0.0
    %837 = vmatprep.subr.mxu0 0.0
    %838 = vmatpush2.xpose.msra.mxu0 0.0
    %839 = vmatprep.subr.mxu0 0.0
    %840 = vmatpush2.xpose.msra.mxu0 0.0
    %841 = vmatprep.subr.mxu0 0.0
    %842 = vmatpush2.xpose.msra.mxu0 0.0
    %843 = vmatprep.subr.mxu0 0.0
    %844 = vmatpush2.xpose.msra.mxu0 0.0
    %845 = vmatprep.subr.mxu0 0.0
    %846 = vmatpush2.xpose.msra.mxu0 0.0
    %847 = vmatprep.mubr.f32.mxu0 0.0
    %848 = vmatmul.mubr.f32.gmra.mxu0 %v778
    %v849 = vpop.f32.mrf.mxu0
    %v850 = vadd.f32 0.0, %v849
    %v851 = vpop.f32.mrf.mxu0
    %852 = vdwg.mxu0
    %v853 = vsel %vm376, %v850, -inf
    %854 = vmax.xlane.f32.xlu0 %v853
    %v855 = vpop.xlane.xlu0 %854
    %v856 = vsub.f32 %v850, %v855
    %v857 = vmul.f32 %v856, 1.442695
    %v858 = vpow.pop %v857
    %v859 = vsel %vm376, %v858, 0.0
    %860 = vadd.xlane.f32.xlu0 %v859
    %v861 = vpop.xlane.xlu0 %860
    %v862 = vrcp.pop %v861
    %v863 = vmul.f32 %v858, %v862
    %v865 = vsel %vm376, %v863, 0
    %867 = vmatprep.subr.mxu0 0.0
    %868 = vmatpush1.msra.mxu0 0.0
    %869 = vmatprep.subr.mxu0 0.0
    %870 = vmatpush1.msra.mxu0 0.0
    %871 = vmatprep.subr.mxu0 0.0
    %872 = vmatpush1.msra.mxu0 0.0
    %873 = vmatprep.subr.mxu0 0.0
    %874 = vmatpush1.msra.mxu0 0.0
    %875 = vmatprep.subr.mxu0 0.0
    %876 = vmatpush1.msra.mxu0 0.0
    %877 = vmatprep.subr.mxu0 0.0
    %878 = vmatpush1.msra.mxu0 0.0
    %879 = vmatprep.subr.mxu0 0.0
    %880 = vmatpush1.msra.mxu0 0.0
    %881 = vmatprep.subr.mxu0 0.0
    %882 = vmatpush1.msra.mxu0 0.0
    %883 = vmatprep.subr.mxu0 0.0
    %884 = vmatpush1.msra.mxu0 0.0
    %885 = vmatprep.subr.mxu0 0.0
    %886 = vmatpush1.msra.mxu0 0.0
    %887 = vmatprep.subr.mxu0 0.0
    %888 = vmatpush1.msra.mxu0 0.0
    %889 = vmatprep.subr.mxu0 0.0
    %890 = vmatpush1.msra.mxu0 0.0
    %891 = vmatprep.subr.mxu0 0.0
    %892 = vmatpush1.msra.mxu0 0.0
    %893 = vmatprep.subr.mxu0 0.0
    %894 = vmatpush1.msra.mxu0 0.0
    %895 = vmatprep.subr.mxu0 0.0
    %896 = vmatpush1.msra.mxu0 0.0
    %897 = vmatprep.subr.mxu0 0.0
    %898 = vmatpush1.msra.mxu0 %v774
    %899 = vmatprep.subr.mxu0 0.0
    %900 = vmatpush2.msra.mxu0 0.0
    %901 = vmatprep.subr.mxu0 0.0
    %902 = vmatpush2.msra.mxu0 0.0
    %903 = vmatprep.subr.mxu0 0.0
    %904 = vmatpush2.msra.mxu0 0.0
    %905 = vmatprep.subr.mxu0 0.0
    %906 = vmatpush2.msra.mxu0 0.0
    %907 = vmatprep.subr.mxu0 0.0
    %908 = vmatpush2.msra.mxu0 0.0
    %909 = vmatprep.subr.mxu0 0.0
    %910 = vmatpush2.msra.mxu0 0.0
    %911 = vmatprep.subr.mxu0 0.0
    %912 = vmatpush2.msra.mxu0 0.0
    %913 = vmatprep.subr.mxu0 0.0
    %914 = vmatpush2.msra.mxu0 0.0
    %915 = vmatprep.subr.mxu0 0.0
    %916 = vmatpush2.msra.mxu0 0.0
    %917 = vmatprep.subr.mxu0 0.0
    %918 = vmatpush2.msra.mxu0 0.0
    %919 = vmatprep.subr.mxu0 0.0
    %920 = vmatpush2.msra.mxu0 0.0
    %921 = vmatprep.subr.mxu0 0.0
    %922 = vmatpush2.msra.mxu0 0.0
    %923 = vmatprep.subr.mxu0 0.0
    %924 = vmatpush2.msra.mxu0 0.0
    %925 = vmatprep.subr.mxu0 0.0
    %926 = vmatpush2.msra.mxu0 0.0
    %927 = vmatprep.subr.mxu0 0.0
    %928 = vmatpush2.msra.mxu0 0.0
    %929 = vmatprep.subr.mxu0 0.0
    %930 = vmatpush2.msra.mxu0 0.0
    %931 = vmatprep.mubr.f32.mxu0 0.0
    %932 = vmatmul.mubr.f32.gmra.mxu0 %v865
    %v933 = vpop.f32.mrf.mxu0
    %v934 = vadd.f32 0.0, %v933
    %v935 = vpop.f32.mrf.mxu0
    %936 = vdwg.mxu0
    %938 = vrot.lane.b32.xlu0 %v934, 8
    %v939 = vpop.permute.xlu0 %938
    %vm941 = vcmask 130112
    %942 = vst.msk [vmem:[#allocation2] sm:$0xff] %vm941, %v939
    %s943 = scalar_lea.vmem %s6, 8
    %v944 = vld [vmem:[%s943] sm:$0x7]
    %s945 = scalar_lea.vmem %s3, 64
    %v946 = vld [vmem:[%s945] sm:$0xff]
    %v947 = vld [vmem:[%s945 + $0x8] sm:$0xff]
    %v948 = vld [vmem:[%s945 + $0x10] sm:$0xff]
    %v949 = vld [vmem:[%s945 + $0x18] sm:$0xff]
    %v950 = vlaneseq
    %v951 = vshrl.u32 %v950, 7
    %v952 = vsub.s32 0, %v951
    %v953 = vrot.slane %v944, %v952
    %954 = vmatprep.subr.mxu0 0.0
    %955 = vmatpush1.msra.mxu0 0.0
    %956 = vmatprep.subr.mxu0 0.0
    %957 = vmatpush1.msra.mxu0 0.0
    %958 = vmatprep.subr.mxu0 0.0
    %959 = vmatpush1.msra.mxu0 0.0
    %960 = vmatprep.subr.mxu0 0.0
    %961 = vmatpush1.msra.mxu0 0.0
    %962 = vmatprep.subr.mxu0 0.0
    %963 = vmatpush1.msra.mxu0 0.0
    %964 = vmatprep.subr.mxu0 0.0
    %965 = vmatpush1.msra.mxu0 0.0
    %966 = vmatprep.subr.mxu0 0.0
    %967 = vmatpush1.msra.mxu0 0.0
    %968 = vmatprep.subr.mxu0 0.0
    %969 = vmatpush1.msra.mxu0 0.0
    %970 = vmatprep.subr.mxu0 0.0
    %971 = vmatpush1.msra.mxu0 0.0
    %972 = vmatprep.subr.mxu0 0.0
    %973 = vmatpush1.msra.mxu0 0.0
    %974 = vmatprep.subr.mxu0 0.0
    %975 = vmatpush1.msra.mxu0 0.0
    %976 = vmatprep.subr.mxu0 0.0
    %977 = vmatpush1.msra.mxu0 0.0
    %978 = vmatprep.subr.mxu0 0.0
    %979 = vmatpush1.msra.mxu0 %v949
    %980 = vmatprep.subr.mxu0 0.0
    %981 = vmatpush1.msra.mxu0 %v948
    %982 = vmatprep.subr.mxu0 0.0
    %983 = vmatpush1.msra.mxu0 %v947
    %984 = vmatprep.subr.mxu0 0.0
    %985 = vmatpush1.msra.mxu0 %v946
    %986 = vmatprep.subr.mxu0 0.0
    %987 = vmatpush2.msra.mxu0 0.0
    %988 = vmatprep.subr.mxu0 0.0
    %989 = vmatpush2.msra.mxu0 0.0
    %990 = vmatprep.subr.mxu0 0.0
    %991 = vmatpush2.msra.mxu0 0.0
    %992 = vmatprep.subr.mxu0 0.0
    %993 = vmatpush2.msra.mxu0 0.0
    %994 = vmatprep.subr.mxu0 0.0
    %995 = vmatpush2.msra.mxu0 0.0
    %996 = vmatprep.subr.mxu0 0.0
    %997 = vmatpush2.msra.mxu0 0.0
    %998 = vmatprep.subr.mxu0 0.0
    %999 = vmatpush2.msra.mxu0 0.0
    %1000 = vmatprep.subr.mxu0 0.0
    %1001 = vmatpush2.msra.mxu0 0.0
    %1002 = vmatprep.subr.mxu0 0.0
    %1003 = vmatpush2.msra.mxu0 0.0
    %1004 = vmatprep.subr.mxu0 0.0
    %1005 = vmatpush2.msra.mxu0 0.0
    %1006 = vmatprep.subr.mxu0 0.0
    %1007 = vmatpush2.msra.mxu0 0.0
    %1008 = vmatprep.subr.mxu0 0.0
    %1009 = vmatpush2.msra.mxu0 0.0
    %1010 = vmatprep.subr.mxu0 0.0
    %1011 = vmatpush2.msra.mxu0 0.0
    %1012 = vmatprep.subr.mxu0 0.0
    %1013 = vmatpush2.msra.mxu0 0.0
    %1014 = vmatprep.subr.mxu0 0.0
    %1015 = vmatpush2.msra.mxu0 0.0
    %1016 = vmatprep.subr.mxu0 0.0
    %1017 = vmatpush2.msra.mxu0 0.0
    %1018 = vmatprep.mubr.f32.mxu0 0.0
    %1019 = vmatmul.mubr.f32.gmra.mxu0 %v148
    %v1020 = vpop.f32.mrf.mxu0
    %v1021 = vadd.f32 %v953, %v1020
    %v1022 = vpop.f32.mrf.mxu0
    %1023 = vdwg.mxu0
    %s1024 = scalar_lea.vmem %s4, 64
    %v1025 = vld [vmem:[%s1024] sm:$0xff]
    %v1026 = vld [vmem:[%s1024 + $0x8] sm:$0xff]
    %v1027 = vld [vmem:[%s1024 + $0x10] sm:$0xff]
    %v1028 = vld [vmem:[%s1024 + $0x18] sm:$0xff]
    %v1029 = vlaneseq
    %v1030 = vshrl.u32 %v1029, 7
    %v1031 = vsub.s32 1, %v1030
    %v1032 = vrot.slane %v944, %v1031
    %1033 = vmatprep.subr.mxu0 0.0
    %1034 = vmatpush1.msra.mxu0 0.0
    %1035 = vmatprep.subr.mxu0 0.0
    %1036 = vmatpush1.msra.mxu0 0.0
    %1037 = vmatprep.subr.mxu0 0.0
    %1038 = vmatpush1.msra.mxu0 0.0
    %1039 = vmatprep.subr.mxu0 0.0
    %1040 = vmatpush1.msra.mxu0 0.0
    %1041 = vmatprep.subr.mxu0 0.0
    %1042 = vmatpush1.msra.mxu0 0.0
    %1043 = vmatprep.subr.mxu0 0.0
    %1044 = vmatpush1.msra.mxu0 0.0
    %1045 = vmatprep.subr.mxu0 0.0
    %1046 = vmatpush1.msra.mxu0 0.0
    %1047 = vmatprep.subr.mxu0 0.0
    %1048 = vmatpush1.msra.mxu0 0.0
    %1049 = vmatprep.subr.mxu0 0.0
    %1050 = vmatpush1.msra.mxu0 0.0
    %1051 = vmatprep.subr.mxu0 0.0
    %1052 = vmatpush1.msra.mxu0 0.0
    %1053 = vmatprep.subr.mxu0 0.0
    %1054 = vmatpush1.msra.mxu0 0.0
    %1055 = vmatprep.subr.mxu0 0.0
    %1056 = vmatpush1.msra.mxu0 0.0
    %1057 = vmatprep.subr.mxu0 0.0
    %1058 = vmatpush1.msra.mxu0 %v1028
    %1059 = vmatprep.subr.mxu0 0.0
    %1060 = vmatpush1.msra.mxu0 %v1027
    %1061 = vmatprep.subr.mxu0 0.0
    %1062 = vmatpush1.msra.mxu0 %v1026
    %1063 = vmatprep.subr.mxu0 0.0
    %1064 = vmatpush1.msra.mxu0 %v1025
    %1065 = vmatprep.subr.mxu0 0.0
    %1066 = vmatpush2.msra.mxu0 0.0
    %1067 = vmatprep.subr.mxu0 0.0
    %1068 = vmatpush2.msra.mxu0 0.0
    %1069 = vmatprep.subr.mxu0 0.0
    %1070 = vmatpush2.msra.mxu0 0.0
    %1071 = vmatprep.subr.mxu0 0.0
    %1072 = vmatpush2.msra.mxu0 0.0
    %1073 = vmatprep.subr.mxu0 0.0
    %1074 = vmatpush2.msra.mxu0 0.0
    %1075 = vmatprep.subr.mxu0 0.0
    %1076 = vmatpush2.msra.mxu0 0.0
    %1077 = vmatprep.subr.mxu0 0.0
    %1078 = vmatpush2.msra.mxu0 0.0
    %1079 = vmatprep.subr.mxu0 0.0
    %1080 = vmatpush2.msra.mxu0 0.0
    %1081 = vmatprep.subr.mxu0 0.0
    %1082 = vmatpush2.msra.mxu0 0.0
    %1083 = vmatprep.subr.mxu0 0.0
    %1084 = vmatpush2.msra.mxu0 0.0
    %1085 = vmatprep.subr.mxu0 0.0
    %1086 = vmatpush2.msra.mxu0 0.0
    %1087 = vmatprep.subr.mxu0 0.0
    %1088 = vmatpush2.msra.mxu0 0.0
    %1089 = vmatprep.subr.mxu0 0.0
    %1090 = vmatpush2.msra.mxu0 0.0
    %1091 = vmatprep.subr.mxu0 0.0
    %1092 = vmatpush2.msra.mxu0 0.0
    %1093 = vmatprep.subr.mxu0 0.0
    %1094 = vmatpush2.msra.mxu0 0.0
    %1095 = vmatprep.subr.mxu0 0.0
    %1096 = vmatpush2.msra.mxu0 0.0
    %1097 = vmatprep.mubr.f32.mxu0 0.0
    %1098 = vmatmul.mubr.f32.gmra.mxu0 %v148
    %v1099 = vpop.f32.mrf.mxu0
    %v1100 = vadd.f32 %v1032, %v1099
    %v1101 = vpop.f32.mrf.mxu0
    %1102 = vdwg.mxu0
    %s1103 = scalar_lea.vmem %s5, 64
    %v1104 = vld [vmem:[%s1103] sm:$0xff]
    %v1105 = vld [vmem:[%s1103 + $0x8] sm:$0xff]
    %v1106 = vld [vmem:[%s1103 + $0x10] sm:$0xff]
    %v1107 = vld [vmem:[%s1103 + $0x18] sm:$0xff]
    %v1108 = vlaneseq
    %v1109 = vshrl.u32 %v1108, 7
    %v1110 = vsub.s32 2, %v1109
    %v1111 = vrot.slane %v944, %v1110
    %1112 = vmatprep.subr.mxu0 0.0
    %1113 = vmatpush1.msra.mxu0 0.0
    %1114 = vmatprep.subr.mxu0 0.0
    %1115 = vmatpush1.msra.mxu0 0.0
    %1116 = vmatprep.subr.mxu0 0.0
    %1117 = vmatpush1.msra.mxu0 0.0
    %1118 = vmatprep.subr.mxu0 0.0
    %1119 = vmatpush1.msra.mxu0 0.0
    %1120 = vmatprep.subr.mxu0 0.0
    %1121 = vmatpush1.msra.mxu0 0.0
    %1122 = vmatprep.subr.mxu0 0.0
    %1123 = vmatpush1.msra.mxu0 0.0
    %1124 = vmatprep.subr.mxu0 0.0
    %1125 = vmatpush1.msra.mxu0 0.0
    %1126 = vmatprep.subr.mxu0 0.0
    %1127 = vmatpush1.msra.mxu0 0.0
    %1128 = vmatprep.subr.mxu0 0.0
    %1129 = vmatpush1.msra.mxu0 0.0
    %1130 = vmatprep.subr.mxu0 0.0
    %1131 = vmatpush1.msra.mxu0 0.0
    %1132 = vmatprep.subr.mxu0 0.0
    %1133 = vmatpush1.msra.mxu0 0.0
    %1134 = vmatprep.subr.mxu0 0.0
    %1135 = vmatpush1.msra.mxu0 0.0
    %1136 = vmatprep.subr.mxu0 0.0
    %1137 = vmatpush1.msra.mxu0 %v1107
    %1138 = vmatprep.subr.mxu0 0.0
    %1139 = vmatpush1.msra.mxu0 %v1106
    %1140 = vmatprep.subr.mxu0 0.0
    %1141 = vmatpush1.msra.mxu0 %v1105
    %1142 = vmatprep.subr.mxu0 0.0
    %1143 = vmatpush1.msra.mxu0 %v1104
    %1144 = vmatprep.subr.mxu0 0.0
    %1145 = vmatpush2.msra.mxu0 0.0
    %1146 = vmatprep.subr.mxu0 0.0
    %1147 = vmatpush2.msra.mxu0 0.0
    %1148 = vmatprep.subr.mxu0 0.0
    %1149 = vmatpush2.msra.mxu0 0.0
    %1150 = vmatprep.subr.mxu0 0.0
    %1151 = vmatpush2.msra.mxu0 0.0
    %1152 = vmatprep.subr.mxu0 0.0
    %1153 = vmatpush2.msra.mxu0 0.0
    %1154 = vmatprep.subr.mxu0 0.0
    %1155 = vmatpush2.msra.mxu0 0.0
    %1156 = vmatprep.subr.mxu0 0.0
    %1157 = vmatpush2.msra.mxu0 0.0
    %1158 = vmatprep.subr.mxu0 0.0
    %1159 = vmatpush2.msra.mxu0 0.0
    %1160 = vmatprep.subr.mxu0 0.0
    %1161 = vmatpush2.msra.mxu0 0.0
    %1162 = vmatprep.subr.mxu0 0.0
    %1163 = vmatpush2.msra.mxu0 0.0
    %1164 = vmatprep.subr.mxu0 0.0
    %1165 = vmatpush2.msra.mxu0 0.0
    %1166 = vmatprep.subr.mxu0 0.0
    %1167 = vmatpush2.msra.mxu0 0.0
    %1168 = vmatprep.subr.mxu0 0.0
    %1169 = vmatpush2.msra.mxu0 0.0
    %1170 = vmatprep.subr.mxu0 0.0
    %1171 = vmatpush2.msra.mxu0 0.0
    %1172 = vmatprep.subr.mxu0 0.0
    %1173 = vmatpush2.msra.mxu0 0.0
    %1174 = vmatprep.subr.mxu0 0.0
    %1175 = vmatpush2.msra.mxu0 0.0
    %1176 = vmatprep.mubr.f32.mxu0 0.0
    %1177 = vmatmul.mubr.f32.gmra.mxu0 %v148
    %v1178 = vpop.f32.mrf.mxu0
    %v1179 = vadd.f32 %v1111, %v1178
    %v1180 = vpop.f32.mrf.mxu0
    %1181 = vdwg.mxu0
    %v1183 = vsel %vm376, %v1021, 0
    %v1186 = vsel %vm376, %v1100, 0
    %1188 = vmatprep.subr.mxu0 0.0
    %1189 = vmatpush1.xpose.msra.mxu0 0.0
    %1190 = vmatprep.subr.mxu0 0.0
    %1191 = vmatpush1.xpose.msra.mxu0 0.0
    %1192 = vmatprep.subr.mxu0 0.0
    %1193 = vmatpush1.xpose.msra.mxu0 0.0
    %1194 = vmatprep.subr.mxu0 0.0
    %1195 = vmatpush1.xpose.msra.mxu0 0.0
    %1196 = vmatprep.subr.mxu0 0.0
    %1197 = vmatpush1.xpose.msra.mxu0 0.0
    %1198 = vmatprep.subr.mxu0 0.0
    %1199 = vmatpush1.xpose.msra.mxu0 0.0
    %1200 = vmatprep.subr.mxu0 0.0
    %1201 = vmatpush1.xpose.msra.mxu0 0.0
    %1202 = vmatprep.subr.mxu0 0.0
    %1203 = vmatpush1.xpose.msra.mxu0 0.0
    %1204 = vmatprep.subr.mxu0 0.0
    %1205 = vmatpush1.xpose.msra.mxu0 0.0
    %1206 = vmatprep.subr.mxu0 0.0
    %1207 = vmatpush1.xpose.msra.mxu0 0.0
    %1208 = vmatprep.subr.mxu0 0.0
    %1209 = vmatpush1.xpose.msra.mxu0 0.0
    %1210 = vmatprep.subr.mxu0 0.0
    %1211 = vmatpush1.xpose.msra.mxu0 0.0
    %1212 = vmatprep.subr.mxu0 0.0
    %1213 = vmatpush1.xpose.msra.mxu0 0.0
    %1214 = vmatprep.subr.mxu0 0.0
    %1215 = vmatpush1.xpose.msra.mxu0 0.0
    %1216 = vmatprep.subr.mxu0 0.0
    %1217 = vmatpush1.xpose.msra.mxu0 0.0
    %1218 = vmatprep.subr.mxu0 0.0
    %1219 = vmatpush1.xpose.msra.mxu0 %v1186
    %1220 = vmatprep.subr.mxu0 0.0
    %1221 = vmatpush2.xpose.msra.mxu0 0.0
    %1222 = vmatprep.subr.mxu0 0.0
    %1223 = vmatpush2.xpose.msra.mxu0 0.0
    %1224 = vmatprep.subr.mxu0 0.0
    %1225 = vmatpush2.xpose.msra.mxu0 0.0
    %1226 = vmatprep.subr.mxu0 0.0
    %1227 = vmatpush2.xpose.msra.mxu0 0.0
    %1228 = vmatprep.subr.mxu0 0.0
    %1229 = vmatpush2.xpose.msra.mxu0 0.0
    %1230 = vmatprep.subr.mxu0 0.0
    %1231 = vmatpush2.xpose.msra.mxu0 0.0
    %1232 = vmatprep.subr.mxu0 0.0
    %1233 = vmatpush2.xpose.msra.mxu0 0.0
    %1234 = vmatprep.subr.mxu0 0.0
    %1235 = vmatpush2.xpose.msra.mxu0 0.0
    %1236 = vmatprep.subr.mxu0 0.0
    %1237 = vmatpush2.xpose.msra.mxu0 0.0
    %1238 = vmatprep.subr.mxu0 0.0
    %1239 = vmatpush2.xpose.msra.mxu0 0.0
    %1240 = vmatprep.subr.mxu0 0.0
    %1241 = vmatpush2.xpose.msra.mxu0 0.0
    %1242 = vmatprep.subr.mxu0 0.0
    %1243 = vmatpush2.xpose.msra.mxu0 0.0
    %1244 = vmatprep.subr.mxu0 0.0
    %1245 = vmatpush2.xpose.msra.mxu0 0.0
    %1246 = vmatprep.subr.mxu0 0.0
    %1247 = vmatpush2.xpose.msra.mxu0 0.0
    %1248 = vmatprep.subr.mxu0 0.0
    %1249 = vmatpush2.xpose.msra.mxu0 0.0
    %1250 = vmatprep.subr.mxu0 0.0
    %1251 = vmatpush2.xpose.msra.mxu0 0.0
    %1252 = vmatprep.mubr.f32.mxu0 0.0
    %1253 = vmatmul.mubr.f32.gmra.mxu0 %v1183
    %v1254 = vpop.f32.mrf.mxu0
    %v1255 = vadd.f32 0.0, %v1254
    %v1256 = vpop.f32.mrf.mxu0
    %1257 = vdwg.mxu0
    %v1258 = vsel %vm376, %v1255, -inf
    %1259 = vmax.xlane.f32.xlu0 %v1258
    %v1260 = vpop.xlane.xlu0 %1259
    %v1261 = vsub.f32 %v1255, %v1260
    %v1262 = vmul.f32 %v1261, 1.442695
    %v1263 = vpow.pop %v1262
    %v1264 = vsel %vm376, %v1263, 0.0
    %1265 = vadd.xlane.f32.xlu0 %v1264
    %v1266 = vpop.xlane.xlu0 %1265
    %v1267 = vrcp.pop %v1266
    %v1268 = vmul.f32 %v1263, %v1267
    %v1270 = vsel %vm376, %v1268, 0
    %1272 = vmatprep.subr.mxu0 0.0
    %1273 = vmatpush1.msra.mxu0 0.0
    %1274 = vmatprep.subr.mxu0 0.0
    %1275 = vmatpush1.msra.mxu0 0.0
    %1276 = vmatprep.subr.mxu0 0.0
    %1277 = vmatpush1.msra.mxu0 0.0
    %1278 = vmatprep.subr.mxu0 0.0
    %1279 = vmatpush1.msra.mxu0 0.0
    %1280 = vmatprep.subr.mxu0 0.0
    %1281 = vmatpush1.msra.mxu0 0.0
    %1282 = vmatprep.subr.mxu0 0.0
    %1283 = vmatpush1.msra.mxu0 0.0
    %1284 = vmatprep.subr.mxu0 0.0
    %1285 = vmatpush1.msra.mxu0 0.0
    %1286 = vmatprep.subr.mxu0 0.0
    %1287 = vmatpush1.msra.mxu0 0.0
    %1288 = vmatprep.subr.mxu0 0.0
    %1289 = vmatpush1.msra.mxu0 0.0
    %1290 = vmatprep.subr.mxu0 0.0
    %1291 = vmatpush1.msra.mxu0 0.0
    %1292 = vmatprep.subr.mxu0 0.0
    %1293 = vmatpush1.msra.mxu0 0.0
    %1294 = vmatprep.subr.mxu0 0.0
    %1295 = vmatpush1.msra.mxu0 0.0
    %1296 = vmatprep.subr.mxu0 0.0
    %1297 = vmatpush1.msra.mxu0 0.0
    %1298 = vmatprep.subr.mxu0 0.0
    %1299 = vmatpush1.msra.mxu0 0.0
    %1300 = vmatprep.subr.mxu0 0.0
    %1301 = vmatpush1.msra.mxu0 0.0
    %1302 = vmatprep.subr.mxu0 0.0
    %1303 = vmatpush1.msra.mxu0 %v1179
    %1304 = vmatprep.subr.mxu0 0.0
    %1305 = vmatpush2.msra.mxu0 0.0
    %1306 = vmatprep.subr.mxu0 0.0
    %1307 = vmatpush2.msra.mxu0 0.0
    %1308 = vmatprep.subr.mxu0 0.0
    %1309 = vmatpush2.msra.mxu0 0.0
    %1310 = vmatprep.subr.mxu0 0.0
    %1311 = vmatpush2.msra.mxu0 0.0
    %1312 = vmatprep.subr.mxu0 0.0
    %1313 = vmatpush2.msra.mxu0 0.0
    %1314 = vmatprep.subr.mxu0 0.0
    %1315 = vmatpush2.msra.mxu0 0.0
    %1316 = vmatprep.subr.mxu0 0.0
    %1317 = vmatpush2.msra.mxu0 0.0
    %1318 = vmatprep.subr.mxu0 0.0
    %1319 = vmatpush2.msra.mxu0 0.0
    %1320 = vmatprep.subr.mxu0 0.0
    %1321 = vmatpush2.msra.mxu0 0.0
    %1322 = vmatprep.subr.mxu0 0.0
    %1323 = vmatpush2.msra.mxu0 0.0
    %1324 = vmatprep.subr.mxu0 0.0
    %1325 = vmatpush2.msra.mxu0 0.0
    %1326 = vmatprep.subr.mxu0 0.0
    %1327 = vmatpush2.msra.mxu0 0.0
    %1328 = vmatprep.subr.mxu0 0.0
    %1329 = vmatpush2.msra.mxu0 0.0
    %1330 = vmatprep.subr.mxu0 0.0
    %1331 = vmatpush2.msra.mxu0 0.0
    %1332 = vmatprep.subr.mxu0 0.0
    %1333 = vmatpush2.msra.mxu0 0.0
    %1334 = vmatprep.subr.mxu0 0.0
    %1335 = vmatpush2.msra.mxu0 0.0
    %1336 = vmatprep.mubr.f32.mxu0 0.0
    %1337 = vmatmul.mubr.f32.gmra.mxu0 %v1270
    %v1338 = vpop.f32.mrf.mxu0
    %v1339 = vadd.f32 0.0, %v1338
    %v1340 = vpop.f32.mrf.mxu0
    %1341 = vdwg.mxu0
    %1343 = vrot.lane.b32.xlu0 %v1339, 16
    %v1344 = vpop.permute.xlu0 %1343
    %vm1346 = vcmask 195712
    %1347 = vst.msk [vmem:[#allocation2] sm:$0xff] %vm1346, %v1344
    %s1348 = scalar_lea.vmem %s6, 12
    %v1349 = vld [vmem:[%s1348] sm:$0x7]
    %s1350 = scalar_lea.vmem %s3, 96
    %v1351 = vld [vmem:[%s1350] sm:$0xff]
    %v1352 = vld [vmem:[%s1350 + $0x8] sm:$0xff]
    %v1353 = vld [vmem:[%s1350 + $0x10] sm:$0xff]
    %v1354 = vld [vmem:[%s1350 + $0x18] sm:$0xff]
    %v1355 = vlaneseq
    %v1356 = vshrl.u32 %v1355, 7
    %v1357 = vsub.s32 0, %v1356
    %v1358 = vrot.slane %v1349, %v1357
    %1359 = vmatprep.subr.mxu0 0.0
    %1360 = vmatpush1.msra.mxu0 0.0
    %1361 = vmatprep.subr.mxu0 0.0
    %1362 = vmatpush1.msra.mxu0 0.0
    %1363 = vmatprep.subr.mxu0 0.0
    %1364 = vmatpush1.msra.mxu0 0.0
    %1365 = vmatprep.subr.mxu0 0.0
    %1366 = vmatpush1.msra.mxu0 0.0
    %1367 = vmatprep.subr.mxu0 0.0
    %1368 = vmatpush1.msra.mxu0 0.0
    %1369 = vmatprep.subr.mxu0 0.0
    %1370 = vmatpush1.msra.mxu0 0.0
    %1371 = vmatprep.subr.mxu0 0.0
    %1372 = vmatpush1.msra.mxu0 0.0
    %1373 = vmatprep.subr.mxu0 0.0
    %1374 = vmatpush1.msra.mxu0 0.0
    %1375 = vmatprep.subr.mxu0 0.0
    %1376 = vmatpush1.msra.mxu0 0.0
    %1377 = vmatprep.subr.mxu0 0.0
    %1378 = vmatpush1.msra.mxu0 0.0
    %1379 = vmatprep.subr.mxu0 0.0
    %1380 = vmatpush1.msra.mxu0 0.0
    %1381 = vmatprep.subr.mxu0 0.0
    %1382 = vmatpush1.msra.mxu0 0.0
    %1383 = vmatprep.subr.mxu0 0.0
    %1384 = vmatpush1.msra.mxu0 %v1354
    %1385 = vmatprep.subr.mxu0 0.0
    %1386 = vmatpush1.msra.mxu0 %v1353
    %1387 = vmatprep.subr.mxu0 0.0
    %1388 = vmatpush1.msra.mxu0 %v1352
    %1389 = vmatprep.subr.mxu0 0.0
    %1390 = vmatpush1.msra.mxu0 %v1351
    %1391 = vmatprep.subr.mxu0 0.0
    %1392 = vmatpush2.msra.mxu0 0.0
    %1393 = vmatprep.subr.mxu0 0.0
    %1394 = vmatpush2.msra.mxu0 0.0
    %1395 = vmatprep.subr.mxu0 0.0
    %1396 = vmatpush2.msra.mxu0 0.0
    %1397 = vmatprep.subr.mxu0 0.0
    %1398 = vmatpush2.msra.mxu0 0.0
    %1399 = vmatprep.subr.mxu0 0.0
    %1400 = vmatpush2.msra.mxu0 0.0
    %1401 = vmatprep.subr.mxu0 0.0
    %1402 = vmatpush2.msra.mxu0 0.0
    %1403 = vmatprep.subr.mxu0 0.0
    %1404 = vmatpush2.msra.mxu0 0.0
    %1405 = vmatprep.subr.mxu0 0.0
    %1406 = vmatpush2.msra.mxu0 0.0
    %1407 = vmatprep.subr.mxu0 0.0
    %1408 = vmatpush2.msra.mxu0 0.0
    %1409 = vmatprep.subr.mxu0 0.0
    %1410 = vmatpush2.msra.mxu0 0.0
    %1411 = vmatprep.subr.mxu0 0.0
    %1412 = vmatpush2.msra.mxu0 0.0
    %1413 = vmatprep.subr.mxu0 0.0
    %1414 = vmatpush2.msra.mxu0 0.0
    %1415 = vmatprep.subr.mxu0 0.0
    %1416 = vmatpush2.msra.mxu0 0.0
    %1417 = vmatprep.subr.mxu0 0.0
    %1418 = vmatpush2.msra.mxu0 0.0
    %1419 = vmatprep.subr.mxu0 0.0
    %1420 = vmatpush2.msra.mxu0 0.0
    %1421 = vmatprep.subr.mxu0 0.0
    %1422 = vmatpush2.msra.mxu0 0.0
    %1423 = vmatprep.mubr.f32.mxu0 0.0
    %1424 = vmatmul.mubr.f32.gmra.mxu0 %v148
    %v1425 = vpop.f32.mrf.mxu0
    %v1426 = vadd.f32 %v1358, %v1425
    %v1427 = vpop.f32.mrf.mxu0
    %1428 = vdwg.mxu0
    %s1429 = scalar_lea.vmem %s4, 96
    %v1430 = vld [vmem:[%s1429] sm:$0xff]
    %v1431 = vld [vmem:[%s1429 + $0x8] sm:$0xff]
    %v1432 = vld [vmem:[%s1429 + $0x10] sm:$0xff]
    %v1433 = vld [vmem:[%s1429 + $0x18] sm:$0xff]
    %v1434 = vlaneseq
    %v1435 = vshrl.u32 %v1434, 7
    %v1436 = vsub.s32 1, %v1435
    %v1437 = vrot.slane %v1349, %v1436
    %1438 = vmatprep.subr.mxu0 0.0
    %1439 = vmatpush1.msra.mxu0 0.0
    %1440 = vmatprep.subr.mxu0 0.0
    %1441 = vmatpush1.msra.mxu0 0.0
    %1442 = vmatprep.subr.mxu0 0.0
    %1443 = vmatpush1.msra.mxu0 0.0
    %1444 = vmatprep.subr.mxu0 0.0
    %1445 = vmatpush1.msra.mxu0 0.0
    %1446 = vmatprep.subr.mxu0 0.0
    %1447 = vmatpush1.msra.mxu0 0.0
    %1448 = vmatprep.subr.mxu0 0.0
    %1449 = vmatpush1.msra.mxu0 0.0
    %1450 = vmatprep.subr.mxu0 0.0
    %1451 = vmatpush1.msra.mxu0 0.0
    %1452 = vmatprep.subr.mxu0 0.0
    %1453 = vmatpush1.msra.mxu0 0.0
    %1454 = vmatprep.subr.mxu0 0.0
    %1455 = vmatpush1.msra.mxu0 0.0
    %1456 = vmatprep.subr.mxu0 0.0
    %1457 = vmatpush1.msra.mxu0 0.0
    %1458 = vmatprep.subr.mxu0 0.0
    %1459 = vmatpush1.msra.mxu0 0.0
    %1460 = vmatprep.subr.mxu0 0.0
    %1461 = vmatpush1.msra.mxu0 0.0
    %1462 = vmatprep.subr.mxu0 0.0
    %1463 = vmatpush1.msra.mxu0 %v1433
    %1464 = vmatprep.subr.mxu0 0.0
    %1465 = vmatpush1.msra.mxu0 %v1432
    %1466 = vmatprep.subr.mxu0 0.0
    %1467 = vmatpush1.msra.mxu0 %v1431
    %1468 = vmatprep.subr.mxu0 0.0
    %1469 = vmatpush1.msra.mxu0 %v1430
    %1470 = vmatprep.subr.mxu0 0.0
    %1471 = vmatpush2.msra.mxu0 0.0
    %1472 = vmatprep.subr.mxu0 0.0
    %1473 = vmatpush2.msra.mxu0 0.0
    %1474 = vmatprep.subr.mxu0 0.0
    %1475 = vmatpush2.msra.mxu0 0.0
    %1476 = vmatprep.subr.mxu0 0.0
    %1477 = vmatpush2.msra.mxu0 0.0
    %1478 = vmatprep.subr.mxu0 0.0
    %1479 = vmatpush2.msra.mxu0 0.0
    %1480 = vmatprep.subr.mxu0 0.0
    %1481 = vmatpush2.msra.mxu0 0.0
    %1482 = vmatprep.subr.mxu0 0.0
    %1483 = vmatpush2.msra.mxu0 0.0
    %1484 = vmatprep.subr.mxu0 0.0
    %1485 = vmatpush2.msra.mxu0 0.0
    %1486 = vmatprep.subr.mxu0 0.0
    %1487 = vmatpush2.msra.mxu0 0.0
    %1488 = vmatprep.subr.mxu0 0.0
    %1489 = vmatpush2.msra.mxu0 0.0
    %1490 = vmatprep.subr.mxu0 0.0
    %1491 = vmatpush2.msra.mxu0 0.0
    %1492 = vmatprep.subr.mxu0 0.0
    %1493 = vmatpush2.msra.mxu0 0.0
    %1494 = vmatprep.subr.mxu0 0.0
    %1495 = vmatpush2.msra.mxu0 0.0
    %1496 = vmatprep.subr.mxu0 0.0
    %1497 = vmatpush2.msra.mxu0 0.0
    %1498 = vmatprep.subr.mxu0 0.0
    %1499 = vmatpush2.msra.mxu0 0.0
    %1500 = vmatprep.subr.mxu0 0.0
    %1501 = vmatpush2.msra.mxu0 0.0
    %1502 = vmatprep.mubr.f32.mxu0 0.0
    %1503 = vmatmul.mubr.f32.gmra.mxu0 %v148
    %v1504 = vpop.f32.mrf.mxu0
    %v1505 = vadd.f32 %v1437, %v1504
    %v1506 = vpop.f32.mrf.mxu0
    %1507 = vdwg.mxu0
    %s1508 = scalar_lea.vmem %s5, 96
    %v1509 = vld [vmem:[%s1508] sm:$0xff]
    %v1510 = vld [vmem:[%s1508 + $0x8] sm:$0xff]
    %v1511 = vld [vmem:[%s1508 + $0x10] sm:$0xff]
    %v1512 = vld [vmem:[%s1508 + $0x18] sm:$0xff]
    %v1513 = vlaneseq
    %v1514 = vshrl.u32 %v1513, 7
    %v1515 = vsub.s32 2, %v1514
    %v1516 = vrot.slane %v1349, %v1515
    %1517 = vmatprep.subr.mxu0 0.0
    %1518 = vmatpush1.msra.mxu0 0.0
    %1519 = vmatprep.subr.mxu0 0.0
    %1520 = vmatpush1.msra.mxu0 0.0
    %1521 = vmatprep.subr.mxu0 0.0
    %1522 = vmatpush1.msra.mxu0 0.0
    %1523 = vmatprep.subr.mxu0 0.0
    %1524 = vmatpush1.msra.mxu0 0.0
    %1525 = vmatprep.subr.mxu0 0.0
    %1526 = vmatpush1.msra.mxu0 0.0
    %1527 = vmatprep.subr.mxu0 0.0
    %1528 = vmatpush1.msra.mxu0 0.0
    %1529 = vmatprep.subr.mxu0 0.0
    %1530 = vmatpush1.msra.mxu0 0.0
    %1531 = vmatprep.subr.mxu0 0.0
    %1532 = vmatpush1.msra.mxu0 0.0
    %1533 = vmatprep.subr.mxu0 0.0
    %1534 = vmatpush1.msra.mxu0 0.0
    %1535 = vmatprep.subr.mxu0 0.0
    %1536 = vmatpush1.msra.mxu0 0.0
    %1537 = vmatprep.subr.mxu0 0.0
    %1538 = vmatpush1.msra.mxu0 0.0
    %1539 = vmatprep.subr.mxu0 0.0
    %1540 = vmatpush1.msra.mxu0 0.0
    %1541 = vmatprep.subr.mxu0 0.0
    %1542 = vmatpush1.msra.mxu0 %v1512
    %1543 = vmatprep.subr.mxu0 0.0
    %1544 = vmatpush1.msra.mxu0 %v1511
    %1545 = vmatprep.subr.mxu0 0.0
    %1546 = vmatpush1.msra.mxu0 %v1510
    %1547 = vmatprep.subr.mxu0 0.0
    %1548 = vmatpush1.msra.mxu0 %v1509
    %1549 = vmatprep.subr.mxu0 0.0
    %1550 = vmatpush2.msra.mxu0 0.0
    %1551 = vmatprep.subr.mxu0 0.0
    %1552 = vmatpush2.msra.mxu0 0.0
    %1553 = vmatprep.subr.mxu0 0.0
    %1554 = vmatpush2.msra.mxu0 0.0
    %1555 = vmatprep.subr.mxu0 0.0
    %1556 = vmatpush2.msra.mxu0 0.0
    %1557 = vmatprep.subr.mxu0 0.0
    %1558 = vmatpush2.msra.mxu0 0.0
    %1559 = vmatprep.subr.mxu0 0.0
    %1560 = vmatpush2.msra.mxu0 0.0
    %1561 = vmatprep.subr.mxu0 0.0
    %1562 = vmatpush2.msra.mxu0 0.0
    %1563 = vmatprep.subr.mxu0 0.0
    %1564 = vmatpush2.msra.mxu0 0.0
    %1565 = vmatprep.subr.mxu0 0.0
    %1566 = vmatpush2.msra.mxu0 0.0
    %1567 = vmatprep.subr.mxu0 0.0
    %1568 = vmatpush2.msra.mxu0 0.0
    %1569 = vmatprep.subr.mxu0 0.0
    %1570 = vmatpush2.msra.mxu0 0.0
    %1571 = vmatprep.subr.mxu0 0.0
    %1572 = vmatpush2.msra.mxu0 0.0
    %1573 = vmatprep.subr.mxu0 0.0
    %1574 = vmatpush2.msra.mxu0 0.0
    %1575 = vmatprep.subr.mxu0 0.0
    %1576 = vmatpush2.msra.mxu0 0.0
    %1577 = vmatprep.subr.mxu0 0.0
    %1578 = vmatpush2.msra.mxu0 0.0
    %1579 = vmatprep.subr.mxu0 0.0
    %1580 = vmatpush2.msra.mxu0 0.0
    %1581 = vmatprep.mubr.f32.mxu0 0.0
    %1582 = vmatmul.mubr.f32.gmra.mxu0 %v148
    %v1583 = vpop.f32.mrf.mxu0
    %v1584 = vadd.f32 %v1516, %v1583
    %v1585 = vpop.f32.mrf.mxu0
    %1586 = vdwg.mxu0
    %v1588 = vsel %vm376, %v1426, 0
    %v1591 = vsel %vm376, %v1505, 0
    %1593 = vmatprep.subr.mxu0 0.0
    %1594 = vmatpush1.xpose.msra.mxu0 0.0
    %1595 = vmatprep.subr.mxu0 0.0
    %1596 = vmatpush1.xpose.msra.mxu0 0.0
    %1597 = vmatprep.subr.mxu0 0.0
    %1598 = vmatpush1.xpose.msra.mxu0 0.0
    %1599 = vmatprep.subr.mxu0 0.0
    %1600 = vmatpush1.xpose.msra.mxu0 0.0
    %1601 = vmatprep.subr.mxu0 0.0
    %1602 = vmatpush1.xpose.msra.mxu0 0.0
    %1603 = vmatprep.subr.mxu0 0.0
    %1604 = vmatpush1.xpose.msra.mxu0 0.0
    %1605 = vmatprep.subr.mxu0 0.0
    %1606 = vmatpush1.xpose.msra.mxu0 0.0
    %1607 = vmatprep.subr.mxu0 0.0
    %1608 = vmatpush1.xpose.msra.mxu0 0.0
    %1609 = vmatprep.subr.mxu0 0.0
    %1610 = vmatpush1.xpose.msra.mxu0 0.0
    %1611 = vmatprep.subr.mxu0 0.0
    %1612 = vmatpush1.xpose.msra.mxu0 0.0
    %1613 = vmatprep.subr.mxu0 0.0
    %1614 = vmatpush1.xpose.msra.mxu0 0.0
    %1615 = vmatprep.subr.mxu0 0.0
    %1616 = vmatpush1.xpose.msra.mxu0 0.0
    %1617 = vmatprep.subr.mxu0 0.0
    %1618 = vmatpush1.xpose.msra.mxu0 0.0
    %1619 = vmatprep.subr.mxu0 0.0
    %1620 = vmatpush1.xpose.msra.mxu0 0.0
    %1621 = vmatprep.subr.mxu0 0.0
    %1622 = vmatpush1.xpose.msra.mxu0 0.0
    %1623 = vmatprep.subr.mxu0 0.0
    %1624 = vmatpush1.xpose.msra.mxu0 %v1591
    %1625 = vmatprep.subr.mxu0 0.0
    %1626 = vmatpush2.xpose.msra.mxu0 0.0
    %1627 = vmatprep.subr.mxu0 0.0
    %1628 = vmatpush2.xpose.msra.mxu0 0.0
    %1629 = vmatprep.subr.mxu0 0.0
    %1630 = vmatpush2.xpose.msra.mxu0 0.0
    %1631 = vmatprep.subr.mxu0 0.0
    %1632 = vmatpush2.xpose.msra.mxu0 0.0
    %1633 = vmatprep.subr.mxu0 0.0
    %1634 = vmatpush2.xpose.msra.mxu0 0.0
    %1635 = vmatprep.subr.mxu0 0.0
    %1636 = vmatpush2.xpose.msra.mxu0 0.0
    %1637 = vmatprep.subr.mxu0 0.0
    %1638 = vmatpush2.xpose.msra.mxu0 0.0
    %1639 = vmatprep.subr.mxu0 0.0
    %1640 = vmatpush2.xpose.msra.mxu0 0.0
    %1641 = vmatprep.subr.mxu0 0.0
    %1642 = vmatpush2.xpose.msra.mxu0 0.0
    %1643 = vmatprep.subr.mxu0 0.0
    %1644 = vmatpush2.xpose.msra.mxu0 0.0
    %1645 = vmatprep.subr.mxu0 0.0
    %1646 = vmatpush2.xpose.msra.mxu0 0.0
    %1647 = vmatprep.subr.mxu0 0.0
    %1648 = vmatpush2.xpose.msra.mxu0 0.0
    %1649 = vmatprep.subr.mxu0 0.0
    %1650 = vmatpush2.xpose.msra.mxu0 0.0
    %1651 = vmatprep.subr.mxu0 0.0
    %1652 = vmatpush2.xpose.msra.mxu0 0.0
    %1653 = vmatprep.subr.mxu0 0.0
    %1654 = vmatpush2.xpose.msra.mxu0 0.0
    %1655 = vmatprep.subr.mxu0 0.0
    %1656 = vmatpush2.xpose.msra.mxu0 0.0
    %1657 = vmatprep.mubr.f32.mxu0 0.0
    %1658 = vmatmul.mubr.f32.gmra.mxu0 %v1588
    %v1659 = vpop.f32.mrf.mxu0
    %v1660 = vadd.f32 0.0, %v1659
    %v1661 = vpop.f32.mrf.mxu0
    %1662 = vdwg.mxu0
    %v1663 = vsel %vm376, %v1660, -inf
    %1664 = vmax.xlane.f32.xlu0 %v1663
    %v1665 = vpop.xlane.xlu0 %1664
    %v1666 = vsub.f32 %v1660, %v1665
    %v1667 = vmul.f32 %v1666, 1.442695
    %v1668 = vpow.pop %v1667
    %v1669 = vsel %vm376, %v1668, 0.0
    %1670 = vadd.xlane.f32.xlu0 %v1669
    %v1671 = vpop.xlane.xlu0 %1670
    %v1672 = vrcp.pop %v1671
    %v1673 = vmul.f32 %v1668, %v1672
    %v1675 = vsel %vm376, %v1673, 0
    %1677 = vmatprep.subr.mxu0 0.0
    %1678 = vmatpush1.msra.mxu0 0.0
    %1679 = vmatprep.subr.mxu0 0.0
    %1680 = vmatpush1.msra.mxu0 0.0
    %1681 = vmatprep.subr.mxu0 0.0
    %1682 = vmatpush1.msra.mxu0 0.0
    %1683 = vmatprep.subr.mxu0 0.0
    %1684 = vmatpush1.msra.mxu0 0.0
    %1685 = vmatprep.subr.mxu0 0.0
    %1686 = vmatpush1.msra.mxu0 0.0
    %1687 = vmatprep.subr.mxu0 0.0
    %1688 = vmatpush1.msra.mxu0 0.0
    %1689 = vmatprep.subr.mxu0 0.0
    %1690 = vmatpush1.msra.mxu0 0.0
    %1691 = vmatprep.subr.mxu0 0.0
    %1692 = vmatpush1.msra.mxu0 0.0
    %1693 = vmatprep.subr.mxu0 0.0
    %1694 = vmatpush1.msra.mxu0 0.0
    %1695 = vmatprep.subr.mxu0 0.0
    %1696 = vmatpush1.msra.mxu0 0.0
    %1697 = vmatprep.subr.mxu0 0.0
    %1698 = vmatpush1.msra.mxu0 0.0
    %1699 = vmatprep.subr.mxu0 0.0
    %1700 = vmatpush1.msra.mxu0 0.0
    %1701 = vmatprep.subr.mxu0 0.0
    %1702 = vmatpush1.msra.mxu0 0.0
    %1703 = vmatprep.subr.mxu0 0.0
    %1704 = vmatpush1.msra.mxu0 0.0
    %1705 = vmatprep.subr.mxu0 0.0
    %1706 = vmatpush1.msra.mxu0 0.0
    %1707 = vmatprep.subr.mxu0 0.0
    %1708 = vmatpush1.msra.mxu0 %v1584
    %1709 = vmatprep.subr.mxu0 0.0
    %1710 = vmatpush2.msra.mxu0 0.0
    %1711 = vmatprep.subr.mxu0 0.0
    %1712 = vmatpush2.msra.mxu0 0.0
    %1713 = vmatprep.subr.mxu0 0.0
    %1714 = vmatpush2.msra.mxu0 0.0
    %1715 = vmatprep.subr.mxu0 0.0
    %1716 = vmatpush2.msra.mxu0 0.0
    %1717 = vmatprep.subr.mxu0 0.0
    %1718 = vmatpush2.msra.mxu0 0.0
    %1719 = vmatprep.subr.mxu0 0.0
    %1720 = vmatpush2.msra.mxu0 0.0
    %1721 = vmatprep.subr.mxu0 0.0
    %1722 = vmatpush2.msra.mxu0 0.0
    %1723 = vmatprep.subr.mxu0 0.0
    %1724 = vmatpush2.msra.mxu0 0.0
    %1725 = vmatprep.subr.mxu0 0.0
    %1726 = vmatpush2.msra.mxu0 0.0
    %1727 = vmatprep.subr.mxu0 0.0
    %1728 = vmatpush2.msra.mxu0 0.0
    %1729 = vmatprep.subr.mxu0 0.0
    %1730 = vmatpush2.msra.mxu0 0.0
    %1731 = vmatprep.subr.mxu0 0.0
    %1732 = vmatpush2.msra.mxu0 0.0
    %1733 = vmatprep.subr.mxu0 0.0
    %1734 = vmatpush2.msra.mxu0 0.0
    %1735 = vmatprep.subr.mxu0 0.0
    %1736 = vmatpush2.msra.mxu0 0.0
    %1737 = vmatprep.subr.mxu0 0.0
    %1738 = vmatpush2.msra.mxu0 0.0
    %1739 = vmatprep.subr.mxu0 0.0
    %1740 = vmatpush2.msra.mxu0 0.0
    %1741 = vmatprep.mubr.f32.mxu0 0.0
    %1742 = vmatmul.mubr.f32.gmra.mxu0 %v1675
    %v1743 = vpop.f32.mrf.mxu0
    %v1744 = vadd.f32 0.0, %v1743
    %v1745 = vpop.f32.mrf.mxu0
    %1746 = vdwg.mxu0
    %1748 = vrot.lane.b32.xlu0 %v1744, 24
    %v1749 = vpop.permute.xlu0 %1748
    %vm1751 = vcmask 261312
    %1752 = vst.msk [vmem:[#allocation2] sm:$0xff] %vm1751, %v1749
    %v1753 = vld [vmem:[%s6] sm:$0x7]
    %v1754 = vld [vmem:[%s3] sm:$0xff]
    %v1755 = vld [vmem:[%s3 + $0x8] sm:$0xff]
    %v1756 = vld [vmem:[%s3 + $0x10] sm:$0xff]
    %v1757 = vld [vmem:[%s3 + $0x18] sm:$0xff]
    %v1758 = vlaneseq
    %v1759 = vshrl.u32 %v1758, 7
    %v1760 = vsub.s32 0, %v1759
    %v1761 = vrot.slane %v1753, %v1760
    %v1763 = vsel %vm146, %v133, 0
    %1765 = vmatprep.subr.mxu0 0.0
    %1766 = vmatpush1.msra.mxu0 0.0
    %1767 = vmatprep.subr.mxu0 0.0
    %1768 = vmatpush1.msra.mxu0 0.0
    %1769 = vmatprep.subr.mxu0 0.0
    %1770 = vmatpush1.msra.mxu0 0.0
    %1771 = vmatprep.subr.mxu0 0.0
    %1772 = vmatpush1.msra.mxu0 0.0
    %1773 = vmatprep.subr.mxu0 0.0
    %1774 = vmatpush1.msra.mxu0 0.0
    %1775 = vmatprep.subr.mxu0 0.0
    %1776 = vmatpush1.msra.mxu0 0.0
    %1777 = vmatprep.subr.mxu0 0.0
    %1778 = vmatpush1.msra.mxu0 0.0
    %1779 = vmatprep.subr.mxu0 0.0
    %1780 = vmatpush1.msra.mxu0 0.0
    %1781 = vmatprep.subr.mxu0 0.0
    %1782 = vmatpush1.msra.mxu0 0.0
    %1783 = vmatprep.subr.mxu0 0.0
    %1784 = vmatpush1.msra.mxu0 0.0
    %1785 = vmatprep.subr.mxu0 0.0
    %1786 = vmatpush1.msra.mxu0 0.0
    %1787 = vmatprep.subr.mxu0 0.0
    %1788 = vmatpush1.msra.mxu0 0.0
    %1789 = vmatprep.subr.mxu0 0.0
    %1790 = vmatpush1.msra.mxu0 %v1757
    %1791 = vmatprep.subr.mxu0 0.0
    %1792 = vmatpush1.msra.mxu0 %v1756
    %1793 = vmatprep.subr.mxu0 0.0
    %1794 = vmatpush1.msra.mxu0 %v1755
    %1795 = vmatprep.subr.mxu0 0.0
    %1796 = vmatpush1.msra.mxu0 %v1754
    %1797 = vmatprep.subr.mxu0 0.0
    %1798 = vmatpush2.msra.mxu0 0.0
    %1799 = vmatprep.subr.mxu0 0.0
    %1800 = vmatpush2.msra.mxu0 0.0
    %1801 = vmatprep.subr.mxu0 0.0
    %1802 = vmatpush2.msra.mxu0 0.0
    %1803 = vmatprep.subr.mxu0 0.0
    %1804 = vmatpush2.msra.mxu0 0.0
    %1805 = vmatprep.subr.mxu0 0.0
    %1806 = vmatpush2.msra.mxu0 0.0
    %1807 = vmatprep.subr.mxu0 0.0
    %1808 = vmatpush2.msra.mxu0 0.0
    %1809 = vmatprep.subr.mxu0 0.0
    %1810 = vmatpush2.msra.mxu0 0.0
    %1811 = vmatprep.subr.mxu0 0.0
    %1812 = vmatpush2.msra.mxu0 0.0
    %1813 = vmatprep.subr.mxu0 0.0
    %1814 = vmatpush2.msra.mxu0 0.0
    %1815 = vmatprep.subr.mxu0 0.0
    %1816 = vmatpush2.msra.mxu0 0.0
    %1817 = vmatprep.subr.mxu0 0.0
    %1818 = vmatpush2.msra.mxu0 0.0
    %1819 = vmatprep.subr.mxu0 0.0
    %1820 = vmatpush2.msra.mxu0 0.0
    %1821 = vmatprep.subr.mxu0 0.0
    %1822 = vmatpush2.msra.mxu0 0.0
    %1823 = vmatprep.subr.mxu0 0.0
    %1824 = vmatpush2.msra.mxu0 0.0
    %1825 = vmatprep.subr.mxu0 0.0
    %1826 = vmatpush2.msra.mxu0 0.0
    %1827 = vmatprep.subr.mxu0 0.0
    %1828 = vmatpush2.msra.mxu0 0.0
    %1829 = vmatprep.mubr.f32.mxu0 0.0
    %1830 = vmatmul.mubr.f32.gmra.mxu0 %v1763
    %v1831 = vpop.f32.mrf.mxu0
    %v1832 = vadd.f32 %v1761, %v1831
    %v1833 = vpop.f32.mrf.mxu0
    %1834 = vdwg.mxu0
    %v1835 = vld [vmem:[%s4] sm:$0xff]
    %v1836 = vld [vmem:[%s4 + $0x8] sm:$0xff]
    %v1837 = vld [vmem:[%s4 + $0x10] sm:$0xff]
    %v1838 = vld [vmem:[%s4 + $0x18] sm:$0xff]
    %v1839 = vlaneseq
    %v1840 = vshrl.u32 %v1839, 7
    %v1841 = vsub.s32 1, %v1840
    %v1842 = vrot.slane %v1753, %v1841
    %1843 = vmatprep.subr.mxu0 0.0
    %1844 = vmatpush1.msra.mxu0 0.0
    %1845 = vmatprep.subr.mxu0 0.0
    %1846 = vmatpush1.msra.mxu0 0.0
    %1847 = vmatprep.subr.mxu0 0.0
    %1848 = vmatpush1.msra.mxu0 0.0
    %1849 = vmatprep.subr.mxu0 0.0
    %1850 = vmatpush1.msra.mxu0 0.0
    %1851 = vmatprep.subr.mxu0 0.0
    %1852 = vmatpush1.msra.mxu0 0.0
    %1853 = vmatprep.subr.mxu0 0.0
    %1854 = vmatpush1.msra.mxu0 0.0
    %1855 = vmatprep.subr.mxu0 0.0
    %1856 = vmatpush1.msra.mxu0 0.0
    %1857 = vmatprep.subr.mxu0 0.0
    %1858 = vmatpush1.msra.mxu0 0.0
    %1859 = vmatprep.subr.mxu0 0.0
    %1860 = vmatpush1.msra.mxu0 0.0
    %1861 = vmatprep.subr.mxu0 0.0
    %1862 = vmatpush1.msra.mxu0 0.0
    %1863 = vmatprep.subr.mxu0 0.0
    %1864 = vmatpush1.msra.mxu0 0.0
    %1865 = vmatprep.subr.mxu0 0.0
    %1866 = vmatpush1.msra.mxu0 0.0
    %1867 = vmatprep.subr.mxu0 0.0
    %1868 = vmatpush1.msra.mxu0 %v1838
    %1869 = vmatprep.subr.mxu0 0.0
    %1870 = vmatpush1.msra.mxu0 %v1837
    %1871 = vmatprep.subr.mxu0 0.0
    %1872 = vmatpush1.msra.mxu0 %v1836
    %1873 = vmatprep.subr.mxu0 0.0
    %1874 = vmatpush1.msra.mxu0 %v1835
    %1875 = vmatprep.subr.mxu0 0.0
    %1876 = vmatpush2.msra.mxu0 0.0
    %1877 = vmatprep.subr.mxu0 0.0
    %1878 = vmatpush2.msra.mxu0 0.0
    %1879 = vmatprep.subr.mxu0 0.0
    %1880 = vmatpush2.msra.mxu0 0.0
    %1881 = vmatprep.subr.mxu0 0.0
    %1882 = vmatpush2.msra.mxu0 0.0
    %1883 = vmatprep.subr.mxu0 0.0
    %1884 = vmatpush2.msra.mxu0 0.0
    %1885 = vmatprep.subr.mxu0 0.0
    %1886 = vmatpush2.msra.mxu0 0.0
    %1887 = vmatprep.subr.mxu0 0.0
    %1888 = vmatpush2.msra.mxu0 0.0
    %1889 = vmatprep.subr.mxu0 0.0
    %1890 = vmatpush2.msra.mxu0 0.0
    %1891 = vmatprep.subr.mxu0 0.0
    %1892 = vmatpush2.msra.mxu0 0.0
    %1893 = vmatprep.subr.mxu0 0.0
    %1894 = vmatpush2.msra.mxu0 0.0
    %1895 = vmatprep.subr.mxu0 0.0
    %1896 = vmatpush2.msra.mxu0 0.0
    %1897 = vmatprep.subr.mxu0 0.0
    %1898 = vmatpush2.msra.mxu0 0.0
    %1899 = vmatprep.subr.mxu0 0.0
    %1900 = vmatpush2.msra.mxu0 0.0
    %1901 = vmatprep.subr.mxu0 0.0
    %1902 = vmatpush2.msra.mxu0 0.0
    %1903 = vmatprep.subr.mxu0 0.0
    %1904 = vmatpush2.msra.mxu0 0.0
    %1905 = vmatprep.subr.mxu0 0.0
    %1906 = vmatpush2.msra.mxu0 0.0
    %1907 = vmatprep.mubr.f32.mxu0 0.0
    %1908 = vmatmul.mubr.f32.gmra.mxu0 %v1763
    %v1909 = vpop.f32.mrf.mxu0
    %v1910 = vadd.f32 %v1842, %v1909
    %v1911 = vpop.f32.mrf.mxu0
    %1912 = vdwg.mxu0
    %v1913 = vld [vmem:[%s5] sm:$0xff]
    %v1914 = vld [vmem:[%s5 + $0x8] sm:$0xff]
    %v1915 = vld [vmem:[%s5 + $0x10] sm:$0xff]
    %v1916 = vld [vmem:[%s5 + $0x18] sm:$0xff]
    %v1917 = vlaneseq
    %v1918 = vshrl.u32 %v1917, 7
    %v1919 = vsub.s32 2, %v1918
    %v1920 = vrot.slane %v1753, %v1919
    %1921 = vmatprep.subr.mxu0 0.0
    %1922 = vmatpush1.msra.mxu0 0.0
    %1923 = vmatprep.subr.mxu0 0.0
    %1924 = vmatpush1.msra.mxu0 0.0
    %1925 = vmatprep.subr.mxu0 0.0
    %1926 = vmatpush1.msra.mxu0 0.0
    %1927 = vmatprep.subr.mxu0 0.0
    %1928 = vmatpush1.msra.mxu0 0.0
    %1929 = vmatprep.subr.mxu0 0.0
    %1930 = vmatpush1.msra.mxu0 0.0
    %1931 = vmatprep.subr.mxu0 0.0
    %1932 = vmatpush1.msra.mxu0 0.0
    %1933 = vmatprep.subr.mxu0 0.0
    %1934 = vmatpush1.msra.mxu0 0.0
    %1935 = vmatprep.subr.mxu0 0.0
    %1936 = vmatpush1.msra.mxu0 0.0
    %1937 = vmatprep.subr.mxu0 0.0
    %1938 = vmatpush1.msra.mxu0 0.0
    %1939 = vmatprep.subr.mxu0 0.0
    %1940 = vmatpush1.msra.mxu0 0.0
    %1941 = vmatprep.subr.mxu0 0.0
    %1942 = vmatpush1.msra.mxu0 0.0
    %1943 = vmatprep.subr.mxu0 0.0
    %1944 = vmatpush1.msra.mxu0 0.0
    %1945 = vmatprep.subr.mxu0 0.0
    %1946 = vmatpush1.msra.mxu0 %v1916
    %1947 = vmatprep.subr.mxu0 0.0
    %1948 = vmatpush1.msra.mxu0 %v1915
    %1949 = vmatprep.subr.mxu0 0.0
    %1950 = vmatpush1.msra.mxu0 %v1914
    %1951 = vmatprep.subr.mxu0 0.0
    %1952 = vmatpush1.msra.mxu0 %v1913
    %1953 = vmatprep.subr.mxu0 0.0
    %1954 = vmatpush2.msra.mxu0 0.0
    %1955 = vmatprep.subr.mxu0 0.0
    %1956 = vmatpush2.msra.mxu0 0.0
    %1957 = vmatprep.subr.mxu0 0.0
    %1958 = vmatpush2.msra.mxu0 0.0
    %1959 = vmatprep.subr.mxu0 0.0
    %1960 = vmatpush2.msra.mxu0 0.0
    %1961 = vmatprep.subr.mxu0 0.0
    %1962 = vmatpush2.msra.mxu0 0.0
    %1963 = vmatprep.subr.mxu0 0.0
    %1964 = vmatpush2.msra.mxu0 0.0
    %1965 = vmatprep.subr.mxu0 0.0
    %1966 = vmatpush2.msra.mxu0 0.0
    %1967 = vmatprep.subr.mxu0 0.0
    %1968 = vmatpush2.msra.mxu0 0.0
    %1969 = vmatprep.subr.mxu0 0.0
    %1970 = vmatpush2.msra.mxu0 0.0
    %1971 = vmatprep.subr.mxu0 0.0
    %1972 = vmatpush2.msra.mxu0 0.0
    %1973 = vmatprep.subr.mxu0 0.0
    %1974 = vmatpush2.msra.mxu0 0.0
    %1975 = vmatprep.subr.mxu0 0.0
    %1976 = vmatpush2.msra.mxu0 0.0
    %1977 = vmatprep.subr.mxu0 0.0
    %1978 = vmatpush2.msra.mxu0 0.0
    %1979 = vmatprep.subr.mxu0 0.0
    %1980 = vmatpush2.msra.mxu0 0.0
    %1981 = vmatprep.subr.mxu0 0.0
    %1982 = vmatpush2.msra.mxu0 0.0
    %1983 = vmatprep.subr.mxu0 0.0
    %1984 = vmatpush2.msra.mxu0 0.0
    %1985 = vmatprep.mubr.f32.mxu0 0.0
    %1986 = vmatmul.mubr.f32.gmra.mxu0 %v1763
    %v1987 = vpop.f32.mrf.mxu0
    %v1988 = vadd.f32 %v1920, %v1987
    %v1989 = vpop.f32.mrf.mxu0
    %1990 = vdwg.mxu0
    %v1992 = vsel %vm376, %v1832, 0
    %v1995 = vsel %vm376, %v1910, 0
    %1997 = vmatprep.subr.mxu0 0.0
    %1998 = vmatpush1.xpose.msra.mxu0 0.0
    %1999 = vmatprep.subr.mxu0 0.0
    %2000 = vmatpush1.xpose.msra.mxu0 0.0
    %2001 = vmatprep.subr.mxu0 0.0
    %2002 = vmatpush1.xpose.msra.mxu0 0.0
    %2003 = vmatprep.subr.mxu0 0.0
    %2004 = vmatpush1.xpose.msra.mxu0 0.0
    %2005 = vmatprep.subr.mxu0 0.0
    %2006 = vmatpush1.xpose.msra.mxu0 0.0
    %2007 = vmatprep.subr.mxu0 0.0
    %2008 = vmatpush1.xpose.msra.mxu0 0.0
    %2009 = vmatprep.subr.mxu0 0.0
    %2010 = vmatpush1.xpose.msra.mxu0 0.0
    %2011 = vmatprep.subr.mxu0 0.0
    %2012 = vmatpush1.xpose.msra.mxu0 0.0
    %2013 = vmatprep.subr.mxu0 0.0
    %2014 = vmatpush1.xpose.msra.mxu0 0.0
    %2015 = vmatprep.subr.mxu0 0.0
    %2016 = vmatpush1.xpose.msra.mxu0 0.0
    %2017 = vmatprep.subr.mxu0 0.0
    %2018 = vmatpush1.xpose.msra.mxu0 0.0
    %2019 = vmatprep.subr.mxu0 0.0
    %2020 = vmatpush1.xpose.msra.mxu0 0.0
    %2021 = vmatprep.subr.mxu0 0.0
    %2022 = vmatpush1.xpose.msra.mxu0 0.0
    %2023 = vmatprep.subr.mxu0 0.0
    %2024 = vmatpush1.xpose.msra.mxu0 0.0
    %2025 = vmatprep.subr.mxu0 0.0
    %2026 = vmatpush1.xpose.msra.mxu0 0.0
    %2027 = vmatprep.subr.mxu0 0.0
    %2028 = vmatpush1.xpose.msra.mxu0 %v1995
    %2029 = vmatprep.subr.mxu0 0.0
    %2030 = vmatpush2.xpose.msra.mxu0 0.0
    %2031 = vmatprep.subr.mxu0 0.0
    %2032 = vmatpush2.xpose.msra.mxu0 0.0
    %2033 = vmatprep.subr.mxu0 0.0
    %2034 = vmatpush2.xpose.msra.mxu0 0.0
    %2035 = vmatprep.subr.mxu0 0.0
    %2036 = vmatpush2.xpose.msra.mxu0 0.0
    %2037 = vmatprep.subr.mxu0 0.0
    %2038 = vmatpush2.xpose.msra.mxu0 0.0
    %2039 = vmatprep.subr.mxu0 0.0
    %2040 = vmatpush2.xpose.msra.mxu0 0.0
    %2041 = vmatprep.subr.mxu0 0.0
    %2042 = vmatpush2.xpose.msra.mxu0 0.0
    %2043 = vmatprep.subr.mxu0 0.0
    %2044 = vmatpush2.xpose.msra.mxu0 0.0
    %2045 = vmatprep.subr.mxu0 0.0
    %2046 = vmatpush2.xpose.msra.mxu0 0.0
    %2047 = vmatprep.subr.mxu0 0.0
    %2048 = vmatpush2.xpose.msra.mxu0 0.0
    %2049 = vmatprep.subr.mxu0 0.0
    %2050 = vmatpush2.xpose.msra.mxu0 0.0
    %2051 = vmatprep.subr.mxu0 0.0
    %2052 = vmatpush2.xpose.msra.mxu0 0.0
    %2053 = vmatprep.subr.mxu0 0.0
    %2054 = vmatpush2.xpose.msra.mxu0 0.0
    %2055 = vmatprep.subr.mxu0 0.0
    %2056 = vmatpush2.xpose.msra.mxu0 0.0
    %2057 = vmatprep.subr.mxu0 0.0
    %2058 = vmatpush2.xpose.msra.mxu0 0.0
    %2059 = vmatprep.subr.mxu0 0.0
    %2060 = vmatpush2.xpose.msra.mxu0 0.0
    %2061 = vmatprep.mubr.f32.mxu0 0.0
    %2062 = vmatmul.mubr.f32.gmra.mxu0 %v1992
    %v2063 = vpop.f32.mrf.mxu0
    %v2064 = vadd.f32 0.0, %v2063
    %v2065 = vpop.f32.mrf.mxu0
    %2066 = vdwg.mxu0
    %v2067 = vsel %vm376, %v2064, -inf
    %2068 = vmax.xlane.f32.xlu0 %v2067
    %v2069 = vpop.xlane.xlu0 %2068
    %v2070 = vsub.f32 %v2064, %v2069
    %v2071 = vmul.f32 %v2070, 1.442695
    %v2072 = vpow.pop %v2071
    %v2073 = vsel %vm376, %v2072, 0.0
    %2074 = vadd.xlane.f32.xlu0 %v2073
    %v2075 = vpop.xlane.xlu0 %2074
    %v2076 = vrcp.pop %v2075
    %v2077 = vmul.f32 %v2072, %v2076
    %v2079 = vsel %vm376, %v2077, 0
    %2081 = vmatprep.subr.mxu0 0.0
    %2082 = vmatpush1.msra.mxu0 0.0
    %2083 = vmatprep.subr.mxu0 0.0
    %2084 = vmatpush1.msra.mxu0 0.0
    %2085 = vmatprep.subr.mxu0 0.0
    %2086 = vmatpush1.msra.mxu0 0.0
    %2087 = vmatprep.subr.mxu0 0.0
    %2088 = vmatpush1.msra.mxu0 0.0
    %2089 = vmatprep.subr.mxu0 0.0
    %2090 = vmatpush1.msra.mxu0 0.0
    %2091 = vmatprep.subr.mxu0 0.0
    %2092 = vmatpush1.msra.mxu0 0.0
    %2093 = vmatprep.subr.mxu0 0.0
    %2094 = vmatpush1.msra.mxu0 0.0
    %2095 = vmatprep.subr.mxu0 0.0
    %2096 = vmatpush1.msra.mxu0 0.0
    %2097 = vmatprep.subr.mxu0 0.0
    %2098 = vmatpush1.msra.mxu0 0.0
    %2099 = vmatprep.subr.mxu0 0.0
    %2100 = vmatpush1.msra.mxu0 0.0
    %2101 = vmatprep.subr.mxu0 0.0
    %2102 = vmatpush1.msra.mxu0 0.0
    %2103 = vmatprep.subr.mxu0 0.0
    %2104 = vmatpush1.msra.mxu0 0.0
    %2105 = vmatprep.subr.mxu0 0.0
    %2106 = vmatpush1.msra.mxu0 0.0
    %2107 = vmatprep.subr.mxu0 0.0
    %2108 = vmatpush1.msra.mxu0 0.0
    %2109 = vmatprep.subr.mxu0 0.0
    %2110 = vmatpush1.msra.mxu0 0.0
    %2111 = vmatprep.subr.mxu0 0.0
    %2112 = vmatpush1.msra.mxu0 %v1988
    %2113 = vmatprep.subr.mxu0 0.0
    %2114 = vmatpush2.msra.mxu0 0.0
    %2115 = vmatprep.subr.mxu0 0.0
    %2116 = vmatpush2.msra.mxu0 0.0
    %2117 = vmatprep.subr.mxu0 0.0
    %2118 = vmatpush2.msra.mxu0 0.0
    %2119 = vmatprep.subr.mxu0 0.0
    %2120 = vmatpush2.msra.mxu0 0.0
    %2121 = vmatprep.subr.mxu0 0.0
    %2122 = vmatpush2.msra.mxu0 0.0
    %2123 = vmatprep.subr.mxu0 0.0
    %2124 = vmatpush2.msra.mxu0 0.0
    %2125 = vmatprep.subr.mxu0 0.0
    %2126 = vmatpush2.msra.mxu0 0.0
    %2127 = vmatprep.subr.mxu0 0.0
    %2128 = vmatpush2.msra.mxu0 0.0
    %2129 = vmatprep.subr.mxu0 0.0
    %2130 = vmatpush2.msra.mxu0 0.0
    %2131 = vmatprep.subr.mxu0 0.0
    %2132 = vmatpush2.msra.mxu0 0.0
    %2133 = vmatprep.subr.mxu0 0.0
    %2134 = vmatpush2.msra.mxu0 0.0
    %2135 = vmatprep.subr.mxu0 0.0
    %2136 = vmatpush2.msra.mxu0 0.0
    %2137 = vmatprep.subr.mxu0 0.0
    %2138 = vmatpush2.msra.mxu0 0.0
    %2139 = vmatprep.subr.mxu0 0.0
    %2140 = vmatpush2.msra.mxu0 0.0
    %2141 = vmatprep.subr.mxu0 0.0
    %2142 = vmatpush2.msra.mxu0 0.0
    %2143 = vmatprep.subr.mxu0 0.0
    %2144 = vmatpush2.msra.mxu0 0.0
    %2145 = vmatprep.mubr.f32.mxu0 0.0
    %2146 = vmatmul.mubr.f32.gmra.mxu0 %v2079
    %v2147 = vpop.f32.mrf.mxu0
    %v2148 = vadd.f32 0.0, %v2147
    %v2149 = vpop.f32.mrf.mxu0
    %2150 = vdwg.mxu0
    %2151 = vst.msk [vmem:[#allocation2 + $0x8] sm:$0xff] %vm376, %v2148
    %v2152 = vld [vmem:[%s538] sm:$0x7]
    %v2153 = vld [vmem:[%s540] sm:$0xff]
    %v2154 = vld [vmem:[%s540 + $0x8] sm:$0xff]
    %v2155 = vld [vmem:[%s540 + $0x10] sm:$0xff]
    %v2156 = vld [vmem:[%s540 + $0x18] sm:$0xff]
    %v2157 = vlaneseq
    %v2158 = vshrl.u32 %v2157, 7
    %v2159 = vsub.s32 0, %v2158
    %v2160 = vrot.slane %v2152, %v2159
    %2161 = vmatprep.subr.mxu0 0.0
    %2162 = vmatpush1.msra.mxu0 0.0
    %2163 = vmatprep.subr.mxu0 0.0
    %2164 = vmatpush1.msra.mxu0 0.0
    %2165 = vmatprep.subr.mxu0 0.0
    %2166 = vmatpush1.msra.mxu0 0.0
    %2167 = vmatprep.subr.mxu0 0.0
    %2168 = vmatpush1.msra.mxu0 0.0
    %2169 = vmatprep.subr.mxu0 0.0
    %2170 = vmatpush1.msra.mxu0 0.0
    %2171 = vmatprep.subr.mxu0 0.0
    %2172 = vmatpush1.msra.mxu0 0.0
    %2173 = vmatprep.subr.mxu0 0.0
    %2174 = vmatpush1.msra.mxu0 0.0
    %2175 = vmatprep.subr.mxu0 0.0
    %2176 = vmatpush1.msra.mxu0 0.0
    %2177 = vmatprep.subr.mxu0 0.0
    %2178 = vmatpush1.msra.mxu0 0.0
    %2179 = vmatprep.subr.mxu0 0.0
    %2180 = vmatpush1.msra.mxu0 0.0
    %2181 = vmatprep.subr.mxu0 0.0
    %2182 = vmatpush1.msra.mxu0 0.0
    %2183 = vmatprep.subr.mxu0 0.0
    %2184 = vmatpush1.msra.mxu0 0.0
    %2185 = vmatprep.subr.mxu0 0.0
    %2186 = vmatpush1.msra.mxu0 %v2156
    %2187 = vmatprep.subr.mxu0 0.0
    %2188 = vmatpush1.msra.mxu0 %v2155
    %2189 = vmatprep.subr.mxu0 0.0
    %2190 = vmatpush1.msra.mxu0 %v2154
    %2191 = vmatprep.subr.mxu0 0.0
    %2192 = vmatpush1.msra.mxu0 %v2153
    %2193 = vmatprep.subr.mxu0 0.0
    %2194 = vmatpush2.msra.mxu0 0.0
    %2195 = vmatprep.subr.mxu0 0.0
    %2196 = vmatpush2.msra.mxu0 0.0
    %2197 = vmatprep.subr.mxu0 0.0
    %2198 = vmatpush2.msra.mxu0 0.0
    %2199 = vmatprep.subr.mxu0 0.0
    %2200 = vmatpush2.msra.mxu0 0.0
    %2201 = vmatprep.subr.mxu0 0.0
    %2202 = vmatpush2.msra.mxu0 0.0
    %2203 = vmatprep.subr.mxu0 0.0
    %2204 = vmatpush2.msra.mxu0 0.0
    %2205 = vmatprep.subr.mxu0 0.0
    %2206 = vmatpush2.msra.mxu0 0.0
    %2207 = vmatprep.subr.mxu0 0.0
    %2208 = vmatpush2.msra.mxu0 0.0
    %2209 = vmatprep.subr.mxu0 0.0
    %2210 = vmatpush2.msra.mxu0 0.0
    %2211 = vmatprep.subr.mxu0 0.0
    %2212 = vmatpush2.msra.mxu0 0.0
    %2213 = vmatprep.subr.mxu0 0.0
    %2214 = vmatpush2.msra.mxu0 0.0
    %2215 = vmatprep.subr.mxu0 0.0
    %2216 = vmatpush2.msra.mxu0 0.0
    %2217 = vmatprep.subr.mxu0 0.0
    %2218 = vmatpush2.msra.mxu0 0.0
    %2219 = vmatprep.subr.mxu0 0.0
    %2220 = vmatpush2.msra.mxu0 0.0
    %2221 = vmatprep.subr.mxu0 0.0
    %2222 = vmatpush2.msra.mxu0 0.0
    %2223 = vmatprep.subr.mxu0 0.0
    %2224 = vmatpush2.msra.mxu0 0.0
    %2225 = vmatprep.mubr.f32.mxu0 0.0
    %2226 = vmatmul.mubr.f32.gmra.mxu0 %v1763
    %v2227 = vpop.f32.mrf.mxu0
    %v2228 = vadd.f32 %v2160, %v2227
    %v2229 = vpop.f32.mrf.mxu0
    %2230 = vdwg.mxu0
    %v2231 = vld [vmem:[%s619] sm:$0xff]
    %v2232 = vld [vmem:[%s619 + $0x8] sm:$0xff]
    %v2233 = vld [vmem:[%s619 + $0x10] sm:$0xff]
    %v2234 = vld [vmem:[%s619 + $0x18] sm:$0xff]
    %v2235 = vlaneseq
    %v2236 = vshrl.u32 %v2235, 7
    %v2237 = vsub.s32 1, %v2236
    %v2238 = vrot.slane %v2152, %v2237
    %2239 = vmatprep.subr.mxu0 0.0
    %2240 = vmatpush1.msra.mxu0 0.0
    %2241 = vmatprep.subr.mxu0 0.0
    %2242 = vmatpush1.msra.mxu0 0.0
    %2243 = vmatprep.subr.mxu0 0.0
    %2244 = vmatpush1.msra.mxu0 0.0
    %2245 = vmatprep.subr.mxu0 0.0
    %2246 = vmatpush1.msra.mxu0 0.0
    %2247 = vmatprep.subr.mxu0 0.0
    %2248 = vmatpush1.msra.mxu0 0.0
    %2249 = vmatprep.subr.mxu0 0.0
    %2250 = vmatpush1.msra.mxu0 0.0
    %2251 = vmatprep.subr.mxu0 0.0
    %2252 = vmatpush1.msra.mxu0 0.0
    %2253 = vmatprep.subr.mxu0 0.0
    %2254 = vmatpush1.msra.mxu0 0.0
    %2255 = vmatprep.subr.mxu0 0.0
    %2256 = vmatpush1.msra.mxu0 0.0
    %2257 = vmatprep.subr.mxu0 0.0
    %2258 = vmatpush1.msra.mxu0 0.0
    %2259 = vmatprep.subr.mxu0 0.0
    %2260 = vmatpush1.msra.mxu0 0.0
    %2261 = vmatprep.subr.mxu0 0.0
    %2262 = vmatpush1.msra.mxu0 0.0
    %2263 = vmatprep.subr.mxu0 0.0
    %2264 = vmatpush1.msra.mxu0 %v2234
    %2265 = vmatprep.subr.mxu0 0.0
    %2266 = vmatpush1.msra.mxu0 %v2233
    %2267 = vmatprep.subr.mxu0 0.0
    %2268 = vmatpush1.msra.mxu0 %v2232
    %2269 = vmatprep.subr.mxu0 0.0
    %2270 = vmatpush1.msra.mxu0 %v2231
    %2271 = vmatprep.subr.mxu0 0.0
    %2272 = vmatpush2.msra.mxu0 0.0
    %2273 = vmatprep.subr.mxu0 0.0
    %2274 = vmatpush2.msra.mxu0 0.0
    %2275 = vmatprep.subr.mxu0 0.0
    %2276 = vmatpush2.msra.mxu0 0.0
    %2277 = vmatprep.subr.mxu0 0.0
    %2278 = vmatpush2.msra.mxu0 0.0
    %2279 = vmatprep.subr.mxu0 0.0
    %2280 = vmatpush2.msra.mxu0 0.0
    %2281 = vmatprep.subr.mxu0 0.0
    %2282 = vmatpush2.msra.mxu0 0.0
    %2283 = vmatprep.subr.mxu0 0.0
    %2284 = vmatpush2.msra.mxu0 0.0
    %2285 = vmatprep.subr.mxu0 0.0
    %2286 = vmatpush2.msra.mxu0 0.0
    %2287 = vmatprep.subr.mxu0 0.0
    %2288 = vmatpush2.msra.mxu0 0.0
    %2289 = vmatprep.subr.mxu0 0.0
    %2290 = vmatpush2.msra.mxu0 0.0
    %2291 = vmatprep.subr.mxu0 0.0
    %2292 = vmatpush2.msra.mxu0 0.0
    %2293 = vmatprep.subr.mxu0 0.0
    %2294 = vmatpush2.msra.mxu0 0.0
    %2295 = vmatprep.subr.mxu0 0.0
    %2296 = vmatpush2.msra.mxu0 0.0
    %2297 = vmatprep.subr.mxu0 0.0
    %2298 = vmatpush2.msra.mxu0 0.0
    %2299 = vmatprep.subr.mxu0 0.0
    %2300 = vmatpush2.msra.mxu0 0.0
    %2301 = vmatprep.subr.mxu0 0.0
    %2302 = vmatpush2.msra.mxu0 0.0
    %2303 = vmatprep.mubr.f32.mxu0 0.0
    %2304 = vmatmul.mubr.f32.gmra.mxu0 %v1763
    %v2305 = vpop.f32.mrf.mxu0
    %v2306 = vadd.f32 %v2238, %v2305
    %v2307 = vpop.f32.mrf.mxu0
    %2308 = vdwg.mxu0
    %v2309 = vld [vmem:[%s698] sm:$0xff]
    %v2310 = vld [vmem:[%s698 + $0x8] sm:$0xff]
    %v2311 = vld [vmem:[%s698 + $0x10] sm:$0xff]
    %v2312 = vld [vmem:[%s698 + $0x18] sm:$0xff]
    %v2313 = vlaneseq
    %v2314 = vshrl.u32 %v2313, 7
    %v2315 = vsub.s32 2, %v2314
    %v2316 = vrot.slane %v2152, %v2315
    %2317 = vmatprep.subr.mxu0 0.0
    %2318 = vmatpush1.msra.mxu0 0.0
    %2319 = vmatprep.subr.mxu0 0.0
    %2320 = vmatpush1.msra.mxu0 0.0
    %2321 = vmatprep.subr.mxu0 0.0
    %2322 = vmatpush1.msra.mxu0 0.0
    %2323 = vmatprep.subr.mxu0 0.0
    %2324 = vmatpush1.msra.mxu0 0.0
    %2325 = vmatprep.subr.mxu0 0.0
    %2326 = vmatpush1.msra.mxu0 0.0
    %2327 = vmatprep.subr.mxu0 0.0
    %2328 = vmatpush1.msra.mxu0 0.0
    %2329 = vmatprep.subr.mxu0 0.0
    %2330 = vmatpush1.msra.mxu0 0.0
    %2331 = vmatprep.subr.mxu0 0.0
    %2332 = vmatpush1.msra.mxu0 0.0
    %2333 = vmatprep.subr.mxu0 0.0
    %2334 = vmatpush1.msra.mxu0 0.0
    %2335 = vmatprep.subr.mxu0 0.0
    %2336 = vmatpush1.msra.mxu0 0.0
    %2337 = vmatprep.subr.mxu0 0.0
    %2338 = vmatpush1.msra.mxu0 0.0
    %2339 = vmatprep.subr.mxu0 0.0
    %2340 = vmatpush1.msra.mxu0 0.0
    %2341 = vmatprep.subr.mxu0 0.0
    %2342 = vmatpush1.msra.mxu0 %v2312
    %2343 = vmatprep.subr.mxu0 0.0
    %2344 = vmatpush1.msra.mxu0 %v2311
    %2345 = vmatprep.subr.mxu0 0.0
    %2346 = vmatpush1.msra.mxu0 %v2310
    %2347 = vmatprep.subr.mxu0 0.0
    %2348 = vmatpush1.msra.mxu0 %v2309
    %2349 = vmatprep.subr.mxu0 0.0
    %2350 = vmatpush2.msra.mxu0 0.0
    %2351 = vmatprep.subr.mxu0 0.0
    %2352 = vmatpush2.msra.mxu0 0.0
    %2353 = vmatprep.subr.mxu0 0.0
    %2354 = vmatpush2.msra.mxu0 0.0
    %2355 = vmatprep.subr.mxu0 0.0
    %2356 = vmatpush2.msra.mxu0 0.0
    %2357 = vmatprep.subr.mxu0 0.0
    %2358 = vmatpush2.msra.mxu0 0.0
    %2359 = vmatprep.subr.mxu0 0.0
    %2360 = vmatpush2.msra.mxu0 0.0
    %2361 = vmatprep.subr.mxu0 0.0
    %2362 = vmatpush2.msra.mxu0 0.0
    %2363 = vmatprep.subr.mxu0 0.0
    %2364 = vmatpush2.msra.mxu0 0.0
    %2365 = vmatprep.subr.mxu0 0.0
    %2366 = vmatpush2.msra.mxu0 0.0
    %2367 = vmatprep.subr.mxu0 0.0
    %2368 = vmatpush2.msra.mxu0 0.0
    %2369 = vmatprep.subr.mxu0 0.0
    %2370 = vmatpush2.msra.mxu0 0.0
    %2371 = vmatprep.subr.mxu0 0.0
    %2372 = vmatpush2.msra.mxu0 0.0
    %2373 = vmatprep.subr.mxu0 0.0
    %2374 = vmatpush2.msra.mxu0 0.0
    %2375 = vmatprep.subr.mxu0 0.0
    %2376 = vmatpush2.msra.mxu0 0.0
    %2377 = vmatprep.subr.mxu0 0.0
    %2378 = vmatpush2.msra.mxu0 0.0
    %2379 = vmatprep.subr.mxu0 0.0
    %2380 = vmatpush2.msra.mxu0 0.0
    %2381 = vmatprep.mubr.f32.mxu0 0.0
    %2382 = vmatmul.mubr.f32.gmra.mxu0 %v1763
    %v2383 = vpop.f32.mrf.mxu0
    %v2384 = vadd.f32 %v2316, %v2383
    %v2385 = vpop.f32.mrf.mxu0
    %2386 = vdwg.mxu0
    %v2388 = vsel %vm376, %v2228, 0
    %v2391 = vsel %vm376, %v2306, 0
    %2393 = vmatprep.subr.mxu0 0.0
    %2394 = vmatpush1.xpose.msra.mxu0 0.0
    %2395 = vmatprep.subr.mxu0 0.0
    %2396 = vmatpush1.xpose.msra.mxu0 0.0
    %2397 = vmatprep.subr.mxu0 0.0
    %2398 = vmatpush1.xpose.msra.mxu0 0.0
    %2399 = vmatprep.subr.mxu0 0.0
    %2400 = vmatpush1.xpose.msra.mxu0 0.0
    %2401 = vmatprep.subr.mxu0 0.0
    %2402 = vmatpush1.xpose.msra.mxu0 0.0
    %2403 = vmatprep.subr.mxu0 0.0
    %2404 = vmatpush1.xpose.msra.mxu0 0.0
    %2405 = vmatprep.subr.mxu0 0.0
    %2406 = vmatpush1.xpose.msra.mxu0 0.0
    %2407 = vmatprep.subr.mxu0 0.0
    %2408 = vmatpush1.xpose.msra.mxu0 0.0
    %2409 = vmatprep.subr.mxu0 0.0
    %2410 = vmatpush1.xpose.msra.mxu0 0.0
    %2411 = vmatprep.subr.mxu0 0.0
    %2412 = vmatpush1.xpose.msra.mxu0 0.0
    %2413 = vmatprep.subr.mxu0 0.0
    %2414 = vmatpush1.xpose.msra.mxu0 0.0
    %2415 = vmatprep.subr.mxu0 0.0
    %2416 = vmatpush1.xpose.msra.mxu0 0.0
    %2417 = vmatprep.subr.mxu0 0.0
    %2418 = vmatpush1.xpose.msra.mxu0 0.0
    %2419 = vmatprep.subr.mxu0 0.0
    %2420 = vmatpush1.xpose.msra.mxu0 0.0
    %2421 = vmatprep.subr.mxu0 0.0
    %2422 = vmatpush1.xpose.msra.mxu0 0.0
    %2423 = vmatprep.subr.mxu0 0.0
    %2424 = vmatpush1.xpose.msra.mxu0 %v2391
    %2425 = vmatprep.subr.mxu0 0.0
    %2426 = vmatpush2.xpose.msra.mxu0 0.0
    %2427 = vmatprep.subr.mxu0 0.0
    %2428 = vmatpush2.xpose.msra.mxu0 0.0
    %2429 = vmatprep.subr.mxu0 0.0
    %2430 = vmatpush2.xpose.msra.mxu0 0.0
    %2431 = vmatprep.subr.mxu0 0.0
    %2432 = vmatpush2.xpose.msra.mxu0 0.0
    %2433 = vmatprep.subr.mxu0 0.0
    %2434 = vmatpush2.xpose.msra.mxu0 0.0
    %2435 = vmatprep.subr.mxu0 0.0
    %2436 = vmatpush2.xpose.msra.mxu0 0.0
    %2437 = vmatprep.subr.mxu0 0.0
    %2438 = vmatpush2.xpose.msra.mxu0 0.0
    %2439 = vmatprep.subr.mxu0 0.0
    %2440 = vmatpush2.xpose.msra.mxu0 0.0
    %2441 = vmatprep.subr.mxu0 0.0
    %2442 = vmatpush2.xpose.msra.mxu0 0.0
    %2443 = vmatprep.subr.mxu0 0.0
    %2444 = vmatpush2.xpose.msra.mxu0 0.0
    %2445 = vmatprep.subr.mxu0 0.0
    %2446 = vmatpush2.xpose.msra.mxu0 0.0
    %2447 = vmatprep.subr.mxu0 0.0
    %2448 = vmatpush2.xpose.msra.mxu0 0.0
    %2449 = vmatprep.subr.mxu0 0.0
    %2450 = vmatpush2.xpose.msra.mxu0 0.0
    %2451 = vmatprep.subr.mxu0 0.0
    %2452 = vmatpush2.xpose.msra.mxu0 0.0
    %2453 = vmatprep.subr.mxu0 0.0
    %2454 = vmatpush2.xpose.msra.mxu0 0.0
    %2455 = vmatprep.subr.mxu0 0.0
    %2456 = vmatpush2.xpose.msra.mxu0 0.0
    %2457 = vmatprep.mubr.f32.mxu0 0.0
    %2458 = vmatmul.mubr.f32.gmra.mxu0 %v2388
    %v2459 = vpop.f32.mrf.mxu0
    %v2460 = vadd.f32 0.0, %v2459
    %v2461 = vpop.f32.mrf.mxu0
    %2462 = vdwg.mxu0
    %v2463 = vsel %vm376, %v2460, -inf
    %2464 = vmax.xlane.f32.xlu0 %v2463
    %v2465 = vpop.xlane.xlu0 %2464
    %v2466 = vsub.f32 %v2460, %v2465
    %v2467 = vmul.f32 %v2466, 1.442695
    %v2468 = vpow.pop %v2467
    %v2469 = vsel %vm376, %v2468, 0.0
    %2470 = vadd.xlane.f32.xlu0 %v2469
    %v2471 = vpop.xlane.xlu0 %2470
    %v2472 = vrcp.pop %v2471
    %v2473 = vmul.f32 %v2468, %v2472
    %v2475 = vsel %vm376, %v2473, 0
    %2477 = vmatprep.subr.mxu0 0.0
    %2478 = vmatpush1.msra.mxu0 0.0
    %2479 = vmatprep.subr.mxu0 0.0
    %2480 = vmatpush1.msra.mxu0 0.0
    %2481 = vmatprep.subr.mxu0 0.0
    %2482 = vmatpush1.msra.mxu0 0.0
    %2483 = vmatprep.subr.mxu0 0.0
    %2484 = vmatpush1.msra.mxu0 0.0
    %2485 = vmatprep.subr.mxu0 0.0
    %2486 = vmatpush1.msra.mxu0 0.0
    %2487 = vmatprep.subr.mxu0 0.0
    %2488 = vmatpush1.msra.mxu0 0.0
    %2489 = vmatprep.subr.mxu0 0.0
    %2490 = vmatpush1.msra.mxu0 0.0
    %2491 = vmatprep.subr.mxu0 0.0
    %2492 = vmatpush1.msra.mxu0 0.0
    %2493 = vmatprep.subr.mxu0 0.0
    %2494 = vmatpush1.msra.mxu0 0.0
    %2495 = vmatprep.subr.mxu0 0.0
    %2496 = vmatpush1.msra.mxu0 0.0
    %2497 = vmatprep.subr.mxu0 0.0
    %2498 = vmatpush1.msra.mxu0 0.0
    %2499 = vmatprep.subr.mxu0 0.0
    %2500 = vmatpush1.msra.mxu0 0.0
    %2501 = vmatprep.subr.mxu0 0.0
    %2502 = vmatpush1.msra.mxu0 0.0
    %2503 = vmatprep.subr.mxu0 0.0
    %2504 = vmatpush1.msra.mxu0 0.0
    %2505 = vmatprep.subr.mxu0 0.0
    %2506 = vmatpush1.msra.mxu0 0.0
    %2507 = vmatprep.subr.mxu0 0.0
    %2508 = vmatpush1.msra.mxu0 %v2384
    %2509 = vmatprep.subr.mxu0 0.0
    %2510 = vmatpush2.msra.mxu0 0.0
    %2511 = vmatprep.subr.mxu0 0.0
    %2512 = vmatpush2.msra.mxu0 0.0
    %2513 = vmatprep.subr.mxu0 0.0
    %2514 = vmatpush2.msra.mxu0 0.0
    %2515 = vmatprep.subr.mxu0 0.0
    %2516 = vmatpush2.msra.mxu0 0.0
    %2517 = vmatprep.subr.mxu0 0.0
    %2518 = vmatpush2.msra.mxu0 0.0
    %2519 = vmatprep.subr.mxu0 0.0
    %2520 = vmatpush2.msra.mxu0 0.0
    %2521 = vmatprep.subr.mxu0 0.0
    %2522 = vmatpush2.msra.mxu0 0.0
    %2523 = vmatprep.subr.mxu0 0.0
    %2524 = vmatpush2.msra.mxu0 0.0
    %2525 = vmatprep.subr.mxu0 0.0
    %2526 = vmatpush2.msra.mxu0 0.0
    %2527 = vmatprep.subr.mxu0 0.0
    %2528 = vmatpush2.msra.mxu0 0.0
    %2529 = vmatprep.subr.mxu0 0.0
    %2530 = vmatpush2.msra.mxu0 0.0
    %2531 = vmatprep.subr.mxu0 0.0
    %2532 = vmatpush2.msra.mxu0 0.0
    %2533 = vmatprep.subr.mxu0 0.0
    %2534 = vmatpush2.msra.mxu0 0.0
    %2535 = vmatprep.subr.mxu0 0.0
    %2536 = vmatpush2.msra.mxu0 0.0
    %2537 = vmatprep.subr.mxu0 0.0
    %2538 = vmatpush2.msra.mxu0 0.0
    %2539 = vmatprep.subr.mxu0 0.0
    %2540 = vmatpush2.msra.mxu0 0.0
    %2541 = vmatprep.mubr.f32.mxu0 0.0
    %2542 = vmatmul.mubr.f32.gmra.mxu0 %v2475
    %v2543 = vpop.f32.mrf.mxu0
    %v2544 = vadd.f32 0.0, %v2543
    %v2545 = vpop.f32.mrf.mxu0
    %2546 = vdwg.mxu0
    %2548 = vrot.lane.b32.xlu0 %v2544, 8
    %v2549 = vpop.permute.xlu0 %2548
    %2551 = vst.msk [vmem:[#allocation2 + $0x8] sm:$0xff] %vm941, %v2549
    %v2552 = vld [vmem:[%s943] sm:$0x7]
    %v2553 = vld [vmem:[%s945] sm:$0xff]
    %v2554 = vld [vmem:[%s945 + $0x8] sm:$0xff]
    %v2555 = vld [vmem:[%s945 + $0x10] sm:$0xff]
    %v2556 = vld [vmem:[%s945 + $0x18] sm:$0xff]
    %v2557 = vlaneseq
    %v2558 = vshrl.u32 %v2557, 7
    %v2559 = vsub.s32 0, %v2558
    %v2560 = vrot.slane %v2552, %v2559
    %2561 = vmatprep.subr.mxu0 0.0
    %2562 = vmatpush1.msra.mxu0 0.0
    %2563 = vmatprep.subr.mxu0 0.0
    %2564 = vmatpush1.msra.mxu0 0.0
    %2565 = vmatprep.subr.mxu0 0.0
    %2566 = vmatpush1.msra.mxu0 0.0
    %2567 = vmatprep.subr.mxu0 0.0
    %2568 = vmatpush1.msra.mxu0 0.0
    %2569 = vmatprep.subr.mxu0 0.0
    %2570 = vmatpush1.msra.mxu0 0.0
    %2571 = vmatprep.subr.mxu0 0.0
    %2572 = vmatpush1.msra.mxu0 0.0
    %2573 = vmatprep.subr.mxu0 0.0
    %2574 = vmatpush1.msra.mxu0 0.0
    %2575 = vmatprep.subr.mxu0 0.0
    %2576 = vmatpush1.msra.mxu0 0.0
    %2577 = vmatprep.subr.mxu0 0.0
    %2578 = vmatpush1.msra.mxu0 0.0
    %2579 = vmatprep.subr.mxu0 0.0
    %2580 = vmatpush1.msra.mxu0 0.0
    %2581 = vmatprep.subr.mxu0 0.0
    %2582 = vmatpush1.msra.mxu0 0.0
    %2583 = vmatprep.subr.mxu0 0.0
    %2584 = vmatpush1.msra.mxu0 0.0
    %2585 = vmatprep.subr.mxu0 0.0
    %2586 = vmatpush1.msra.mxu0 %v2556
    %2587 = vmatprep.subr.mxu0 0.0
    %2588 = vmatpush1.msra.mxu0 %v2555
    %2589 = vmatprep.subr.mxu0 0.0
    %2590 = vmatpush1.msra.mxu0 %v2554
    %2591 = vmatprep.subr.mxu0 0.0
    %2592 = vmatpush1.msra.mxu0 %v2553
    %2593 = vmatprep.subr.mxu0 0.0
    %2594 = vmatpush2.msra.mxu0 0.0
    %2595 = vmatprep.subr.mxu0 0.0
    %2596 = vmatpush2.msra.mxu0 0.0
    %2597 = vmatprep.subr.mxu0 0.0
    %2598 = vmatpush2.msra.mxu0 0.0
    %2599 = vmatprep.subr.mxu0 0.0
    %2600 = vmatpush2.msra.mxu0 0.0
    %2601 = vmatprep.subr.mxu0 0.0
    %2602 = vmatpush2.msra.mxu0 0.0
    %2603 = vmatprep.subr.mxu0 0.0
    %2604 = vmatpush2.msra.mxu0 0.0
    %2605 = vmatprep.subr.mxu0 0.0
    %2606 = vmatpush2.msra.mxu0 0.0
    %2607 = vmatprep.subr.mxu0 0.0
    %2608 = vmatpush2.msra.mxu0 0.0
    %2609 = vmatprep.subr.mxu0 0.0
    %2610 = vmatpush2.msra.mxu0 0.0
    %2611 = vmatprep.subr.mxu0 0.0
    %2612 = vmatpush2.msra.mxu0 0.0
    %2613 = vmatprep.subr.mxu0 0.0
    %2614 = vmatpush2.msra.mxu0 0.0
    %2615 = vmatprep.subr.mxu0 0.0
    %2616 = vmatpush2.msra.mxu0 0.0
    %2617 = vmatprep.subr.mxu0 0.0
    %2618 = vmatpush2.msra.mxu0 0.0
    %2619 = vmatprep.subr.mxu0 0.0
    %2620 = vmatpush2.msra.mxu0 0.0
    %2621 = vmatprep.subr.mxu0 0.0
    %2622 = vmatpush2.msra.mxu0 0.0
    %2623 = vmatprep.subr.mxu0 0.0
    %2624 = vmatpush2.msra.mxu0 0.0
    %2625 = vmatprep.mubr.f32.mxu0 0.0
    %2626 = vmatmul.mubr.f32.gmra.mxu0 %v1763
    %v2627 = vpop.f32.mrf.mxu0
    %v2628 = vadd.f32 %v2560, %v2627
    %v2629 = vpop.f32.mrf.mxu0
    %2630 = vdwg.mxu0
    %v2631 = vld [vmem:[%s1024] sm:$0xff]
    %v2632 = vld [vmem:[%s1024 + $0x8] sm:$0xff]
    %v2633 = vld [vmem:[%s1024 + $0x10] sm:$0xff]
    %v2634 = vld [vmem:[%s1024 + $0x18] sm:$0xff]
    %v2635 = vlaneseq
    %v2636 = vshrl.u32 %v2635, 7
    %v2637 = vsub.s32 1, %v2636
    %v2638 = vrot.slane %v2552, %v2637
    %2639 = vmatprep.subr.mxu0 0.0
    %2640 = vmatpush1.msra.mxu0 0.0
    %2641 = vmatprep.subr.mxu0 0.0
    %2642 = vmatpush1.msra.mxu0 0.0
    %2643 = vmatprep.subr.mxu0 0.0
    %2644 = vmatpush1.msra.mxu0 0.0
    %2645 = vmatprep.subr.mxu0 0.0
    %2646 = vmatpush1.msra.mxu0 0.0
    %2647 = vmatprep.subr.mxu0 0.0
    %2648 = vmatpush1.msra.mxu0 0.0
    %2649 = vmatprep.subr.mxu0 0.0
    %2650 = vmatpush1.msra.mxu0 0.0
    %2651 = vmatprep.subr.mxu0 0.0
    %2652 = vmatpush1.msra.mxu0 0.0
    %2653 = vmatprep.subr.mxu0 0.0
    %2654 = vmatpush1.msra.mxu0 0.0
    %2655 = vmatprep.subr.mxu0 0.0
    %2656 = vmatpush1.msra.mxu0 0.0
    %2657 = vmatprep.subr.mxu0 0.0
    %2658 = vmatpush1.msra.mxu0 0.0
    %2659 = vmatprep.subr.mxu0 0.0
    %2660 = vmatpush1.msra.mxu0 0.0
    %2661 = vmatprep.subr.mxu0 0.0
    %2662 = vmatpush1.msra.mxu0 0.0
    %2663 = vmatprep.subr.mxu0 0.0
    %2664 = vmatpush1.msra.mxu0 %v2634
    %2665 = vmatprep.subr.mxu0 0.0
    %2666 = vmatpush1.msra.mxu0 %v2633
    %2667 = vmatprep.subr.mxu0 0.0
    %2668 = vmatpush1.msra.mxu0 %v2632
    %2669 = vmatprep.subr.mxu0 0.0
    %2670 = vmatpush1.msra.mxu0 %v2631
    %2671 = vmatprep.subr.mxu0 0.0
    %2672 = vmatpush2.msra.mxu0 0.0
    %2673 = vmatprep.subr.mxu0 0.0
    %2674 = vmatpush2.msra.mxu0 0.0
    %2675 = vmatprep.subr.mxu0 0.0
    %2676 = vmatpush2.msra.mxu0 0.0
    %2677 = vmatprep.subr.mxu0 0.0
    %2678 = vmatpush2.msra.mxu0 0.0
    %2679 = vmatprep.subr.mxu0 0.0
    %2680 = vmatpush2.msra.mxu0 0.0
    %2681 = vmatprep.subr.mxu0 0.0
    %2682 = vmatpush2.msra.mxu0 0.0
    %2683 = vmatprep.subr.mxu0 0.0
    %2684 = vmatpush2.msra.mxu0 0.0
    %2685 = vmatprep.subr.mxu0 0.0
    %2686 = vmatpush2.msra.mxu0 0.0
    %2687 = vmatprep.subr.mxu0 0.0
    %2688 = vmatpush2.msra.mxu0 0.0
    %2689 = vmatprep.subr.mxu0 0.0
    %2690 = vmatpush2.msra.mxu0 0.0
    %2691 = vmatprep.subr.mxu0 0.0
    %2692 = vmatpush2.msra.mxu0 0.0
    %2693 = vmatprep.subr.mxu0 0.0
    %2694 = vmatpush2.msra.mxu0 0.0
    %2695 = vmatprep.subr.mxu0 0.0
    %2696 = vmatpush2.msra.mxu0 0.0
    %2697 = vmatprep.subr.mxu0 0.0
    %2698 = vmatpush2.msra.mxu0 0.0
    %2699 = vmatprep.subr.mxu0 0.0
    %2700 = vmatpush2.msra.mxu0 0.0
    %2701 = vmatprep.subr.mxu0 0.0
    %2702 = vmatpush2.msra.mxu0 0.0
    %2703 = vmatprep.mubr.f32.mxu0 0.0
    %2704 = vmatmul.mubr.f32.gmra.mxu0 %v1763
    %v2705 = vpop.f32.mrf.mxu0
    %v2706 = vadd.f32 %v2638, %v2705
    %v2707 = vpop.f32.mrf.mxu0
    %2708 = vdwg.mxu0
    %v2709 = vld [vmem:[%s1103] sm:$0xff]
    %v2710 = vld [vmem:[%s1103 + $0x8] sm:$0xff]
    %v2711 = vld [vmem:[%s1103 + $0x10] sm:$0xff]
    %v2712 = vld [vmem:[%s1103 + $0x18] sm:$0xff]
    %v2713 = vlaneseq
    %v2714 = vshrl.u32 %v2713, 7
    %v2715 = vsub.s32 2, %v2714
    %v2716 = vrot.slane %v2552, %v2715
    %2717 = vmatprep.subr.mxu0 0.0
    %2718 = vmatpush1.msra.mxu0 0.0
    %2719 = vmatprep.subr.mxu0 0.0
    %2720 = vmatpush1.msra.mxu0 0.0
    %2721 = vmatprep.subr.mxu0 0.0
    %2722 = vmatpush1.msra.mxu0 0.0
    %2723 = vmatprep.subr.mxu0 0.0
    %2724 = vmatpush1.msra.mxu0 0.0
    %2725 = vmatprep.subr.mxu0 0.0
    %2726 = vmatpush1.msra.mxu0 0.0
    %2727 = vmatprep.subr.mxu0 0.0
    %2728 = vmatpush1.msra.mxu0 0.0
    %2729 = vmatprep.subr.mxu0 0.0
    %2730 = vmatpush1.msra.mxu0 0.0
    %2731 = vmatprep.subr.mxu0 0.0
    %2732 = vmatpush1.msra.mxu0 0.0
    %2733 = vmatprep.subr.mxu0 0.0
    %2734 = vmatpush1.msra.mxu0 0.0
    %2735 = vmatprep.subr.mxu0 0.0
    %2736 = vmatpush1.msra.mxu0 0.0
    %2737 = vmatprep.subr.mxu0 0.0
    %2738 = vmatpush1.msra.mxu0 0.0
    %2739 = vmatprep.subr.mxu0 0.0
    %2740 = vmatpush1.msra.mxu0 0.0
    %2741 = vmatprep.subr.mxu0 0.0
    %2742 = vmatpush1.msra.mxu0 %v2712
    %2743 = vmatprep.subr.mxu0 0.0
    %2744 = vmatpush1.msra.mxu0 %v2711
    %2745 = vmatprep.subr.mxu0 0.0
    %2746 = vmatpush1.msra.mxu0 %v2710
    %2747 = vmatprep.subr.mxu0 0.0
    %2748 = vmatpush1.msra.mxu0 %v2709
    %2749 = vmatprep.subr.mxu0 0.0
    %2750 = vmatpush2.msra.mxu0 0.0
    %2751 = vmatprep.subr.mxu0 0.0
    %2752 = vmatpush2.msra.mxu0 0.0
    %2753 = vmatprep.subr.mxu0 0.0
    %2754 = vmatpush2.msra.mxu0 0.0
    %2755 = vmatprep.subr.mxu0 0.0
    %2756 = vmatpush2.msra.mxu0 0.0
    %2757 = vmatprep.subr.mxu0 0.0
    %2758 = vmatpush2.msra.mxu0 0.0
    %2759 = vmatprep.subr.mxu0 0.0
    %2760 = vmatpush2.msra.mxu0 0.0
    %2761 = vmatprep.subr.mxu0 0.0
    %2762 = vmatpush2.msra.mxu0 0.0
    %2763 = vmatprep.subr.mxu0 0.0
    %2764 = vmatpush2.msra.mxu0 0.0
    %2765 = vmatprep.subr.mxu0 0.0
    %2766 = vmatpush2.msra.mxu0 0.0
    %2767 = vmatprep.subr.mxu0 0.0
    %2768 = vmatpush2.msra.mxu0 0.0
    %2769 = vmatprep.subr.mxu0 0.0
    %2770 = vmatpush2.msra.mxu0 0.0
    %2771 = vmatprep.subr.mxu0 0.0
    %2772 = vmatpush2.msra.mxu0 0.0
    %2773 = vmatprep.subr.mxu0 0.0
    %2774 = vmatpush2.msra.mxu0 0.0
    %2775 = vmatprep.subr.mxu0 0.0
    %2776 = vmatpush2.msra.mxu0 0.0
    %2777 = vmatprep.subr.mxu0 0.0
    %2778 = vmatpush2.msra.mxu0 0.0
    %2779 = vmatprep.subr.mxu0 0.0
    %2780 = vmatpush2.msra.mxu0 0.0
    %2781 = vmatprep.mubr.f32.mxu0 0.0
    %2782 = vmatmul.mubr.f32.gmra.mxu0 %v1763
    %v2783 = vpop.f32.mrf.mxu0
    %v2784 = vadd.f32 %v2716, %v2783
    %v2785 = vpop.f32.mrf.mxu0
    %2786 = vdwg.mxu0
    %v2788 = vsel %vm376, %v2628, 0
    %v2791 = vsel %vm376, %v2706, 0
    %2793 = vmatprep.subr.mxu0 0.0
    %2794 = vmatpush1.xpose.msra.mxu0 0.0
    %2795 = vmatprep.subr.mxu0 0.0
    %2796 = vmatpush1.xpose.msra.mxu0 0.0
    %2797 = vmatprep.subr.mxu0 0.0
    %2798 = vmatpush1.xpose.msra.mxu0 0.0
    %2799 = vmatprep.subr.mxu0 0.0
    %2800 = vmatpush1.xpose.msra.mxu0 0.0
    %2801 = vmatprep.subr.mxu0 0.0
    %2802 = vmatpush1.xpose.msra.mxu0 0.0
    %2803 = vmatprep.subr.mxu0 0.0
    %2804 = vmatpush1.xpose.msra.mxu0 0.0
    %2805 = vmatprep.subr.mxu0 0.0
    %2806 = vmatpush1.xpose.msra.mxu0 0.0
    %2807 = vmatprep.subr.mxu0 0.0
    %2808 = vmatpush1.xpose.msra.mxu0 0.0
    %2809 = vmatprep.subr.mxu0 0.0
    %2810 = vmatpush1.xpose.msra.mxu0 0.0
    %2811 = vmatprep.subr.mxu0 0.0
    %2812 = vmatpush1.xpose.msra.mxu0 0.0
    %2813 = vmatprep.subr.mxu0 0.0
    %2814 = vmatpush1.xpose.msra.mxu0 0.0
    %2815 = vmatprep.subr.mxu0 0.0
    %2816 = vmatpush1.xpose.msra.mxu0 0.0
    %2817 = vmatprep.subr.mxu0 0.0
    %2818 = vmatpush1.xpose.msra.mxu0 0.0
    %2819 = vmatprep.subr.mxu0 0.0
    %2820 = vmatpush1.xpose.msra.mxu0 0.0
    %2821 = vmatprep.subr.mxu0 0.0
    %2822 = vmatpush1.xpose.msra.mxu0 0.0
    %2823 = vmatprep.subr.mxu0 0.0
    %2824 = vmatpush1.xpose.msra.mxu0 %v2791
    %2825 = vmatprep.subr.mxu0 0.0
    %2826 = vmatpush2.xpose.msra.mxu0 0.0
    %2827 = vmatprep.subr.mxu0 0.0
    %2828 = vmatpush2.xpose.msra.mxu0 0.0
    %2829 = vmatprep.subr.mxu0 0.0
    %2830 = vmatpush2.xpose.msra.mxu0 0.0
    %2831 = vmatprep.subr.mxu0 0.0
    %2832 = vmatpush2.xpose.msra.mxu0 0.0
    %2833 = vmatprep.subr.mxu0 0.0
    %2834 = vmatpush2.xpose.msra.mxu0 0.0
    %2835 = vmatprep.subr.mxu0 0.0
    %2836 = vmatpush2.xpose.msra.mxu0 0.0
    %2837 = vmatprep.subr.mxu0 0.0
    %2838 = vmatpush2.xpose.msra.mxu0 0.0
    %2839 = vmatprep.subr.mxu0 0.0
    %2840 = vmatpush2.xpose.msra.mxu0 0.0
    %2841 = vmatprep.subr.mxu0 0.0
    %2842 = vmatpush2.xpose.msra.mxu0 0.0
    %2843 = vmatprep.subr.mxu0 0.0
    %2844 = vmatpush2.xpose.msra.mxu0 0.0
    %2845 = vmatprep.subr.mxu0 0.0
    %2846 = vmatpush2.xpose.msra.mxu0 0.0
    %2847 = vmatprep.subr.mxu0 0.0
    %2848 = vmatpush2.xpose.msra.mxu0 0.0
    %2849 = vmatprep.subr.mxu0 0.0
    %2850 = vmatpush2.xpose.msra.mxu0 0.0
    %2851 = vmatprep.subr.mxu0 0.0
    %2852 = vmatpush2.xpose.msra.mxu0 0.0
    %2853 = vmatprep.subr.mxu0 0.0
    %2854 = vmatpush2.xpose.msra.mxu0 0.0
    %2855 = vmatprep.subr.mxu0 0.0
    %2856 = vmatpush2.xpose.msra.mxu0 0.0
    %2857 = vmatprep.mubr.f32.mxu0 0.0
    %2858 = vmatmul.mubr.f32.gmra.mxu0 %v2788
    %v2859 = vpop.f32.mrf.mxu0
    %v2860 = vadd.f32 0.0, %v2859
    %v2861 = vpop.f32.mrf.mxu0
    %2862 = vdwg.mxu0
    %v2863 = vsel %vm376, %v2860, -inf
    %2864 = vmax.xlane.f32.xlu0 %v2863
    %v2865 = vpop.xlane.xlu0 %2864
    %v2866 = vsub.f32 %v2860, %v2865
    %v2867 = vmul.f32 %v2866, 1.442695
    %v2868 = vpow.pop %v2867
    %v2869 = vsel %vm376, %v2868, 0.0
    %2870 = vadd.xlane.f32.xlu0 %v2869
    %v2871 = vpop.xlane.xlu0 %2870
    %v2872 = vrcp.pop %v2871
    %v2873 = vmul.f32 %v2868, %v2872
    %v2875 = vsel %vm376, %v2873, 0
    %2877 = vmatprep.subr.mxu0 0.0
    %2878 = vmatpush1.msra.mxu0 0.0
    %2879 = vmatprep.subr.mxu0 0.0
    %2880 = vmatpush1.msra.mxu0 0.0
    %2881 = vmatprep.subr.mxu0 0.0
    %2882 = vmatpush1.msra.mxu0 0.0
    %2883 = vmatprep.subr.mxu0 0.0
    %2884 = vmatpush1.msra.mxu0 0.0
    %2885 = vmatprep.subr.mxu0 0.0
    %2886 = vmatpush1.msra.mxu0 0.0
    %2887 = vmatprep.subr.mxu0 0.0
    %2888 = vmatpush1.msra.mxu0 0.0
    %2889 = vmatprep.subr.mxu0 0.0
    %2890 = vmatpush1.msra.mxu0 0.0
    %2891 = vmatprep.subr.mxu0 0.0
    %2892 = vmatpush1.msra.mxu0 0.0
    %2893 = vmatprep.subr.mxu0 0.0
    %2894 = vmatpush1.msra.mxu0 0.0
    %2895 = vmatprep.subr.mxu0 0.0
    %2896 = vmatpush1.msra.mxu0 0.0
    %2897 = vmatprep.subr.mxu0 0.0
    %2898 = vmatpush1.msra.mxu0 0.0
    %2899 = vmatprep.subr.mxu0 0.0
    %2900 = vmatpush1.msra.mxu0 0.0
    %2901 = vmatprep.subr.mxu0 0.0
    %2902 = vmatpush1.msra.mxu0 0.0
    %2903 = vmatprep.subr.mxu0 0.0
    %2904 = vmatpush1.msra.mxu0 0.0
    %2905 = vmatprep.subr.mxu0 0.0
    %2906 = vmatpush1.msra.mxu0 0.0
    %2907 = vmatprep.subr.mxu0 0.0
    %2908 = vmatpush1.msra.mxu0 %v2784
    %2909 = vmatprep.subr.mxu0 0.0
    %2910 = vmatpush2.msra.mxu0 0.0
    %2911 = vmatprep.subr.mxu0 0.0
    %2912 = vmatpush2.msra.mxu0 0.0
    %2913 = vmatprep.subr.mxu0 0.0
    %2914 = vmatpush2.msra.mxu0 0.0
    %2915 = vmatprep.subr.mxu0 0.0
    %2916 = vmatpush2.msra.mxu0 0.0
    %2917 = vmatprep.subr.mxu0 0.0
    %2918 = vmatpush2.msra.mxu0 0.0
    %2919 = vmatprep.subr.mxu0 0.0
    %2920 = vmatpush2.msra.mxu0 0.0
    %2921 = vmatprep.subr.mxu0 0.0
    %2922 = vmatpush2.msra.mxu0 0.0
    %2923 = vmatprep.subr.mxu0 0.0
    %2924 = vmatpush2.msra.mxu0 0.0
    %2925 = vmatprep.subr.mxu0 0.0
    %2926 = vmatpush2.msra.mxu0 0.0
    %2927 = vmatprep.subr.mxu0 0.0
    %2928 = vmatpush2.msra.mxu0 0.0
    %2929 = vmatprep.subr.mxu0 0.0
    %2930 = vmatpush2.msra.mxu0 0.0
    %2931 = vmatprep.subr.mxu0 0.0
    %2932 = vmatpush2.msra.mxu0 0.0
    %2933 = vmatprep.subr.mxu0 0.0
    %2934 = vmatpush2.msra.mxu0 0.0
    %2935 = vmatprep.subr.mxu0 0.0
    %2936 = vmatpush2.msra.mxu0 0.0
    %2937 = vmatprep.subr.mxu0 0.0
    %2938 = vmatpush2.msra.mxu0 0.0
    %2939 = vmatprep.subr.mxu0 0.0
    %2940 = vmatpush2.msra.mxu0 0.0
    %2941 = vmatprep.mubr.f32.mxu0 0.0
    %2942 = vmatmul.mubr.f32.gmra.mxu0 %v2875
    %v2943 = vpop.f32.mrf.mxu0
    %v2944 = vadd.f32 0.0, %v2943
    %v2945 = vpop.f32.mrf.mxu0
    %2946 = vdwg.mxu0
    %2948 = vrot.lane.b32.xlu0 %v2944, 16
    %v2949 = vpop.permute.xlu0 %2948
    %2951 = vst.msk [vmem:[#allocation2 + $0x8] sm:$0xff] %vm1346, %v2949
    %v2952 = vld [vmem:[%s1348] sm:$0x7]
    %v2953 = vld [vmem:[%s1350] sm:$0xff]
    %v2954 = vld [vmem:[%s1350 + $0x8] sm:$0xff]
    %v2955 = vld [vmem:[%s1350 + $0x10] sm:$0xff]
    %v2956 = vld [vmem:[%s1350 + $0x18] sm:$0xff]
    %v2957 = vlaneseq
    %v2958 = vshrl.u32 %v2957, 7
    %v2959 = vsub.s32 0, %v2958
    %v2960 = vrot.slane %v2952, %v2959
    %2961 = vmatprep.subr.mxu0 0.0
    %2962 = vmatpush1.msra.mxu0 0.0
    %2963 = vmatprep.subr.mxu0 0.0
    %2964 = vmatpush1.msra.mxu0 0.0
    %2965 = vmatprep.subr.mxu0 0.0
    %2966 = vmatpush1.msra.mxu0 0.0
    %2967 = vmatprep.subr.mxu0 0.0
    %2968 = vmatpush1.msra.mxu0 0.0
    %2969 = vmatprep.subr.mxu0 0.0
    %2970 = vmatpush1.msra.mxu0 0.0
    %2971 = vmatprep.subr.mxu0 0.0
    %2972 = vmatpush1.msra.mxu0 0.0
    %2973 = vmatprep.subr.mxu0 0.0
    %2974 = vmatpush1.msra.mxu0 0.0
    %2975 = vmatprep.subr.mxu0 0.0
    %2976 = vmatpush1.msra.mxu0 0.0
    %2977 = vmatprep.subr.mxu0 0.0
    %2978 = vmatpush1.msra.mxu0 0.0
    %2979 = vmatprep.subr.mxu0 0.0
    %2980 = vmatpush1.msra.mxu0 0.0
    %2981 = vmatprep.subr.mxu0 0.0
    %2982 = vmatpush1.msra.mxu0 0.0
    %2983 = vmatprep.subr.mxu0 0.0
    %2984 = vmatpush1.msra.mxu0 0.0
    %2985 = vmatprep.subr.mxu0 0.0
    %2986 = vmatpush1.msra.mxu0 %v2956
    %2987 = vmatprep.subr.mxu0 0.0
    %2988 = vmatpush1.msra.mxu0 %v2955
    %2989 = vmatprep.subr.mxu0 0.0
    %2990 = vmatpush1.msra.mxu0 %v2954
    %2991 = vmatprep.subr.mxu0 0.0
    %2992 = vmatpush1.msra.mxu0 %v2953
    %2993 = vmatprep.subr.mxu0 0.0
    %2994 = vmatpush2.msra.mxu0 0.0
    %2995 = vmatprep.subr.mxu0 0.0
    %2996 = vmatpush2.msra.mxu0 0.0
    %2997 = vmatprep.subr.mxu0 0.0
    %2998 = vmatpush2.msra.mxu0 0.0
    %2999 = vmatprep.subr.mxu0 0.0
    %3000 = vmatpush2.msra.mxu0 0.0
    %3001 = vmatprep.subr.mxu0 0.0
    %3002 = vmatpush2.msra.mxu0 0.0
    %3003 = vmatprep.subr.mxu0 0.0
    %3004 = vmatpush2.msra.mxu0 0.0
    %3005 = vmatprep.subr.mxu0 0.0
    %3006 = vmatpush2.msra.mxu0 0.0
    %3007 = vmatprep.subr.mxu0 0.0
    %3008 = vmatpush2.msra.mxu0 0.0
    %3009 = vmatprep.subr.mxu0 0.0
    %3010 = vmatpush2.msra.mxu0 0.0
    %3011 = vmatprep.subr.mxu0 0.0
    %3012 = vmatpush2.msra.mxu0 0.0
    %3013 = vmatprep.subr.mxu0 0.0
    %3014 = vmatpush2.msra.mxu0 0.0
    %3015 = vmatprep.subr.mxu0 0.0
    %3016 = vmatpush2.msra.mxu0 0.0
    %3017 = vmatprep.subr.mxu0 0.0
    %3018 = vmatpush2.msra.mxu0 0.0
    %3019 = vmatprep.subr.mxu0 0.0
    %3020 = vmatpush2.msra.mxu0 0.0
    %3021 = vmatprep.subr.mxu0 0.0
    %3022 = vmatpush2.msra.mxu0 0.0
    %3023 = vmatprep.subr.mxu0 0.0
    %3024 = vmatpush2.msra.mxu0 0.0
    %3025 = vmatprep.mubr.f32.mxu0 0.0
    %3026 = vmatmul.mubr.f32.gmra.mxu0 %v1763
    %v3027 = vpop.f32.mrf.mxu0
    %v3028 = vadd.f32 %v2960, %v3027
    %v3029 = vpop.f32.mrf.mxu0
    %3030 = vdwg.mxu0
    %v3031 = vld [vmem:[%s1429] sm:$0xff]
    %v3032 = vld [vmem:[%s1429 + $0x8] sm:$0xff]
    %v3033 = vld [vmem:[%s1429 + $0x10] sm:$0xff]
    %v3034 = vld [vmem:[%s1429 + $0x18] sm:$0xff]
    %v3035 = vlaneseq
    %v3036 = vshrl.u32 %v3035, 7
    %v3037 = vsub.s32 1, %v3036
    %v3038 = vrot.slane %v2952, %v3037
    %3039 = vmatprep.subr.mxu0 0.0
    %3040 = vmatpush1.msra.mxu0 0.0
    %3041 = vmatprep.subr.mxu0 0.0
    %3042 = vmatpush1.msra.mxu0 0.0
    %3043 = vmatprep.subr.mxu0 0.0
    %3044 = vmatpush1.msra.mxu0 0.0
    %3045 = vmatprep.subr.mxu0 0.0
    %3046 = vmatpush1.msra.mxu0 0.0
    %3047 = vmatprep.subr.mxu0 0.0
    %3048 = vmatpush1.msra.mxu0 0.0
    %3049 = vmatprep.subr.mxu0 0.0
    %3050 = vmatpush1.msra.mxu0 0.0
    %3051 = vmatprep.subr.mxu0 0.0
    %3052 = vmatpush1.msra.mxu0 0.0
    %3053 = vmatprep.subr.mxu0 0.0
    %3054 = vmatpush1.msra.mxu0 0.0
    %3055 = vmatprep.subr.mxu0 0.0
    %3056 = vmatpush1.msra.mxu0 0.0
    %3057 = vmatprep.subr.mxu0 0.0
    %3058 = vmatpush1.msra.mxu0 0.0
    %3059 = vmatprep.subr.mxu0 0.0
    %3060 = vmatpush1.msra.mxu0 0.0
    %3061 = vmatprep.subr.mxu0 0.0
    %3062 = vmatpush1.msra.mxu0 0.0
    %3063 = vmatprep.subr.mxu0 0.0
    %3064 = vmatpush1.msra.mxu0 %v3034
    %3065 = vmatprep.subr.mxu0 0.0
    %3066 = vmatpush1.msra.mxu0 %v3033
    %3067 = vmatprep.subr.mxu0 0.0
    %3068 = vmatpush1.msra.mxu0 %v3032
    %3069 = vmatprep.subr.mxu0 0.0
    %3070 = vmatpush1.msra.mxu0 %v3031
    %3071 = vmatprep.subr.mxu0 0.0
    %3072 = vmatpush2.msra.mxu0 0.0
    %3073 = vmatprep.subr.mxu0 0.0
    %3074 = vmatpush2.msra.mxu0 0.0
    %3075 = vmatprep.subr.mxu0 0.0
    %3076 = vmatpush2.msra.mxu0 0.0
    %3077 = vmatprep.subr.mxu0 0.0
    %3078 = vmatpush2.msra.mxu0 0.0
    %3079 = vmatprep.subr.mxu0 0.0
    %3080 = vmatpush2.msra.mxu0 0.0
    %3081 = vmatprep.subr.mxu0 0.0
    %3082 = vmatpush2.msra.mxu0 0.0
    %3083 = vmatprep.subr.mxu0 0.0
    %3084 = vmatpush2.msra.mxu0 0.0
    %3085 = vmatprep.subr.mxu0 0.0
    %3086 = vmatpush2.msra.mxu0 0.0
    %3087 = vmatprep.subr.mxu0 0.0
    %3088 = vmatpush2.msra.mxu0 0.0
    %3089 = vmatprep.subr.mxu0 0.0
    %3090 = vmatpush2.msra.mxu0 0.0
    %3091 = vmatprep.subr.mxu0 0.0
    %3092 = vmatpush2.msra.mxu0 0.0
    %3093 = vmatprep.subr.mxu0 0.0
    %3094 = vmatpush2.msra.mxu0 0.0
    %3095 = vmatprep.subr.mxu0 0.0
    %3096 = vmatpush2.msra.mxu0 0.0
    %3097 = vmatprep.subr.mxu0 0.0
    %3098 = vmatpush2.msra.mxu0 0.0
    %3099 = vmatprep.subr.mxu0 0.0
    %3100 = vmatpush2.msra.mxu0 0.0
    %3101 = vmatprep.subr.mxu0 0.0
    %3102 = vmatpush2.msra.mxu0 0.0
    %3103 = vmatprep.mubr.f32.mxu0 0.0
    %3104 = vmatmul.mubr.f32.gmra.mxu0 %v1763
    %v3105 = vpop.f32.mrf.mxu0
    %v3106 = vadd.f32 %v3038, %v3105
    %v3107 = vpop.f32.mrf.mxu0
    %3108 = vdwg.mxu0
    %v3109 = vld [vmem:[%s1508] sm:$0xff]
    %v3110 = vld [vmem:[%s1508 + $0x8] sm:$0xff]
    %v3111 = vld [vmem:[%s1508 + $0x10] sm:$0xff]
    %v3112 = vld [vmem:[%s1508 + $0x18] sm:$0xff]
    %v3113 = vlaneseq
    %v3114 = vshrl.u32 %v3113, 7
    %v3115 = vsub.s32 2, %v3114
    %v3116 = vrot.slane %v2952, %v3115
    %3117 = vmatprep.subr.mxu0 0.0
    %3118 = vmatpush1.msra.mxu0 0.0
    %3119 = vmatprep.subr.mxu0 0.0
    %3120 = vmatpush1.msra.mxu0 0.0
    %3121 = vmatprep.subr.mxu0 0.0
    %3122 = vmatpush1.msra.mxu0 0.0
    %3123 = vmatprep.subr.mxu0 0.0
    %3124 = vmatpush1.msra.mxu0 0.0
    %3125 = vmatprep.subr.mxu0 0.0
    %3126 = vmatpush1.msra.mxu0 0.0
    %3127 = vmatprep.subr.mxu0 0.0
    %3128 = vmatpush1.msra.mxu0 0.0
    %3129 = vmatprep.subr.mxu0 0.0
    %3130 = vmatpush1.msra.mxu0 0.0
    %3131 = vmatprep.subr.mxu0 0.0
    %3132 = vmatpush1.msra.mxu0 0.0
    %3133 = vmatprep.subr.mxu0 0.0
    %3134 = vmatpush1.msra.mxu0 0.0
    %3135 = vmatprep.subr.mxu0 0.0
    %3136 = vmatpush1.msra.mxu0 0.0
    %3137 = vmatprep.subr.mxu0 0.0
    %3138 = vmatpush1.msra.mxu0 0.0
    %3139 = vmatprep.subr.mxu0 0.0
    %3140 = vmatpush1.msra.mxu0 0.0
    %3141 = vmatprep.subr.mxu0 0.0
    %3142 = vmatpush1.msra.mxu0 %v3112
    %3143 = vmatprep.subr.mxu0 0.0
    %3144 = vmatpush1.msra.mxu0 %v3111
    %3145 = vmatprep.subr.mxu0 0.0
    %3146 = vmatpush1.msra.mxu0 %v3110
    %3147 = vmatprep.subr.mxu0 0.0
    %3148 = vmatpush1.msra.mxu0 %v3109
    %3149 = vmatprep.subr.mxu0 0.0
    %3150 = vmatpush2.msra.mxu0 0.0
    %3151 = vmatprep.subr.mxu0 0.0
    %3152 = vmatpush2.msra.mxu0 0.0
    %3153 = vmatprep.subr.mxu0 0.0
    %3154 = vmatpush2.msra.mxu0 0.0
    %3155 = vmatprep.subr.mxu0 0.0
    %3156 = vmatpush2.msra.mxu0 0.0
    %3157 = vmatprep.subr.mxu0 0.0
    %3158 = vmatpush2.msra.mxu0 0.0
    %3159 = vmatprep.subr.mxu0 0.0
    %3160 = vmatpush2.msra.mxu0 0.0
    %3161 = vmatprep.subr.mxu0 0.0
    %3162 = vmatpush2.msra.mxu0 0.0
    %3163 = vmatprep.subr.mxu0 0.0
    %3164 = vmatpush2.msra.mxu0 0.0
    %3165 = vmatprep.subr.mxu0 0.0
    %3166 = vmatpush2.msra.mxu0 0.0
    %3167 = vmatprep.subr.mxu0 0.0
    %3168 = vmatpush2.msra.mxu0 0.0
    %3169 = vmatprep.subr.mxu0 0.0
    %3170 = vmatpush2.msra.mxu0 0.0
    %3171 = vmatprep.subr.mxu0 0.0
    %3172 = vmatpush2.msra.mxu0 0.0
    %3173 = vmatprep.subr.mxu0 0.0
    %3174 = vmatpush2.msra.mxu0 0.0
    %3175 = vmatprep.subr.mxu0 0.0
    %3176 = vmatpush2.msra.mxu0 0.0
    %3177 = vmatprep.subr.mxu0 0.0
    %3178 = vmatpush2.msra.mxu0 0.0
    %3179 = vmatprep.subr.mxu0 0.0
    %3180 = vmatpush2.msra.mxu0 0.0
    %3181 = vmatprep.mubr.f32.mxu0 0.0
    %3182 = vmatmul.mubr.f32.gmra.mxu0 %v1763
    %v3183 = vpop.f32.mrf.mxu0
    %v3184 = vadd.f32 %v3116, %v3183
    %v3185 = vpop.f32.mrf.mxu0
    %3186 = vdwg.mxu0
    %v3188 = vsel %vm376, %v3028, 0
    %v3191 = vsel %vm376, %v3106, 0
    %3193 = vmatprep.subr.mxu0 0.0
    %3194 = vmatpush1.xpose.msra.mxu0 0.0
    %3195 = vmatprep.subr.mxu0 0.0
    %3196 = vmatpush1.xpose.msra.mxu0 0.0
    %3197 = vmatprep.subr.mxu0 0.0
    %3198 = vmatpush1.xpose.msra.mxu0 0.0
    %3199 = vmatprep.subr.mxu0 0.0
    %3200 = vmatpush1.xpose.msra.mxu0 0.0
    %3201 = vmatprep.subr.mxu0 0.0
    %3202 = vmatpush1.xpose.msra.mxu0 0.0
    %3203 = vmatprep.subr.mxu0 0.0
    %3204 = vmatpush1.xpose.msra.mxu0 0.0
    %3205 = vmatprep.subr.mxu0 0.0
    %3206 = vmatpush1.xpose.msra.mxu0 0.0
    %3207 = vmatprep.subr.mxu0 0.0
    %3208 = vmatpush1.xpose.msra.mxu0 0.0
    %3209 = vmatprep.subr.mxu0 0.0
    %3210 = vmatpush1.xpose.msra.mxu0 0.0
    %3211 = vmatprep.subr.mxu0 0.0
    %3212 = vmatpush1.xpose.msra.mxu0 0.0
    %3213 = vmatprep.subr.mxu0 0.0
    %3214 = vmatpush1.xpose.msra.mxu0 0.0
    %3215 = vmatprep.subr.mxu0 0.0
    %3216 = vmatpush1.xpose.msra.mxu0 0.0
    %3217 = vmatprep.subr.mxu0 0.0
    %3218 = vmatpush1.xpose.msra.mxu0 0.0
    %3219 = vmatprep.subr.mxu0 0.0
    %3220 = vmatpush1.xpose.msra.mxu0 0.0
    %3221 = vmatprep.subr.mxu0 0.0
    %3222 = vmatpush1.xpose.msra.mxu0 0.0
    %3223 = vmatprep.subr.mxu0 0.0
    %3224 = vmatpush1.xpose.msra.mxu0 %v3191
    %3225 = vmatprep.subr.mxu0 0.0
    %3226 = vmatpush2.xpose.msra.mxu0 0.0
    %3227 = vmatprep.subr.mxu0 0.0
    %3228 = vmatpush2.xpose.msra.mxu0 0.0
    %3229 = vmatprep.subr.mxu0 0.0
    %3230 = vmatpush2.xpose.msra.mxu0 0.0
    %3231 = vmatprep.subr.mxu0 0.0
    %3232 = vmatpush2.xpose.msra.mxu0 0.0
    %3233 = vmatprep.subr.mxu0 0.0
    %3234 = vmatpush2.xpose.msra.mxu0 0.0
    %3235 = vmatprep.subr.mxu0 0.0
    %3236 = vmatpush2.xpose.msra.mxu0 0.0
    %3237 = vmatprep.subr.mxu0 0.0
    %3238 = vmatpush2.xpose.msra.mxu0 0.0
    %3239 = vmatprep.subr.mxu0 0.0
    %3240 = vmatpush2.xpose.msra.mxu0 0.0
    %3241 = vmatprep.subr.mxu0 0.0
    %3242 = vmatpush2.xpose.msra.mxu0 0.0
    %3243 = vmatprep.subr.mxu0 0.0
    %3244 = vmatpush2.xpose.msra.mxu0 0.0
    %3245 = vmatprep.subr.mxu0 0.0
    %3246 = vmatpush2.xpose.msra.mxu0 0.0
    %3247 = vmatprep.subr.mxu0 0.0
    %3248 = vmatpush2.xpose.msra.mxu0 0.0
    %3249 = vmatprep.subr.mxu0 0.0
    %3250 = vmatpush2.xpose.msra.mxu0 0.0
    %3251 = vmatprep.subr.mxu0 0.0
    %3252 = vmatpush2.xpose.msra.mxu0 0.0
    %3253 = vmatprep.subr.mxu0 0.0
    %3254 = vmatpush2.xpose.msra.mxu0 0.0
    %3255 = vmatprep.subr.mxu0 0.0
    %3256 = vmatpush2.xpose.msra.mxu0 0.0
    %3257 = vmatprep.mubr.f32.mxu0 0.0
    %3258 = vmatmul.mubr.f32.gmra.mxu0 %v3188
    %v3259 = vpop.f32.mrf.mxu0
    %v3260 = vadd.f32 0.0, %v3259
    %v3261 = vpop.f32.mrf.mxu0
    %3262 = vdwg.mxu0
    %v3263 = vsel %vm376, %v3260, -inf
    %3264 = vmax.xlane.f32.xlu0 %v3263
    %v3265 = vpop.xlane.xlu0 %3264
    %v3266 = vsub.f32 %v3260, %v3265
    %v3267 = vmul.f32 %v3266, 1.442695
    %v3268 = vpow.pop %v3267
    %v3269 = vsel %vm376, %v3268, 0.0
    %3270 = vadd.xlane.f32.xlu0 %v3269
    %v3271 = vpop.xlane.xlu0 %3270
    %v3272 = vrcp.pop %v3271
    %v3273 = vmul.f32 %v3268, %v3272
    %v3275 = vsel %vm376, %v3273, 0
    %3277 = vmatprep.subr.mxu0 0.0
    %3278 = vmatpush1.msra.mxu0 0.0
    %3279 = vmatprep.subr.mxu0 0.0
    %3280 = vmatpush1.msra.mxu0 0.0
    %3281 = vmatprep.subr.mxu0 0.0
    %3282 = vmatpush1.msra.mxu0 0.0
    %3283 = vmatprep.subr.mxu0 0.0
    %3284 = vmatpush1.msra.mxu0 0.0
    %3285 = vmatprep.subr.mxu0 0.0
    %3286 = vmatpush1.msra.mxu0 0.0
    %3287 = vmatprep.subr.mxu0 0.0
    %3288 = vmatpush1.msra.mxu0 0.0
    %3289 = vmatprep.subr.mxu0 0.0
    %3290 = vmatpush1.msra.mxu0 0.0
    %3291 = vmatprep.subr.mxu0 0.0
    %3292 = vmatpush1.msra.mxu0 0.0
    %3293 = vmatprep.subr.mxu0 0.0
    %3294 = vmatpush1.msra.mxu0 0.0
    %3295 = vmatprep.subr.mxu0 0.0
    %3296 = vmatpush1.msra.mxu0 0.0
    %3297 = vmatprep.subr.mxu0 0.0
    %3298 = vmatpush1.msra.mxu0 0.0
    %3299 = vmatprep.subr.mxu0 0.0
    %3300 = vmatpush1.msra.mxu0 0.0
    %3301 = vmatprep.subr.mxu0 0.0
    %3302 = vmatpush1.msra.mxu0 0.0
    %3303 = vmatprep.subr.mxu0 0.0
    %3304 = vmatpush1.msra.mxu0 0.0
    %3305 = vmatprep.subr.mxu0 0.0
    %3306 = vmatpush1.msra.mxu0 0.0
    %3307 = vmatprep.subr.mxu0 0.0
    %3308 = vmatpush1.msra.mxu0 %v3184
    %3309 = vmatprep.subr.mxu0 0.0
    %3310 = vmatpush2.msra.mxu0 0.0
    %3311 = vmatprep.subr.mxu0 0.0
    %3312 = vmatpush2.msra.mxu0 0.0
    %3313 = vmatprep.subr.mxu0 0.0
    %3314 = vmatpush2.msra.mxu0 0.0
    %3315 = vmatprep.subr.mxu0 0.0
    %3316 = vmatpush2.msra.mxu0 0.0
    %3317 = vmatprep.subr.mxu0 0.0
    %3318 = vmatpush2.msra.mxu0 0.0
    %3319 = vmatprep.subr.mxu0 0.0
    %3320 = vmatpush2.msra.mxu0 0.0
    %3321 = vmatprep.subr.mxu0 0.0
    %3322 = vmatpush2.msra.mxu0 0.0
    %3323 = vmatprep.subr.mxu0 0.0
    %3324 = vmatpush2.msra.mxu0 0.0
    %3325 = vmatprep.subr.mxu0 0.0
    %3326 = vmatpush2.msra.mxu0 0.0
    %3327 = vmatprep.subr.mxu0 0.0
    %3328 = vmatpush2.msra.mxu0 0.0
    %3329 = vmatprep.subr.mxu0 0.0
    %3330 = vmatpush2.msra.mxu0 0.0
    %3331 = vmatprep.subr.mxu0 0.0
    %3332 = vmatpush2.msra.mxu0 0.0
    %3333 = vmatprep.subr.mxu0 0.0
    %3334 = vmatpush2.msra.mxu0 0.0
    %3335 = vmatprep.subr.mxu0 0.0
    %3336 = vmatpush2.msra.mxu0 0.0
    %3337 = vmatprep.subr.mxu0 0.0
    %3338 = vmatpush2.msra.mxu0 0.0
    %3339 = vmatprep.subr.mxu0 0.0
    %3340 = vmatpush2.msra.mxu0 0.0
    %3341 = vmatprep.mubr.f32.mxu0 0.0
    %3342 = vmatmul.mubr.f32.gmra.mxu0 %v3275
    %v3343 = vpop.f32.mrf.mxu0
    %v3344 = vadd.f32 0.0, %v3343
    %v3345 = vpop.f32.mrf.mxu0
    %3346 = vdwg.mxu0
    %3348 = vrot.lane.b32.xlu0 %v3344, 24
    %v3349 = vpop.permute.xlu0 %3348
    %3351 = vst.msk [vmem:[#allocation2 + $0x8] sm:$0xff] %vm1751, %v3349
    %v3352 = vld [vmem:[#allocation2] sm:$0xff]
    %v3353 = vld [vmem:[#allocation2 + $0x8] sm:$0xff]
    %v3354 = vld [vmem:[%s7] sm:$0xff]
    %v3355 = vld [vmem:[%s7 + $0x8] sm:$0xff]
    %v3356 = vld [vmem:[%s7 + $0x10] sm:$0xff]
    %v3357 = vld [vmem:[%s7 + $0x18] sm:$0xff]
    %v3358 = vlaneseq
    %v3359 = vshrl.u32 %v3358, 7
    %v3360 = vsub.s32 0, %v3359
    %v3361 = vrot.slane %v136, %v3360
    %v3363 = vsel %vm146, %v3352, 0
    %v3366 = vsel %vm146, %v3353, 0
    %3368 = vmatprep.subr.mxu0 0.0
    %3369 = vmatpush1.msra.mxu0 0.0
    %3370 = vmatprep.subr.mxu0 0.0
    %3371 = vmatpush1.msra.mxu0 0.0
    %3372 = vmatprep.subr.mxu0 0.0
    %3373 = vmatpush1.msra.mxu0 0.0
    %3374 = vmatprep.subr.mxu0 0.0
    %3375 = vmatpush1.msra.mxu0 0.0
    %3376 = vmatprep.subr.mxu0 0.0
    %3377 = vmatpush1.msra.mxu0 0.0
    %3378 = vmatprep.subr.mxu0 0.0
    %3379 = vmatpush1.msra.mxu0 0.0
    %3380 = vmatprep.subr.mxu0 0.0
    %3381 = vmatpush1.msra.mxu0 0.0
    %3382 = vmatprep.subr.mxu0 0.0
    %3383 = vmatpush1.msra.mxu0 0.0
    %3384 = vmatprep.subr.mxu0 0.0
    %3385 = vmatpush1.msra.mxu0 0.0
    %3386 = vmatprep.subr.mxu0 0.0
    %3387 = vmatpush1.msra.mxu0 0.0
    %3388 = vmatprep.subr.mxu0 0.0
    %3389 = vmatpush1.msra.mxu0 0.0
    %3390 = vmatprep.subr.mxu0 0.0
    %3391 = vmatpush1.msra.mxu0 0.0
    %3392 = vmatprep.subr.mxu0 0.0
    %3393 = vmatpush1.msra.mxu0 %v3357
    %3394 = vmatprep.subr.mxu0 0.0
    %3395 = vmatpush1.msra.mxu0 %v3356
    %3396 = vmatprep.subr.mxu0 0.0
    %3397 = vmatpush1.msra.mxu0 %v3355
    %3398 = vmatprep.subr.mxu0 0.0
    %3399 = vmatpush1.msra.mxu0 %v3354
    %3400 = vmatprep.subr.mxu0 0.0
    %3401 = vmatpush2.msra.mxu0 0.0
    %3402 = vmatprep.subr.mxu0 0.0
    %3403 = vmatpush2.msra.mxu0 0.0
    %3404 = vmatprep.subr.mxu0 0.0
    %3405 = vmatpush2.msra.mxu0 0.0
    %3406 = vmatprep.subr.mxu0 0.0
    %3407 = vmatpush2.msra.mxu0 0.0
    %3408 = vmatprep.subr.mxu0 0.0
    %3409 = vmatpush2.msra.mxu0 0.0
    %3410 = vmatprep.subr.mxu0 0.0
    %3411 = vmatpush2.msra.mxu0 0.0
    %3412 = vmatprep.subr.mxu0 0.0
    %3413 = vmatpush2.msra.mxu0 0.0
    %3414 = vmatprep.subr.mxu0 0.0
    %3415 = vmatpush2.msra.mxu0 0.0
    %3416 = vmatprep.subr.mxu0 0.0
    %3417 = vmatpush2.msra.mxu0 0.0
    %3418 = vmatprep.subr.mxu0 0.0
    %3419 = vmatpush2.msra.mxu0 0.0
    %3420 = vmatprep.subr.mxu0 0.0
    %3421 = vmatpush2.msra.mxu0 0.0
    %3422 = vmatprep.subr.mxu0 0.0
    %3423 = vmatpush2.msra.mxu0 0.0
    %3424 = vmatprep.subr.mxu0 0.0
    %3425 = vmatpush2.msra.mxu0 0.0
    %3426 = vmatprep.subr.mxu0 0.0
    %3427 = vmatpush2.msra.mxu0 0.0
    %3428 = vmatprep.subr.mxu0 0.0
    %3429 = vmatpush2.msra.mxu0 0.0
    %3430 = vmatprep.subr.mxu0 0.0
    %3431 = vmatpush2.msra.mxu0 0.0
    %3432 = vmatprep.mubr.f32.mxu0 0.0
    %3433 = vmatmul.mubr.f32.gmra.mxu0 %v3363
    %v3434 = vpop.f32.mrf.mxu0
    %v3435 = vadd.f32 %v3361, %v3434
    %v3436 = vpop.f32.mrf.mxu0
    %3437 = vmatprep.mubr.f32.mxu0 0.0
    %3438 = vmatmul.mubr.f32.gmra.mxu0 %v3366
    %v3439 = vpop.f32.mrf.mxu0
    %v3440 = vadd.f32 %v3361, %v3439
    %v3441 = vpop.f32.mrf.mxu0
    %3442 = vdwg.mxu0
    %v3443 = vadd.f32 %v128, %v3435
    %v3444 = vadd.f32 %v133, %v3440
    %v3445 = vsel %vm146, %v3443, 0.0
    %3446 = vadd.xlane.f32.xlu0 %v3445
    %v3447 = vpop.xlane.xlu0 %3446
    %v3448 = vsel %vm146, %v3444, 0.0
    %3449 = vadd.xlane.f32.xlu0 %v3448
    %v3450 = vpop.xlane.xlu0 %3449
    %v3451 = vrcp.pop 32.0
    %v3452 = vmul.f32 %v3447, %v3451
    %v3453 = vmul.f32 %v3450, %v3451
    %v3454 = vsub.f32 %v3443, %v3452
    %v3455 = vsub.f32 %v3444, %v3453
    %v3456 = vmul.f32 %v3454, %v3454
    %v3457 = vmul.f32 %v3455, %v3455
    %v3458 = vsel %vm146, %v3456, 0.0
    %3459 = vadd.xlane.f32.xlu0 %v3458
    %v3460 = vpop.xlane.xlu0 %3459
    %v3461 = vsel %vm146, %v3457, 0.0
    %3462 = vadd.xlane.f32.xlu0 %v3461
    %v3463 = vpop.xlane.xlu0 %3462
    %v3464 = vmul.f32 %v3460, %v3451
    %v3465 = vmul.f32 %v3463, %v3451
    %v3466 = vadd.f32 %v3464, 1e-05
    %v3467 = vadd.f32 %v3465, 1e-05
    %v3468 = vrsqrt.pop %v3466
    %v3469 = vrsqrt.pop %v3467
    %v3470 = vmul.f32 %v3454, %v3468
    %v3471 = vmul.f32 %v3455, %v3469
    %v3472 = vlaneseq
    %v3473 = vshrl.u32 %v3472, 7
    %v3474 = vsub.s32 1, %v3473
    %v3475 = vrot.slane %v136, %v3474
    %v3476 = vmul.f32 %v3470, %v3475
    %v3477 = vmul.f32 %v3471, %v3475
    %v3478 = vlaneseq
    %v3479 = vshrl.u32 %v3478, 7
    %v3480 = vsub.s32 2, %v3479
    %v3481 = vrot.slane %v136, %v3480
    %v3482 = vadd.f32 %v3476, %v3481
    %v3483 = vadd.f32 %v3477, %v3481
    %v3484 = vld [vmem:[%s9] sm:$0xff]
    %v3485 = vld [vmem:[%s9 + $0x8] sm:$0xff]
    %v3486 = vld [vmem:[%s9 + $0x10] sm:$0xff]
    %v3487 = vld [vmem:[%s9 + $0x18] sm:$0xff]
    %v3488 = vld [vmem:[%s10] sm:$0x1]
    %v3490 = vlaneseq
    %v3491 = vshrl.u32 %v3490, 7
    %v3492 = vsub.s32 0, %v3491
    %v3493 = vrot.slane %v3488, %v3492
    %v3496 = vsel %vm146, %v3482, 0
    %v3499 = vsel %vm146, %v3483, 0
    %3501 = vmatprep.subr.mxu0 0.0
    %3502 = vmatpush1.msra.mxu0 0.0
    %3503 = vmatprep.subr.mxu0 0.0
    %3504 = vmatpush1.msra.mxu0 0.0
    %3505 = vmatprep.subr.mxu0 0.0
    %3506 = vmatpush1.msra.mxu0 0.0
    %3507 = vmatprep.subr.mxu0 0.0
    %3508 = vmatpush1.msra.mxu0 0.0
    %3509 = vmatprep.subr.mxu0 0.0
    %3510 = vmatpush1.msra.mxu0 0.0
    %3511 = vmatprep.subr.mxu0 0.0
    %3512 = vmatpush1.msra.mxu0 0.0
    %3513 = vmatprep.subr.mxu0 0.0
    %3514 = vmatpush1.msra.mxu0 0.0
    %3515 = vmatprep.subr.mxu0 0.0
    %3516 = vmatpush1.msra.mxu0 0.0
    %3517 = vmatprep.subr.mxu0 0.0
    %3518 = vmatpush1.msra.mxu0 0.0
    %3519 = vmatprep.subr.mxu0 0.0
    %3520 = vmatpush1.msra.mxu0 0.0
    %3521 = vmatprep.subr.mxu0 0.0
    %3522 = vmatpush1.msra.mxu0 0.0
    %3523 = vmatprep.subr.mxu0 0.0
    %3524 = vmatpush1.msra.mxu0 0.0
    %3525 = vmatprep.subr.mxu0 0.0
    %3526 = vmatpush1.msra.mxu0 %v3487
    %3527 = vmatprep.subr.mxu0 0.0
    %3528 = vmatpush1.msra.mxu0 %v3486
    %3529 = vmatprep.subr.mxu0 0.0
    %3530 = vmatpush1.msra.mxu0 %v3485
    %3531 = vmatprep.subr.mxu0 0.0
    %3532 = vmatpush1.msra.mxu0 %v3484
    %3533 = vmatprep.subr.mxu0 0.0
    %3534 = vmatpush2.msra.mxu0 0.0
    %3535 = vmatprep.subr.mxu0 0.0
    %3536 = vmatpush2.msra.mxu0 0.0
    %3537 = vmatprep.subr.mxu0 0.0
    %3538 = vmatpush2.msra.mxu0 0.0
    %3539 = vmatprep.subr.mxu0 0.0
    %3540 = vmatpush2.msra.mxu0 0.0
    %3541 = vmatprep.subr.mxu0 0.0
    %3542 = vmatpush2.msra.mxu0 0.0
    %3543 = vmatprep.subr.mxu0 0.0
    %3544 = vmatpush2.msra.mxu0 0.0
    %3545 = vmatprep.subr.mxu0 0.0
    %3546 = vmatpush2.msra.mxu0 0.0
    %3547 = vmatprep.subr.mxu0 0.0
    %3548 = vmatpush2.msra.mxu0 0.0
    %3549 = vmatprep.subr.mxu0 0.0
    %3550 = vmatpush2.msra.mxu0 0.0
    %3551 = vmatprep.subr.mxu0 0.0
    %3552 = vmatpush2.msra.mxu0 0.0
    %3553 = vmatprep.subr.mxu0 0.0
    %3554 = vmatpush2.msra.mxu0 0.0
    %3555 = vmatprep.subr.mxu0 0.0
    %3556 = vmatpush2.msra.mxu0 0.0
    %3557 = vmatprep.subr.mxu0 0.0
    %3558 = vmatpush2.msra.mxu0 0.0
    %3559 = vmatprep.subr.mxu0 0.0
    %3560 = vmatpush2.msra.mxu0 0.0
    %3561 = vmatprep.subr.mxu0 0.0
    %3562 = vmatpush2.msra.mxu0 0.0
    %3563 = vmatprep.subr.mxu0 0.0
    %3564 = vmatpush2.msra.mxu0 0.0
    %3565 = vmatprep.mubr.f32.mxu0 0.0
    %3566 = vmatmul.mubr.f32.gmra.mxu0 %v3496
    %v3567 = vpop.f32.mrf.mxu0
    %v3568 = vadd.f32 %v3493, %v3567
    %v3569 = vpop.f32.mrf.mxu0
    %3570 = vmatprep.mubr.f32.mxu0 0.0
    %3571 = vmatmul.mubr.f32.gmra.mxu0 %v3499
    %v3572 = vpop.f32.mrf.mxu0
    %v3573 = vadd.f32 %v3493, %v3572
    %v3574 = vpop.f32.mrf.mxu0
    %3575 = vdwg.mxu0
    %v3576 = vmul.f32 %v3568, %v3568
    %v3577 = vmul.f32 %v3573, %v3573
    %v3578 = vmul.f32 %v3568, %v3576
    %v3579 = vmul.f32 %v3573, %v3577
    %v3580 = vmul.f32 %v3578, 0.044715
    %v3581 = vmul.f32 %v3579, 0.044715
    %v3582 = vadd.f32 %v3568, %v3580
    %v3583 = vadd.f32 %v3573, %v3581
    %v3584 = vmul.f32 %v3582, 0.7978846
    %v3585 = vmul.f32 %v3583, 0.7978846
    %v3586 = vtanh.pop %v3584
    %v3587 = vtanh.pop %v3585
    %v3588 = vadd.f32 %v3586, 1.0
    %v3589 = vadd.f32 %v3587, 1.0
    %v3590 = vmul.f32 %v3588, 0.5
    %v3591 = vmul.f32 %v3589, 0.5
    %v3592 = vmul.f32 %v3568, %v3590
    %v3593 = vmul.f32 %v3573, %v3591
    %v3594 = vld [vmem:[%s11] sm:$0xff]
    %v3595 = vld [vmem:[%s11 + $0x8] sm:$0xff]
    %v3596 = vld [vmem:[%s11 + $0x10] sm:$0xff]
    %v3597 = vld [vmem:[%s11 + $0x18] sm:$0xff]
    %v3598 = vld [vmem:[%s11 + $0x20] sm:$0xff]
    %v3599 = vld [vmem:[%s11 + $0x28] sm:$0xff]
    %v3600 = vld [vmem:[%s11 + $0x30] sm:$0xff]
    %v3601 = vld [vmem:[%s11 + $0x38] sm:$0xff]
    %v3602 = vlaneseq
    %v3603 = vshrl.u32 %v3602, 7
    %v3604 = vsub.s32 3, %v3603
    %v3605 = vrot.slane %v136, %v3604
    %vm3606 = vcmask 523264
    %v3608 = vsel %vm3606, %v3592, 0
    %v3611 = vsel %vm3606, %v3593, 0
    %3613 = vmatprep.subr.mxu0 0.0
    %3614 = vmatpush1.msra.mxu0 0.0
    %3615 = vmatprep.subr.mxu0 0.0
    %3616 = vmatpush1.msra.mxu0 0.0
    %3617 = vmatprep.subr.mxu0 0.0
    %3618 = vmatpush1.msra.mxu0 0.0
    %3619 = vmatprep.subr.mxu0 0.0
    %3620 = vmatpush1.msra.mxu0 0.0
    %3621 = vmatprep.subr.mxu0 0.0
    %3622 = vmatpush1.msra.mxu0 0.0
    %3623 = vmatprep.subr.mxu0 0.0
    %3624 = vmatpush1.msra.mxu0 0.0
    %3625 = vmatprep.subr.mxu0 0.0
    %3626 = vmatpush1.msra.mxu0 0.0
    %3627 = vmatprep.subr.mxu0 0.0
    %3628 = vmatpush1.msra.mxu0 0.0
    %3629 = vmatprep.subr.mxu0 0.0
    %3630 = vmatpush1.msra.mxu0 %v3601
    %3631 = vmatprep.subr.mxu0 0.0
    %3632 = vmatpush1.msra.mxu0 %v3600
    %3633 = vmatprep.subr.mxu0 0.0
    %3634 = vmatpush1.msra.mxu0 %v3599
    %3635 = vmatprep.subr.mxu0 0.0
    %3636 = vmatpush1.msra.mxu0 %v3598
    %3637 = vmatprep.subr.mxu0 0.0
    %3638 = vmatpush1.msra.mxu0 %v3597
    %3639 = vmatprep.subr.mxu0 0.0
    %3640 = vmatpush1.msra.mxu0 %v3596
    %3641 = vmatprep.subr.mxu0 0.0
    %3642 = vmatpush1.msra.mxu0 %v3595
    %3643 = vmatprep.subr.mxu0 0.0
    %3644 = vmatpush1.msra.mxu0 %v3594
    %3645 = vmatprep.subr.mxu0 0.0
    %3646 = vmatpush2.msra.mxu0 0.0
    %3647 = vmatprep.subr.mxu0 0.0
    %3648 = vmatpush2.msra.mxu0 0.0
    %3649 = vmatprep.subr.mxu0 0.0
    %3650 = vmatpush2.msra.mxu0 0.0
    %3651 = vmatprep.subr.mxu0 0.0
    %3652 = vmatpush2.msra.mxu0 0.0
    %3653 = vmatprep.subr.mxu0 0.0
    %3654 = vmatpush2.msra.mxu0 0.0
    %3655 = vmatprep.subr.mxu0 0.0
    %3656 = vmatpush2.msra.mxu0 0.0
    %3657 = vmatprep.subr.mxu0 0.0
    %3658 = vmatpush2.msra.mxu0 0.0
    %3659 = vmatprep.subr.mxu0 0.0
    %3660 = vmatpush2.msra.mxu0 0.0
    %3661 = vmatprep.subr.mxu0 0.0
    %3662 = vmatpush2.msra.mxu0 0.0
    %3663 = vmatprep.subr.mxu0 0.0
    %3664 = vmatpush2.msra.mxu0 0.0
    %3665 = vmatprep.subr.mxu0 0.0
    %3666 = vmatpush2.msra.mxu0 0.0
    %3667 = vmatprep.subr.mxu0 0.0
    %3668 = vmatpush2.msra.mxu0 0.0
    %3669 = vmatprep.subr.mxu0 0.0
    %3670 = vmatpush2.msra.mxu0 0.0
    %3671 = vmatprep.subr.mxu0 0.0
    %3672 = vmatpush2.msra.mxu0 0.0
    %3673 = vmatprep.subr.mxu0 0.0
    %3674 = vmatpush2.msra.mxu0 0.0
    %3675 = vmatprep.subr.mxu0 0.0
    %3676 = vmatpush2.msra.mxu0 0.0
    %3677 = vmatprep.mubr.f32.mxu0 0.0
    %3678 = vmatmul.mubr.f32.gmra.mxu0 %v3608
    %v3679 = vpop.f32.mrf.mxu0
    %v3680 = vadd.f32 %v3605, %v3679
    %v3681 = vpop.f32.mrf.mxu0
    %3682 = vmatprep.mubr.f32.mxu0 0.0
    %3683 = vmatmul.mubr.f32.gmra.mxu0 %v3611
    %v3684 = vpop.f32.mrf.mxu0
    %v3685 = vadd.f32 %v3605, %v3684
    %v3686 = vpop.f32.mrf.mxu0
    %3687 = vdwg.mxu0
    %v3688 = vadd.f32 %v3482, %v3680
    %v3689 = vadd.f32 %v3483, %v3685
    %v3690 = vsel %vm146, %v3688, 0.0
    %3691 = vadd.xlane.f32.xlu0 %v3690
    %v3692 = vpop.xlane.xlu0 %3691
    %v3693 = vsel %vm146, %v3689, 0.0
    %3694 = vadd.xlane.f32.xlu0 %v3693
    %v3695 = vpop.xlane.xlu0 %3694
    %v3696 = vmul.f32 %v3692, %v3451
    %v3697 = vmul.f32 %v3695, %v3451
    %v3698 = vsub.f32 %v3688, %v3696
    %v3699 = vsub.f32 %v3689, %v3697
    %v3700 = vmul.f32 %v3698, %v3698
    %v3701 = vmul.f32 %v3699, %v3699
    %v3702 = vsel %vm146, %v3700, 0.0
    %3703 = vadd.xlane.f32.xlu0 %v3702
    %v3704 = vpop.xlane.xlu0 %3703
    %v3705 = vsel %vm146, %v3701, 0.0
    %3706 = vadd.xlane.f32.xlu0 %v3705
    %v3707 = vpop.xlane.xlu0 %3706
    %v3708 = vmul.f32 %v3704, %v3451
    %v3709 = vmul.f32 %v3707, %v3451
    %v3710 = vadd.f32 %v3708, 1e-05
    %v3711 = vadd.f32 %v3709, 1e-05
    %v3712 = vrsqrt.pop %v3710
    %v3713 = vrsqrt.pop %v3711
    %v3714 = vmul.f32 %v3698, %v3712
    %v3715 = vmul.f32 %v3699, %v3713
    %v3716 = vlaneseq
    %v3717 = vshrl.u32 %v3716, 7
    %v3718 = vsub.s32 4, %v3717
    %v3719 = vrot.slane %v136, %v3718
    %v3720 = vmul.f32 %v3714, %v3719
    %v3721 = vmul.f32 %v3715, %v3719
    %v3722 = vlaneseq
    %v3723 = vshrl.u32 %v3722, 7
    %v3724 = vsub.s32 5, %v3723
    %v3725 = vrot.slane %v136, %v3724
    %v3726 = vadd.f32 %v3720, %v3725
    %v3727 = vadd.f32 %v3721, %v3725
    %s3728 = scalar_lea.vmem %s8, 8
    %v3729 = vld [vmem:[%s3728] sm:$0x3f]
    %s3730 = scalar_lea.vmem %s6, 16
    %v3731 = vld [vmem:[%s3730] sm:$0x7]
    %s3732 = scalar_lea.vmem %s3, 128
    %v3733 = vld [vmem:[%s3732] sm:$0xff]
    %v3734 = vld [vmem:[%s3732 + $0x8] sm:$0xff]
    %v3735 = vld [vmem:[%s3732 + $0x10] sm:$0xff]
    %v3736 = vld [vmem:[%s3732 + $0x18] sm:$0xff]
    %v3737 = vlaneseq
    %v3738 = vshrl.u32 %v3737, 7
    %v3739 = vsub.s32 0, %v3738
    %v3740 = vrot.slane %v3731, %v3739
    %v3742 = vsel %vm146, %v3726, 0
    %3744 = vmatprep.subr.mxu0 0.0
    %3745 = vmatpush1.msra.mxu0 0.0
    %3746 = vmatprep.subr.mxu0 0.0
    %3747 = vmatpush1.msra.mxu0 0.0
    %3748 = vmatprep.subr.mxu0 0.0
    %3749 = vmatpush1.msra.mxu0 0.0
    %3750 = vmatprep.subr.mxu0 0.0
    %3751 = vmatpush1.msra.mxu0 0.0
    %3752 = vmatprep.subr.mxu0 0.0
    %3753 = vmatpush1.msra.mxu0 0.0
    %3754 = vmatprep.subr.mxu0 0.0
    %3755 = vmatpush1.msra.mxu0 0.0
    %3756 = vmatprep.subr.mxu0 0.0
    %3757 = vmatpush1.msra.mxu0 0.0
    %3758 = vmatprep.subr.mxu0 0.0
    %3759 = vmatpush1.msra.mxu0 0.0
    %3760 = vmatprep.subr.mxu0 0.0
    %3761 = vmatpush1.msra.mxu0 0.0
    %3762 = vmatprep.subr.mxu0 0.0
    %3763 = vmatpush1.msra.mxu0 0.0
    %3764 = vmatprep.subr.mxu0 0.0
    %3765 = vmatpush1.msra.mxu0 0.0
    %3766 = vmatprep.subr.mxu0 0.0
    %3767 = vmatpush1.msra.mxu0 0.0
    %3768 = vmatprep.subr.mxu0 0.0
    %3769 = vmatpush1.msra.mxu0 %v3736
    %3770 = vmatprep.subr.mxu0 0.0
    %3771 = vmatpush1.msra.mxu0 %v3735
    %3772 = vmatprep.subr.mxu0 0.0
    %3773 = vmatpush1.msra.mxu0 %v3734
    %3774 = vmatprep.subr.mxu0 0.0
    %3775 = vmatpush1.msra.mxu0 %v3733
    %3776 = vmatprep.subr.mxu0 0.0
    %3777 = vmatpush2.msra.mxu0 0.0
    %3778 = vmatprep.subr.mxu0 0.0
    %3779 = vmatpush2.msra.mxu0 0.0
    %3780 = vmatprep.subr.mxu0 0.0
    %3781 = vmatpush2.msra.mxu0 0.0
    %3782 = vmatprep.subr.mxu0 0.0
    %3783 = vmatpush2.msra.mxu0 0.0
    %3784 = vmatprep.subr.mxu0 0.0
    %3785 = vmatpush2.msra.mxu0 0.0
    %3786 = vmatprep.subr.mxu0 0.0
    %3787 = vmatpush2.msra.mxu0 0.0
    %3788 = vmatprep.subr.mxu0 0.0
    %3789 = vmatpush2.msra.mxu0 0.0
    %3790 = vmatprep.subr.mxu0 0.0
    %3791 = vmatpush2.msra.mxu0 0.0
    %3792 = vmatprep.subr.mxu0 0.0
    %3793 = vmatpush2.msra.mxu0 0.0
    %3794 = vmatprep.subr.mxu0 0.0
    %3795 = vmatpush2.msra.mxu0 0.0
    %3796 = vmatprep.subr.mxu0 0.0
    %3797 = vmatpush2.msra.mxu0 0.0
    %3798 = vmatprep.subr.mxu0 0.0
    %3799 = vmatpush2.msra.mxu0 0.0
    %3800 = vmatprep.subr.mxu0 0.0
    %3801 = vmatpush2.msra.mxu0 0.0
    %3802 = vmatprep.subr.mxu0 0.0
    %3803 = vmatpush2.msra.mxu0 0.0
    %3804 = vmatprep.subr.mxu0 0.0
    %3805 = vmatpush2.msra.mxu0 0.0
    %3806 = vmatprep.subr.mxu0 0.0
    %3807 = vmatpush2.msra.mxu0 0.0
    %3808 = vmatprep.mubr.f32.mxu0 0.0
    %3809 = vmatmul.mubr.f32.gmra.mxu0 %v3742
    %v3810 = vpop.f32.mrf.mxu0
    %v3811 = vadd.f32 %v3740, %v3810
    %v3812 = vpop.f32.mrf.mxu0
    %3813 = vdwg.mxu0
    %s3814 = scalar_lea.vmem %s4, 128
    %v3815 = vld [vmem:[%s3814] sm:$0xff]
    %v3816 = vld [vmem:[%s3814 + $0x8] sm:$0xff]
    %v3817 = vld [vmem:[%s3814 + $0x10] sm:$0xff]
    %v3818 = vld [vmem:[%s3814 + $0x18] sm:$0xff]
    %v3819 = vlaneseq
    %v3820 = vshrl.u32 %v3819, 7
    %v3821 = vsub.s32 1, %v3820
    %v3822 = vrot.slane %v3731, %v3821
    %3823 = vmatprep.subr.mxu0 0.0
    %3824 = vmatpush1.msra.mxu0 0.0
    %3825 = vmatprep.subr.mxu0 0.0
    %3826 = vmatpush1.msra.mxu0 0.0
    %3827 = vmatprep.subr.mxu0 0.0
    %3828 = vmatpush1.msra.mxu0 0.0
    %3829 = vmatprep.subr.mxu0 0.0
    %3830 = vmatpush1.msra.mxu0 0.0
    %3831 = vmatprep.subr.mxu0 0.0
    %3832 = vmatpush1.msra.mxu0 0.0
    %3833 = vmatprep.subr.mxu0 0.0
    %3834 = vmatpush1.msra.mxu0 0.0
    %3835 = vmatprep.subr.mxu0 0.0
    %3836 = vmatpush1.msra.mxu0 0.0
    %3837 = vmatprep.subr.mxu0 0.0
    %3838 = vmatpush1.msra.mxu0 0.0
    %3839 = vmatprep.subr.mxu0 0.0
    %3840 = vmatpush1.msra.mxu0 0.0
    %3841 = vmatprep.subr.mxu0 0.0
    %3842 = vmatpush1.msra.mxu0 0.0
    %3843 = vmatprep.subr.mxu0 0.0
    %3844 = vmatpush1.msra.mxu0 0.0
    %3845 = vmatprep.subr.mxu0 0.0
    %3846 = vmatpush1.msra.mxu0 0.0
    %3847 = vmatprep.subr.mxu0 0.0
    %3848 = vmatpush1.msra.mxu0 %v3818
    %3849 = vmatprep.subr.mxu0 0.0
    %3850 = vmatpush1.msra.mxu0 %v3817
    %3851 = vmatprep.subr.mxu0 0.0
    %3852 = vmatpush1.msra.mxu0 %v3816
    %3853 = vmatprep.subr.mxu0 0.0
    %3854 = vmatpush1.msra.mxu0 %v3815
    %3855 = vmatprep.subr.mxu0 0.0
    %3856 = vmatpush2.msra.mxu0 0.0
    %3857 = vmatprep.subr.mxu0 0.0
    %3858 = vmatpush2.msra.mxu0 0.0
    %3859 = vmatprep.subr.mxu0 0.0
    %3860 = vmatpush2.msra.mxu0 0.0
    %3861 = vmatprep.subr.mxu0 0.0
    %3862 = vmatpush2.msra.mxu0 0.0
    %3863 = vmatprep.subr.mxu0 0.0
    %3864 = vmatpush2.msra.mxu0 0.0
    %3865 = vmatprep.subr.mxu0 0.0
    %3866 = vmatpush2.msra.mxu0 0.0
    %3867 = vmatprep.subr.mxu0 0.0
    %3868 = vmatpush2.msra.mxu0 0.0
    %3869 = vmatprep.subr.mxu0 0.0
    %3870 = vmatpush2.msra.mxu0 0.0
    %3871 = vmatprep.subr.mxu0 0.0
    %3872 = vmatpush2.msra.mxu0 0.0
    %3873 = vmatprep.subr.mxu0 0.0
    %3874 = vmatpush2.msra.mxu0 0.0
    %3875 = vmatprep.subr.mxu0 0.0
    %3876 = vmatpush2.msra.mxu0 0.0
    %3877 = vmatprep.subr.mxu0 0.0
    %3878 = vmatpush2.msra.mxu0 0.0
    %3879 = vmatprep.subr.mxu0 0.0
    %3880 = vmatpush2.msra.mxu0 0.0
    %3881 = vmatprep.subr.mxu0 0.0
    %3882 = vmatpush2.msra.mxu0 0.0
    %3883 = vmatprep.subr.mxu0 0.0
    %3884 = vmatpush2.msra.mxu0 0.0
    %3885 = vmatprep.subr.mxu0 0.0
    %3886 = vmatpush2.msra.mxu0 0.0
    %3887 = vmatprep.mubr.f32.mxu0 0.0
    %3888 = vmatmul.mubr.f32.gmra.mxu0 %v3742
    %v3889 = vpop.f32.mrf.mxu0
    %v3890 = vadd.f32 %v3822, %v3889
    %v3891 = vpop.f32.mrf.mxu0
    %3892 = vdwg.mxu0
    %s3893 = scalar_lea.vmem %s5, 128
    %v3894 = vld [vmem:[%s3893] sm:$0xff]
    %v3895 = vld [vmem:[%s3893 + $0x8] sm:$0xff]
    %v3896 = vld [vmem:[%s3893 + $0x10] sm:$0xff]
    %v3897 = vld [vmem:[%s3893 + $0x18] sm:$0xff]
    %v3898 = vlaneseq
    %v3899 = vshrl.u32 %v3898, 7
    %v3900 = vsub.s32 2, %v3899
    %v3901 = vrot.slane %v3731, %v3900
    %3902 = vmatprep.subr.mxu0 0.0
    %3903 = vmatpush1.msra.mxu0 0.0
    %3904 = vmatprep.subr.mxu0 0.0
    %3905 = vmatpush1.msra.mxu0 0.0
    %3906 = vmatprep.subr.mxu0 0.0
    %3907 = vmatpush1.msra.mxu0 0.0
    %3908 = vmatprep.subr.mxu0 0.0
    %3909 = vmatpush1.msra.mxu0 0.0
    %3910 = vmatprep.subr.mxu0 0.0
    %3911 = vmatpush1.msra.mxu0 0.0
    %3912 = vmatprep.subr.mxu0 0.0
    %3913 = vmatpush1.msra.mxu0 0.0
    %3914 = vmatprep.subr.mxu0 0.0
    %3915 = vmatpush1.msra.mxu0 0.0
    %3916 = vmatprep.subr.mxu0 0.0
    %3917 = vmatpush1.msra.mxu0 0.0
    %3918 = vmatprep.subr.mxu0 0.0
    %3919 = vmatpush1.msra.mxu0 0.0
    %3920 = vmatprep.subr.mxu0 0.0
    %3921 = vmatpush1.msra.mxu0 0.0
    %3922 = vmatprep.subr.mxu0 0.0
    %3923 = vmatpush1.msra.mxu0 0.0
    %3924 = vmatprep.subr.mxu0 0.0
    %3925 = vmatpush1.msra.mxu0 0.0
    %3926 = vmatprep.subr.mxu0 0.0
    %3927 = vmatpush1.msra.mxu0 %v3897
    %3928 = vmatprep.subr.mxu0 0.0
    %3929 = vmatpush1.msra.mxu0 %v3896
    %3930 = vmatprep.subr.mxu0 0.0
    %3931 = vmatpush1.msra.mxu0 %v3895
    %3932 = vmatprep.subr.mxu0 0.0
    %3933 = vmatpush1.msra.mxu0 %v3894
    %3934 = vmatprep.subr.mxu0 0.0
    %3935 = vmatpush2.msra.mxu0 0.0
    %3936 = vmatprep.subr.mxu0 0.0
    %3937 = vmatpush2.msra.mxu0 0.0
    %3938 = vmatprep.subr.mxu0 0.0
    %3939 = vmatpush2.msra.mxu0 0.0
    %3940 = vmatprep.subr.mxu0 0.0
    %3941 = vmatpush2.msra.mxu0 0.0
    %3942 = vmatprep.subr.mxu0 0.0
    %3943 = vmatpush2.msra.mxu0 0.0
    %3944 = vmatprep.subr.mxu0 0.0
    %3945 = vmatpush2.msra.mxu0 0.0
    %3946 = vmatprep.subr.mxu0 0.0
    %3947 = vmatpush2.msra.mxu0 0.0
    %3948 = vmatprep.subr.mxu0 0.0
    %3949 = vmatpush2.msra.mxu0 0.0
    %3950 = vmatprep.subr.mxu0 0.0
    %3951 = vmatpush2.msra.mxu0 0.0
    %3952 = vmatprep.subr.mxu0 0.0
    %3953 = vmatpush2.msra.mxu0 0.0
    %3954 = vmatprep.subr.mxu0 0.0
    %3955 = vmatpush2.msra.mxu0 0.0
    %3956 = vmatprep.subr.mxu0 0.0
    %3957 = vmatpush2.msra.mxu0 0.0
    %3958 = vmatprep.subr.mxu0 0.0
    %3959 = vmatpush2.msra.mxu0 0.0
    %3960 = vmatprep.subr.mxu0 0.0
    %3961 = vmatpush2.msra.mxu0 0.0
    %3962 = vmatprep.subr.mxu0 0.0
    %3963 = vmatpush2.msra.mxu0 0.0
    %3964 = vmatprep.subr.mxu0 0.0
    %3965 = vmatpush2.msra.mxu0 0.0
    %3966 = vmatprep.mubr.f32.mxu0 0.0
    %3967 = vmatmul.mubr.f32.gmra.mxu0 %v3742
    %v3968 = vpop.f32.mrf.mxu0
    %v3969 = vadd.f32 %v3901, %v3968
    %v3970 = vpop.f32.mrf.mxu0
    %3971 = vdwg.mxu0
    %v3973 = vsel %vm376, %v3811, 0
    %v3976 = vsel %vm376, %v3890, 0
    %3978 = vmatprep.subr.mxu0 0.0
    %3979 = vmatpush1.xpose.msra.mxu0 0.0
    %3980 = vmatprep.subr.mxu0 0.0
    %3981 = vmatpush1.xpose.msra.mxu0 0.0
    %3982 = vmatprep.subr.mxu0 0.0
    %3983 = vmatpush1.xpose.msra.mxu0 0.0
    %3984 = vmatprep.subr.mxu0 0.0
    %3985 = vmatpush1.xpose.msra.mxu0 0.0
    %3986 = vmatprep.subr.mxu0 0.0
    %3987 = vmatpush1.xpose.msra.mxu0 0.0
    %3988 = vmatprep.subr.mxu0 0.0
    %3989 = vmatpush1.xpose.msra.mxu0 0.0
    %3990 = vmatprep.subr.mxu0 0.0
    %3991 = vmatpush1.xpose.msra.mxu0 0.0
    %3992 = vmatprep.subr.mxu0 0.0
    %3993 = vmatpush1.xpose.msra.mxu0 0.0
    %3994 = vmatprep.subr.mxu0 0.0
    %3995 = vmatpush1.xpose.msra.mxu0 0.0
    %3996 = vmatprep.subr.mxu0 0.0
    %3997 = vmatpush1.xpose.msra.mxu0 0.0
    %3998 = vmatprep.subr.mxu0 0.0
    %3999 = vmatpush1.xpose.msra.mxu0 0.0
    %4000 = vmatprep.subr.mxu0 0.0
    %4001 = vmatpush1.xpose.msra.mxu0 0.0
    %4002 = vmatprep.subr.mxu0 0.0
    %4003 = vmatpush1.xpose.msra.mxu0 0.0
    %4004 = vmatprep.subr.mxu0 0.0
    %4005 = vmatpush1.xpose.msra.mxu0 0.0
    %4006 = vmatprep.subr.mxu0 0.0
    %4007 = vmatpush1.xpose.msra.mxu0 0.0
    %4008 = vmatprep.subr.mxu0 0.0
    %4009 = vmatpush1.xpose.msra.mxu0 %v3976
    %4010 = vmatprep.subr.mxu0 0.0
    %4011 = vmatpush2.xpose.msra.mxu0 0.0
    %4012 = vmatprep.subr.mxu0 0.0
    %4013 = vmatpush2.xpose.msra.mxu0 0.0
    %4014 = vmatprep.subr.mxu0 0.0
    %4015 = vmatpush2.xpose.msra.mxu0 0.0
    %4016 = vmatprep.subr.mxu0 0.0
    %4017 = vmatpush2.xpose.msra.mxu0 0.0
    %4018 = vmatprep.subr.mxu0 0.0
    %4019 = vmatpush2.xpose.msra.mxu0 0.0
    %4020 = vmatprep.subr.mxu0 0.0
    %4021 = vmatpush2.xpose.msra.mxu0 0.0
    %4022 = vmatprep.subr.mxu0 0.0
    %4023 = vmatpush2.xpose.msra.mxu0 0.0
    %4024 = vmatprep.subr.mxu0 0.0
    %4025 = vmatpush2.xpose.msra.mxu0 0.0
    %4026 = vmatprep.subr.mxu0 0.0
    %4027 = vmatpush2.xpose.msra.mxu0 0.0
    %4028 = vmatprep.subr.mxu0 0.0
    %4029 = vmatpush2.xpose.msra.mxu0 0.0
    %4030 = vmatprep.subr.mxu0 0.0
    %4031 = vmatpush2.xpose.msra.mxu0 0.0
    %4032 = vmatprep.subr.mxu0 0.0
    %4033 = vmatpush2.xpose.msra.mxu0 0.0
    %4034 = vmatprep.subr.mxu0 0.0
    %4035 = vmatpush2.xpose.msra.mxu0 0.0
    %4036 = vmatprep.subr.mxu0 0.0
    %4037 = vmatpush2.xpose.msra.mxu0 0.0
    %4038 = vmatprep.subr.mxu0 0.0
    %4039 = vmatpush2.xpose.msra.mxu0 0.0
    %4040 = vmatprep.subr.mxu0 0.0
    %4041 = vmatpush2.xpose.msra.mxu0 0.0
    %4042 = vmatprep.mubr.f32.mxu0 0.0
    %4043 = vmatmul.mubr.f32.gmra.mxu0 %v3973
    %v4044 = vpop.f32.mrf.mxu0
    %v4045 = vadd.f32 0.0, %v4044
    %v4046 = vpop.f32.mrf.mxu0
    %4047 = vdwg.mxu0
    %v4048 = vsel %vm376, %v4045, -inf
    %4049 = vmax.xlane.f32.xlu0 %v4048
    %v4050 = vpop.xlane.xlu0 %4049
    %v4051 = vsub.f32 %v4045, %v4050
    %v4052 = vmul.f32 %v4051, 1.442695
    %v4053 = vpow.pop %v4052
    %v4054 = vsel %vm376, %v4053, 0.0
    %4055 = vadd.xlane.f32.xlu0 %v4054
    %v4056 = vpop.xlane.xlu0 %4055
    %v4057 = vrcp.pop %v4056
    %v4058 = vmul.f32 %v4053, %v4057
    %v4060 = vsel %vm376, %v4058, 0
    %4062 = vmatprep.subr.mxu0 0.0
    %4063 = vmatpush1.msra.mxu0 0.0
    %4064 = vmatprep.subr.mxu0 0.0
    %4065 = vmatpush1.msra.mxu0 0.0
    %4066 = vmatprep.subr.mxu0 0.0
    %4067 = vmatpush1.msra.mxu0 0.0
    %4068 = vmatprep.subr.mxu0 0.0
    %4069 = vmatpush1.msra.mxu0 0.0
    %4070 = vmatprep.subr.mxu0 0.0
    %4071 = vmatpush1.msra.mxu0 0.0
    %4072 = vmatprep.subr.mxu0 0.0
    %4073 = vmatpush1.msra.mxu0 0.0
    %4074 = vmatprep.subr.mxu0 0.0
    %4075 = vmatpush1.msra.mxu0 0.0
    %4076 = vmatprep.subr.mxu0 0.0
    %4077 = vmatpush1.msra.mxu0 0.0
    %4078 = vmatprep.subr.mxu0 0.0
    %4079 = vmatpush1.msra.mxu0 0.0
    %4080 = vmatprep.subr.mxu0 0.0
    %4081 = vmatpush1.msra.mxu0 0.0
    %4082 = vmatprep.subr.mxu0 0.0
    %4083 = vmatpush1.msra.mxu0 0.0
    %4084 = vmatprep.subr.mxu0 0.0
    %4085 = vmatpush1.msra.mxu0 0.0
    %4086 = vmatprep.subr.mxu0 0.0
    %4087 = vmatpush1.msra.mxu0 0.0
    %4088 = vmatprep.subr.mxu0 0.0
    %4089 = vmatpush1.msra.mxu0 0.0
    %4090 = vmatprep.subr.mxu0 0.0
    %4091 = vmatpush1.msra.mxu0 0.0
    %4092 = vmatprep.subr.mxu0 0.0
    %4093 = vmatpush1.msra.mxu0 %v3969
    %4094 = vmatprep.subr.mxu0 0.0
    %4095 = vmatpush2.msra.mxu0 0.0
    %4096 = vmatprep.subr.mxu0 0.0
    %4097 = vmatpush2.msra.mxu0 0.0
    %4098 = vmatprep.subr.mxu0 0.0
    %4099 = vmatpush2.msra.mxu0 0.0
    %4100 = vmatprep.subr.mxu0 0.0
    %4101 = vmatpush2.msra.mxu0 0.0
    %4102 = vmatprep.subr.mxu0 0.0
    %4103 = vmatpush2.msra.mxu0 0.0
    %4104 = vmatprep.subr.mxu0 0.0
    %4105 = vmatpush2.msra.mxu0 0.0
    %4106 = vmatprep.subr.mxu0 0.0
    %4107 = vmatpush2.msra.mxu0 0.0
    %4108 = vmatprep.subr.mxu0 0.0
    %4109 = vmatpush2.msra.mxu0 0.0
    %4110 = vmatprep.subr.mxu0 0.0
    %4111 = vmatpush2.msra.mxu0 0.0
    %4112 = vmatprep.subr.mxu0 0.0
    %4113 = vmatpush2.msra.mxu0 0.0
    %4114 = vmatprep.subr.mxu0 0.0
    %4115 = vmatpush2.msra.mxu0 0.0
    %4116 = vmatprep.subr.mxu0 0.0
    %4117 = vmatpush2.msra.mxu0 0.0
    %4118 = vmatprep.subr.mxu0 0.0
    %4119 = vmatpush2.msra.mxu0 0.0
    %4120 = vmatprep.subr.mxu0 0.0
    %4121 = vmatpush2.msra.mxu0 0.0
    %4122 = vmatprep.subr.mxu0 0.0
    %4123 = vmatpush2.msra.mxu0 0.0
    %4124 = vmatprep.subr.mxu0 0.0
    %4125 = vmatpush2.msra.mxu0 0.0
    %4126 = vmatprep.mubr.f32.mxu0 0.0
    %4127 = vmatmul.mubr.f32.gmra.mxu0 %v4060
    %v4128 = vpop.f32.mrf.mxu0
    %v4129 = vadd.f32 0.0, %v4128
    %v4130 = vpop.f32.mrf.mxu0
    %4131 = vdwg.mxu0
    %4132 = vst.msk [vmem:[#allocation2] sm:$0xff] %vm376, %v4129
    %s4133 = scalar_lea.vmem %s6, 20
    %v4134 = vld [vmem:[%s4133] sm:$0x7]
    %s4135 = scalar_lea.vmem %s3, 160
    %v4136 = vld [vmem:[%s4135] sm:$0xff]
    %v4137 = vld [vmem:[%s4135 + $0x8] sm:$0xff]
    %v4138 = vld [vmem:[%s4135 + $0x10] sm:$0xff]
    %v4139 = vld [vmem:[%s4135 + $0x18] sm:$0xff]
    %v4140 = vlaneseq
    %v4141 = vshrl.u32 %v4140, 7
    %v4142 = vsub.s32 0, %v4141
    %v4143 = vrot.slane %v4134, %v4142
    %4144 = vmatprep.subr.mxu0 0.0
    %4145 = vmatpush1.msra.mxu0 0.0
    %4146 = vmatprep.subr.mxu0 0.0
    %4147 = vmatpush1.msra.mxu0 0.0
    %4148 = vmatprep.subr.mxu0 0.0
    %4149 = vmatpush1.msra.mxu0 0.0
    %4150 = vmatprep.subr.mxu0 0.0
    %4151 = vmatpush1.msra.mxu0 0.0
    %4152 = vmatprep.subr.mxu0 0.0
    %4153 = vmatpush1.msra.mxu0 0.0
    %4154 = vmatprep.subr.mxu0 0.0
    %4155 = vmatpush1.msra.mxu0 0.0
    %4156 = vmatprep.subr.mxu0 0.0
    %4157 = vmatpush1.msra.mxu0 0.0
    %4158 = vmatprep.subr.mxu0 0.0
    %4159 = vmatpush1.msra.mxu0 0.0
    %4160 = vmatprep.subr.mxu0 0.0
    %4161 = vmatpush1.msra.mxu0 0.0
    %4162 = vmatprep.subr.mxu0 0.0
    %4163 = vmatpush1.msra.mxu0 0.0
    %4164 = vmatprep.subr.mxu0 0.0
    %4165 = vmatpush1.msra.mxu0 0.0
    %4166 = vmatprep.subr.mxu0 0.0
    %4167 = vmatpush1.msra.mxu0 0.0
    %4168 = vmatprep.subr.mxu0 0.0
    %4169 = vmatpush1.msra.mxu0 %v4139
    %4170 = vmatprep.subr.mxu0 0.0
    %4171 = vmatpush1.msra.mxu0 %v4138
    %4172 = vmatprep.subr.mxu0 0.0
    %4173 = vmatpush1.msra.mxu0 %v4137
    %4174 = vmatprep.subr.mxu0 0.0
    %4175 = vmatpush1.msra.mxu0 %v4136
    %4176 = vmatprep.subr.mxu0 0.0
    %4177 = vmatpush2.msra.mxu0 0.0
    %4178 = vmatprep.subr.mxu0 0.0
    %4179 = vmatpush2.msra.mxu0 0.0
    %4180 = vmatprep.subr.mxu0 0.0
    %4181 = vmatpush2.msra.mxu0 0.0
    %4182 = vmatprep.subr.mxu0 0.0
    %4183 = vmatpush2.msra.mxu0 0.0
    %4184 = vmatprep.subr.mxu0 0.0
    %4185 = vmatpush2.msra.mxu0 0.0
    %4186 = vmatprep.subr.mxu0 0.0
    %4187 = vmatpush2.msra.mxu0 0.0
    %4188 = vmatprep.subr.mxu0 0.0
    %4189 = vmatpush2.msra.mxu0 0.0
    %4190 = vmatprep.subr.mxu0 0.0
    %4191 = vmatpush2.msra.mxu0 0.0
    %4192 = vmatprep.subr.mxu0 0.0
    %4193 = vmatpush2.msra.mxu0 0.0
    %4194 = vmatprep.subr.mxu0 0.0
    %4195 = vmatpush2.msra.mxu0 0.0
    %4196 = vmatprep.subr.mxu0 0.0
    %4197 = vmatpush2.msra.mxu0 0.0
    %4198 = vmatprep.subr.mxu0 0.0
    %4199 = vmatpush2.msra.mxu0 0.0
    %4200 = vmatprep.subr.mxu0 0.0
    %4201 = vmatpush2.msra.mxu0 0.0
    %4202 = vmatprep.subr.mxu0 0.0
    %4203 = vmatpush2.msra.mxu0 0.0
    %4204 = vmatprep.subr.mxu0 0.0
    %4205 = vmatpush2.msra.mxu0 0.0
    %4206 = vmatprep.subr.mxu0 0.0
    %4207 = vmatpush2.msra.mxu0 0.0
    %4208 = vmatprep.mubr.f32.mxu0 0.0
    %4209 = vmatmul.mubr.f32.gmra.mxu0 %v3742
    %v4210 = vpop.f32.mrf.mxu0
    %v4211 = vadd.f32 %v4143, %v4210
    %v4212 = vpop.f32.mrf.mxu0
    %4213 = vdwg.mxu0
    %s4214 = scalar_lea.vmem %s4, 160
    %v4215 = vld [vmem:[%s4214] sm:$0xff]
    %v4216 = vld [vmem:[%s4214 + $0x8] sm:$0xff]
    %v4217 = vld [vmem:[%s4214 + $0x10] sm:$0xff]
    %v4218 = vld [vmem:[%s4214 + $0x18] sm:$0xff]
    %v4219 = vlaneseq
    %v4220 = vshrl.u32 %v4219, 7
    %v4221 = vsub.s32 1, %v4220
    %v4222 = vrot.slane %v4134, %v4221
    %4223 = vmatprep.subr.mxu0 0.0
    %4224 = vmatpush1.msra.mxu0 0.0
    %4225 = vmatprep.subr.mxu0 0.0
    %4226 = vmatpush1.msra.mxu0 0.0
    %4227 = vmatprep.subr.mxu0 0.0
    %4228 = vmatpush1.msra.mxu0 0.0
    %4229 = vmatprep.subr.mxu0 0.0
    %4230 = vmatpush1.msra.mxu0 0.0
    %4231 = vmatprep.subr.mxu0 0.0
    %4232 = vmatpush1.msra.mxu0 0.0
    %4233 = vmatprep.subr.mxu0 0.0
    %4234 = vmatpush1.msra.mxu0 0.0
    %4235 = vmatprep.subr.mxu0 0.0
    %4236 = vmatpush1.msra.mxu0 0.0
    %4237 = vmatprep.subr.mxu0 0.0
    %4238 = vmatpush1.msra.mxu0 0.0
    %4239 = vmatprep.subr.mxu0 0.0
    %4240 = vmatpush1.msra.mxu0 0.0
    %4241 = vmatprep.subr.mxu0 0.0
    %4242 = vmatpush1.msra.mxu0 0.0
    %4243 = vmatprep.subr.mxu0 0.0
    %4244 = vmatpush1.msra.mxu0 0.0
    %4245 = vmatprep.subr.mxu0 0.0
    %4246 = vmatpush1.msra.mxu0 0.0
    %4247 = vmatprep.subr.mxu0 0.0
    %4248 = vmatpush1.msra.mxu0 %v4218
    %4249 = vmatprep.subr.mxu0 0.0
    %4250 = vmatpush1.msra.mxu0 %v4217
    %4251 = vmatprep.subr.mxu0 0.0
    %4252 = vmatpush1.msra.mxu0 %v4216
    %4253 = vmatprep.subr.mxu0 0.0
    %4254 = vmatpush1.msra.mxu0 %v4215
    %4255 = vmatprep.subr.mxu0 0.0
    %4256 = vmatpush2.msra.mxu0 0.0
    %4257 = vmatprep.subr.mxu0 0.0
    %4258 = vmatpush2.msra.mxu0 0.0
    %4259 = vmatprep.subr.mxu0 0.0
    %4260 = vmatpush2.msra.mxu0 0.0
    %4261 = vmatprep.subr.mxu0 0.0
    %4262 = vmatpush2.msra.mxu0 0.0
    %4263 = vmatprep.subr.mxu0 0.0
    %4264 = vmatpush2.msra.mxu0 0.0
    %4265 = vmatprep.subr.mxu0 0.0
    %4266 = vmatpush2.msra.mxu0 0.0
    %4267 = vmatprep.subr.mxu0 0.0
    %4268 = vmatpush2.msra.mxu0 0.0
    %4269 = vmatprep.subr.mxu0 0.0
    %4270 = vmatpush2.msra.mxu0 0.0
    %4271 = vmatprep.subr.mxu0 0.0
    %4272 = vmatpush2.msra.mxu0 0.0
    %4273 = vmatprep.subr.mxu0 0.0
    %4274 = vmatpush2.msra.mxu0 0.0
    %4275 = vmatprep.subr.mxu0 0.0
    %4276 = vmatpush2.msra.mxu0 0.0
    %4277 = vmatprep.subr.mxu0 0.0
    %4278 = vmatpush2.msra.mxu0 0.0
    %4279 = vmatprep.subr.mxu0 0.0
    %4280 = vmatpush2.msra.mxu0 0.0
    %4281 = vmatprep.subr.mxu0 0.0
    %4282 = vmatpush2.msra.mxu0 0.0
    %4283 = vmatprep.subr.mxu0 0.0
    %4284 = vmatpush2.msra.mxu0 0.0
    %4285 = vmatprep.subr.mxu0 0.0
    %4286 = vmatpush2.msra.mxu0 0.0
    %4287 = vmatprep.mubr.f32.mxu0 0.0
    %4288 = vmatmul.mubr.f32.gmra.mxu0 %v3742
    %v4289 = vpop.f32.mrf.mxu0
    %v4290 = vadd.f32 %v4222, %v4289
    %v4291 = vpop.f32.mrf.mxu0
    %4292 = vdwg.mxu0
    %s4293 = scalar_lea.vmem %s5, 160
    %v4294 = vld [vmem:[%s4293] sm:$0xff]
    %v4295 = vld [vmem:[%s4293 + $0x8] sm:$0xff]
    %v4296 = vld [vmem:[%s4293 + $0x10] sm:$0xff]
    %v4297 = vld [vmem:[%s4293 + $0x18] sm:$0xff]
    %v4298 = vlaneseq
    %v4299 = vshrl.u32 %v4298, 7
    %v4300 = vsub.s32 2, %v4299
    %v4301 = vrot.slane %v4134, %v4300
    %4302 = vmatprep.subr.mxu0 0.0
    %4303 = vmatpush1.msra.mxu0 0.0
    %4304 = vmatprep.subr.mxu0 0.0
    %4305 = vmatpush1.msra.mxu0 0.0
    %4306 = vmatprep.subr.mxu0 0.0
    %4307 = vmatpush1.msra.mxu0 0.0
    %4308 = vmatprep.subr.mxu0 0.0
    %4309 = vmatpush1.msra.mxu0 0.0
    %4310 = vmatprep.subr.mxu0 0.0
    %4311 = vmatpush1.msra.mxu0 0.0
    %4312 = vmatprep.subr.mxu0 0.0
    %4313 = vmatpush1.msra.mxu0 0.0
    %4314 = vmatprep.subr.mxu0 0.0
    %4315 = vmatpush1.msra.mxu0 0.0
    %4316 = vmatprep.subr.mxu0 0.0
    %4317 = vmatpush1.msra.mxu0 0.0
    %4318 = vmatprep.subr.mxu0 0.0
    %4319 = vmatpush1.msra.mxu0 0.0
    %4320 = vmatprep.subr.mxu0 0.0
    %4321 = vmatpush1.msra.mxu0 0.0
    %4322 = vmatprep.subr.mxu0 0.0
    %4323 = vmatpush1.msra.mxu0 0.0
    %4324 = vmatprep.subr.mxu0 0.0
    %4325 = vmatpush1.msra.mxu0 0.0
    %4326 = vmatprep.subr.mxu0 0.0
    %4327 = vmatpush1.msra.mxu0 %v4297
    %4328 = vmatprep.subr.mxu0 0.0
    %4329 = vmatpush1.msra.mxu0 %v4296
    %4330 = vmatprep.subr.mxu0 0.0
    %4331 = vmatpush1.msra.mxu0 %v4295
    %4332 = vmatprep.subr.mxu0 0.0
    %4333 = vmatpush1.msra.mxu0 %v4294
    %4334 = vmatprep.subr.mxu0 0.0
    %4335 = vmatpush2.msra.mxu0 0.0
    %4336 = vmatprep.subr.mxu0 0.0
    %4337 = vmatpush2.msra.mxu0 0.0
    %4338 = vmatprep.subr.mxu0 0.0
    %4339 = vmatpush2.msra.mxu0 0.0
    %4340 = vmatprep.subr.mxu0 0.0
    %4341 = vmatpush2.msra.mxu0 0.0
    %4342 = vmatprep.subr.mxu0 0.0
    %4343 = vmatpush2.msra.mxu0 0.0
    %4344 = vmatprep.subr.mxu0 0.0
    %4345 = vmatpush2.msra.mxu0 0.0
    %4346 = vmatprep.subr.mxu0 0.0
    %4347 = vmatpush2.msra.mxu0 0.0
    %4348 = vmatprep.subr.mxu0 0.0
    %4349 = vmatpush2.msra.mxu0 0.0
    %4350 = vmatprep.subr.mxu0 0.0
    %4351 = vmatpush2.msra.mxu0 0.0
    %4352 = vmatprep.subr.mxu0 0.0
    %4353 = vmatpush2.msra.mxu0 0.0
    %4354 = vmatprep.subr.mxu0 0.0
    %4355 = vmatpush2.msra.mxu0 0.0
    %4356 = vmatprep.subr.mxu0 0.0
    %4357 = vmatpush2.msra.mxu0 0.0
    %4358 = vmatprep.subr.mxu0 0.0
    %4359 = vmatpush2.msra.mxu0 0.0
    %4360 = vmatprep.subr.mxu0 0.0
    %4361 = vmatpush2.msra.mxu0 0.0
    %4362 = vmatprep.subr.mxu0 0.0
    %4363 = vmatpush2.msra.mxu0 0.0
    %4364 = vmatprep.subr.mxu0 0.0
    %4365 = vmatpush2.msra.mxu0 0.0
    %4366 = vmatprep.mubr.f32.mxu0 0.0
    %4367 = vmatmul.mubr.f32.gmra.mxu0 %v3742
    %v4368 = vpop.f32.mrf.mxu0
    %v4369 = vadd.f32 %v4301, %v4368
    %v4370 = vpop.f32.mrf.mxu0
    %4371 = vdwg.mxu0
    %v4373 = vsel %vm376, %v4211, 0
    %v4376 = vsel %vm376, %v4290, 0
    %4378 = vmatprep.subr.mxu0 0.0
    %4379 = vmatpush1.xpose.msra.mxu0 0.0
    %4380 = vmatprep.subr.mxu0 0.0
    %4381 = vmatpush1.xpose.msra.mxu0 0.0
    %4382 = vmatprep.subr.mxu0 0.0
    %4383 = vmatpush1.xpose.msra.mxu0 0.0
    %4384 = vmatprep.subr.mxu0 0.0
    %4385 = vmatpush1.xpose.msra.mxu0 0.0
    %4386 = vmatprep.subr.mxu0 0.0
    %4387 = vmatpush1.xpose.msra.mxu0 0.0
    %4388 = vmatprep.subr.mxu0 0.0
    %4389 = vmatpush1.xpose.msra.mxu0 0.0
    %4390 = vmatprep.subr.mxu0 0.0
    %4391 = vmatpush1.xpose.msra.mxu0 0.0
    %4392 = vmatprep.subr.mxu0 0.0
    %4393 = vmatpush1.xpose.msra.mxu0 0.0
    %4394 = vmatprep.subr.mxu0 0.0
    %4395 = vmatpush1.xpose.msra.mxu0 0.0
    %4396 = vmatprep.subr.mxu0 0.0
    %4397 = vmatpush1.xpose.msra.mxu0 0.0
    %4398 = vmatprep.subr.mxu0 0.0
    %4399 = vmatpush1.xpose.msra.mxu0 0.0
    %4400 = vmatprep.subr.mxu0 0.0
    %4401 = vmatpush1.xpose.msra.mxu0 0.0
    %4402 = vmatprep.subr.mxu0 0.0
    %4403 = vmatpush1.xpose.msra.mxu0 0.0
    %4404 = vmatprep.subr.mxu0 0.0
    %4405 = vmatpush1.xpose.msra.mxu0 0.0
    %4406 = vmatprep.subr.mxu0 0.0
    %4407 = vmatpush1.xpose.msra.mxu0 0.0
    %4408 = vmatprep.subr.mxu0 0.0
    %4409 = vmatpush1.xpose.msra.mxu0 %v4376
    %4410 = vmatprep.subr.mxu0 0.0
    %4411 = vmatpush2.xpose.msra.mxu0 0.0
    %4412 = vmatprep.subr.mxu0 0.0
    %4413 = vmatpush2.xpose.msra.mxu0 0.0
    %4414 = vmatprep.subr.mxu0 0.0
    %4415 = vmatpush2.xpose.msra.mxu0 0.0
    %4416 = vmatprep.subr.mxu0 0.0
    %4417 = vmatpush2.xpose.msra.mxu0 0.0
    %4418 = vmatprep.subr.mxu0 0.0
    %4419 = vmatpush2.xpose.msra.mxu0 0.0
    %4420 = vmatprep.subr.mxu0 0.0
    %4421 = vmatpush2.xpose.msra.mxu0 0.0
    %4422 = vmatprep.subr.mxu0 0.0
    %4423 = vmatpush2.xpose.msra.mxu0 0.0
    %4424 = vmatprep.subr.mxu0 0.0
    %4425 = vmatpush2.xpose.msra.mxu0 0.0
    %4426 = vmatprep.subr.mxu0 0.0
    %4427 = vmatpush2.xpose.msra.mxu0 0.0
    %4428 = vmatprep.subr.mxu0 0.0
    %4429 = vmatpush2.xpose.msra.mxu0 0.0
    %4430 = vmatprep.subr.mxu0 0.0
    %4431 = vmatpush2.xpose.msra.mxu0 0.0
    %4432 = vmatprep.subr.mxu0 0.0
    %4433 = vmatpush2.xpose.msra.mxu0 0.0
    %4434 = vmatprep.subr.mxu0 0.0
    %4435 = vmatpush2.xpose.msra.mxu0 0.0
    %4436 = vmatprep.subr.mxu0 0.0
    %4437 = vmatpush2.xpose.msra.mxu0 0.0
    %4438 = vmatprep.subr.mxu0 0.0
    %4439 = vmatpush2.xpose.msra.mxu0 0.0
    %4440 = vmatprep.subr.mxu0 0.0
    %4441 = vmatpush2.xpose.msra.mxu0 0.0
    %4442 = vmatprep.mubr.f32.mxu0 0.0
    %4443 = vmatmul.mubr.f32.gmra.mxu0 %v4373
    %v4444 = vpop.f32.mrf.mxu0
    %v4445 = vadd.f32 0.0, %v4444
    %v4446 = vpop.f32.mrf.mxu0
    %4447 = vdwg.mxu0
    %v4448 = vsel %vm376, %v4445, -inf
    %4449 = vmax.xlane.f32.xlu0 %v4448
    %v4450 = vpop.xlane.xlu0 %4449
    %v4451 = vsub.f32 %v4445, %v4450
    %v4452 = vmul.f32 %v4451, 1.442695
    %v4453 = vpow.pop %v4452
    %v4454 = vsel %vm376, %v4453, 0.0
    %4455 = vadd.xlane.f32.xlu0 %v4454
    %v4456 = vpop.xlane.xlu0 %4455
    %v4457 = vrcp.pop %v4456
    %v4458 = vmul.f32 %v4453, %v4457
    %v4460 = vsel %vm376, %v4458, 0
    %4462 = vmatprep.subr.mxu0 0.0
    %4463 = vmatpush1.msra.mxu0 0.0
    %4464 = vmatprep.subr.mxu0 0.0
    %4465 = vmatpush1.msra.mxu0 0.0
    %4466 = vmatprep.subr.mxu0 0.0
    %4467 = vmatpush1.msra.mxu0 0.0
    %4468 = vmatprep.subr.mxu0 0.0
    %4469 = vmatpush1.msra.mxu0 0.0
    %4470 = vmatprep.subr.mxu0 0.0
    %4471 = vmatpush1.msra.mxu0 0.0
    %4472 = vmatprep.subr.mxu0 0.0
    %4473 = vmatpush1.msra.mxu0 0.0
    %4474 = vmatprep.subr.mxu0 0.0
    %4475 = vmatpush1.msra.mxu0 0.0
    %4476 = vmatprep.subr.mxu0 0.0
    %4477 = vmatpush1.msra.mxu0 0.0
    %4478 = vmatprep.subr.mxu0 0.0
    %4479 = vmatpush1.msra.mxu0 0.0
    %4480 = vmatprep.subr.mxu0 0.0
    %4481 = vmatpush1.msra.mxu0 0.0
    %4482 = vmatprep.subr.mxu0 0.0
    %4483 = vmatpush1.msra.mxu0 0.0
    %4484 = vmatprep.subr.mxu0 0.0
    %4485 = vmatpush1.msra.mxu0 0.0
    %4486 = vmatprep.subr.mxu0 0.0
    %4487 = vmatpush1.msra.mxu0 0.0
    %4488 = vmatprep.subr.mxu0 0.0
    %4489 = vmatpush1.msra.mxu0 0.0
    %4490 = vmatprep.subr.mxu0 0.0
    %4491 = vmatpush1.msra.mxu0 0.0
    %4492 = vmatprep.subr.mxu0 0.0
    %4493 = vmatpush1.msra.mxu0 %v4369
    %4494 = vmatprep.subr.mxu0 0.0
    %4495 = vmatpush2.msra.mxu0 0.0
    %4496 = vmatprep.subr.mxu0 0.0
    %4497 = vmatpush2.msra.mxu0 0.0
    %4498 = vmatprep.subr.mxu0 0.0
    %4499 = vmatpush2.msra.mxu0 0.0
    %4500 = vmatprep.subr.mxu0 0.0
    %4501 = vmatpush2.msra.mxu0 0.0
    %4502 = vmatprep.subr.mxu0 0.0
    %4503 = vmatpush2.msra.mxu0 0.0
    %4504 = vmatprep.subr.mxu0 0.0
    %4505 = vmatpush2.msra.mxu0 0.0
    %4506 = vmatprep.subr.mxu0 0.0
    %4507 = vmatpush2.msra.mxu0 0.0
    %4508 = vmatprep.subr.mxu0 0.0
    %4509 = vmatpush2.msra.mxu0 0.0
    %4510 = vmatprep.subr.mxu0 0.0
    %4511 = vmatpush2.msra.mxu0 0.0
    %4512 = vmatprep.subr.mxu0 0.0
    %4513 = vmatpush2.msra.mxu0 0.0
    %4514 = vmatprep.subr.mxu0 0.0
    %4515 = vmatpush2.msra.mxu0 0.0
    %4516 = vmatprep.subr.mxu0 0.0
    %4517 = vmatpush2.msra.mxu0 0.0
    %4518 = vmatprep.subr.mxu0 0.0
    %4519 = vmatpush2.msra.mxu0 0.0
    %4520 = vmatprep.subr.mxu0 0.0
    %4521 = vmatpush2.msra.mxu0 0.0
    %4522 = vmatprep.subr.mxu0 0.0
    %4523 = vmatpush2.msra.mxu0 0.0
    %4524 = vmatprep.subr.mxu0 0.0
    %4525 = vmatpush2.msra.mxu0 0.0
    %4526 = vmatprep.mubr.f32.mxu0 0.0
    %4527 = vmatmul.mubr.f32.gmra.mxu0 %v4460
    %v4528 = vpop.f32.mrf.mxu0
    %v4529 = vadd.f32 0.0, %v4528
    %v4530 = vpop.f32.mrf.mxu0
    %4531 = vdwg.mxu0
    %4533 = vrot.lane.b32.xlu0 %v4529, 8
    %v4534 = vpop.permute.xlu0 %4533
    %4536 = vst.msk [vmem:[#allocation2] sm:$0xff] %vm941, %v4534
    %s4537 = scalar_lea.vmem %s6, 24
    %v4538 = vld [vmem:[%s4537] sm:$0x7]
    %s4539 = scalar_lea.vmem %s3, 192
    %v4540 = vld [vmem:[%s4539] sm:$0xff]
    %v4541 = vld [vmem:[%s4539 + $0x8] sm:$0xff]
    %v4542 = vld [vmem:[%s4539 + $0x10] sm:$0xff]
    %v4543 = vld [vmem:[%s4539 + $0x18] sm:$0xff]
    %v4544 = vlaneseq
    %v4545 = vshrl.u32 %v4544, 7
    %v4546 = vsub.s32 0, %v4545
    %v4547 = vrot.slane %v4538, %v4546
    %4548 = vmatprep.subr.mxu0 0.0
    %4549 = vmatpush1.msra.mxu0 0.0
    %4550 = vmatprep.subr.mxu0 0.0
    %4551 = vmatpush1.msra.mxu0 0.0
    %4552 = vmatprep.subr.mxu0 0.0
    %4553 = vmatpush1.msra.mxu0 0.0
    %4554 = vmatprep.subr.mxu0 0.0
    %4555 = vmatpush1.msra.mxu0 0.0
    %4556 = vmatprep.subr.mxu0 0.0
    %4557 = vmatpush1.msra.mxu0 0.0
    %4558 = vmatprep.subr.mxu0 0.0
    %4559 = vmatpush1.msra.mxu0 0.0
    %4560 = vmatprep.subr.mxu0 0.0
    %4561 = vmatpush1.msra.mxu0 0.0
    %4562 = vmatprep.subr.mxu0 0.0
    %4563 = vmatpush1.msra.mxu0 0.0
    %4564 = vmatprep.subr.mxu0 0.0
    %4565 = vmatpush1.msra.mxu0 0.0
    %4566 = vmatprep.subr.mxu0 0.0
    %4567 = vmatpush1.msra.mxu0 0.0
    %4568 = vmatprep.subr.mxu0 0.0
    %4569 = vmatpush1.msra.mxu0 0.0
    %4570 = vmatprep.subr.mxu0 0.0
    %4571 = vmatpush1.msra.mxu0 0.0
    %4572 = vmatprep.subr.mxu0 0.0
    %4573 = vmatpush1.msra.mxu0 %v4543
    %4574 = vmatprep.subr.mxu0 0.0
    %4575 = vmatpush1.msra.mxu0 %v4542
    %4576 = vmatprep.subr.mxu0 0.0
    %4577 = vmatpush1.msra.mxu0 %v4541
    %4578 = vmatprep.subr.mxu0 0.0
    %4579 = vmatpush1.msra.mxu0 %v4540
    %4580 = vmatprep.subr.mxu0 0.0
    %4581 = vmatpush2.msra.mxu0 0.0
    %4582 = vmatprep.subr.mxu0 0.0
    %4583 = vmatpush2.msra.mxu0 0.0
    %4584 = vmatprep.subr.mxu0 0.0
    %4585 = vmatpush2.msra.mxu0 0.0
    %4586 = vmatprep.subr.mxu0 0.0
    %4587 = vmatpush2.msra.mxu0 0.0
    %4588 = vmatprep.subr.mxu0 0.0
    %4589 = vmatpush2.msra.mxu0 0.0
    %4590 = vmatprep.subr.mxu0 0.0
    %4591 = vmatpush2.msra.mxu0 0.0
    %4592 = vmatprep.subr.mxu0 0.0
    %4593 = vmatpush2.msra.mxu0 0.0
    %4594 = vmatprep.subr.mxu0 0.0
    %4595 = vmatpush2.msra.mxu0 0.0
    %4596 = vmatprep.subr.mxu0 0.0
    %4597 = vmatpush2.msra.mxu0 0.0
    %4598 = vmatprep.subr.mxu0 0.0
    %4599 = vmatpush2.msra.mxu0 0.0
    %4600 = vmatprep.subr.mxu0 0.0
    %4601 = vmatpush2.msra.mxu0 0.0
    %4602 = vmatprep.subr.mxu0 0.0
    %4603 = vmatpush2.msra.mxu0 0.0
    %4604 = vmatprep.subr.mxu0 0.0
    %4605 = vmatpush2.msra.mxu0 0.0
    %4606 = vmatprep.subr.mxu0 0.0
    %4607 = vmatpush2.msra.mxu0 0.0
    %4608 = vmatprep.subr.mxu0 0.0
    %4609 = vmatpush2.msra.mxu0 0.0
    %4610 = vmatprep.subr.mxu0 0.0
    %4611 = vmatpush2.msra.mxu0 0.0
    %4612 = vmatprep.mubr.f32.mxu0 0.0
    %4613 = vmatmul.mubr.f32.gmra.mxu0 %v3742
    %v4614 = vpop.f32.mrf.mxu0
    %v4615 = vadd.f32 %v4547, %v4614
    %v4616 = vpop.f32.mrf.mxu0
    %4617 = vdwg.mxu0
    %s4618 = scalar_lea.vmem %s4, 192
    %v4619 = vld [vmem:[%s4618] sm:$0xff]
    %v4620 = vld [vmem:[%s4618 + $0x8] sm:$0xff]
    %v4621 = vld [vmem:[%s4618 + $0x10] sm:$0xff]
    %v4622 = vld [vmem:[%s4618 + $0x18] sm:$0xff]
    %v4623 = vlaneseq
    %v4624 = vshrl.u32 %v4623, 7
    %v4625 = vsub.s32 1, %v4624
    %v4626 = vrot.slane %v4538, %v4625
    %4627 = vmatprep.subr.mxu0 0.0
    %4628 = vmatpush1.msra.mxu0 0.0
    %4629 = vmatprep.subr.mxu0 0.0
    %4630 = vmatpush1.msra.mxu0 0.0
    %4631 = vmatprep.subr.mxu0 0.0
    %4632 = vmatpush1.msra.mxu0 0.0
    %4633 = vmatprep.subr.mxu0 0.0
    %4634 = vmatpush1.msra.mxu0 0.0
    %4635 = vmatprep.subr.mxu0 0.0
    %4636 = vmatpush1.msra.mxu0 0.0
    %4637 = vmatprep.subr.mxu0 0.0
    %4638 = vmatpush1.msra.mxu0 0.0
    %4639 = vmatprep.subr.mxu0 0.0
    %4640 = vmatpush1.msra.mxu0 0.0
    %4641 = vmatprep.subr.mxu0 0.0
    %4642 = vmatpush1.msra.mxu0 0.0
    %4643 = vmatprep.subr.mxu0 0.0
    %4644 = vmatpush1.msra.mxu0 0.0
    %4645 = vmatprep.subr.mxu0 0.0
    %4646 = vmatpush1.msra.mxu0 0.0
    %4647 = vmatprep.subr.mxu0 0.0
    %4648 = vmatpush1.msra.mxu0 0.0
    %4649 = vmatprep.subr.mxu0 0.0
    %4650 = vmatpush1.msra.mxu0 0.0
    %4651 = vmatprep.subr.mxu0 0.0
    %4652 = vmatpush1.msra.mxu0 %v4622
    %4653 = vmatprep.subr.mxu0 0.0
    %4654 = vmatpush1.msra.mxu0 %v4621
    %4655 = vmatprep.subr.mxu0 0.0
    %4656 = vmatpush1.msra.mxu0 %v4620
    %4657 = vmatprep.subr.mxu0 0.0
    %4658 = vmatpush1.msra.mxu0 %v4619
    %4659 = vmatprep.subr.mxu0 0.0
    %4660 = vmatpush2.msra.mxu0 0.0
    %4661 = vmatprep.subr.mxu0 0.0
    %4662 = vmatpush2.msra.mxu0 0.0
    %4663 = vmatprep.subr.mxu0 0.0
    %4664 = vmatpush2.msra.mxu0 0.0
    %4665 = vmatprep.subr.mxu0 0.0
    %4666 = vmatpush2.msra.mxu0 0.0
    %4667 = vmatprep.subr.mxu0 0.0
    %4668 = vmatpush2.msra.mxu0 0.0
    %4669 = vmatprep.subr.mxu0 0.0
    %4670 = vmatpush2.msra.mxu0 0.0
    %4671 = vmatprep.subr.mxu0 0.0
    %4672 = vmatpush2.msra.mxu0 0.0
    %4673 = vmatprep.subr.mxu0 0.0
    %4674 = vmatpush2.msra.mxu0 0.0
    %4675 = vmatprep.subr.mxu0 0.0
    %4676 = vmatpush2.msra.mxu0 0.0
    %4677 = vmatprep.subr.mxu0 0.0
    %4678 = vmatpush2.msra.mxu0 0.0
    %4679 = vmatprep.subr.mxu0 0.0
    %4680 = vmatpush2.msra.mxu0 0.0
    %4681 = vmatprep.subr.mxu0 0.0
    %4682 = vmatpush2.msra.mxu0 0.0
    %4683 = vmatprep.subr.mxu0 0.0
    %4684 = vmatpush2.msra.mxu0 0.0
    %4685 = vmatprep.subr.mxu0 0.0
    %4686 = vmatpush2.msra.mxu0 0.0
    %4687 = vmatprep.subr.mxu0 0.0
    %4688 = vmatpush2.msra.mxu0 0.0
    %4689 = vmatprep.subr.mxu0 0.0
    %4690 = vmatpush2.msra.mxu0 0.0
    %4691 = vmatprep.mubr.f32.mxu0 0.0
    %4692 = vmatmul.mubr.f32.gmra.mxu0 %v3742
    %v4693 = vpop.f32.mrf.mxu0
    %v4694 = vadd.f32 %v4626, %v4693
    %v4695 = vpop.f32.mrf.mxu0
    %4696 = vdwg.mxu0
    %s4697 = scalar_lea.vmem %s5, 192
    %v4698 = vld [vmem:[%s4697] sm:$0xff]
    %v4699 = vld [vmem:[%s4697 + $0x8] sm:$0xff]
    %v4700 = vld [vmem:[%s4697 + $0x10] sm:$0xff]
    %v4701 = vld [vmem:[%s4697 + $0x18] sm:$0xff]
    %v4702 = vlaneseq
    %v4703 = vshrl.u32 %v4702, 7
    %v4704 = vsub.s32 2, %v4703
    %v4705 = vrot.slane %v4538, %v4704
    %4706 = vmatprep.subr.mxu0 0.0
    %4707 = vmatpush1.msra.mxu0 0.0
    %4708 = vmatprep.subr.mxu0 0.0
    %4709 = vmatpush1.msra.mxu0 0.0
    %4710 = vmatprep.subr.mxu0 0.0
    %4711 = vmatpush1.msra.mxu0 0.0
    %4712 = vmatprep.subr.mxu0 0.0
    %4713 = vmatpush1.msra.mxu0 0.0
    %4714 = vmatprep.subr.mxu0 0.0
    %4715 = vmatpush1.msra.mxu0 0.0
    %4716 = vmatprep.subr.mxu0 0.0
    %4717 = vmatpush1.msra.mxu0 0.0
    %4718 = vmatprep.subr.mxu0 0.0
    %4719 = vmatpush1.msra.mxu0 0.0
    %4720 = vmatprep.subr.mxu0 0.0
    %4721 = vmatpush1.msra.mxu0 0.0
    %4722 = vmatprep.subr.mxu0 0.0
    %4723 = vmatpush1.msra.mxu0 0.0
    %4724 = vmatprep.subr.mxu0 0.0
    %4725 = vmatpush1.msra.mxu0 0.0
    %4726 = vmatprep.subr.mxu0 0.0
    %4727 = vmatpush1.msra.mxu0 0.0
    %4728 = vmatprep.subr.mxu0 0.0
    %4729 = vmatpush1.msra.mxu0 0.0
    %4730 = vmatprep.subr.mxu0 0.0
    %4731 = vmatpush1.msra.mxu0 %v4701
    %4732 = vmatprep.subr.mxu0 0.0
    %4733 = vmatpush1.msra.mxu0 %v4700
    %4734 = vmatprep.subr.mxu0 0.0
    %4735 = vmatpush1.msra.mxu0 %v4699
    %4736 = vmatprep.subr.mxu0 0.0
    %4737 = vmatpush1.msra.mxu0 %v4698
    %4738 = vmatprep.subr.mxu0 0.0
    %4739 = vmatpush2.msra.mxu0 0.0
    %4740 = vmatprep.subr.mxu0 0.0
    %4741 = vmatpush2.msra.mxu0 0.0
    %4742 = vmatprep.subr.mxu0 0.0
    %4743 = vmatpush2.msra.mxu0 0.0
    %4744 = vmatprep.subr.mxu0 0.0
    %4745 = vmatpush2.msra.mxu0 0.0
    %4746 = vmatprep.subr.mxu0 0.0
    %4747 = vmatpush2.msra.mxu0 0.0
    %4748 = vmatprep.subr.mxu0 0.0
    %4749 = vmatpush2.msra.mxu0 0.0
    %4750 = vmatprep.subr.mxu0 0.0
    %4751 = vmatpush2.msra.mxu0 0.0
    %4752 = vmatprep.subr.mxu0 0.0
    %4753 = vmatpush2.msra.mxu0 0.0
    %4754 = vmatprep.subr.mxu0 0.0
    %4755 = vmatpush2.msra.mxu0 0.0
    %4756 = vmatprep.subr.mxu0 0.0
    %4757 = vmatpush2.msra.mxu0 0.0
    %4758 = vmatprep.subr.mxu0 0.0
    %4759 = vmatpush2.msra.mxu0 0.0
    %4760 = vmatprep.subr.mxu0 0.0
    %4761 = vmatpush2.msra.mxu0 0.0
    %4762 = vmatprep.subr.mxu0 0.0
    %4763 = vmatpush2.msra.mxu0 0.0
    %4764 = vmatprep.subr.mxu0 0.0
    %4765 = vmatpush2.msra.mxu0 0.0
    %4766 = vmatprep.subr.mxu0 0.0
    %4767 = vmatpush2.msra.mxu0 0.0
    %4768 = vmatprep.subr.mxu0 0.0
    %4769 = vmatpush2.msra.mxu0 0.0
    %4770 = vmatprep.mubr.f32.mxu0 0.0
    %4771 = vmatmul.mubr.f32.gmra.mxu0 %v3742
    %v4772 = vpop.f32.mrf.mxu0
    %v4773 = vadd.f32 %v4705, %v4772
    %v4774 = vpop.f32.mrf.mxu0
    %4775 = vdwg.mxu0
    %v4777 = vsel %vm376, %v4615, 0
    %v4780 = vsel %vm376, %v4694, 0
    %4782 = vmatprep.subr.mxu0 0.0
    %4783 = vmatpush1.xpose.msra.mxu0 0.0
    %4784 = vmatprep.subr.mxu0 0.0
    %4785 = vmatpush1.xpose.msra.mxu0 0.0
    %4786 = vmatprep.subr.mxu0 0.0
    %4787 = vmatpush1.xpose.msra.mxu0 0.0
    %4788 = vmatprep.subr.mxu0 0.0
    %4789 = vmatpush1.xpose.msra.mxu0 0.0
    %4790 = vmatprep.subr.mxu0 0.0
    %4791 = vmatpush1.xpose.msra.mxu0 0.0
    %4792 = vmatprep.subr.mxu0 0.0
    %4793 = vmatpush1.xpose.msra.mxu0 0.0
    %4794 = vmatprep.subr.mxu0 0.0
    %4795 = vmatpush1.xpose.msra.mxu0 0.0
    %4796 = vmatprep.subr.mxu0 0.0
    %4797 = vmatpush1.xpose.msra.mxu0 0.0
    %4798 = vmatprep.subr.mxu0 0.0
    %4799 = vmatpush1.xpose.msra.mxu0 0.0
    %4800 = vmatprep.subr.mxu0 0.0
    %4801 = vmatpush1.xpose.msra.mxu0 0.0
    %4802 = vmatprep.subr.mxu0 0.0
    %4803 = vmatpush1.xpose.msra.mxu0 0.0
    %4804 = vmatprep.subr.mxu0 0.0
    %4805 = vmatpush1.xpose.msra.mxu0 0.0
    %4806 = vmatprep.subr.mxu0 0.0
    %4807 = vmatpush1.xpose.msra.mxu0 0.0
    %4808 = vmatprep.subr.mxu0 0.0
    %4809 = vmatpush1.xpose.msra.mxu0 0.0
    %4810 = vmatprep.subr.mxu0 0.0
    %4811 = vmatpush1.xpose.msra.mxu0 0.0
    %4812 = vmatprep.subr.mxu0 0.0
    %4813 = vmatpush1.xpose.msra.mxu0 %v4780
    %4814 = vmatprep.subr.mxu0 0.0
    %4815 = vmatpush2.xpose.msra.mxu0 0.0
    %4816 = vmatprep.subr.mxu0 0.0
    %4817 = vmatpush2.xpose.msra.mxu0 0.0
    %4818 = vmatprep.subr.mxu0 0.0
    %4819 = vmatpush2.xpose.msra.mxu0 0.0
    %4820 = vmatprep.subr.mxu0 0.0
    %4821 = vmatpush2.xpose.msra.mxu0 0.0
    %4822 = vmatprep.subr.mxu0 0.0
    %4823 = vmatpush2.xpose.msra.mxu0 0.0
    %4824 = vmatprep.subr.mxu0 0.0
    %4825 = vmatpush2.xpose.msra.mxu0 0.0
    %4826 = vmatprep.subr.mxu0 0.0
    %4827 = vmatpush2.xpose.msra.mxu0 0.0
    %4828 = vmatprep.subr.mxu0 0.0
    %4829 = vmatpush2.xpose.msra.mxu0 0.0
    %4830 = vmatprep.subr.mxu0 0.0
    %4831 = vmatpush2.xpose.msra.mxu0 0.0
    %4832 = vmatprep.subr.mxu0 0.0
    %4833 = vmatpush2.xpose.msra.mxu0 0.0
    %4834 = vmatprep.subr.mxu0 0.0
    %4835 = vmatpush2.xpose.msra.mxu0 0.0
    %4836 = vmatprep.subr.mxu0 0.0
    %4837 = vmatpush2.xpose.msra.mxu0 0.0
    %4838 = vmatprep.subr.mxu0 0.0
    %4839 = vmatpush2.xpose.msra.mxu0 0.0
    %4840 = vmatprep.subr.mxu0 0.0
    %4841 = vmatpush2.xpose.msra.mxu0 0.0
    %4842 = vmatprep.subr.mxu0 0.0
    %4843 = vmatpush2.xpose.msra.mxu0 0.0
    %4844 = vmatprep.subr.mxu0 0.0
    %4845 = vmatpush2.xpose.msra.mxu0 0.0
    %4846 = vmatprep.mubr.f32.mxu0 0.0
    %4847 = vmatmul.mubr.f32.gmra.mxu0 %v4777
    %v4848 = vpop.f32.mrf.mxu0
    %v4849 = vadd.f32 0.0, %v4848
    %v4850 = vpop.f32.mrf.mxu0
    %4851 = vdwg.mxu0
    %v4852 = vsel %vm376, %v4849, -inf
    %4853 = vmax.xlane.f32.xlu0 %v4852
    %v4854 = vpop.xlane.xlu0 %4853
    %v4855 = vsub.f32 %v4849, %v4854
    %v4856 = vmul.f32 %v4855, 1.442695
    %v4857 = vpow.pop %v4856
    %v4858 = vsel %vm376, %v4857, 0.0
    %4859 = vadd.xlane.f32.xlu0 %v4858
    %v4860 = vpop.xlane.xlu0 %4859
    %v4861 = vrcp.pop %v4860
    %v4862 = vmul.f32 %v4857, %v4861
    %v4864 = vsel %vm376, %v4862, 0
    %4866 = vmatprep.subr.mxu0 0.0
    %4867 = vmatpush1.msra.mxu0 0.0
    %4868 = vmatprep.subr.mxu0 0.0
    %4869 = vmatpush1.msra.mxu0 0.0
    %4870 = vmatprep.subr.mxu0 0.0
    %4871 = vmatpush1.msra.mxu0 0.0
    %4872 = vmatprep.subr.mxu0 0.0
    %4873 = vmatpush1.msra.mxu0 0.0
    %4874 = vmatprep.subr.mxu0 0.0
    %4875 = vmatpush1.msra.mxu0 0.0
    %4876 = vmatprep.subr.mxu0 0.0
    %4877 = vmatpush1.msra.mxu0 0.0
    %4878 = vmatprep.subr.mxu0 0.0
    %4879 = vmatpush1.msra.mxu0 0.0
    %4880 = vmatprep.subr.mxu0 0.0
    %4881 = vmatpush1.msra.mxu0 0.0
    %4882 = vmatprep.subr.mxu0 0.0
    %4883 = vmatpush1.msra.mxu0 0.0
    %4884 = vmatprep.subr.mxu0 0.0
    %4885 = vmatpush1.msra.mxu0 0.0
    %4886 = vmatprep.subr.mxu0 0.0
    %4887 = vmatpush1.msra.mxu0 0.0
    %4888 = vmatprep.subr.mxu0 0.0
    %4889 = vmatpush1.msra.mxu0 0.0
    %4890 = vmatprep.subr.mxu0 0.0
    %4891 = vmatpush1.msra.mxu0 0.0
    %4892 = vmatprep.subr.mxu0 0.0
    %4893 = vmatpush1.msra.mxu0 0.0
    %4894 = vmatprep.subr.mxu0 0.0
    %4895 = vmatpush1.msra.mxu0 0.0
    %4896 = vmatprep.subr.mxu0 0.0
    %4897 = vmatpush1.msra.mxu0 %v4773
    %4898 = vmatprep.subr.mxu0 0.0
    %4899 = vmatpush2.msra.mxu0 0.0
    %4900 = vmatprep.subr.mxu0 0.0
    %4901 = vmatpush2.msra.mxu0 0.0
    %4902 = vmatprep.subr.mxu0 0.0
    %4903 = vmatpush2.msra.mxu0 0.0
    %4904 = vmatprep.subr.mxu0 0.0
    %4905 = vmatpush2.msra.mxu0 0.0
    %4906 = vmatprep.subr.mxu0 0.0
    %4907 = vmatpush2.msra.mxu0 0.0
    %4908 = vmatprep.subr.mxu0 0.0
    %4909 = vmatpush2.msra.mxu0 0.0
    %4910 = vmatprep.subr.mxu0 0.0
    %4911 = vmatpush2.msra.mxu0 0.0
    %4912 = vmatprep.subr.mxu0 0.0
    %4913 = vmatpush2.msra.mxu0 0.0
    %4914 = vmatprep.subr.mxu0 0.0
    %4915 = vmatpush2.msra.mxu0 0.0
    %4916 = vmatprep.subr.mxu0 0.0
    %4917 = vmatpush2.msra.mxu0 0.0
    %4918 = vmatprep.subr.mxu0 0.0
    %4919 = vmatpush2.msra.mxu0 0.0
    %4920 = vmatprep.subr.mxu0 0.0
    %4921 = vmatpush2.msra.mxu0 0.0
    %4922 = vmatprep.subr.mxu0 0.0
    %4923 = vmatpush2.msra.mxu0 0.0
    %4924 = vmatprep.subr.mxu0 0.0
    %4925 = vmatpush2.msra.mxu0 0.0
    %4926 = vmatprep.subr.mxu0 0.0
    %4927 = vmatpush2.msra.mxu0 0.0
    %4928 = vmatprep.subr.mxu0 0.0
    %4929 = vmatpush2.msra.mxu0 0.0
    %4930 = vmatprep.mubr.f32.mxu0 0.0
    %4931 = vmatmul.mubr.f32.gmra.mxu0 %v4864
    %v4932 = vpop.f32.mrf.mxu0
    %v4933 = vadd.f32 0.0, %v4932
    %v4934 = vpop.f32.mrf.mxu0
    %4935 = vdwg.mxu0
    %4937 = vrot.lane.b32.xlu0 %v4933, 16
    %v4938 = vpop.permute.xlu0 %4937
    %4940 = vst.msk [vmem:[#allocation2] sm:$0xff] %vm1346, %v4938
    %s4941 = scalar_lea.vmem %s6, 28
    %v4942 = vld [vmem:[%s4941] sm:$0x7]
    %s4943 = scalar_lea.vmem %s3, 224
    %v4944 = vld [vmem:[%s4943] sm:$0xff]
    %v4945 = vld [vmem:[%s4943 + $0x8] sm:$0xff]
    %v4946 = vld [vmem:[%s4943 + $0x10] sm:$0xff]
    %v4947 = vld [vmem:[%s4943 + $0x18] sm:$0xff]
    %v4948 = vlaneseq
    %v4949 = vshrl.u32 %v4948, 7
    %v4950 = vsub.s32 0, %v4949
    %v4951 = vrot.slane %v4942, %v4950
    %4952 = vmatprep.subr.mxu0 0.0
    %4953 = vmatpush1.msra.mxu0 0.0
    %4954 = vmatprep.subr.mxu0 0.0
    %4955 = vmatpush1.msra.mxu0 0.0
    %4956 = vmatprep.subr.mxu0 0.0
    %4957 = vmatpush1.msra.mxu0 0.0
    %4958 = vmatprep.subr.mxu0 0.0
    %4959 = vmatpush1.msra.mxu0 0.0
    %4960 = vmatprep.subr.mxu0 0.0
    %4961 = vmatpush1.msra.mxu0 0.0
    %4962 = vmatprep.subr.mxu0 0.0
    %4963 = vmatpush1.msra.mxu0 0.0
    %4964 = vmatprep.subr.mxu0 0.0
    %4965 = vmatpush1.msra.mxu0 0.0
    %4966 = vmatprep.subr.mxu0 0.0
    %4967 = vmatpush1.msra.mxu0 0.0
    %4968 = vmatprep.subr.mxu0 0.0
    %4969 = vmatpush1.msra.mxu0 0.0
    %4970 = vmatprep.subr.mxu0 0.0
    %4971 = vmatpush1.msra.mxu0 0.0
    %4972 = vmatprep.subr.mxu0 0.0
    %4973 = vmatpush1.msra.mxu0 0.0
    %4974 = vmatprep.subr.mxu0 0.0
    %4975 = vmatpush1.msra.mxu0 0.0
    %4976 = vmatprep.subr.mxu0 0.0
    %4977 = vmatpush1.msra.mxu0 %v4947
    %4978 = vmatprep.subr.mxu0 0.0
    %4979 = vmatpush1.msra.mxu0 %v4946
    %4980 = vmatprep.subr.mxu0 0.0
    %4981 = vmatpush1.msra.mxu0 %v4945
    %4982 = vmatprep.subr.mxu0 0.0
    %4983 = vmatpush1.msra.mxu0 %v4944
    %4984 = vmatprep.subr.mxu0 0.0
    %4985 = vmatpush2.msra.mxu0 0.0
    %4986 = vmatprep.subr.mxu0 0.0
    %4987 = vmatpush2.msra.mxu0 0.0
    %4988 = vmatprep.subr.mxu0 0.0
    %4989 = vmatpush2.msra.mxu0 0.0
    %4990 = vmatprep.subr.mxu0 0.0
    %4991 = vmatpush2.msra.mxu0 0.0
    %4992 = vmatprep.subr.mxu0 0.0
    %4993 = vmatpush2.msra.mxu0 0.0
    %4994 = vmatprep.subr.mxu0 0.0
    %4995 = vmatpush2.msra.mxu0 0.0
    %4996 = vmatprep.subr.mxu0 0.0
    %4997 = vmatpush2.msra.mxu0 0.0
    %4998 = vmatprep.subr.mxu0 0.0
    %4999 = vmatpush2.msra.mxu0 0.0
    %5000 = vmatprep.subr.mxu0 0.0
    %5001 = vmatpush2.msra.mxu0 0.0
    %5002 = vmatprep.subr.mxu0 0.0
    %5003 = vmatpush2.msra.mxu0 0.0
    %5004 = vmatprep.subr.mxu0 0.0
    %5005 = vmatpush2.msra.mxu0 0.0
    %5006 = vmatprep.subr.mxu0 0.0
    %5007 = vmatpush2.msra.mxu0 0.0
    %5008 = vmatprep.subr.mxu0 0.0
    %5009 = vmatpush2.msra.mxu0 0.0
    %5010 = vmatprep.subr.mxu0 0.0
    %5011 = vmatpush2.msra.mxu0 0.0
    %5012 = vmatprep.subr.mxu0 0.0
    %5013 = vmatpush2.msra.mxu0 0.0
    %5014 = vmatprep.subr.mxu0 0.0
    %5015 = vmatpush2.msra.mxu0 0.0
    %5016 = vmatprep.mubr.f32.mxu0 0.0
    %5017 = vmatmul.mubr.f32.gmra.mxu0 %v3742
    %v5018 = vpop.f32.mrf.mxu0
    %v5019 = vadd.f32 %v4951, %v5018
    %v5020 = vpop.f32.mrf.mxu0
    %5021 = vdwg.mxu0
    %s5022 = scalar_lea.vmem %s4, 224
    %v5023 = vld [vmem:[%s5022] sm:$0xff]
    %v5024 = vld [vmem:[%s5022 + $0x8] sm:$0xff]
    %v5025 = vld [vmem:[%s5022 + $0x10] sm:$0xff]
    %v5026 = vld [vmem:[%s5022 + $0x18] sm:$0xff]
    %v5027 = vlaneseq
    %v5028 = vshrl.u32 %v5027, 7
    %v5029 = vsub.s32 1, %v5028
    %v5030 = vrot.slane %v4942, %v5029
    %5031 = vmatprep.subr.mxu0 0.0
    %5032 = vmatpush1.msra.mxu0 0.0
    %5033 = vmatprep.subr.mxu0 0.0
    %5034 = vmatpush1.msra.mxu0 0.0
    %5035 = vmatprep.subr.mxu0 0.0
    %5036 = vmatpush1.msra.mxu0 0.0
    %5037 = vmatprep.subr.mxu0 0.0
    %5038 = vmatpush1.msra.mxu0 0.0
    %5039 = vmatprep.subr.mxu0 0.0
    %5040 = vmatpush1.msra.mxu0 0.0
    %5041 = vmatprep.subr.mxu0 0.0
    %5042 = vmatpush1.msra.mxu0 0.0
    %5043 = vmatprep.subr.mxu0 0.0
    %5044 = vmatpush1.msra.mxu0 0.0
    %5045 = vmatprep.subr.mxu0 0.0
    %5046 = vmatpush1.msra.mxu0 0.0
    %5047 = vmatprep.subr.mxu0 0.0
    %5048 = vmatpush1.msra.mxu0 0.0
    %5049 = vmatprep.subr.mxu0 0.0
    %5050 = vmatpush1.msra.mxu0 0.0
    %5051 = vmatprep.subr.mxu0 0.0
    %5052 = vmatpush1.msra.mxu0 0.0
    %5053 = vmatprep.subr.mxu0 0.0
    %5054 = vmatpush1.msra.mxu0 0.0
    %5055 = vmatprep.subr.mxu0 0.0
    %5056 = vmatpush1.msra.mxu0 %v5026
    %5057 = vmatprep.subr.mxu0 0.0
    %5058 = vmatpush1.msra.mxu0 %v5025
    %5059 = vmatprep.subr.mxu0 0.0
    %5060 = vmatpush1.msra.mxu0 %v5024
    %5061 = vmatprep.subr.mxu0 0.0
    %5062 = vmatpush1.msra.mxu0 %v5023
    %5063 = vmatprep.subr.mxu0 0.0
    %5064 = vmatpush2.msra.mxu0 0.0
    %5065 = vmatprep.subr.mxu0 0.0
    %5066 = vmatpush2.msra.mxu0 0.0
    %5067 = vmatprep.subr.mxu0 0.0
    %5068 = vmatpush2.msra.mxu0 0.0
    %5069 = vmatprep.subr.mxu0 0.0
    %5070 = vmatpush2.msra.mxu0 0.0
    %5071 = vmatprep.subr.mxu0 0.0
    %5072 = vmatpush2.msra.mxu0 0.0
    %5073 = vmatprep.subr.mxu0 0.0
    %5074 = vmatpush2.msra.mxu0 0.0
    %5075 = vmatprep.subr.mxu0 0.0
    %5076 = vmatpush2.msra.mxu0 0.0
    %5077 = vmatprep.subr.mxu0 0.0
    %5078 = vmatpush2.msra.mxu0 0.0
    %5079 = vmatprep.subr.mxu0 0.0
    %5080 = vmatpush2.msra.mxu0 0.0
    %5081 = vmatprep.subr.mxu0 0.0
    %5082 = vmatpush2.msra.mxu0 0.0
    %5083 = vmatprep.subr.mxu0 0.0
    %5084 = vmatpush2.msra.mxu0 0.0
    %5085 = vmatprep.subr.mxu0 0.0
    %5086 = vmatpush2.msra.mxu0 0.0
    %5087 = vmatprep.subr.mxu0 0.0
    %5088 = vmatpush2.msra.mxu0 0.0
    %5089 = vmatprep.subr.mxu0 0.0
    %5090 = vmatpush2.msra.mxu0 0.0
    %5091 = vmatprep.subr.mxu0 0.0
    %5092 = vmatpush2.msra.mxu0 0.0
    %5093 = vmatprep.subr.mxu0 0.0
    %5094 = vmatpush2.msra.mxu0 0.0
    %5095 = vmatprep.mubr.f32.mxu0 0.0
    %5096 = vmatmul.mubr.f32.gmra.mxu0 %v3742
    %v5097 = vpop.f32.mrf.mxu0
    %v5098 = vadd.f32 %v5030, %v5097
    %v5099 = vpop.f32.mrf.mxu0
    %5100 = vdwg.mxu0
    %s5101 = scalar_lea.vmem %s5, 224
    %v5102 = vld [vmem:[%s5101] sm:$0xff]
    %v5103 = vld [vmem:[%s5101 + $0x8] sm:$0xff]
    %v5104 = vld [vmem:[%s5101 + $0x10] sm:$0xff]
    %v5105 = vld [vmem:[%s5101 + $0x18] sm:$0xff]
    %v5106 = vlaneseq
    %v5107 = vshrl.u32 %v5106, 7
    %v5108 = vsub.s32 2, %v5107
    %v5109 = vrot.slane %v4942, %v5108
    %5110 = vmatprep.subr.mxu0 0.0
    %5111 = vmatpush1.msra.mxu0 0.0
    %5112 = vmatprep.subr.mxu0 0.0
    %5113 = vmatpush1.msra.mxu0 0.0
    %5114 = vmatprep.subr.mxu0 0.0
    %5115 = vmatpush1.msra.mxu0 0.0
    %5116 = vmatprep.subr.mxu0 0.0
    %5117 = vmatpush1.msra.mxu0 0.0
    %5118 = vmatprep.subr.mxu0 0.0
    %5119 = vmatpush1.msra.mxu0 0.0
    %5120 = vmatprep.subr.mxu0 0.0
    %5121 = vmatpush1.msra.mxu0 0.0
    %5122 = vmatprep.subr.mxu0 0.0
    %5123 = vmatpush1.msra.mxu0 0.0
    %5124 = vmatprep.subr.mxu0 0.0
    %5125 = vmatpush1.msra.mxu0 0.0
    %5126 = vmatprep.subr.mxu0 0.0
    %5127 = vmatpush1.msra.mxu0 0.0
    %5128 = vmatprep.subr.mxu0 0.0
    %5129 = vmatpush1.msra.mxu0 0.0
    %5130 = vmatprep.subr.mxu0 0.0
    %5131 = vmatpush1.msra.mxu0 0.0
    %5132 = vmatprep.subr.mxu0 0.0
    %5133 = vmatpush1.msra.mxu0 0.0
    %5134 = vmatprep.subr.mxu0 0.0
    %5135 = vmatpush1.msra.mxu0 %v5105
    %5136 = vmatprep.subr.mxu0 0.0
    %5137 = vmatpush1.msra.mxu0 %v5104
    %5138 = vmatprep.subr.mxu0 0.0
    %5139 = vmatpush1.msra.mxu0 %v5103
    %5140 = vmatprep.subr.mxu0 0.0
    %5141 = vmatpush1.msra.mxu0 %v5102
    %5142 = vmatprep.subr.mxu0 0.0
    %5143 = vmatpush2.msra.mxu0 0.0
    %5144 = vmatprep.subr.mxu0 0.0
    %5145 = vmatpush2.msra.mxu0 0.0
    %5146 = vmatprep.subr.mxu0 0.0
    %5147 = vmatpush2.msra.mxu0 0.0
    %5148 = vmatprep.subr.mxu0 0.0
    %5149 = vmatpush2.msra.mxu0 0.0
    %5150 = vmatprep.subr.mxu0 0.0
    %5151 = vmatpush2.msra.mxu0 0.0
    %5152 = vmatprep.subr.mxu0 0.0
    %5153 = vmatpush2.msra.mxu0 0.0
    %5154 = vmatprep.subr.mxu0 0.0
    %5155 = vmatpush2.msra.mxu0 0.0
    %5156 = vmatprep.subr.mxu0 0.0
    %5157 = vmatpush2.msra.mxu0 0.0
    %5158 = vmatprep.subr.mxu0 0.0
    %5159 = vmatpush2.msra.mxu0 0.0
    %5160 = vmatprep.subr.mxu0 0.0
    %5161 = vmatpush2.msra.mxu0 0.0
    %5162 = vmatprep.subr.mxu0 0.0
    %5163 = vmatpush2.msra.mxu0 0.0
    %5164 = vmatprep.subr.mxu0 0.0
    %5165 = vmatpush2.msra.mxu0 0.0
    %5166 = vmatprep.subr.mxu0 0.0
    %5167 = vmatpush2.msra.mxu0 0.0
    %5168 = vmatprep.subr.mxu0 0.0
    %5169 = vmatpush2.msra.mxu0 0.0
    %5170 = vmatprep.subr.mxu0 0.0
    %5171 = vmatpush2.msra.mxu0 0.0
    %5172 = vmatprep.subr.mxu0 0.0
    %5173 = vmatpush2.msra.mxu0 0.0
    %5174 = vmatprep.mubr.f32.mxu0 0.0
    %5175 = vmatmul.mubr.f32.gmra.mxu0 %v3742
    %v5176 = vpop.f32.mrf.mxu0
    %v5177 = vadd.f32 %v5109, %v5176
    %v5178 = vpop.f32.mrf.mxu0
    %5179 = vdwg.mxu0
    %v5181 = vsel %vm376, %v5019, 0
    %v5184 = vsel %vm376, %v5098, 0
    %5186 = vmatprep.subr.mxu0 0.0
    %5187 = vmatpush1.xpose.msra.mxu0 0.0
    %5188 = vmatprep.subr.mxu0 0.0
    %5189 = vmatpush1.xpose.msra.mxu0 0.0
    %5190 = vmatprep.subr.mxu0 0.0
    %5191 = vmatpush1.xpose.msra.mxu0 0.0
    %5192 = vmatprep.subr.mxu0 0.0
    %5193 = vmatpush1.xpose.msra.mxu0 0.0
    %5194 = vmatprep.subr.mxu0 0.0
    %5195 = vmatpush1.xpose.msra.mxu0 0.0
    %5196 = vmatprep.subr.mxu0 0.0
    %5197 = vmatpush1.xpose.msra.mxu0 0.0
    %5198 = vmatprep.subr.mxu0 0.0
    %5199 = vmatpush1.xpose.msra.mxu0 0.0
    %5200 = vmatprep.subr.mxu0 0.0
    %5201 = vmatpush1.xpose.msra.mxu0 0.0
    %5202 = vmatprep.subr.mxu0 0.0
    %5203 = vmatpush1.xpose.msra.mxu0 0.0
    %5204 = vmatprep.subr.mxu0 0.0
    %5205 = vmatpush1.xpose.msra.mxu0 0.0
    %5206 = vmatprep.subr.mxu0 0.0
    %5207 = vmatpush1.xpose.msra.mxu0 0.0
    %5208 = vmatprep.subr.mxu0 0.0
    %5209 = vmatpush1.xpose.msra.mxu0 0.0
    %5210 = vmatprep.subr.mxu0 0.0
    %5211 = vmatpush1.xpose.msra.mxu0 0.0
    %5212 = vmatprep.subr.mxu0 0.0
    %5213 = vmatpush1.xpose.msra.mxu0 0.0
    %5214 = vmatprep.subr.mxu0 0.0
    %5215 = vmatpush1.xpose.msra.mxu0 0.0
    %5216 = vmatprep.subr.mxu0 0.0
    %5217 = vmatpush1.xpose.msra.mxu0 %v5184
    %5218 = vmatprep.subr.mxu0 0.0
    %5219 = vmatpush2.xpose.msra.mxu0 0.0
    %5220 = vmatprep.subr.mxu0 0.0
    %5221 = vmatpush2.xpose.msra.mxu0 0.0
    %5222 = vmatprep.subr.mxu0 0.0
    %5223 = vmatpush2.xpose.msra.mxu0 0.0
    %5224 = vmatprep.subr.mxu0 0.0
    %5225 = vmatpush2.xpose.msra.mxu0 0.0
    %5226 = vmatprep.subr.mxu0 0.0
    %5227 = vmatpush2.xpose.msra.mxu0 0.0
    %5228 = vmatprep.subr.mxu0 0.0
    %5229 = vmatpush2.xpose.msra.mxu0 0.0
    %5230 = vmatprep.subr.mxu0 0.0
    %5231 = vmatpush2.xpose.msra.mxu0 0.0
    %5232 = vmatprep.subr.mxu0 0.0
    %5233 = vmatpush2.xpose.msra.mxu0 0.0
    %5234 = vmatprep.subr.mxu0 0.0
    %5235 = vmatpush2.xpose.msra.mxu0 0.0
    %5236 = vmatprep.subr.mxu0 0.0
    %5237 = vmatpush2.xpose.msra.mxu0 0.0
    %5238 = vmatprep.subr.mxu0 0.0
    %5239 = vmatpush2.xpose.msra.mxu0 0.0
    %5240 = vmatprep.subr.mxu0 0.0
    %5241 = vmatpush2.xpose.msra.mxu0 0.0
    %5242 = vmatprep.subr.mxu0 0.0
    %5243 = vmatpush2.xpose.msra.mxu0 0.0
    %5244 = vmatprep.subr.mxu0 0.0
    %5245 = vmatpush2.xpose.msra.mxu0 0.0
    %5246 = vmatprep.subr.mxu0 0.0
    %5247 = vmatpush2.xpose.msra.mxu0 0.0
    %5248 = vmatprep.subr.mxu0 0.0
    %5249 = vmatpush2.xpose.msra.mxu0 0.0
    %5250 = vmatprep.mubr.f32.mxu0 0.0
    %5251 = vmatmul.mubr.f32.gmra.mxu0 %v5181
    %v5252 = vpop.f32.mrf.mxu0
    %v5253 = vadd.f32 0.0, %v5252
    %v5254 = vpop.f32.mrf.mxu0
    %5255 = vdwg.mxu0
    %v5256 = vsel %vm376, %v5253, -inf
    %5257 = vmax.xlane.f32.xlu0 %v5256
    %v5258 = vpop.xlane.xlu0 %5257
    %v5259 = vsub.f32 %v5253, %v5258
    %v5260 = vmul.f32 %v5259, 1.442695
    %v5261 = vpow.pop %v5260
    %v5262 = vsel %vm376, %v5261, 0.0
    %5263 = vadd.xlane.f32.xlu0 %v5262
    %v5264 = vpop.xlane.xlu0 %5263
    %v5265 = vrcp.pop %v5264
    %v5266 = vmul.f32 %v5261, %v5265
    %v5268 = vsel %vm376, %v5266, 0
    %5270 = vmatprep.subr.mxu0 0.0
    %5271 = vmatpush1.msra.mxu0 0.0
    %5272 = vmatprep.subr.mxu0 0.0
    %5273 = vmatpush1.msra.mxu0 0.0
    %5274 = vmatprep.subr.mxu0 0.0
    %5275 = vmatpush1.msra.mxu0 0.0
    %5276 = vmatprep.subr.mxu0 0.0
    %5277 = vmatpush1.msra.mxu0 0.0
    %5278 = vmatprep.subr.mxu0 0.0
    %5279 = vmatpush1.msra.mxu0 0.0
    %5280 = vmatprep.subr.mxu0 0.0
    %5281 = vmatpush1.msra.mxu0 0.0
    %5282 = vmatprep.subr.mxu0 0.0
    %5283 = vmatpush1.msra.mxu0 0.0
    %5284 = vmatprep.subr.mxu0 0.0
    %5285 = vmatpush1.msra.mxu0 0.0
    %5286 = vmatprep.subr.mxu0 0.0
    %5287 = vmatpush1.msra.mxu0 0.0
    %5288 = vmatprep.subr.mxu0 0.0
    %5289 = vmatpush1.msra.mxu0 0.0
    %5290 = vmatprep.subr.mxu0 0.0
    %5291 = vmatpush1.msra.mxu0 0.0
    %5292 = vmatprep.subr.mxu0 0.0
    %5293 = vmatpush1.msra.mxu0 0.0
    %5294 = vmatprep.subr.mxu0 0.0
    %5295 = vmatpush1.msra.mxu0 0.0
    %5296 = vmatprep.subr.mxu0 0.0
    %5297 = vmatpush1.msra.mxu0 0.0
    %5298 = vmatprep.subr.mxu0 0.0
    %5299 = vmatpush1.msra.mxu0 0.0
    %5300 = vmatprep.subr.mxu0 0.0
    %5301 = vmatpush1.msra.mxu0 %v5177
    %5302 = vmatprep.subr.mxu0 0.0
    %5303 = vmatpush2.msra.mxu0 0.0
    %5304 = vmatprep.subr.mxu0 0.0
    %5305 = vmatpush2.msra.mxu0 0.0
    %5306 = vmatprep.subr.mxu0 0.0
    %5307 = vmatpush2.msra.mxu0 0.0
    %5308 = vmatprep.subr.mxu0 0.0
    %5309 = vmatpush2.msra.mxu0 0.0
    %5310 = vmatprep.subr.mxu0 0.0
    %5311 = vmatpush2.msra.mxu0 0.0
    %5312 = vmatprep.subr.mxu0 0.0
    %5313 = vmatpush2.msra.mxu0 0.0
    %5314 = vmatprep.subr.mxu0 0.0
    %5315 = vmatpush2.msra.mxu0 0.0
    %5316 = vmatprep.subr.mxu0 0.0
    %5317 = vmatpush2.msra.mxu0 0.0
    %5318 = vmatprep.subr.mxu0 0.0
    %5319 = vmatpush2.msra.mxu0 0.0
    %5320 = vmatprep.subr.mxu0 0.0
    %5321 = vmatpush2.msra.mxu0 0.0
    %5322 = vmatprep.subr.mxu0 0.0
    %5323 = vmatpush2.msra.mxu0 0.0
    %5324 = vmatprep.subr.mxu0 0.0
    %5325 = vmatpush2.msra.mxu0 0.0
    %5326 = vmatprep.subr.mxu0 0.0
    %5327 = vmatpush2.msra.mxu0 0.0
    %5328 = vmatprep.subr.mxu0 0.0
    %5329 = vmatpush2.msra.mxu0 0.0
    %5330 = vmatprep.subr.mxu0 0.0
    %5331 = vmatpush2.msra.mxu0 0.0
    %5332 = vmatprep.subr.mxu0 0.0
    %5333 = vmatpush2.msra.mxu0 0.0
    %5334 = vmatprep.mubr.f32.mxu0 0.0
    %5335 = vmatmul.mubr.f32.gmra.mxu0 %v5268
    %v5336 = vpop.f32.mrf.mxu0
    %v5337 = vadd.f32 0.0, %v5336
    %v5338 = vpop.f32.mrf.mxu0
    %5339 = vdwg.mxu0
    %5341 = vrot.lane.b32.xlu0 %v5337, 24
    %v5342 = vpop.permute.xlu0 %5341
    %5344 = vst.msk [vmem:[#allocation2] sm:$0xff] %vm1751, %v5342
    %v5345 = vld [vmem:[%s3730] sm:$0x7]
    %v5346 = vld [vmem:[%s3732] sm:$0xff]
    %v5347 = vld [vmem:[%s3732 + $0x8] sm:$0xff]
    %v5348 = vld [vmem:[%s3732 + $0x10] sm:$0xff]
    %v5349 = vld [vmem:[%s3732 + $0x18] sm:$0xff]
    %v5350 = vlaneseq
    %v5351 = vshrl.u32 %v5350, 7
    %v5352 = vsub.s32 0, %v5351
    %v5353 = vrot.slane %v5345, %v5352
    %v5355 = vsel %vm146, %v3727, 0
    %5357 = vmatprep.subr.mxu0 0.0
    %5358 = vmatpush1.msra.mxu0 0.0
    %5359 = vmatprep.subr.mxu0 0.0
    %5360 = vmatpush1.msra.mxu0 0.0
    %5361 = vmatprep.subr.mxu0 0.0
    %5362 = vmatpush1.msra.mxu0 0.0
    %5363 = vmatprep.subr.mxu0 0.0
    %5364 = vmatpush1.msra.mxu0 0.0
    %5365 = vmatprep.subr.mxu0 0.0
    %5366 = vmatpush1.msra.mxu0 0.0
    %5367 = vmatprep.subr.mxu0 0.0
    %5368 = vmatpush1.msra.mxu0 0.0
    %5369 = vmatprep.subr.mxu0 0.0
    %5370 = vmatpush1.msra.mxu0 0.0
    %5371 = vmatprep.subr.mxu0 0.0
    %5372 = vmatpush1.msra.mxu0 0.0
    %5373 = vmatprep.subr.mxu0 0.0
    %5374 = vmatpush1.msra.mxu0 0.0
    %5375 = vmatprep.subr.mxu0 0.0
    %5376 = vmatpush1.msra.mxu0 0.0
    %5377 = vmatprep.subr.mxu0 0.0
    %5378 = vmatpush1.msra.mxu0 0.0
    %5379 = vmatprep.subr.mxu0 0.0
    %5380 = vmatpush1.msra.mxu0 0.0
    %5381 = vmatprep.subr.mxu0 0.0
    %5382 = vmatpush1.msra.mxu0 %v5349
    %5383 = vmatprep.subr.mxu0 0.0
    %5384 = vmatpush1.msra.mxu0 %v5348
    %5385 = vmatprep.subr.mxu0 0.0
    %5386 = vmatpush1.msra.mxu0 %v5347
    %5387 = vmatprep.subr.mxu0 0.0
    %5388 = vmatpush1.msra.mxu0 %v5346
    %5389 = vmatprep.subr.mxu0 0.0
    %5390 = vmatpush2.msra.mxu0 0.0
    %5391 = vmatprep.subr.mxu0 0.0
    %5392 = vmatpush2.msra.mxu0 0.0
    %5393 = vmatprep.subr.mxu0 0.0
    %5394 = vmatpush2.msra.mxu0 0.0
    %5395 = vmatprep.subr.mxu0 0.0
    %5396 = vmatpush2.msra.mxu0 0.0
    %5397 = vmatprep.subr.mxu0 0.0
    %5398 = vmatpush2.msra.mxu0 0.0
    %5399 = vmatprep.subr.mxu0 0.0
    %5400 = vmatpush2.msra.mxu0 0.0
    %5401 = vmatprep.subr.mxu0 0.0
    %5402 = vmatpush2.msra.mxu0 0.0
    %5403 = vmatprep.subr.mxu0 0.0
    %5404 = vmatpush2.msra.mxu0 0.0
    %5405 = vmatprep.subr.mxu0 0.0
    %5406 = vmatpush2.msra.mxu0 0.0
    %5407 = vmatprep.subr.mxu0 0.0
    %5408 = vmatpush2.msra.mxu0 0.0
    %5409 = vmatprep.subr.mxu0 0.0
    %5410 = vmatpush2.msra.mxu0 0.0
    %5411 = vmatprep.subr.mxu0 0.0
    %5412 = vmatpush2.msra.mxu0 0.0
    %5413 = vmatprep.subr.mxu0 0.0
    %5414 = vmatpush2.msra.mxu0 0.0
    %5415 = vmatprep.subr.mxu0 0.0
    %5416 = vmatpush2.msra.mxu0 0.0
    %5417 = vmatprep.subr.mxu0 0.0
    %5418 = vmatpush2.msra.mxu0 0.0
    %5419 = vmatprep.subr.mxu0 0.0
    %5420 = vmatpush2.msra.mxu0 0.0
    %5421 = vmatprep.mubr.f32.mxu0 0.0
    %5422 = vmatmul.mubr.f32.gmra.mxu0 %v5355
    %v5423 = vpop.f32.mrf.mxu0
    %v5424 = vadd.f32 %v5353, %v5423
    %v5425 = vpop.f32.mrf.mxu0
    %5426 = vdwg.mxu0
    %v5427 = vld [vmem:[%s3814] sm:$0xff]
    %v5428 = vld [vmem:[%s3814 + $0x8] sm:$0xff]
    %v5429 = vld [vmem:[%s3814 + $0x10] sm:$0xff]
    %v5430 = vld [vmem:[%s3814 + $0x18] sm:$0xff]
    %v5431 = vlaneseq
    %v5432 = vshrl.u32 %v5431, 7
    %v5433 = vsub.s32 1, %v5432
    %v5434 = vrot.slane %v5345, %v5433
    %5435 = vmatprep.subr.mxu0 0.0
    %5436 = vmatpush1.msra.mxu0 0.0
    %5437 = vmatprep.subr.mxu0 0.0
    %5438 = vmatpush1.msra.mxu0 0.0
    %5439 = vmatprep.subr.mxu0 0.0
    %5440 = vmatpush1.msra.mxu0 0.0
    %5441 = vmatprep.subr.mxu0 0.0
    %5442 = vmatpush1.msra.mxu0 0.0
    %5443 = vmatprep.subr.mxu0 0.0
    %5444 = vmatpush1.msra.mxu0 0.0
    %5445 = vmatprep.subr.mxu0 0.0
    %5446 = vmatpush1.msra.mxu0 0.0
    %5447 = vmatprep.subr.mxu0 0.0
    %5448 = vmatpush1.msra.mxu0 0.0
    %5449 = vmatprep.subr.mxu0 0.0
    %5450 = vmatpush1.msra.mxu0 0.0
    %5451 = vmatprep.subr.mxu0 0.0
    %5452 = vmatpush1.msra.mxu0 0.0
    %5453 = vmatprep.subr.mxu0 0.0
    %5454 = vmatpush1.msra.mxu0 0.0
    %5455 = vmatprep.subr.mxu0 0.0
    %5456 = vmatpush1.msra.mxu0 0.0
    %5457 = vmatprep.subr.mxu0 0.0
    %5458 = vmatpush1.msra.mxu0 0.0
    %5459 = vmatprep.subr.mxu0 0.0
    %5460 = vmatpush1.msra.mxu0 %v5430
    %5461 = vmatprep.subr.mxu0 0.0
    %5462 = vmatpush1.msra.mxu0 %v5429
    %5463 = vmatprep.subr.mxu0 0.0
    %5464 = vmatpush1.msra.mxu0 %v5428
    %5465 = vmatprep.subr.mxu0 0.0
    %5466 = vmatpush1.msra.mxu0 %v5427
    %5467 = vmatprep.subr.mxu0 0.0
    %5468 = vmatpush2.msra.mxu0 0.0
    %5469 = vmatprep.subr.mxu0 0.0
    %5470 = vmatpush2.msra.mxu0 0.0
    %5471 = vmatprep.subr.mxu0 0.0
    %5472 = vmatpush2.msra.mxu0 0.0
    %5473 = vmatprep.subr.mxu0 0.0
    %5474 = vmatpush2.msra.mxu0 0.0
    %5475 = vmatprep.subr.mxu0 0.0
    %5476 = vmatpush2.msra.mxu0 0.0
    %5477 = vmatprep.subr.mxu0 0.0
    %5478 = vmatpush2.msra.mxu0 0.0
    %5479 = vmatprep.subr.mxu0 0.0
    %5480 = vmatpush2.msra.mxu0 0.0
    %5481 = vmatprep.subr.mxu0 0.0
    %5482 = vmatpush2.msra.mxu0 0.0
    %5483 = vmatprep.subr.mxu0 0.0
    %5484 = vmatpush2.msra.mxu0 0.0
    %5485 = vmatprep.subr.mxu0 0.0
    %5486 = vmatpush2.msra.mxu0 0.0
    %5487 = vmatprep.subr.mxu0 0.0
    %5488 = vmatpush2.msra.mxu0 0.0
    %5489 = vmatprep.subr.mxu0 0.0
    %5490 = vmatpush2.msra.mxu0 0.0
    %5491 = vmatprep.subr.mxu0 0.0
    %5492 = vmatpush2.msra.mxu0 0.0
    %5493 = vmatprep.subr.mxu0 0.0
    %5494 = vmatpush2.msra.mxu0 0.0
    %5495 = vmatprep.subr.mxu0 0.0
    %5496 = vmatpush2.msra.mxu0 0.0
    %5497 = vmatprep.subr.mxu0 0.0
    %5498 = vmatpush2.msra.mxu0 0.0
    %5499 = vmatprep.mubr.f32.mxu0 0.0
    %5500 = vmatmul.mubr.f32.gmra.mxu0 %v5355
    %v5501 = vpop.f32.mrf.mxu0
    %v5502 = vadd.f32 %v5434, %v5501
    %v5503 = vpop.f32.mrf.mxu0
    %5504 = vdwg.mxu0
    %v5505 = vld [vmem:[%s3893] sm:$0xff]
    %v5506 = vld [vmem:[%s3893 + $0x8] sm:$0xff]
    %v5507 = vld [vmem:[%s3893 + $0x10] sm:$0xff]
    %v5508 = vld [vmem:[%s3893 + $0x18] sm:$0xff]
    %v5509 = vlaneseq
    %v5510 = vshrl.u32 %v5509, 7
    %v5511 = vsub.s32 2, %v5510
    %v5512 = vrot.slane %v5345, %v5511
    %5513 = vmatprep.subr.mxu0 0.0
    %5514 = vmatpush1.msra.mxu0 0.0
    %5515 = vmatprep.subr.mxu0 0.0
    %5516 = vmatpush1.msra.mxu0 0.0
    %5517 = vmatprep.subr.mxu0 0.0
    %5518 = vmatpush1.msra.mxu0 0.0
    %5519 = vmatprep.subr.mxu0 0.0
    %5520 = vmatpush1.msra.mxu0 0.0
    %5521 = vmatprep.subr.mxu0 0.0
    %5522 = vmatpush1.msra.mxu0 0.0
    %5523 = vmatprep.subr.mxu0 0.0
    %5524 = vmatpush1.msra.mxu0 0.0
    %5525 = vmatprep.subr.mxu0 0.0
    %5526 = vmatpush1.msra.mxu0 0.0
    %5527 = vmatprep.subr.mxu0 0.0
    %5528 = vmatpush1.msra.mxu0 0.0
    %5529 = vmatprep.subr.mxu0 0.0
    %5530 = vmatpush1.msra.mxu0 0.0
    %5531 = vmatprep.subr.mxu0 0.0
    %5532 = vmatpush1.msra.mxu0 0.0
    %5533 = vmatprep.subr.mxu0 0.0
    %5534 = vmatpush1.msra.mxu0 0.0
    %5535 = vmatprep.subr.mxu0 0.0
    %5536 = vmatpush1.msra.mxu0 0.0
    %5537 = vmatprep.subr.mxu0 0.0
    %5538 = vmatpush1.msra.mxu0 %v5508
    %5539 = vmatprep.subr.mxu0 0.0
    %5540 = vmatpush1.msra.mxu0 %v5507
    %5541 = vmatprep.subr.mxu0 0.0
    %5542 = vmatpush1.msra.mxu0 %v5506
    %5543 = vmatprep.subr.mxu0 0.0
    %5544 = vmatpush1.msra.mxu0 %v5505
    %5545 = vmatprep.subr.mxu0 0.0
    %5546 = vmatpush2.msra.mxu0 0.0
    %5547 = vmatprep.subr.mxu0 0.0
    %5548 = vmatpush2.msra.mxu0 0.0
    %5549 = vmatprep.subr.mxu0 0.0
    %5550 = vmatpush2.msra.mxu0 0.0
    %5551 = vmatprep.subr.mxu0 0.0
    %5552 = vmatpush2.msra.mxu0 0.0
    %5553 = vmatprep.subr.mxu0 0.0
    %5554 = vmatpush2.msra.mxu0 0.0
    %5555 = vmatprep.subr.mxu0 0.0
    %5556 = vmatpush2.msra.mxu0 0.0
    %5557 = vmatprep.subr.mxu0 0.0
    %5558 = vmatpush2.msra.mxu0 0.0
    %5559 = vmatprep.subr.mxu0 0.0
    %5560 = vmatpush2.msra.mxu0 0.0
    %5561 = vmatprep.subr.mxu0 0.0
    %5562 = vmatpush2.msra.mxu0 0.0
    %5563 = vmatprep.subr.mxu0 0.0
    %5564 = vmatpush2.msra.mxu0 0.0
    %5565 = vmatprep.subr.mxu0 0.0
    %5566 = vmatpush2.msra.mxu0 0.0
    %5567 = vmatprep.subr.mxu0 0.0
    %5568 = vmatpush2.msra.mxu0 0.0
    %5569 = vmatprep.subr.mxu0 0.0
    %5570 = vmatpush2.msra.mxu0 0.0
    %5571 = vmatprep.subr.mxu0 0.0
    %5572 = vmatpush2.msra.mxu0 0.0
    %5573 = vmatprep.subr.mxu0 0.0
    %5574 = vmatpush2.msra.mxu0 0.0
    %5575 = vmatprep.subr.mxu0 0.0
    %5576 = vmatpush2.msra.mxu0 0.0
    %5577 = vmatprep.mubr.f32.mxu0 0.0
    %5578 = vmatmul.mubr.f32.gmra.mxu0 %v5355
    %v5579 = vpop.f32.mrf.mxu0
    %v5580 = vadd.f32 %v5512, %v5579
    %v5581 = vpop.f32.mrf.mxu0
    %5582 = vdwg.mxu0
    %v5584 = vsel %vm376, %v5424, 0
    %v5587 = vsel %vm376, %v5502, 0
    %5589 = vmatprep.subr.mxu0 0.0
    %5590 = vmatpush1.xpose.msra.mxu0 0.0
    %5591 = vmatprep.subr.mxu0 0.0
    %5592 = vmatpush1.xpose.msra.mxu0 0.0
    %5593 = vmatprep.subr.mxu0 0.0
    %5594 = vmatpush1.xpose.msra.mxu0 0.0
    %5595 = vmatprep.subr.mxu0 0.0
    %5596 = vmatpush1.xpose.msra.mxu0 0.0
    %5597 = vmatprep.subr.mxu0 0.0
    %5598 = vmatpush1.xpose.msra.mxu0 0.0
    %5599 = vmatprep.subr.mxu0 0.0
    %5600 = vmatpush1.xpose.msra.mxu0 0.0
    %5601 = vmatprep.subr.mxu0 0.0
    %5602 = vmatpush1.xpose.msra.mxu0 0.0
    %5603 = vmatprep.subr.mxu0 0.0
    %5604 = vmatpush1.xpose.msra.mxu0 0.0
    %5605 = vmatprep.subr.mxu0 0.0
    %5606 = vmatpush1.xpose.msra.mxu0 0.0
    %5607 = vmatprep.subr.mxu0 0.0
    %5608 = vmatpush1.xpose.msra.mxu0 0.0
    %5609 = vmatprep.subr.mxu0 0.0
    %5610 = vmatpush1.xpose.msra.mxu0 0.0
    %5611 = vmatprep.subr.mxu0 0.0
    %5612 = vmatpush1.xpose.msra.mxu0 0.0
    %5613 = vmatprep.subr.mxu0 0.0
    %5614 = vmatpush1.xpose.msra.mxu0 0.0
    %5615 = vmatprep.subr.mxu0 0.0
    %5616 = vmatpush1.xpose.msra.mxu0 0.0
    %5617 = vmatprep.subr.mxu0 0.0
    %5618 = vmatpush1.xpose.msra.mxu0 0.0
    %5619 = vmatprep.subr.mxu0 0.0
    %5620 = vmatpush1.xpose.msra.mxu0 %v5587
    %5621 = vmatprep.subr.mxu0 0.0
    %5622 = vmatpush2.xpose.msra.mxu0 0.0
    %5623 = vmatprep.subr.mxu0 0.0
    %5624 = vmatpush2.xpose.msra.mxu0 0.0
    %5625 = vmatprep.subr.mxu0 0.0
    %5626 = vmatpush2.xpose.msra.mxu0 0.0
    %5627 = vmatprep.subr.mxu0 0.0
    %5628 = vmatpush2.xpose.msra.mxu0 0.0
    %5629 = vmatprep.subr.mxu0 0.0
    %5630 = vmatpush2.xpose.msra.mxu0 0.0
    %5631 = vmatprep.subr.mxu0 0.0
    %5632 = vmatpush2.xpose.msra.mxu0 0.0
    %5633 = vmatprep.subr.mxu0 0.0
    %5634 = vmatpush2.xpose.msra.mxu0 0.0
    %5635 = vmatprep.subr.mxu0 0.0
    %5636 = vmatpush2.xpose.msra.mxu0 0.0
    %5637 = vmatprep.subr.mxu0 0.0
    %5638 = vmatpush2.xpose.msra.mxu0 0.0
    %5639 = vmatprep.subr.mxu0 0.0
    %5640 = vmatpush2.xpose.msra.mxu0 0.0
    %5641 = vmatprep.subr.mxu0 0.0
    %5642 = vmatpush2.xpose.msra.mxu0 0.0
    %5643 = vmatprep.subr.mxu0 0.0
    %5644 = vmatpush2.xpose.msra.mxu0 0.0
    %5645 = vmatprep.subr.mxu0 0.0
    %5646 = vmatpush2.xpose.msra.mxu0 0.0
    %5647 = vmatprep.subr.mxu0 0.0
    %5648 = vmatpush2.xpose.msra.mxu0 0.0
    %5649 = vmatprep.subr.mxu0 0.0
    %5650 = vmatpush2.xpose.msra.mxu0 0.0
    %5651 = vmatprep.subr.mxu0 0.0
    %5652 = vmatpush2.xpose.msra.mxu0 0.0
    %5653 = vmatprep.mubr.f32.mxu0 0.0
    %5654 = vmatmul.mubr.f32.gmra.mxu0 %v5584
    %v5655 = vpop.f32.mrf.mxu0
    %v5656 = vadd.f32 0.0, %v5655
    %v5657 = vpop.f32.mrf.mxu0
    %5658 = vdwg.mxu0
    %v5659 = vsel %vm376, %v5656, -inf
    %5660 = vmax.xlane.f32.xlu0 %v5659
    %v5661 = vpop.xlane.xlu0 %5660
    %v5662 = vsub.f32 %v5656, %v5661
    %v5663 = vmul.f32 %v5662, 1.442695
    %v5664 = vpow.pop %v5663
    %v5665 = vsel %vm376, %v5664, 0.0
    %5666 = vadd.xlane.f32.xlu0 %v5665
    %v5667 = vpop.xlane.xlu0 %5666
    %v5668 = vrcp.pop %v5667
    %v5669 = vmul.f32 %v5664, %v5668
    %v5671 = vsel %vm376, %v5669, 0
    %5673 = vmatprep.subr.mxu0 0.0
    %5674 = vmatpush1.msra.mxu0 0.0
    %5675 = vmatprep.subr.mxu0 0.0
    %5676 = vmatpush1.msra.mxu0 0.0
    %5677 = vmatprep.subr.mxu0 0.0
    %5678 = vmatpush1.msra.mxu0 0.0
    %5679 = vmatprep.subr.mxu0 0.0
    %5680 = vmatpush1.msra.mxu0 0.0
    %5681 = vmatprep.subr.mxu0 0.0
    %5682 = vmatpush1.msra.mxu0 0.0
    %5683 = vmatprep.subr.mxu0 0.0
    %5684 = vmatpush1.msra.mxu0 0.0
    %5685 = vmatprep.subr.mxu0 0.0
    %5686 = vmatpush1.msra.mxu0 0.0
    %5687 = vmatprep.subr.mxu0 0.0
    %5688 = vmatpush1.msra.mxu0 0.0
    %5689 = vmatprep.subr.mxu0 0.0
    %5690 = vmatpush1.msra.mxu0 0.0
    %5691 = vmatprep.subr.mxu0 0.0
    %5692 = vmatpush1.msra.mxu0 0.0
    %5693 = vmatprep.subr.mxu0 0.0
    %5694 = vmatpush1.msra.mxu0 0.0
    %5695 = vmatprep.subr.mxu0 0.0
    %5696 = vmatpush1.msra.mxu0 0.0
    %5697 = vmatprep.subr.mxu0 0.0
    %5698 = vmatpush1.msra.mxu0 0.0
    %5699 = vmatprep.subr.mxu0 0.0
    %5700 = vmatpush1.msra.mxu0 0.0
    %5701 = vmatprep.subr.mxu0 0.0
    %5702 = vmatpush1.msra.mxu0 0.0
    %5703 = vmatprep.subr.mxu0 0.0
    %5704 = vmatpush1.msra.mxu0 %v5580
    %5705 = vmatprep.subr.mxu0 0.0
    %5706 = vmatpush2.msra.mxu0 0.0
    %5707 = vmatprep.subr.mxu0 0.0
    %5708 = vmatpush2.msra.mxu0 0.0
    %5709 = vmatprep.subr.mxu0 0.0
    %5710 = vmatpush2.msra.mxu0 0.0
    %5711 = vmatprep.subr.mxu0 0.0
    %5712 = vmatpush2.msra.mxu0 0.0
    %5713 = vmatprep.subr.mxu0 0.0
    %5714 = vmatpush2.msra.mxu0 0.0
    %5715 = vmatprep.subr.mxu0 0.0
    %5716 = vmatpush2.msra.mxu0 0.0
    %5717 = vmatprep.subr.mxu0 0.0
    %5718 = vmatpush2.msra.mxu0 0.0
    %5719 = vmatprep.subr.mxu0 0.0
    %5720 = vmatpush2.msra.mxu0 0.0
    %5721 = vmatprep.subr.mxu0 0.0
    %5722 = vmatpush2.msra.mxu0 0.0
    %5723 = vmatprep.subr.mxu0 0.0
    %5724 = vmatpush2.msra.mxu0 0.0
    %5725 = vmatprep.subr.mxu0 0.0
    %5726 = vmatpush2.msra.mxu0 0.0
    %5727 = vmatprep.subr.mxu0 0.0
    %5728 = vmatpush2.msra.mxu0 0.0
    %5729 = vmatprep.subr.mxu0 0.0
    %5730 = vmatpush2.msra.mxu0 0.0
    %5731 = vmatprep.subr.mxu0 0.0
    %5732 = vmatpush2.msra.mxu0 0.0
    %5733 = vmatprep.subr.mxu0 0.0
    %5734 = vmatpush2.msra.mxu0 0.0
    %5735 = vmatprep.subr.mxu0 0.0
    %5736 = vmatpush2.msra.mxu0 0.0
    %5737 = vmatprep.mubr.f32.mxu0 0.0
    %5738 = vmatmul.mubr.f32.gmra.mxu0 %v5671
    %v5739 = vpop.f32.mrf.mxu0
    %v5740 = vadd.f32 0.0, %v5739
    %v5741 = vpop.f32.mrf.mxu0
    %5742 = vdwg.mxu0
    %5743 = vst.msk [vmem:[#allocation2 + $0x8] sm:$0xff] %vm376, %v5740
    %v5744 = vld [vmem:[%s4133] sm:$0x7]
    %v5745 = vld [vmem:[%s4135] sm:$0xff]
    %v5746 = vld [vmem:[%s4135 + $0x8] sm:$0xff]
    %v5747 = vld [vmem:[%s4135 + $0x10] sm:$0xff]
    %v5748 = vld [vmem:[%s4135 + $0x18] sm:$0xff]
    %v5749 = vlaneseq
    %v5750 = vshrl.u32 %v5749, 7
    %v5751 = vsub.s32 0, %v5750
    %v5752 = vrot.slane %v5744, %v5751
    %5753 = vmatprep.subr.mxu0 0.0
    %5754 = vmatpush1.msra.mxu0 0.0
    %5755 = vmatprep.subr.mxu0 0.0
    %5756 = vmatpush1.msra.mxu0 0.0
    %5757 = vmatprep.subr.mxu0 0.0
    %5758 = vmatpush1.msra.mxu0 0.0
    %5759 = vmatprep.subr.mxu0 0.0
    %5760 = vmatpush1.msra.mxu0 0.0
    %5761 = vmatprep.subr.mxu0 0.0
    %5762 = vmatpush1.msra.mxu0 0.0
    %5763 = vmatprep.subr.mxu0 0.0
    %5764 = vmatpush1.msra.mxu0 0.0
    %5765 = vmatprep.subr.mxu0 0.0
    %5766 = vmatpush1.msra.mxu0 0.0
    %5767 = vmatprep.subr.mxu0 0.0
    %5768 = vmatpush1.msra.mxu0 0.0
    %5769 = vmatprep.subr.mxu0 0.0
    %5770 = vmatpush1.msra.mxu0 0.0
    %5771 = vmatprep.subr.mxu0 0.0
    %5772 = vmatpush1.msra.mxu0 0.0
    %5773 = vmatprep.subr.mxu0 0.0
    %5774 = vmatpush1.msra.mxu0 0.0
    %5775 = vmatprep.subr.mxu0 0.0
    %5776 = vmatpush1.msra.mxu0 0.0
    %5777 = vmatprep.subr.mxu0 0.0
    %5778 = vmatpush1.msra.mxu0 %v5748
    %5779 = vmatprep.subr.mxu0 0.0
    %5780 = vmatpush1.msra.mxu0 %v5747
    %5781 = vmatprep.subr.mxu0 0.0
    %5782 = vmatpush1.msra.mxu0 %v5746
    %5783 = vmatprep.subr.mxu0 0.0
    %5784 = vmatpush1.msra.mxu0 %v5745
    %5785 = vmatprep.subr.mxu0 0.0
    %5786 = vmatpush2.msra.mxu0 0.0
    %5787 = vmatprep.subr.mxu0 0.0
    %5788 = vmatpush2.msra.mxu0 0.0
    %5789 = vmatprep.subr.mxu0 0.0
    %5790 = vmatpush2.msra.mxu0 0.0
    %5791 = vmatprep.subr.mxu0 0.0
    %5792 = vmatpush2.msra.mxu0 0.0
    %5793 = vmatprep.subr.mxu0 0.0
    %5794 = vmatpush2.msra.mxu0 0.0
    %5795 = vmatprep.subr.mxu0 0.0
    %5796 = vmatpush2.msra.mxu0 0.0
    %5797 = vmatprep.subr.mxu0 0.0
    %5798 = vmatpush2.msra.mxu0 0.0
    %5799 = vmatprep.subr.mxu0 0.0
    %5800 = vmatpush2.msra.mxu0 0.0
    %5801 = vmatprep.subr.mxu0 0.0
    %5802 = vmatpush2.msra.mxu0 0.0
    %5803 = vmatprep.subr.mxu0 0.0
    %5804 = vmatpush2.msra.mxu0 0.0
    %5805 = vmatprep.subr.mxu0 0.0
    %5806 = vmatpush2.msra.mxu0 0.0
    %5807 = vmatprep.subr.mxu0 0.0
    %5808 = vmatpush2.msra.mxu0 0.0
    %5809 = vmatprep.subr.mxu0 0.0
    %5810 = vmatpush2.msra.mxu0 0.0
    %5811 = vmatprep.subr.mxu0 0.0
    %5812 = vmatpush2.msra.mxu0 0.0
    %5813 = vmatprep.subr.mxu0 0.0
    %5814 = vmatpush2.msra.mxu0 0.0
    %5815 = vmatprep.subr.mxu0 0.0
    %5816 = vmatpush2.msra.mxu0 0.0
    %5817 = vmatprep.mubr.f32.mxu0 0.0
    %5818 = vmatmul.mubr.f32.gmra.mxu0 %v5355
    %v5819 = vpop.f32.mrf.mxu0
    %v5820 = vadd.f32 %v5752, %v5819
    %v5821 = vpop.f32.mrf.mxu0
    %5822 = vdwg.mxu0
    %v5823 = vld [vmem:[%s4214] sm:$0xff]
    %v5824 = vld [vmem:[%s4214 + $0x8] sm:$0xff]
    %v5825 = vld [vmem:[%s4214 + $0x10] sm:$0xff]
    %v5826 = vld [vmem:[%s4214 + $0x18] sm:$0xff]
    %v5827 = vlaneseq
    %v5828 = vshrl.u32 %v5827, 7
    %v5829 = vsub.s32 1, %v5828
    %v5830 = vrot.slane %v5744, %v5829
    %5831 = vmatprep.subr.mxu0 0.0
    %5832 = vmatpush1.msra.mxu0 0.0
    %5833 = vmatprep.subr.mxu0 0.0
    %5834 = vmatpush1.msra.mxu0 0.0
    %5835 = vmatprep.subr.mxu0 0.0
    %5836 = vmatpush1.msra.mxu0 0.0
    %5837 = vmatprep.subr.mxu0 0.0
    %5838 = vmatpush1.msra.mxu0 0.0
    %5839 = vmatprep.subr.mxu0 0.0
    %5840 = vmatpush1.msra.mxu0 0.0
    %5841 = vmatprep.subr.mxu0 0.0
    %5842 = vmatpush1.msra.mxu0 0.0
    %5843 = vmatprep.subr.mxu0 0.0
    %5844 = vmatpush1.msra.mxu0 0.0
    %5845 = vmatprep.subr.mxu0 0.0
    %5846 = vmatpush1.msra.mxu0 0.0
    %5847 = vmatprep.subr.mxu0 0.0
    %5848 = vmatpush1.msra.mxu0 0.0
    %5849 = vmatprep.subr.mxu0 0.0
    %5850 = vmatpush1.msra.mxu0 0.0
    %5851 = vmatprep.subr.mxu0 0.0
    %5852 = vmatpush1.msra.mxu0 0.0
    %5853 = vmatprep.subr.mxu0 0.0
    %5854 = vmatpush1.msra.mxu0 0.0
    %5855 = vmatprep.subr.mxu0 0.0
    %5856 = vmatpush1.msra.mxu0 %v5826
    %5857 = vmatprep.subr.mxu0 0.0
    %5858 = vmatpush1.msra.mxu0 %v5825
    %5859 = vmatprep.subr.mxu0 0.0
    %5860 = vmatpush1.msra.mxu0 %v5824
    %5861 = vmatprep.subr.mxu0 0.0
    %5862 = vmatpush1.msra.mxu0 %v5823
    %5863 = vmatprep.subr.mxu0 0.0
    %5864 = vmatpush2.msra.mxu0 0.0
    %5865 = vmatprep.subr.mxu0 0.0
    %5866 = vmatpush2.msra.mxu0 0.0
    %5867 = vmatprep.subr.mxu0 0.0
    %5868 = vmatpush2.msra.mxu0 0.0
    %5869 = vmatprep.subr.mxu0 0.0
    %5870 = vmatpush2.msra.mxu0 0.0
    %5871 = vmatprep.subr.mxu0 0.0
    %5872 = vmatpush2.msra.mxu0 0.0
    %5873 = vmatprep.subr.mxu0 0.0
    %5874 = vmatpush2.msra.mxu0 0.0
    %5875 = vmatprep.subr.mxu0 0.0
    %5876 = vmatpush2.msra.mxu0 0.0
    %5877 = vmatprep.subr.mxu0 0.0
    %5878 = vmatpush2.msra.mxu0 0.0
    %5879 = vmatprep.subr.mxu0 0.0
    %5880 = vmatpush2.msra.mxu0 0.0
    %5881 = vmatprep.subr.mxu0 0.0
    %5882 = vmatpush2.msra.mxu0 0.0
    %5883 = vmatprep.subr.mxu0 0.0
    %5884 = vmatpush2.msra.mxu0 0.0
    %5885 = vmatprep.subr.mxu0 0.0
    %5886 = vmatpush2.msra.mxu0 0.0
    %5887 = vmatprep.subr.mxu0 0.0
    %5888 = vmatpush2.msra.mxu0 0.0
    %5889 = vmatprep.subr.mxu0 0.0
    %5890 = vmatpush2.msra.mxu0 0.0
    %5891 = vmatprep.subr.mxu0 0.0
    %5892 = vmatpush2.msra.mxu0 0.0
    %5893 = vmatprep.subr.mxu0 0.0
    %5894 = vmatpush2.msra.mxu0 0.0
    %5895 = vmatprep.mubr.f32.mxu0 0.0
    %5896 = vmatmul.mubr.f32.gmra.mxu0 %v5355
    %v5897 = vpop.f32.mrf.mxu0
    %v5898 = vadd.f32 %v5830, %v5897
    %v5899 = vpop.f32.mrf.mxu0
    %5900 = vdwg.mxu0
    %v5901 = vld [vmem:[%s4293] sm:$0xff]
    %v5902 = vld [vmem:[%s4293 + $0x8] sm:$0xff]
    %v5903 = vld [vmem:[%s4293 + $0x10] sm:$0xff]
    %v5904 = vld [vmem:[%s4293 + $0x18] sm:$0xff]
    %v5905 = vlaneseq
    %v5906 = vshrl.u32 %v5905, 7
    %v5907 = vsub.s32 2, %v5906
    %v5908 = vrot.slane %v5744, %v5907
    %5909 = vmatprep.subr.mxu0 0.0
    %5910 = vmatpush1.msra.mxu0 0.0
    %5911 = vmatprep.subr.mxu0 0.0
    %5912 = vmatpush1.msra.mxu0 0.0
    %5913 = vmatprep.subr.mxu0 0.0
    %5914 = vmatpush1.msra.mxu0 0.0
    %5915 = vmatprep.subr.mxu0 0.0
    %5916 = vmatpush1.msra.mxu0 0.0
    %5917 = vmatprep.subr.mxu0 0.0
    %5918 = vmatpush1.msra.mxu0 0.0
    %5919 = vmatprep.subr.mxu0 0.0
    %5920 = vmatpush1.msra.mxu0 0.0
    %5921 = vmatprep.subr.mxu0 0.0
    %5922 = vmatpush1.msra.mxu0 0.0
    %5923 = vmatprep.subr.mxu0 0.0
    %5924 = vmatpush1.msra.mxu0 0.0
    %5925 = vmatprep.subr.mxu0 0.0
    %5926 = vmatpush1.msra.mxu0 0.0
    %5927 = vmatprep.subr.mxu0 0.0
    %5928 = vmatpush1.msra.mxu0 0.0
    %5929 = vmatprep.subr.mxu0 0.0
    %5930 = vmatpush1.msra.mxu0 0.0
    %5931 = vmatprep.subr.mxu0 0.0
    %5932 = vmatpush1.msra.mxu0 0.0
    %5933 = vmatprep.subr.mxu0 0.0
    %5934 = vmatpush1.msra.mxu0 %v5904
    %5935 = vmatprep.subr.mxu0 0.0
    %5936 = vmatpush1.msra.mxu0 %v5903
    %5937 = vmatprep.subr.mxu0 0.0
    %5938 = vmatpush1.msra.mxu0 %v5902
    %5939 = vmatprep.subr.mxu0 0.0
    %5940 = vmatpush1.msra.mxu0 %v5901
    %5941 = vmatprep.subr.mxu0 0.0
    %5942 = vmatpush2.msra.mxu0 0.0
    %5943 = vmatprep.subr.mxu0 0.0
    %5944 = vmatpush2.msra.mxu0 0.0
    %5945 = vmatprep.subr.mxu0 0.0
    %5946 = vmatpush2.msra.mxu0 0.0
    %5947 = vmatprep.subr.mxu0 0.0
    %5948 = vmatpush2.msra.mxu0 0.0
    %5949 = vmatprep.subr.mxu0 0.0
    %5950 = vmatpush2.msra.mxu0 0.0
    %5951 = vmatprep.subr.mxu0 0.0
    %5952 = vmatpush2.msra.mxu0 0.0
    %5953 = vmatprep.subr.mxu0 0.0
    %5954 = vmatpush2.msra.mxu0 0.0
    %5955 = vmatprep.subr.mxu0 0.0
    %5956 = vmatpush2.msra.mxu0 0.0
    %5957 = vmatprep.subr.mxu0 0.0
    %5958 = vmatpush2.msra.mxu0 0.0
    %5959 = vmatprep.subr.mxu0 0.0
    %5960 = vmatpush2.msra.mxu0 0.0
    %5961 = vmatprep.subr.mxu0 0.0
    %5962 = vmatpush2.msra.mxu0 0.0
    %5963 = vmatprep.subr.mxu0 0.0
    %5964 = vmatpush2.msra.mxu0 0.0
    %5965 = vmatprep.subr.mxu0 0.0
    %5966 = vmatpush2.msra.mxu0 0.0
    %5967 = vmatprep.subr.mxu0 0.0
    %5968 = vmatpush2.msra.mxu0 0.0
    %5969 = vmatprep.subr.mxu0 0.0
    %5970 = vmatpush2.msra.mxu0 0.0
    %5971 = vmatprep.subr.mxu0 0.0
    %5972 = vmatpush2.msra.mxu0 0.0
    %5973 = vmatprep.mubr.f32.mxu0 0.0
    %5974 = vmatmul.mubr.f32.gmra.mxu0 %v5355
    %v5975 = vpop.f32.mrf.mxu0
    %v5976 = vadd.f32 %v5908, %v5975
    %v5977 = vpop.f32.mrf.mxu0
    %5978 = vdwg.mxu0
    %v5980 = vsel %vm376, %v5820, 0
    %v5983 = vsel %vm376, %v5898, 0
    %5985 = vmatprep.subr.mxu0 0.0
    %5986 = vmatpush1.xpose.msra.mxu0 0.0
    %5987 = vmatprep.subr.mxu0 0.0
    %5988 = vmatpush1.xpose.msra.mxu0 0.0
    %5989 = vmatprep.subr.mxu0 0.0
    %5990 = vmatpush1.xpose.msra.mxu0 0.0
    %5991 = vmatprep.subr.mxu0 0.0
    %5992 = vmatpush1.xpose.msra.mxu0 0.0
    %5993 = vmatprep.subr.mxu0 0.0
    %5994 = vmatpush1.xpose.msra.mxu0 0.0
    %5995 = vmatprep.subr.mxu0 0.0
    %5996 = vmatpush1.xpose.msra.mxu0 0.0
    %5997 = vmatprep.subr.mxu0 0.0
    %5998 = vmatpush1.xpose.msra.mxu0 0.0
    %5999 = vmatprep.subr.mxu0 0.0
    %6000 = vmatpush1.xpose.msra.mxu0 0.0
    %6001 = vmatprep.subr.mxu0 0.0
    %6002 = vmatpush1.xpose.msra.mxu0 0.0
    %6003 = vmatprep.subr.mxu0 0.0
    %6004 = vmatpush1.xpose.msra.mxu0 0.0
    %6005 = vmatprep.subr.mxu0 0.0
    %6006 = vmatpush1.xpose.msra.mxu0 0.0
    %6007 = vmatprep.subr.mxu0 0.0
    %6008 = vmatpush1.xpose.msra.mxu0 0.0
    %6009 = vmatprep.subr.mxu0 0.0
    %6010 = vmatpush1.xpose.msra.mxu0 0.0
    %6011 = vmatprep.subr.mxu0 0.0
    %6012 = vmatpush1.xpose.msra.mxu0 0.0
    %6013 = vmatprep.subr.mxu0 0.0
    %6014 = vmatpush1.xpose.msra.mxu0 0.0
    %6015 = vmatprep.subr.mxu0 0.0
    %6016 = vmatpush1.xpose.msra.mxu0 %v5983
    %6017 = vmatprep.subr.mxu0 0.0
    %6018 = vmatpush2.xpose.msra.mxu0 0.0
    %6019 = vmatprep.subr.mxu0 0.0
    %6020 = vmatpush2.xpose.msra.mxu0 0.0
    %6021 = vmatprep.subr.mxu0 0.0
    %6022 = vmatpush2.xpose.msra.mxu0 0.0
    %6023 = vmatprep.subr.mxu0 0.0
    %6024 = vmatpush2.xpose.msra.mxu0 0.0
    %6025 = vmatprep.subr.mxu0 0.0
    %6026 = vmatpush2.xpose.msra.mxu0 0.0
    %6027 = vmatprep.subr.mxu0 0.0
    %6028 = vmatpush2.xpose.msra.mxu0 0.0
    %6029 = vmatprep.subr.mxu0 0.0
    %6030 = vmatpush2.xpose.msra.mxu0 0.0
    %6031 = vmatprep.subr.mxu0 0.0
    %6032 = vmatpush2.xpose.msra.mxu0 0.0
    %6033 = vmatprep.subr.mxu0 0.0
    %6034 = vmatpush2.xpose.msra.mxu0 0.0
    %6035 = vmatprep.subr.mxu0 0.0
    %6036 = vmatpush2.xpose.msra.mxu0 0.0
    %6037 = vmatprep.subr.mxu0 0.0
    %6038 = vmatpush2.xpose.msra.mxu0 0.0
    %6039 = vmatprep.subr.mxu0 0.0
    %6040 = vmatpush2.xpose.msra.mxu0 0.0
    %6041 = vmatprep.subr.mxu0 0.0
    %6042 = vmatpush2.xpose.msra.mxu0 0.0
    %6043 = vmatprep.subr.mxu0 0.0
    %6044 = vmatpush2.xpose.msra.mxu0 0.0
    %6045 = vmatprep.subr.mxu0 0.0
    %6046 = vmatpush2.xpose.msra.mxu0 0.0
    %6047 = vmatprep.subr.mxu0 0.0
    %6048 = vmatpush2.xpose.msra.mxu0 0.0
    %6049 = vmatprep.mubr.f32.mxu0 0.0
    %6050 = vmatmul.mubr.f32.gmra.mxu0 %v5980
    %v6051 = vpop.f32.mrf.mxu0
    %v6052 = vadd.f32 0.0, %v6051
    %v6053 = vpop.f32.mrf.mxu0
    %6054 = vdwg.mxu0
    %v6055 = vsel %vm376, %v6052, -inf
    %6056 = vmax.xlane.f32.xlu0 %v6055
    %v6057 = vpop.xlane.xlu0 %6056
    %v6058 = vsub.f32 %v6052, %v6057
    %v6059 = vmul.f32 %v6058, 1.442695
    %v6060 = vpow.pop %v6059
    %v6061 = vsel %vm376, %v6060, 0.0
    %6062 = vadd.xlane.f32.xlu0 %v6061
    %v6063 = vpop.xlane.xlu0 %6062
    %v6064 = vrcp.pop %v6063
    %v6065 = vmul.f32 %v6060, %v6064
    %v6067 = vsel %vm376, %v6065, 0
    %6069 = vmatprep.subr.mxu0 0.0
    %6070 = vmatpush1.msra.mxu0 0.0
    %6071 = vmatprep.subr.mxu0 0.0
    %6072 = vmatpush1.msra.mxu0 0.0
    %6073 = vmatprep.subr.mxu0 0.0
    %6074 = vmatpush1.msra.mxu0 0.0
    %6075 = vmatprep.subr.mxu0 0.0
    %6076 = vmatpush1.msra.mxu0 0.0
    %6077 = vmatprep.subr.mxu0 0.0
    %6078 = vmatpush1.msra.mxu0 0.0
    %6079 = vmatprep.subr.mxu0 0.0
    %6080 = vmatpush1.msra.mxu0 0.0
    %6081 = vmatprep.subr.mxu0 0.0
    %6082 = vmatpush1.msra.mxu0 0.0
    %6083 = vmatprep.subr.mxu0 0.0
    %6084 = vmatpush1.msra.mxu0 0.0
    %6085 = vmatprep.subr.mxu0 0.0
    %6086 = vmatpush1.msra.mxu0 0.0
    %6087 = vmatprep.subr.mxu0 0.0
    %6088 = vmatpush1.msra.mxu0 0.0
    %6089 = vmatprep.subr.mxu0 0.0
    %6090 = vmatpush1.msra.mxu0 0.0
    %6091 = vmatprep.subr.mxu0 0.0
    %6092 = vmatpush1.msra.mxu0 0.0
    %6093 = vmatprep.subr.mxu0 0.0
    %6094 = vmatpush1.msra.mxu0 0.0
    %6095 = vmatprep.subr.mxu0 0.0
    %6096 = vmatpush1.msra.mxu0 0.0
    %6097 = vmatprep.subr.mxu0 0.0
    %6098 = vmatpush1.msra.mxu0 0.0
    %6099 = vmatprep.subr.mxu0 0.0
    %6100 = vmatpush1.msra.mxu0 %v5976
    %6101 = vmatprep.subr.mxu0 0.0
    %6102 = vmatpush2.msra.mxu0 0.0
    %6103 = vmatprep.subr.mxu0 0.0
    %6104 = vmatpush2.msra.mxu0 0.0
    %6105 = vmatprep.subr.mxu0 0.0
    %6106 = vmatpush2.msra.mxu0 0.0
    %6107 = vmatprep.subr.mxu0 0.0
    %6108 = vmatpush2.msra.mxu0 0.0
    %6109 = vmatprep.subr.mxu0 0.0
    %6110 = vmatpush2.msra.mxu0 0.0
    %6111 = vmatprep.subr.mxu0 0.0
    %6112 = vmatpush2.msra.mxu0 0.0
    %6113 = vmatprep.subr.mxu0 0.0
    %6114 = vmatpush2.msra.mxu0 0.0
    %6115 = vmatprep.subr.mxu0 0.0
    %6116 = vmatpush2.msra.mxu0 0.0
    %6117 = vmatprep.subr.mxu0 0.0
    %6118 = vmatpush2.msra.mxu0 0.0
    %6119 = vmatprep.subr.mxu0 0.0
    %6120 = vmatpush2.msra.mxu0 0.0
    %6121 = vmatprep.subr.mxu0 0.0
    %6122 = vmatpush2.msra.mxu0 0.0
    %6123 = vmatprep.subr.mxu0 0.0
    %6124 = vmatpush2.msra.mxu0 0.0
    %6125 = vmatprep.subr.mxu0 0.0
    %6126 = vmatpush2.msra.mxu0 0.0
    %6127 = vmatprep.subr.mxu0 0.0
    %6128 = vmatpush2.msra.mxu0 0.0
    %6129 = vmatprep.subr.mxu0 0.0
    %6130 = vmatpush2.msra.mxu0 0.0
    %6131 = vmatprep.subr.mxu0 0.0
    %6132 = vmatpush2.msra.mxu0 0.0
    %6133 = vmatprep.mubr.f32.mxu0 0.0
    %6134 = vmatmul.mubr.f32.gmra.mxu0 %v6067
    %v6135 = vpop.f32.mrf.mxu0
    %v6136 = vadd.f32 0.0, %v6135
    %v6137 = vpop.f32.mrf.mxu0
    %6138 = vdwg.mxu0
    %6140 = vrot.lane.b32.xlu0 %v6136, 8
    %v6141 = vpop.permute.xlu0 %6140
    %6143 = vst.msk [vmem:[#allocation2 + $0x8] sm:$0xff] %vm941, %v6141
    %v6144 = vld [vmem:[%s4537] sm:$0x7]
    %v6145 = vld [vmem:[%s4539] sm:$0xff]
    %v6146 = vld [vmem:[%s4539 + $0x8] sm:$0xff]
    %v6147 = vld [vmem:[%s4539 + $0x10] sm:$0xff]
    %v6148 = vld [vmem:[%s4539 + $0x18] sm:$0xff]
    %v6149 = vlaneseq
    %v6150 = vshrl.u32 %v6149, 7
    %v6151 = vsub.s32 0, %v6150
    %v6152 = vrot.slane %v6144, %v6151
    %6153 = vmatprep.subr.mxu0 0.0
    %6154 = vmatpush1.msra.mxu0 0.0
    %6155 = vmatprep.subr.mxu0 0.0
    %6156 = vmatpush1.msra.mxu0 0.0
    %6157 = vmatprep.subr.mxu0 0.0
    %6158 = vmatpush1.msra.mxu0 0.0
    %6159 = vmatprep.subr.mxu0 0.0
    %6160 = vmatpush1.msra.mxu0 0.0
    %6161 = vmatprep.subr.mxu0 0.0
    %6162 = vmatpush1.msra.mxu0 0.0
    %6163 = vmatprep.subr.mxu0 0.0
    %6164 = vmatpush1.msra.mxu0 0.0
    %6165 = vmatprep.subr.mxu0 0.0
    %6166 = vmatpush1.msra.mxu0 0.0
    %6167 = vmatprep.subr.mxu0 0.0
    %6168 = vmatpush1.msra.mxu0 0.0
    %6169 = vmatprep.subr.mxu0 0.0
    %6170 = vmatpush1.msra.mxu0 0.0
    %6171 = vmatprep.subr.mxu0 0.0
    %6172 = vmatpush1.msra.mxu0 0.0
    %6173 = vmatprep.subr.mxu0 0.0
    %6174 = vmatpush1.msra.mxu0 0.0
    %6175 = vmatprep.subr.mxu0 0.0
    %6176 = vmatpush1.msra.mxu0 0.0
    %6177 = vmatprep.subr.mxu0 0.0
    %6178 = vmatpush1.msra.mxu0 %v6148
    %6179 = vmatprep.subr.mxu0 0.0
    %6180 = vmatpush1.msra.mxu0 %v6147
    %6181 = vmatprep.subr.mxu0 0.0
    %6182 = vmatpush1.msra.mxu0 %v6146
    %6183 = vmatprep.subr.mxu0 0.0
    %6184 = vmatpush1.msra.mxu0 %v6145
    %6185 = vmatprep.subr.mxu0 0.0
    %6186 = vmatpush2.msra.mxu0 0.0
    %6187 = vmatprep.subr.mxu0 0.0
    %6188 = vmatpush2.msra.mxu0 0.0
    %6189 = vmatprep.subr.mxu0 0.0
    %6190 = vmatpush2.msra.mxu0 0.0
    %6191 = vmatprep.subr.mxu0 0.0
    %6192 = vmatpush2.msra.mxu0 0.0
    %6193 = vmatprep.subr.mxu0 0.0
    %6194 = vmatpush2.msra.mxu0 0.0
    %6195 = vmatprep.subr.mxu0 0.0
    %6196 = vmatpush2.msra.mxu0 0.0
    %6197 = vmatprep.subr.mxu0 0.0
    %6198 = vmatpush2.msra.mxu0 0.0
    %6199 = vmatprep.subr.mxu0 0.0
    %6200 = vmatpush2.msra.mxu0 0.0
    %6201 = vmatprep.subr.mxu0 0.0
    %6202 = vmatpush2.msra.mxu0 0.0
    %6203 = vmatprep.subr.mxu0 0.0
    %6204 = vmatpush2.msra.mxu0 0.0
    %6205 = vmatprep.subr.mxu0 0.0
    %6206 = vmatpush2.msra.mxu0 0.0
    %6207 = vmatprep.subr.mxu0 0.0
    %6208 = vmatpush2.msra.mxu0 0.0
    %6209 = vmatprep.subr.mxu0 0.0
    %6210 = vmatpush2.msra.mxu0 0.0
    %6211 = vmatprep.subr.mxu0 0.0
    %6212 = vmatpush2.msra.mxu0 0.0
    %6213 = vmatprep.subr.mxu0 0.0
    %6214 = vmatpush2.msra.mxu0 0.0
    %6215 = vmatprep.subr.mxu0 0.0
    %6216 = vmatpush2.msra.mxu0 0.0
    %6217 = vmatprep.mubr.f32.mxu0 0.0
    %6218 = vmatmul.mubr.f32.gmra.mxu0 %v5355
    %v6219 = vpop.f32.mrf.mxu0
    %v6220 = vadd.f32 %v6152, %v6219
    %v6221 = vpop.f32.mrf.mxu0
    %6222 = vdwg.mxu0
    %v6223 = vld [vmem:[%s4618] sm:$0xff]
    %v6224 = vld [vmem:[%s4618 + $0x8] sm:$0xff]
    %v6225 = vld [vmem:[%s4618 + $0x10] sm:$0xff]
    %v6226 = vld [vmem:[%s4618 + $0x18] sm:$0xff]
    %v6227 = vlaneseq
    %v6228 = vshrl.u32 %v6227, 7
    %v6229 = vsub.s32 1, %v6228
    %v6230 = vrot.slane %v6144, %v6229
    %6231 = vmatprep.subr.mxu0 0.0
    %6232 = vmatpush1.msra.mxu0 0.0
    %6233 = vmatprep.subr.mxu0 0.0
    %6234 = vmatpush1.msra.mxu0 0.0
    %6235 = vmatprep.subr.mxu0 0.0
    %6236 = vmatpush1.msra.mxu0 0.0
    %6237 = vmatprep.subr.mxu0 0.0
    %6238 = vmatpush1.msra.mxu0 0.0
    %6239 = vmatprep.subr.mxu0 0.0
    %6240 = vmatpush1.msra.mxu0 0.0
    %6241 = vmatprep.subr.mxu0 0.0
    %6242 = vmatpush1.msra.mxu0 0.0
    %6243 = vmatprep.subr.mxu0 0.0
    %6244 = vmatpush1.msra.mxu0 0.0
    %6245 = vmatprep.subr.mxu0 0.0
    %6246 = vmatpush1.msra.mxu0 0.0
    %6247 = vmatprep.subr.mxu0 0.0
    %6248 = vmatpush1.msra.mxu0 0.0
    %6249 = vmatprep.subr.mxu0 0.0
    %6250 = vmatpush1.msra.mxu0 0.0
    %6251 = vmatprep.subr.mxu0 0.0
    %6252 = vmatpush1.msra.mxu0 0.0
    %6253 = vmatprep.subr.mxu0 0.0
    %6254 = vmatpush1.msra.mxu0 0.0
    %6255 = vmatprep.subr.mxu0 0.0
    %6256 = vmatpush1.msra.mxu0 %v6226
    %6257 = vmatprep.subr.mxu0 0.0
    %6258 = vmatpush1.msra.mxu0 %v6225
    %6259 = vmatprep.subr.mxu0 0.0
    %6260 = vmatpush1.msra.mxu0 %v6224
    %6261 = vmatprep.subr.mxu0 0.0
    %6262 = vmatpush1.msra.mxu0 %v6223
    %6263 = vmatprep.subr.mxu0 0.0
    %6264 = vmatpush2.msra.mxu0 0.0
    %6265 = vmatprep.subr.mxu0 0.0
    %6266 = vmatpush2.msra.mxu0 0.0
    %6267 = vmatprep.subr.mxu0 0.0
    %6268 = vmatpush2.msra.mxu0 0.0
    %6269 = vmatprep.subr.mxu0 0.0
    %6270 = vmatpush2.msra.mxu0 0.0
    %6271 = vmatprep.subr.mxu0 0.0
    %6272 = vmatpush2.msra.mxu0 0.0
    %6273 = vmatprep.subr.mxu0 0.0
    %6274 = vmatpush2.msra.mxu0 0.0
    %6275 = vmatprep.subr.mxu0 0.0
    %6276 = vmatpush2.msra.mxu0 0.0
    %6277 = vmatprep.subr.mxu0 0.0
    %6278 = vmatpush2.msra.mxu0 0.0
    %6279 = vmatprep.subr.mxu0 0.0
    %6280 = vmatpush2.msra.mxu0 0.0
    %6281 = vmatprep.subr.mxu0 0.0
    %6282 = vmatpush2.msra.mxu0 0.0
    %6283 = vmatprep.subr.mxu0 0.0
    %6284 = vmatpush2.msra.mxu0 0.0
    %6285 = vmatprep.subr.mxu0 0.0
    %6286 = vmatpush2.msra.mxu0 0.0
    %6287 = vmatprep.subr.mxu0 0.0
    %6288 = vmatpush2.msra.mxu0 0.0
    %6289 = vmatprep.subr.mxu0 0.0
    %6290 = vmatpush2.msra.mxu0 0.0
    %6291 = vmatprep.subr.mxu0 0.0
    %6292 = vmatpush2.msra.mxu0 0.0
    %6293 = vmatprep.subr.mxu0 0.0
    %6294 = vmatpush2.msra.mxu0 0.0
    %6295 = vmatprep.mubr.f32.mxu0 0.0
    %6296 = vmatmul.mubr.f32.gmra.mxu0 %v5355
    %v6297 = vpop.f32.mrf.mxu0
    %v6298 = vadd.f32 %v6230, %v6297
    %v6299 = vpop.f32.mrf.mxu0
    %6300 = vdwg.mxu0
    %v6301 = vld [vmem:[%s4697] sm:$0xff]
    %v6302 = vld [vmem:[%s4697 + $0x8] sm:$0xff]
    %v6303 = vld [vmem:[%s4697 + $0x10] sm:$0xff]
    %v6304 = vld [vmem:[%s4697 + $0x18] sm:$0xff]
    %v6305 = vlaneseq
    %v6306 = vshrl.u32 %v6305, 7
    %v6307 = vsub.s32 2, %v6306
    %v6308 = vrot.slane %v6144, %v6307
    %6309 = vmatprep.subr.mxu0 0.0
    %6310 = vmatpush1.msra.mxu0 0.0
    %6311 = vmatprep.subr.mxu0 0.0
    %6312 = vmatpush1.msra.mxu0 0.0
    %6313 = vmatprep.subr.mxu0 0.0
    %6314 = vmatpush1.msra.mxu0 0.0
    %6315 = vmatprep.subr.mxu0 0.0
    %6316 = vmatpush1.msra.mxu0 0.0
    %6317 = vmatprep.subr.mxu0 0.0
    %6318 = vmatpush1.msra.mxu0 0.0
    %6319 = vmatprep.subr.mxu0 0.0
    %6320 = vmatpush1.msra.mxu0 0.0
    %6321 = vmatprep.subr.mxu0 0.0
    %6322 = vmatpush1.msra.mxu0 0.0
    %6323 = vmatprep.subr.mxu0 0.0
    %6324 = vmatpush1.msra.mxu0 0.0
    %6325 = vmatprep.subr.mxu0 0.0
    %6326 = vmatpush1.msra.mxu0 0.0
    %6327 = vmatprep.subr.mxu0 0.0
    %6328 = vmatpush1.msra.mxu0 0.0
    %6329 = vmatprep.subr.mxu0 0.0
    %6330 = vmatpush1.msra.mxu0 0.0
    %6331 = vmatprep.subr.mxu0 0.0
    %6332 = vmatpush1.msra.mxu0 0.0
    %6333 = vmatprep.subr.mxu0 0.0
    %6334 = vmatpush1.msra.mxu0 %v6304
    %6335 = vmatprep.subr.mxu0 0.0
    %6336 = vmatpush1.msra.mxu0 %v6303
    %6337 = vmatprep.subr.mxu0 0.0
    %6338 = vmatpush1.msra.mxu0 %v6302
    %6339 = vmatprep.subr.mxu0 0.0
    %6340 = vmatpush1.msra.mxu0 %v6301
    %6341 = vmatprep.subr.mxu0 0.0
    %6342 = vmatpush2.msra.mxu0 0.0
    %6343 = vmatprep.subr.mxu0 0.0
    %6344 = vmatpush2.msra.mxu0 0.0
    %6345 = vmatprep.subr.mxu0 0.0
    %6346 = vmatpush2.msra.mxu0 0.0
    %6347 = vmatprep.subr.mxu0 0.0
    %6348 = vmatpush2.msra.mxu0 0.0
    %6349 = vmatprep.subr.mxu0 0.0
    %6350 = vmatpush2.msra.mxu0 0.0
    %6351 = vmatprep.subr.mxu0 0.0
    %6352 = vmatpush2.msra.mxu0 0.0
    %6353 = vmatprep.subr.mxu0 0.0
    %6354 = vmatpush2.msra.mxu0 0.0
    %6355 = vmatprep.subr.mxu0 0.0
    %6356 = vmatpush2.msra.mxu0 0.0
    %6357 = vmatprep.subr.mxu0 0.0
    %6358 = vmatpush2.msra.mxu0 0.0
    %6359 = vmatprep.subr.mxu0 0.0
    %6360 = vmatpush2.msra.mxu0 0.0
    %6361 = vmatprep.subr.mxu0 0.0
    %6362 = vmatpush2.msra.mxu0 0.0
    %6363 = vmatprep.subr.mxu0 0.0
    %6364 = vmatpush2.msra.mxu0 0.0
    %6365 = vmatprep.subr.mxu0 0.0
    %6366 = vmatpush2.msra.mxu0 0.0
    %6367 = vmatprep.subr.mxu0 0.0
    %6368 = vmatpush2.msra.mxu0 0.0
    %6369 = vmatprep.subr.mxu0 0.0
    %6370 = vmatpush2.msra.mxu0 0.0
    %6371 = vmatprep.subr.mxu0 0.0
    %6372 = vmatpush2.msra.mxu0 0.0
    %6373 = vmatprep.mubr.f32.mxu0 0.0
    %6374 = vmatmul.mubr.f32.gmra.mxu0 %v5355
    %v6375 = vpop.f32.mrf.mxu0
    %v6376 = vadd.f32 %v6308, %v6375
    %v6377 = vpop.f32.mrf.mxu0
    %6378 = vdwg.mxu0
    %v6380 = vsel %vm376, %v6220, 0
    %v6383 = vsel %vm376, %v6298, 0
    %6385 = vmatprep.subr.mxu0 0.0
    %6386 = vmatpush1.xpose.msra.mxu0 0.0
    %6387 = vmatprep.subr.mxu0 0.0
    %6388 = vmatpush1.xpose.msra.mxu0 0.0
    %6389 = vmatprep.subr.mxu0 0.0
    %6390 = vmatpush1.xpose.msra.mxu0 0.0
    %6391 = vmatprep.subr.mxu0 0.0
    %6392 = vmatpush1.xpose.msra.mxu0 0.0
    %6393 = vmatprep.subr.mxu0 0.0
    %6394 = vmatpush1.xpose.msra.mxu0 0.0
    %6395 = vmatprep.subr.mxu0 0.0
    %6396 = vmatpush1.xpose.msra.mxu0 0.0
    %6397 = vmatprep.subr.mxu0 0.0
    %6398 = vmatpush1.xpose.msra.mxu0 0.0
    %6399 = vmatprep.subr.mxu0 0.0
    %6400 = vmatpush1.xpose.msra.mxu0 0.0
    %6401 = vmatprep.subr.mxu0 0.0
    %6402 = vmatpush1.xpose.msra.mxu0 0.0
    %6403 = vmatprep.subr.mxu0 0.0
    %6404 = vmatpush1.xpose.msra.mxu0 0.0
    %6405 = vmatprep.subr.mxu0 0.0
    %6406 = vmatpush1.xpose.msra.mxu0 0.0
    %6407 = vmatprep.subr.mxu0 0.0
    %6408 = vmatpush1.xpose.msra.mxu0 0.0
    %6409 = vmatprep.subr.mxu0 0.0
    %6410 = vmatpush1.xpose.msra.mxu0 0.0
    %6411 = vmatprep.subr.mxu0 0.0
    %6412 = vmatpush1.xpose.msra.mxu0 0.0
    %6413 = vmatprep.subr.mxu0 0.0
    %6414 = vmatpush1.xpose.msra.mxu0 0.0
    %6415 = vmatprep.subr.mxu0 0.0
    %6416 = vmatpush1.xpose.msra.mxu0 %v6383
    %6417 = vmatprep.subr.mxu0 0.0
    %6418 = vmatpush2.xpose.msra.mxu0 0.0
    %6419 = vmatprep.subr.mxu0 0.0
    %6420 = vmatpush2.xpose.msra.mxu0 0.0
    %6421 = vmatprep.subr.mxu0 0.0
    %6422 = vmatpush2.xpose.msra.mxu0 0.0
    %6423 = vmatprep.subr.mxu0 0.0
    %6424 = vmatpush2.xpose.msra.mxu0 0.0
    %6425 = vmatprep.subr.mxu0 0.0
    %6426 = vmatpush2.xpose.msra.mxu0 0.0
    %6427 = vmatprep.subr.mxu0 0.0
    %6428 = vmatpush2.xpose.msra.mxu0 0.0
    %6429 = vmatprep.subr.mxu0 0.0
    %6430 = vmatpush2.xpose.msra.mxu0 0.0
    %6431 = vmatprep.subr.mxu0 0.0
    %6432 = vmatpush2.xpose.msra.mxu0 0.0
    %6433 = vmatprep.subr.mxu0 0.0
    %6434 = vmatpush2.xpose.msra.mxu0 0.0
    %6435 = vmatprep.subr.mxu0 0.0
    %6436 = vmatpush2.xpose.msra.mxu0 0.0
    %6437 = vmatprep.subr.mxu0 0.0
    %6438 = vmatpush2.xpose.msra.mxu0 0.0
    %6439 = vmatprep.subr.mxu0 0.0
    %6440 = vmatpush2.xpose.msra.mxu0 0.0
    %6441 = vmatprep.subr.mxu0 0.0
    %6442 = vmatpush2.xpose.msra.mxu0 0.0
    %6443 = vmatprep.subr.mxu0 0.0
    %6444 = vmatpush2.xpose.msra.mxu0 0.0
    %6445 = vmatprep.subr.mxu0 0.0
    %6446 = vmatpush2.xpose.msra.mxu0 0.0
    %6447 = vmatprep.subr.mxu0 0.0
    %6448 = vmatpush2.xpose.msra.mxu0 0.0
    %6449 = vmatprep.mubr.f32.mxu0 0.0
    %6450 = vmatmul.mubr.f32.gmra.mxu0 %v6380
    %v6451 = vpop.f32.mrf.mxu0
    %v6452 = vadd.f32 0.0, %v6451
    %v6453 = vpop.f32.mrf.mxu0
    %6454 = vdwg.mxu0
    %v6455 = vsel %vm376, %v6452, -inf
    %6456 = vmax.xlane.f32.xlu0 %v6455
    %v6457 = vpop.xlane.xlu0 %6456
    %v6458 = vsub.f32 %v6452, %v6457
    %v6459 = vmul.f32 %v6458, 1.442695
    %v6460 = vpow.pop %v6459
    %v6461 = vsel %vm376, %v6460, 0.0
    %6462 = vadd.xlane.f32.xlu0 %v6461
    %v6463 = vpop.xlane.xlu0 %6462
    %v6464 = vrcp.pop %v6463
    %v6465 = vmul.f32 %v6460, %v6464
    %v6467 = vsel %vm376, %v6465, 0
    %6469 = vmatprep.subr.mxu0 0.0
    %6470 = vmatpush1.msra.mxu0 0.0
    %6471 = vmatprep.subr.mxu0 0.0
    %6472 = vmatpush1.msra.mxu0 0.0
    %6473 = vmatprep.subr.mxu0 0.0
    %6474 = vmatpush1.msra.mxu0 0.0
    %6475 = vmatprep.subr.mxu0 0.0
    %6476 = vmatpush1.msra.mxu0 0.0
    %6477 = vmatprep.subr.mxu0 0.0
    %6478 = vmatpush1.msra.mxu0 0.0
    %6479 = vmatprep.subr.mxu0 0.0
    %6480 = vmatpush1.msra.mxu0 0.0
    %6481 = vmatprep.subr.mxu0 0.0
    %6482 = vmatpush1.msra.mxu0 0.0
    %6483 = vmatprep.subr.mxu0 0.0
    %6484 = vmatpush1.msra.mxu0 0.0
    %6485 = vmatprep.subr.mxu0 0.0
    %6486 = vmatpush1.msra.mxu0 0.0
    %6487 = vmatprep.subr.mxu0 0.0
    %6488 = vmatpush1.msra.mxu0 0.0
    %6489 = vmatprep.subr.mxu0 0.0
    %6490 = vmatpush1.msra.mxu0 0.0
    %6491 = vmatprep.subr.mxu0 0.0
    %6492 = vmatpush1.msra.mxu0 0.0
    %6493 = vmatprep.subr.mxu0 0.0
    %6494 = vmatpush1.msra.mxu0 0.0
    %6495 = vmatprep.subr.mxu0 0.0
    %6496 = vmatpush1.msra.mxu0 0.0
    %6497 = vmatprep.subr.mxu0 0.0
    %6498 = vmatpush1.msra.mxu0 0.0
    %6499 = vmatprep.subr.mxu0 0.0
    %6500 = vmatpush1.msra.mxu0 %v6376
    %6501 = vmatprep.subr.mxu0 0.0
    %6502 = vmatpush2.msra.mxu0 0.0
    %6503 = vmatprep.subr.mxu0 0.0
    %6504 = vmatpush2.msra.mxu0 0.0
    %6505 = vmatprep.subr.mxu0 0.0
    %6506 = vmatpush2.msra.mxu0 0.0
    %6507 = vmatprep.subr.mxu0 0.0
    %6508 = vmatpush2.msra.mxu0 0.0
    %6509 = vmatprep.subr.mxu0 0.0
    %6510 = vmatpush2.msra.mxu0 0.0
    %6511 = vmatprep.subr.mxu0 0.0
    %6512 = vmatpush2.msra.mxu0 0.0
    %6513 = vmatprep.subr.mxu0 0.0
    %6514 = vmatpush2.msra.mxu0 0.0
    %6515 = vmatprep.subr.mxu0 0.0
    %6516 = vmatpush2.msra.mxu0 0.0
    %6517 = vmatprep.subr.mxu0 0.0
    %6518 = vmatpush2.msra.mxu0 0.0
    %6519 = vmatprep.subr.mxu0 0.0
    %6520 = vmatpush2.msra.mxu0 0.0
    %6521 = vmatprep.subr.mxu0 0.0
    %6522 = vmatpush2.msra.mxu0 0.0
    %6523 = vmatprep.subr.mxu0 0.0
    %6524 = vmatpush2.msra.mxu0 0.0
    %6525 = vmatprep.subr.mxu0 0.0
    %6526 = vmatpush2.msra.mxu0 0.0
    %6527 = vmatprep.subr.mxu0 0.0
    %6528 = vmatpush2.msra.mxu0 0.0
    %6529 = vmatprep.subr.mxu0 0.0
    %6530 = vmatpush2.msra.mxu0 0.0
    %6531 = vmatprep.subr.mxu0 0.0
    %6532 = vmatpush2.msra.mxu0 0.0
    %6533 = vmatprep.mubr.f32.mxu0 0.0
    %6534 = vmatmul.mubr.f32.gmra.mxu0 %v6467
    %v6535 = vpop.f32.mrf.mxu0
    %v6536 = vadd.f32 0.0, %v6535
    %v6537 = vpop.f32.mrf.mxu0
    %6538 = vdwg.mxu0
    %6540 = vrot.lane.b32.xlu0 %v6536, 16
    %v6541 = vpop.permute.xlu0 %6540
    %6543 = vst.msk [vmem:[#allocation2 + $0x8] sm:$0xff] %vm1346, %v6541
    %v6544 = vld [vmem:[%s4941] sm:$0x7]
    %v6545 = vld [vmem:[%s4943] sm:$0xff]
    %v6546 = vld [vmem:[%s4943 + $0x8] sm:$0xff]
    %v6547 = vld [vmem:[%s4943 + $0x10] sm:$0xff]
    %v6548 = vld [vmem:[%s4943 + $0x18] sm:$0xff]
    %v6549 = vlaneseq
    %v6550 = vshrl.u32 %v6549, 7
    %v6551 = vsub.s32 0, %v6550
    %v6552 = vrot.slane %v6544, %v6551
    %6553 = vmatprep.subr.mxu0 0.0
    %6554 = vmatpush1.msra.mxu0 0.0
    %6555 = vmatprep.subr.mxu0 0.0
    %6556 = vmatpush1.msra.mxu0 0.0
    %6557 = vmatprep.subr.mxu0 0.0
    %6558 = vmatpush1.msra.mxu0 0.0
    %6559 = vmatprep.subr.mxu0 0.0
    %6560 = vmatpush1.msra.mxu0 0.0
    %6561 = vmatprep.subr.mxu0 0.0
    %6562 = vmatpush1.msra.mxu0 0.0
    %6563 = vmatprep.subr.mxu0 0.0
    %6564 = vmatpush1.msra.mxu0 0.0
    %6565 = vmatprep.subr.mxu0 0.0
    %6566 = vmatpush1.msra.mxu0 0.0
    %6567 = vmatprep.subr.mxu0 0.0
    %6568 = vmatpush1.msra.mxu0 0.0
    %6569 = vmatprep.subr.mxu0 0.0
    %6570 = vmatpush1.msra.mxu0 0.0
    %6571 = vmatprep.subr.mxu0 0.0
    %6572 = vmatpush1.msra.mxu0 0.0
    %6573 = vmatprep.subr.mxu0 0.0
    %6574 = vmatpush1.msra.mxu0 0.0
    %6575 = vmatprep.subr.mxu0 0.0
    %6576 = vmatpush1.msra.mxu0 0.0
    %6577 = vmatprep.subr.mxu0 0.0
    %6578 = vmatpush1.msra.mxu0 %v6548
    %6579 = vmatprep.subr.mxu0 0.0
    %6580 = vmatpush1.msra.mxu0 %v6547
    %6581 = vmatprep.subr.mxu0 0.0
    %6582 = vmatpush1.msra.mxu0 %v6546
    %6583 = vmatprep.subr.mxu0 0.0
    %6584 = vmatpush1.msra.mxu0 %v6545
    %6585 = vmatprep.subr.mxu0 0.0
    %6586 = vmatpush2.msra.mxu0 0.0
    %6587 = vmatprep.subr.mxu0 0.0
    %6588 = vmatpush2.msra.mxu0 0.0
    %6589 = vmatprep.subr.mxu0 0.0
    %6590 = vmatpush2.msra.mxu0 0.0
    %6591 = vmatprep.subr.mxu0 0.0
    %6592 = vmatpush2.msra.mxu0 0.0
    %6593 = vmatprep.subr.mxu0 0.0
    %6594 = vmatpush2.msra.mxu0 0.0
    %6595 = vmatprep.subr.mxu0 0.0
    %6596 = vmatpush2.msra.mxu0 0.0
    %6597 = vmatprep.subr.mxu0 0.0
    %6598 = vmatpush2.msra.mxu0 0.0
    %6599 = vmatprep.subr.mxu0 0.0
    %6600 = vmatpush2.msra.mxu0 0.0
    %6601 = vmatprep.subr.mxu0 0.0
    %6602 = vmatpush2.msra.mxu0 0.0
    %6603 = vmatprep.subr.mxu0 0.0
    %6604 = vmatpush2.msra.mxu0 0.0
    %6605 = vmatprep.subr.mxu0 0.0
    %6606 = vmatpush2.msra.mxu0 0.0
    %6607 = vmatprep.subr.mxu0 0.0
    %6608 = vmatpush2.msra.mxu0 0.0
    %6609 = vmatprep.subr.mxu0 0.0
    %6610 = vmatpush2.msra.mxu0 0.0
    %6611 = vmatprep.subr.mxu0 0.0
    %6612 = vmatpush2.msra.mxu0 0.0
    %6613 = vmatprep.subr.mxu0 0.0
    %6614 = vmatpush2.msra.mxu0 0.0
    %6615 = vmatprep.subr.mxu0 0.0
    %6616 = vmatpush2.msra.mxu0 0.0
    %6617 = vmatprep.mubr.f32.mxu0 0.0
    %6618 = vmatmul.mubr.f32.gmra.mxu0 %v5355
    %v6619 = vpop.f32.mrf.mxu0
    %v6620 = vadd.f32 %v6552, %v6619
    %v6621 = vpop.f32.mrf.mxu0
    %6622 = vdwg.mxu0
    %v6623 = vld [vmem:[%s5022] sm:$0xff]
    %v6624 = vld [vmem:[%s5022 + $0x8] sm:$0xff]
    %v6625 = vld [vmem:[%s5022 + $0x10] sm:$0xff]
    %v6626 = vld [vmem:[%s5022 + $0x18] sm:$0xff]
    %v6627 = vlaneseq
    %v6628 = vshrl.u32 %v6627, 7
    %v6629 = vsub.s32 1, %v6628
    %v6630 = vrot.slane %v6544, %v6629
    %6631 = vmatprep.subr.mxu0 0.0
    %6632 = vmatpush1.msra.mxu0 0.0
    %6633 = vmatprep.subr.mxu0 0.0
    %6634 = vmatpush1.msra.mxu0 0.0
    %6635 = vmatprep.subr.mxu0 0.0
    %6636 = vmatpush1.msra.mxu0 0.0
    %6637 = vmatprep.subr.mxu0 0.0
    %6638 = vmatpush1.msra.mxu0 0.0
    %6639 = vmatprep.subr.mxu0 0.0
    %6640 = vmatpush1.msra.mxu0 0.0
    %6641 = vmatprep.subr.mxu0 0.0
    %6642 = vmatpush1.msra.mxu0 0.0
    %6643 = vmatprep.subr.mxu0 0.0
    %6644 = vmatpush1.msra.mxu0 0.0
    %6645 = vmatprep.subr.mxu0 0.0
    %6646 = vmatpush1.msra.mxu0 0.0
    %6647 = vmatprep.subr.mxu0 0.0
    %6648 = vmatpush1.msra.mxu0 0.0
    %6649 = vmatprep.subr.mxu0 0.0
    %6650 = vmatpush1.msra.mxu0 0.0
    %6651 = vmatprep.subr.mxu0 0.0
    %6652 = vmatpush1.msra.mxu0 0.0
    %6653 = vmatprep.subr.mxu0 0.0
    %6654 = vmatpush1.msra.mxu0 0.0
    %6655 = vmatprep.subr.mxu0 0.0
    %6656 = vmatpush1.msra.mxu0 %v6626
    %6657 = vmatprep.subr.mxu0 0.0
    %6658 = vmatpush1.msra.mxu0 %v6625
    %6659 = vmatprep.subr.mxu0 0.0
    %6660 = vmatpush1.msra.mxu0 %v6624
    %6661 = vmatprep.subr.mxu0 0.0
    %6662 = vmatpush1.msra.mxu0 %v6623
    %6663 = vmatprep.subr.mxu0 0.0
    %6664 = vmatpush2.msra.mxu0 0.0
    %6665 = vmatprep.subr.mxu0 0.0
    %6666 = vmatpush2.msra.mxu0 0.0
    %6667 = vmatprep.subr.mxu0 0.0
    %6668 = vmatpush2.msra.mxu0 0.0
    %6669 = vmatprep.subr.mxu0 0.0
    %6670 = vmatpush2.msra.mxu0 0.0
    %6671 = vmatprep.subr.mxu0 0.0
    %6672 = vmatpush2.msra.mxu0 0.0
    %6673 = vmatprep.subr.mxu0 0.0
    %6674 = vmatpush2.msra.mxu0 0.0
    %6675 = vmatprep.subr.mxu0 0.0
    %6676 = vmatpush2.msra.mxu0 0.0
    %6677 = vmatprep.subr.mxu0 0.0
    %6678 = vmatpush2.msra.mxu0 0.0
    %6679 = vmatprep.subr.mxu0 0.0
    %6680 = vmatpush2.msra.mxu0 0.0
    %6681 = vmatprep.subr.mxu0 0.0
    %6682 = vmatpush2.msra.mxu0 0.0
    %6683 = vmatprep.subr.mxu0 0.0
    %6684 = vmatpush2.msra.mxu0 0.0
    %6685 = vmatprep.subr.mxu0 0.0
    %6686 = vmatpush2.msra.mxu0 0.0
    %6687 = vmatprep.subr.mxu0 0.0
    %6688 = vmatpush2.msra.mxu0 0.0
    %6689 = vmatprep.subr.mxu0 0.0
    %6690 = vmatpush2.msra.mxu0 0.0
    %6691 = vmatprep.subr.mxu0 0.0
    %6692 = vmatpush2.msra.mxu0 0.0
    %6693 = vmatprep.subr.mxu0 0.0
    %6694 = vmatpush2.msra.mxu0 0.0
    %6695 = vmatprep.mubr.f32.mxu0 0.0
    %6696 = vmatmul.mubr.f32.gmra.mxu0 %v5355
    %v6697 = vpop.f32.mrf.mxu0
    %v6698 = vadd.f32 %v6630, %v6697
    %v6699 = vpop.f32.mrf.mxu0
    %6700 = vdwg.mxu0
    %v6701 = vld [vmem:[%s5101] sm:$0xff]
    %v6702 = vld [vmem:[%s5101 + $0x8] sm:$0xff]
    %v6703 = vld [vmem:[%s5101 + $0x10] sm:$0xff]
    %v6704 = vld [vmem:[%s5101 + $0x18] sm:$0xff]
    %v6705 = vlaneseq
    %v6706 = vshrl.u32 %v6705, 7
    %v6707 = vsub.s32 2, %v6706
    %v6708 = vrot.slane %v6544, %v6707
    %6709 = vmatprep.subr.mxu0 0.0
    %6710 = vmatpush1.msra.mxu0 0.0
    %6711 = vmatprep.subr.mxu0 0.0
    %6712 = vmatpush1.msra.mxu0 0.0
    %6713 = vmatprep.subr.mxu0 0.0
    %6714 = vmatpush1.msra.mxu0 0.0
    %6715 = vmatprep.subr.mxu0 0.0
    %6716 = vmatpush1.msra.mxu0 0.0
    %6717 = vmatprep.subr.mxu0 0.0
    %6718 = vmatpush1.msra.mxu0 0.0
    %6719 = vmatprep.subr.mxu0 0.0
    %6720 = vmatpush1.msra.mxu0 0.0
    %6721 = vmatprep.subr.mxu0 0.0
    %6722 = vmatpush1.msra.mxu0 0.0
    %6723 = vmatprep.subr.mxu0 0.0
    %6724 = vmatpush1.msra.mxu0 0.0
    %6725 = vmatprep.subr.mxu0 0.0
    %6726 = vmatpush1.msra.mxu0 0.0
    %6727 = vmatprep.subr.mxu0 0.0
    %6728 = vmatpush1.msra.mxu0 0.0
    %6729 = vmatprep.subr.mxu0 0.0
    %6730 = vmatpush1.msra.mxu0 0.0
    %6731 = vmatprep.subr.mxu0 0.0
    %6732 = vmatpush1.msra.mxu0 0.0
    %6733 = vmatprep.subr.mxu0 0.0
    %6734 = vmatpush1.msra.mxu0 %v6704
    %6735 = vmatprep.subr.mxu0 0.0
    %6736 = vmatpush1.msra.mxu0 %v6703
    %6737 = vmatprep.subr.mxu0 0.0
    %6738 = vmatpush1.msra.mxu0 %v6702
    %6739 = vmatprep.subr.mxu0 0.0
    %6740 = vmatpush1.msra.mxu0 %v6701
    %6741 = vmatprep.subr.mxu0 0.0
    %6742 = vmatpush2.msra.mxu0 0.0
    %6743 = vmatprep.subr.mxu0 0.0
    %6744 = vmatpush2.msra.mxu0 0.0
    %6745 = vmatprep.subr.mxu0 0.0
    %6746 = vmatpush2.msra.mxu0 0.0
    %6747 = vmatprep.subr.mxu0 0.0
    %6748 = vmatpush2.msra.mxu0 0.0
    %6749 = vmatprep.subr.mxu0 0.0
    %6750 = vmatpush2.msra.mxu0 0.0
    %6751 = vmatprep.subr.mxu0 0.0
    %6752 = vmatpush2.msra.mxu0 0.0
    %6753 = vmatprep.subr.mxu0 0.0
    %6754 = vmatpush2.msra.mxu0 0.0
    %6755 = vmatprep.subr.mxu0 0.0
    %6756 = vmatpush2.msra.mxu0 0.0
    %6757 = vmatprep.subr.mxu0 0.0
    %6758 = vmatpush2.msra.mxu0 0.0
    %6759 = vmatprep.subr.mxu0 0.0
    %6760 = vmatpush2.msra.mxu0 0.0
    %6761 = vmatprep.subr.mxu0 0.0
    %6762 = vmatpush2.msra.mxu0 0.0
    %6763 = vmatprep.subr.mxu0 0.0
    %6764 = vmatpush2.msra.mxu0 0.0
    %6765 = vmatprep.subr.mxu0 0.0
    %6766 = vmatpush2.msra.mxu0 0.0
    %6767 = vmatprep.subr.mxu0 0.0
    %6768 = vmatpush2.msra.mxu0 0.0
    %6769 = vmatprep.subr.mxu0 0.0
    %6770 = vmatpush2.msra.mxu0 0.0
    %6771 = vmatprep.subr.mxu0 0.0
    %6772 = vmatpush2.msra.mxu0 0.0
    %6773 = vmatprep.mubr.f32.mxu0 0.0
    %6774 = vmatmul.mubr.f32.gmra.mxu0 %v5355
    %v6775 = vpop.f32.mrf.mxu0
    %v6776 = vadd.f32 %v6708, %v6775
    %v6777 = vpop.f32.mrf.mxu0
    %6778 = vdwg.mxu0
    %v6780 = vsel %vm376, %v6620, 0
    %v6783 = vsel %vm376, %v6698, 0
    %6785 = vmatprep.subr.mxu0 0.0
    %6786 = vmatpush1.xpose.msra.mxu0 0.0
    %6787 = vmatprep.subr.mxu0 0.0
    %6788 = vmatpush1.xpose.msra.mxu0 0.0
    %6789 = vmatprep.subr.mxu0 0.0
    %6790 = vmatpush1.xpose.msra.mxu0 0.0
    %6791 = vmatprep.subr.mxu0 0.0
    %6792 = vmatpush1.xpose.msra.mxu0 0.0
    %6793 = vmatprep.subr.mxu0 0.0
    %6794 = vmatpush1.xpose.msra.mxu0 0.0
    %6795 = vmatprep.subr.mxu0 0.0
    %6796 = vmatpush1.xpose.msra.mxu0 0.0
    %6797 = vmatprep.subr.mxu0 0.0
    %6798 = vmatpush1.xpose.msra.mxu0 0.0
    %6799 = vmatprep.subr.mxu0 0.0
    %6800 = vmatpush1.xpose.msra.mxu0 0.0
    %6801 = vmatprep.subr.mxu0 0.0
    %6802 = vmatpush1.xpose.msra.mxu0 0.0
    %6803 = vmatprep.subr.mxu0 0.0
    %6804 = vmatpush1.xpose.msra.mxu0 0.0
    %6805 = vmatprep.subr.mxu0 0.0
    %6806 = vmatpush1.xpose.msra.mxu0 0.0
    %6807 = vmatprep.subr.mxu0 0.0
    %6808 = vmatpush1.xpose.msra.mxu0 0.0
    %6809 = vmatprep.subr.mxu0 0.0
    %6810 = vmatpush1.xpose.msra.mxu0 0.0
    %6811 = vmatprep.subr.mxu0 0.0
    %6812 = vmatpush1.xpose.msra.mxu0 0.0
    %6813 = vmatprep.subr.mxu0 0.0
    %6814 = vmatpush1.xpose.msra.mxu0 0.0
    %6815 = vmatprep.subr.mxu0 0.0
    %6816 = vmatpush1.xpose.msra.mxu0 %v6783
    %6817 = vmatprep.subr.mxu0 0.0
    %6818 = vmatpush2.xpose.msra.mxu0 0.0
    %6819 = vmatprep.subr.mxu0 0.0
    %6820 = vmatpush2.xpose.msra.mxu0 0.0
    %6821 = vmatprep.subr.mxu0 0.0
    %6822 = vmatpush2.xpose.msra.mxu0 0.0
    %6823 = vmatprep.subr.mxu0 0.0
    %6824 = vmatpush2.xpose.msra.mxu0 0.0
    %6825 = vmatprep.subr.mxu0 0.0
    %6826 = vmatpush2.xpose.msra.mxu0 0.0
    %6827 = vmatprep.subr.mxu0 0.0
    %6828 = vmatpush2.xpose.msra.mxu0 0.0
    %6829 = vmatprep.subr.mxu0 0.0
    %6830 = vmatpush2.xpose.msra.mxu0 0.0
    %6831 = vmatprep.subr.mxu0 0.0
    %6832 = vmatpush2.xpose.msra.mxu0 0.0
    %6833 = vmatprep.subr.mxu0 0.0
    %6834 = vmatpush2.xpose.msra.mxu0 0.0
    %6835 = vmatprep.subr.mxu0 0.0
    %6836 = vmatpush2.xpose.msra.mxu0 0.0
    %6837 = vmatprep.subr.mxu0 0.0
    %6838 = vmatpush2.xpose.msra.mxu0 0.0
    %6839 = vmatprep.subr.mxu0 0.0
    %6840 = vmatpush2.xpose.msra.mxu0 0.0
    %6841 = vmatprep.subr.mxu0 0.0
    %6842 = vmatpush2.xpose.msra.mxu0 0.0
    %6843 = vmatprep.subr.mxu0 0.0
    %6844 = vmatpush2.xpose.msra.mxu0 0.0
    %6845 = vmatprep.subr.mxu0 0.0
    %6846 = vmatpush2.xpose.msra.mxu0 0.0
    %6847 = vmatprep.subr.mxu0 0.0
    %6848 = vmatpush2.xpose.msra.mxu0 0.0
    %6849 = vmatprep.mubr.f32.mxu0 0.0
    %6850 = vmatmul.mubr.f32.gmra.mxu0 %v6780
    %v6851 = vpop.f32.mrf.mxu0
    %v6852 = vadd.f32 0.0, %v6851
    %v6853 = vpop.f32.mrf.mxu0
    %6854 = vdwg.mxu0
    %v6855 = vsel %vm376, %v6852, -inf
    %6856 = vmax.xlane.f32.xlu0 %v6855
    %v6857 = vpop.xlane.xlu0 %6856
    %v6858 = vsub.f32 %v6852, %v6857
    %v6859 = vmul.f32 %v6858, 1.442695
    %v6860 = vpow.pop %v6859
    %v6861 = vsel %vm376, %v6860, 0.0
    %6862 = vadd.xlane.f32.xlu0 %v6861
    %v6863 = vpop.xlane.xlu0 %6862
    %v6864 = vrcp.pop %v6863
    %v6865 = vmul.f32 %v6860, %v6864
    %v6867 = vsel %vm376, %v6865, 0
    %6869 = vmatprep.subr.mxu0 0.0
    %6870 = vmatpush1.msra.mxu0 0.0
    %6871 = vmatprep.subr.mxu0 0.0
    %6872 = vmatpush1.msra.mxu0 0.0
    %6873 = vmatprep.subr.mxu0 0.0
    %6874 = vmatpush1.msra.mxu0 0.0
    %6875 = vmatprep.subr.mxu0 0.0
    %6876 = vmatpush1.msra.mxu0 0.0
    %6877 = vmatprep.subr.mxu0 0.0
    %6878 = vmatpush1.msra.mxu0 0.0
    %6879 = vmatprep.subr.mxu0 0.0
    %6880 = vmatpush1.msra.mxu0 0.0
    %6881 = vmatprep.subr.mxu0 0.0
    %6882 = vmatpush1.msra.mxu0 0.0
    %6883 = vmatprep.subr.mxu0 0.0
    %6884 = vmatpush1.msra.mxu0 0.0
    %6885 = vmatprep.subr.mxu0 0.0
    %6886 = vmatpush1.msra.mxu0 0.0
    %6887 = vmatprep.subr.mxu0 0.0
    %6888 = vmatpush1.msra.mxu0 0.0
    %6889 = vmatprep.subr.mxu0 0.0
    %6890 = vmatpush1.msra.mxu0 0.0
    %6891 = vmatprep.subr.mxu0 0.0
    %6892 = vmatpush1.msra.mxu0 0.0
    %6893 = vmatprep.subr.mxu0 0.0
    %6894 = vmatpush1.msra.mxu0 0.0
    %6895 = vmatprep.subr.mxu0 0.0
    %6896 = vmatpush1.msra.mxu0 0.0
    %6897 = vmatprep.subr.mxu0 0.0
    %6898 = vmatpush1.msra.mxu0 0.0
    %6899 = vmatprep.subr.mxu0 0.0
    %6900 = vmatpush1.msra.mxu0 %v6776
    %6901 = vmatprep.subr.mxu0 0.0
    %6902 = vmatpush2.msra.mxu0 0.0
    %6903 = vmatprep.subr.mxu0 0.0
    %6904 = vmatpush2.msra.mxu0 0.0
    %6905 = vmatprep.subr.mxu0 0.0
    %6906 = vmatpush2.msra.mxu0 0.0
    %6907 = vmatprep.subr.mxu0 0.0
    %6908 = vmatpush2.msra.mxu0 0.0
    %6909 = vmatprep.subr.mxu0 0.0
    %6910 = vmatpush2.msra.mxu0 0.0
    %6911 = vmatprep.subr.mxu0 0.0
    %6912 = vmatpush2.msra.mxu0 0.0
    %6913 = vmatprep.subr.mxu0 0.0
    %6914 = vmatpush2.msra.mxu0 0.0
    %6915 = vmatprep.subr.mxu0 0.0
    %6916 = vmatpush2.msra.mxu0 0.0
    %6917 = vmatprep.subr.mxu0 0.0
    %6918 = vmatpush2.msra.mxu0 0.0
    %6919 = vmatprep.subr.mxu0 0.0
    %6920 = vmatpush2.msra.mxu0 0.0
    %6921 = vmatprep.subr.mxu0 0.0
    %6922 = vmatpush2.msra.mxu0 0.0
    %6923 = vmatprep.subr.mxu0 0.0
    %6924 = vmatpush2.msra.mxu0 0.0
    %6925 = vmatprep.subr.mxu0 0.0
    %6926 = vmatpush2.msra.mxu0 0.0
    %6927 = vmatprep.subr.mxu0 0.0
    %6928 = vmatpush2.msra.mxu0 0.0
    %6929 = vmatprep.subr.mxu0 0.0
    %6930 = vmatpush2.msra.mxu0 0.0
    %6931 = vmatprep.subr.mxu0 0.0
    %6932 = vmatpush2.msra.mxu0 0.0
    %6933 = vmatprep.mubr.f32.mxu0 0.0
    %6934 = vmatmul.mubr.f32.gmra.mxu0 %v6867
    %v6935 = vpop.f32.mrf.mxu0
    %v6936 = vadd.f32 0.0, %v6935
    %v6937 = vpop.f32.mrf.mxu0
    %6938 = vdwg.mxu0
    %6940 = vrot.lane.b32.xlu0 %v6936, 24
    %v6941 = vpop.permute.xlu0 %6940
    %6943 = vst.msk [vmem:[#allocation2 + $0x8] sm:$0xff] %vm1751, %v6941
    %v6944 = vld [vmem:[#allocation2] sm:$0xff]
    %v6945 = vld [vmem:[#allocation2 + $0x8] sm:$0xff]
    %s6946 = scalar_lea.vmem %s7, 32
    %v6947 = vld [vmem:[%s6946] sm:$0xff]
    %v6948 = vld [vmem:[%s6946 + $0x8] sm:$0xff]
    %v6949 = vld [vmem:[%s6946 + $0x10] sm:$0xff]
    %v6950 = vld [vmem:[%s6946 + $0x18] sm:$0xff]
    %v6951 = vlaneseq
    %v6952 = vshrl.u32 %v6951, 7
    %v6953 = vsub.s32 0, %v6952
    %v6954 = vrot.slane %v3729, %v6953
    %v6956 = vsel %vm146, %v6944, 0
    %v6959 = vsel %vm146, %v6945, 0
    %6961 = vmatprep.subr.mxu0 0.0
    %6962 = vmatpush1.msra.mxu0 0.0
    %6963 = vmatprep.subr.mxu0 0.0
    %6964 = vmatpush1.msra.mxu0 0.0
    %6965 = vmatprep.subr.mxu0 0.0
    %6966 = vmatpush1.msra.mxu0 0.0
    %6967 = vmatprep.subr.mxu0 0.0
    %6968 = vmatpush1.msra.mxu0 0.0
    %6969 = vmatprep.subr.mxu0 0.0
    %6970 = vmatpush1.msra.mxu0 0.0
    %6971 = vmatprep.subr.mxu0 0.0
    %6972 = vmatpush1.msra.mxu0 0.0
    %6973 = vmatprep.subr.mxu0 0.0
    %6974 = vmatpush1.msra.mxu0 0.0
    %6975 = vmatprep.subr.mxu0 0.0
    %6976 = vmatpush1.msra.mxu0 0.0
    %6977 = vmatprep.subr.mxu0 0.0
    %6978 = vmatpush1.msra.mxu0 0.0
    %6979 = vmatprep.subr.mxu0 0.0
    %6980 = vmatpush1.msra.mxu0 0.0
    %6981 = vmatprep.subr.mxu0 0.0
    %6982 = vmatpush1.msra.mxu0 0.0
    %6983 = vmatprep.subr.mxu0 0.0
    %6984 = vmatpush1.msra.mxu0 0.0
    %6985 = vmatprep.subr.mxu0 0.0
    %6986 = vmatpush1.msra.mxu0 %v6950
    %6987 = vmatprep.subr.mxu0 0.0
    %6988 = vmatpush1.msra.mxu0 %v6949
    %6989 = vmatprep.subr.mxu0 0.0
    %6990 = vmatpush1.msra.mxu0 %v6948
    %6991 = vmatprep.subr.mxu0 0.0
    %6992 = vmatpush1.msra.mxu0 %v6947
    %6993 = vmatprep.subr.mxu0 0.0
    %6994 = vmatpush2.msra.mxu0 0.0
    %6995 = vmatprep.subr.mxu0 0.0
    %6996 = vmatpush2.msra.mxu0 0.0
    %6997 = vmatprep.subr.mxu0 0.0
    %6998 = vmatpush2.msra.mxu0 0.0
    %6999 = vmatprep.subr.mxu0 0.0
    %7000 = vmatpush2.msra.mxu0 0.0
    %7001 = vmatprep.subr.mxu0 0.0
    %7002 = vmatpush2.msra.mxu0 0.0
    %7003 = vmatprep.subr.mxu0 0.0
    %7004 = vmatpush2.msra.mxu0 0.0
    %7005 = vmatprep.subr.mxu0 0.0
    %7006 = vmatpush2.msra.mxu0 0.0
    %7007 = vmatprep.subr.mxu0 0.0
    %7008 = vmatpush2.msra.mxu0 0.0
    %7009 = vmatprep.subr.mxu0 0.0
    %7010 = vmatpush2.msra.mxu0 0.0
    %7011 = vmatprep.subr.mxu0 0.0
    %7012 = vmatpush2.msra.mxu0 0.0
    %7013 = vmatprep.subr.mxu0 0.0
    %7014 = vmatpush2.msra.mxu0 0.0
    %7015 = vmatprep.subr.mxu0 0.0
    %7016 = vmatpush2.msra.mxu0 0.0
    %7017 = vmatprep.subr.mxu0 0.0
    %7018 = vmatpush2.msra.mxu0 0.0
    %7019 = vmatprep.subr.mxu0 0.0
    %7020 = vmatpush2.msra.mxu0 0.0
    %7021 = vmatprep.subr.mxu0 0.0
    %7022 = vmatpush2.msra.mxu0 0.0
    %7023 = vmatprep.subr.mxu0 0.0
    %7024 = vmatpush2.msra.mxu0 0.0
    %7025 = vmatprep.mubr.f32.mxu0 0.0
    %7026 = vmatmul.mubr.f32.gmra.mxu0 %v6956
    %v7027 = vpop.f32.mrf.mxu0
    %v7028 = vadd.f32 %v6954, %v7027
    %v7029 = vpop.f32.mrf.mxu0
    %7030 = vmatprep.mubr.f32.mxu0 0.0
    %7031 = vmatmul.mubr.f32.gmra.mxu0 %v6959
    %v7032 = vpop.f32.mrf.mxu0
    %v7033 = vadd.f32 %v6954, %v7032
    %v7034 = vpop.f32.mrf.mxu0
    %7035 = vdwg.mxu0
    %v7036 = vadd.f32 %v3726, %v7028
    %v7037 = vadd.f32 %v3727, %v7033
    %v7038 = vsel %vm146, %v7036, 0.0
    %7039 = vadd.xlane.f32.xlu0 %v7038
    %v7040 = vpop.xlane.xlu0 %7039
    %v7041 = vsel %vm146, %v7037, 0.0
    %7042 = vadd.xlane.f32.xlu0 %v7041
    %v7043 = vpop.xlane.xlu0 %7042
    %v7044 = vmul.f32 %v7040, %v3451
    %v7045 = vmul.f32 %v7043, %v3451
    %v7046 = vsub.f32 %v7036, %v7044
    %v7047 = vsub.f32 %v7037, %v7045
    %v7048 = vmul.f32 %v7046, %v7046
    %v7049 = vmul.f32 %v7047, %v7047
    %v7050 = vsel %vm146, %v7048, 0.0
    %7051 = vadd.xlane.f32.xlu0 %v7050
    %v7052 = vpop.xlane.xlu0 %7051
    %v7053 = vsel %vm146, %v7049, 0.0
    %7054 = vadd.xlane.f32.xlu0 %v7053
    %v7055 = vpop.xlane.xlu0 %7054
    %v7056 = vmul.f32 %v7052, %v3451
    %v7057 = vmul.f32 %v7055, %v3451
    %v7058 = vadd.f32 %v7056, 1e-05
    %v7059 = vadd.f32 %v7057, 1e-05
    %v7060 = vrsqrt.pop %v7058
    %v7061 = vrsqrt.pop %v7059
    %v7062 = vmul.f32 %v7046, %v7060
    %v7063 = vmul.f32 %v7047, %v7061
    %v7064 = vlaneseq
    %v7065 = vshrl.u32 %v7064, 7
    %v7066 = vsub.s32 1, %v7065
    %v7067 = vrot.slane %v3729, %v7066
    %v7068 = vmul.f32 %v7062, %v7067
    %v7069 = vmul.f32 %v7063, %v7067
    %v7070 = vlaneseq
    %v7071 = vshrl.u32 %v7070, 7
    %v7072 = vsub.s32 2, %v7071
    %v7073 = vrot.slane %v3729, %v7072
    %v7074 = vadd.f32 %v7068, %v7073
    %v7075 = vadd.f32 %v7069, %v7073
    %s7076 = scalar_lea.vmem %s9, 32
    %v7077 = vld [vmem:[%s7076] sm:$0xff]
    %v7078 = vld [vmem:[%s7076 + $0x8] sm:$0xff]
    %v7079 = vld [vmem:[%s7076 + $0x10] sm:$0xff]
    %v7080 = vld [vmem:[%s7076 + $0x18] sm:$0xff]
    %s7081 = scalar_lea.vmem %s10, 1
    %v7082 = vld [vmem:[%s7081] sm:$0x1]
    %v7084 = vlaneseq
    %v7085 = vshrl.u32 %v7084, 7
    %v7086 = vsub.s32 0, %v7085
    %v7087 = vrot.slane %v7082, %v7086
    %v7090 = vsel %vm146, %v7074, 0
    %v7093 = vsel %vm146, %v7075, 0
    %7095 = vmatprep.subr.mxu0 0.0
    %7096 = vmatpush1.msra.mxu0 0.0
    %7097 = vmatprep.subr.mxu0 0.0
    %7098 = vmatpush1.msra.mxu0 0.0
    %7099 = vmatprep.subr.mxu0 0.0
    %7100 = vmatpush1.msra.mxu0 0.0
    %7101 = vmatprep.subr.mxu0 0.0
    %7102 = vmatpush1.msra.mxu0 0.0
    %7103 = vmatprep.subr.mxu0 0.0
    %7104 = vmatpush1.msra.mxu0 0.0
    %7105 = vmatprep.subr.mxu0 0.0
    %7106 = vmatpush1.msra.mxu0 0.0
    %7107 = vmatprep.subr.mxu0 0.0
    %7108 = vmatpush1.msra.mxu0 0.0
    %7109 = vmatprep.subr.mxu0 0.0
    %7110 = vmatpush1.msra.mxu0 0.0
    %7111 = vmatprep.subr.mxu0 0.0
    %7112 = vmatpush1.msra.mxu0 0.0
    %7113 = vmatprep.subr.mxu0 0.0
    %7114 = vmatpush1.msra.mxu0 0.0
    %7115 = vmatprep.subr.mxu0 0.0
    %7116 = vmatpush1.msra.mxu0 0.0
    %7117 = vmatprep.subr.mxu0 0.0
    %7118 = vmatpush1.msra.mxu0 0.0
    %7119 = vmatprep.subr.mxu0 0.0
    %7120 = vmatpush1.msra.mxu0 %v7080
    %7121 = vmatprep.subr.mxu0 0.0
    %7122 = vmatpush1.msra.mxu0 %v7079
    %7123 = vmatprep.subr.mxu0 0.0
    %7124 = vmatpush1.msra.mxu0 %v7078
    %7125 = vmatprep.subr.mxu0 0.0
    %7126 = vmatpush1.msra.mxu0 %v7077
    %7127 = vmatprep.subr.mxu0 0.0
    %7128 = vmatpush2.msra.mxu0 0.0
    %7129 = vmatprep.subr.mxu0 0.0
    %7130 = vmatpush2.msra.mxu0 0.0
    %7131 = vmatprep.subr.mxu0 0.0
    %7132 = vmatpush2.msra.mxu0 0.0
    %7133 = vmatprep.subr.mxu0 0.0
    %7134 = vmatpush2.msra.mxu0 0.0
    %7135 = vmatprep.subr.mxu0 0.0
    %7136 = vmatpush2.msra.mxu0 0.0
    %7137 = vmatprep.subr.mxu0 0.0
    %7138 = vmatpush2.msra.mxu0 0.0
    %7139 = vmatprep.subr.mxu0 0.0
    %7140 = vmatpush2.msra.mxu0 0.0
    %7141 = vmatprep.subr.mxu0 0.0
    %7142 = vmatpush2.msra.mxu0 0.0
    %7143 = vmatprep.subr.mxu0 0.0
    %7144 = vmatpush2.msra.mxu0 0.0
    %7145 = vmatprep.subr.mxu0 0.0
    %7146 = vmatpush2.msra.mxu0 0.0
    %7147 = vmatprep.subr.mxu0 0.0
    %7148 = vmatpush2.msra.mxu0 0.0
    %7149 = vmatprep.subr.mxu0 0.0
    %7150 = vmatpush2.msra.mxu0 0.0
    %7151 = vmatprep.subr.mxu0 0.0
    %7152 = vmatpush2.msra.mxu0 0.0
    %7153 = vmatprep.subr.mxu0 0.0
    %7154 = vmatpush2.msra.mxu0 0.0
    %7155 = vmatprep.subr.mxu0 0.0
    %7156 = vmatpush2.msra.mxu0 0.0
    %7157 = vmatprep.subr.mxu0 0.0
    %7158 = vmatpush2.msra.mxu0 0.0
    %7159 = vmatprep.mubr.f32.mxu0 0.0
    %7160 = vmatmul.mubr.f32.gmra.mxu0 %v7090
    %v7161 = vpop.f32.mrf.mxu0
    %v7162 = vadd.f32 %v7087, %v7161
    %v7163 = vpop.f32.mrf.mxu0
    %7164 = vmatprep.mubr.f32.mxu0 0.0
    %7165 = vmatmul.mubr.f32.gmra.mxu0 %v7093
    %v7166 = vpop.f32.mrf.mxu0
    %v7167 = vadd.f32 %v7087, %v7166
    %v7168 = vpop.f32.mrf.mxu0
    %7169 = vdwg.mxu0
    %v7170 = vmul.f32 %v7162, %v7162
    %v7171 = vmul.f32 %v7167, %v7167
    %v7172 = vmul.f32 %v7162, %v7170
    %v7173 = vmul.f32 %v7167, %v7171
    %v7174 = vmul.f32 %v7172, 0.044715
    %v7175 = vmul.f32 %v7173, 0.044715
    %v7176 = vadd.f32 %v7162, %v7174
    %v7177 = vadd.f32 %v7167, %v7175
    %v7178 = vmul.f32 %v7176, 0.7978846
    %v7179 = vmul.f32 %v7177, 0.7978846
    %v7180 = vtanh.pop %v7178
    %v7181 = vtanh.pop %v7179
    %v7182 = vadd.f32 %v7180, 1.0
    %v7183 = vadd.f32 %v7181, 1.0
    %v7184 = vmul.f32 %v7182, 0.5
    %v7185 = vmul.f32 %v7183, 0.5
    %v7186 = vmul.f32 %v7162, %v7184
    %v7187 = vmul.f32 %v7167, %v7185
    %s7188 = scalar_lea.vmem %s11, 64
    %v7189 = vld [vmem:[%s7188] sm:$0xff]
    %v7190 = vld [vmem:[%s7188 + $0x8] sm:$0xff]
    %v7191 = vld [vmem:[%s7188 + $0x10] sm:$0xff]
    %v7192 = vld [vmem:[%s7188 + $0x18] sm:$0xff]
    %v7193 = vld [vmem:[%s7188 + $0x20] sm:$0xff]
    %v7194 = vld [vmem:[%s7188 + $0x28] sm:$0xff]
    %v7195 = vld [vmem:[%s7188 + $0x30] sm:$0xff]
    %v7196 = vld [vmem:[%s7188 + $0x38] sm:$0xff]
    %v7197 = vlaneseq
    %v7198 = vshrl.u32 %v7197, 7
    %v7199 = vsub.s32 3, %v7198
    %v7200 = vrot.slane %v3729, %v7199
    %v7202 = vsel %vm3606, %v7186, 0
    %v7205 = vsel %vm3606, %v7187, 0
    %7207 = vmatprep.subr.mxu0 0.0
    %7208 = vmatpush1.msra.mxu0 0.0
    %7209 = vmatprep.subr.mxu0 0.0
    %7210 = vmatpush1.msra.mxu0 0.0
    %7211 = vmatprep.subr.mxu0 0.0
    %7212 = vmatpush1.msra.mxu0 0.0
    %7213 = vmatprep.subr.mxu0 0.0
    %7214 = vmatpush1.msra.mxu0 0.0
    %7215 = vmatprep.subr.mxu0 0.0
    %7216 = vmatpush1.msra.mxu0 0.0
    %7217 = vmatprep.subr.mxu0 0.0
    %7218 = vmatpush1.msra.mxu0 0.0
    %7219 = vmatprep.subr.mxu0 0.0
    %7220 = vmatpush1.msra.mxu0 0.0
    %7221 = vmatprep.subr.mxu0 0.0
    %7222 = vmatpush1.msra.mxu0 0.0
    %7223 = vmatprep.subr.mxu0 0.0
    %7224 = vmatpush1.msra.mxu0 %v7196
    %7225 = vmatprep.subr.mxu0 0.0
    %7226 = vmatpush1.msra.mxu0 %v7195
    %7227 = vmatprep.subr.mxu0 0.0
    %7228 = vmatpush1.msra.mxu0 %v7194
    %7229 = vmatprep.subr.mxu0 0.0
    %7230 = vmatpush1.msra.mxu0 %v7193
    %7231 = vmatprep.subr.mxu0 0.0
    %7232 = vmatpush1.msra.mxu0 %v7192
    %7233 = vmatprep.subr.mxu0 0.0
    %7234 = vmatpush1.msra.mxu0 %v7191
    %7235 = vmatprep.subr.mxu0 0.0
    %7236 = vmatpush1.msra.mxu0 %v7190
    %7237 = vmatprep.subr.mxu0 0.0
    %7238 = vmatpush1.msra.mxu0 %v7189
    %7239 = vmatprep.subr.mxu0 0.0
    %7240 = vmatpush2.msra.mxu0 0.0
    %7241 = vmatprep.subr.mxu0 0.0
    %7242 = vmatpush2.msra.mxu0 0.0
    %7243 = vmatprep.subr.mxu0 0.0
    %7244 = vmatpush2.msra.mxu0 0.0
    %7245 = vmatprep.subr.mxu0 0.0
    %7246 = vmatpush2.msra.mxu0 0.0
    %7247 = vmatprep.subr.mxu0 0.0
    %7248 = vmatpush2.msra.mxu0 0.0
    %7249 = vmatprep.subr.mxu0 0.0
    %7250 = vmatpush2.msra.mxu0 0.0
    %7251 = vmatprep.subr.mxu0 0.0
    %7252 = vmatpush2.msra.mxu0 0.0
    %7253 = vmatprep.subr.mxu0 0.0
    %7254 = vmatpush2.msra.mxu0 0.0
    %7255 = vmatprep.subr.mxu0 0.0
    %7256 = vmatpush2.msra.mxu0 0.0
    %7257 = vmatprep.subr.mxu0 0.0
    %7258 = vmatpush2.msra.mxu0 0.0
    %7259 = vmatprep.subr.mxu0 0.0
    %7260 = vmatpush2.msra.mxu0 0.0
    %7261 = vmatprep.subr.mxu0 0.0
    %7262 = vmatpush2.msra.mxu0 0.0
    %7263 = vmatprep.subr.mxu0 0.0
    %7264 = vmatpush2.msra.mxu0 0.0
    %7265 = vmatprep.subr.mxu0 0.0
    %7266 = vmatpush2.msra.mxu0 0.0
    %7267 = vmatprep.subr.mxu0 0.0
    %7268 = vmatpush2.msra.mxu0 0.0
    %7269 = vmatprep.subr.mxu0 0.0
    %7270 = vmatpush2.msra.mxu0 0.0
    %7271 = vmatprep.mubr.f32.mxu0 0.0
    %7272 = vmatmul.mubr.f32.gmra.mxu0 %v7202
    %v7273 = vpop.f32.mrf.mxu0
    %v7274 = vadd.f32 %v7200, %v7273
    %v7275 = vpop.f32.mrf.mxu0
    %7276 = vmatprep.mubr.f32.mxu0 0.0
    %7277 = vmatmul.mubr.f32.gmra.mxu0 %v7205
    %v7278 = vpop.f32.mrf.mxu0
    %v7279 = vadd.f32 %v7200, %v7278
    %v7280 = vpop.f32.mrf.mxu0
    %7281 = vdwg.mxu0
    %v7282 = vadd.f32 %v7074, %v7274
    %v7283 = vadd.f32 %v7075, %v7279
    %v7284 = vsel %vm146, %v7282, 0.0
    %7285 = vadd.xlane.f32.xlu0 %v7284
    %v7286 = vpop.xlane.xlu0 %7285
    %v7287 = vsel %vm146, %v7283, 0.0
    %7288 = vadd.xlane.f32.xlu0 %v7287
    %v7289 = vpop.xlane.xlu0 %7288
    %v7290 = vmul.f32 %v7286, %v3451
    %v7291 = vmul.f32 %v7289, %v3451
    %v7292 = vsub.f32 %v7282, %v7290
    %v7293 = vsub.f32 %v7283, %v7291
    %v7294 = vmul.f32 %v7292, %v7292
    %v7295 = vmul.f32 %v7293, %v7293
    %v7296 = vsel %vm146, %v7294, 0.0
    %7297 = vadd.xlane.f32.xlu0 %v7296
    %v7298 = vpop.xlane.xlu0 %7297
    %v7299 = vsel %vm146, %v7295, 0.0
    %7300 = vadd.xlane.f32.xlu0 %v7299
    %v7301 = vpop.xlane.xlu0 %7300
    %v7302 = vmul.f32 %v7298, %v3451
    %v7303 = vmul.f32 %v7301, %v3451
    %v7304 = vadd.f32 %v7302, 1e-05
    %v7305 = vadd.f32 %v7303, 1e-05
    %v7306 = vrsqrt.pop %v7304
    %v7307 = vrsqrt.pop %v7305
    %v7308 = vmul.f32 %v7292, %v7306
    %v7309 = vmul.f32 %v7293, %v7307
    %v7310 = vlaneseq
    %v7311 = vshrl.u32 %v7310, 7
    %v7312 = vsub.s32 4, %v7311
    %v7313 = vrot.slane %v3729, %v7312
    %v7314 = vmul.f32 %v7308, %v7313
    %v7315 = vmul.f32 %v7309, %v7313
    %v7316 = vlaneseq
    %v7317 = vshrl.u32 %v7316, 7
    %v7318 = vsub.s32 5, %v7317
    %v7319 = vrot.slane %v3729, %v7318
    %v7320 = vadd.f32 %v7314, %v7319
    %v7321 = vadd.f32 %v7315, %v7319
    %v7322 = vld [vmem:[%s12] sm:$0xff]
    %v7323 = vld [vmem:[%s12 + $0x8] sm:$0xff]
    %v7324 = vld [vmem:[%s12 + $0x10] sm:$0xff]
    %v7325 = vld [vmem:[%s12 + $0x18] sm:$0xff]
    %v7326 = vld [vmem:[%s13] sm:$0x1]
    %v7328 = vlaneseq
    %v7329 = vshrl.u32 %v7328, 7
    %v7330 = vsub.s32 0, %v7329
    %v7331 = vrot.slane %v7326, %v7330
    %v7334 = vsel %vm146, %v7320, 0
    %v7337 = vsel %vm146, %v7321, 0
    %7339 = vmatprep.subr.mxu0 0.0
    %7340 = vmatpush1.msra.mxu0 0.0
    %7341 = vmatprep.subr.mxu0 0.0
    %7342 = vmatpush1.msra.mxu0 0.0
    %7343 = vmatprep.subr.mxu0 0.0
    %7344 = vmatpush1.msra.mxu0 0.0
    %7345 = vmatprep.subr.mxu0 0.0
    %7346 = vmatpush1.msra.mxu0 0.0
    %7347 = vmatprep.subr.mxu0 0.0
    %7348 = vmatpush1.msra.mxu0 0.0
    %7349 = vmatprep.subr.mxu0 0.0
    %7350 = vmatpush1.msra.mxu0 0.0
    %7351 = vmatprep.subr.mxu0 0.0
    %7352 = vmatpush1.msra.mxu0 0.0
    %7353 = vmatprep.subr.mxu0 0.0
    %7354 = vmatpush1.msra.mxu0 0.0
    %7355 = vmatprep.subr.mxu0 0.0
    %7356 = vmatpush1.msra.mxu0 0.0
    %7357 = vmatprep.subr.mxu0 0.0
    %7358 = vmatpush1.msra.mxu0 0.0
    %7359 = vmatprep.subr.mxu0 0.0
    %7360 = vmatpush1.msra.mxu0 0.0
    %7361 = vmatprep.subr.mxu0 0.0
    %7362 = vmatpush1.msra.mxu0 0.0
    %7363 = vmatprep.subr.mxu0 0.0
    %7364 = vmatpush1.msra.mxu0 %v7325
    %7365 = vmatprep.subr.mxu0 0.0
    %7366 = vmatpush1.msra.mxu0 %v7324
    %7367 = vmatprep.subr.mxu0 0.0
    %7368 = vmatpush1.msra.mxu0 %v7323
    %7369 = vmatprep.subr.mxu0 0.0
    %7370 = vmatpush1.msra.mxu0 %v7322
    %7371 = vmatprep.subr.mxu0 0.0
    %7372 = vmatpush2.msra.mxu0 0.0
    %7373 = vmatprep.subr.mxu0 0.0
    %7374 = vmatpush2.msra.mxu0 0.0
    %7375 = vmatprep.subr.mxu0 0.0
    %7376 = vmatpush2.msra.mxu0 0.0
    %7377 = vmatprep.subr.mxu0 0.0
    %7378 = vmatpush2.msra.mxu0 0.0
    %7379 = vmatprep.subr.mxu0 0.0
    %7380 = vmatpush2.msra.mxu0 0.0
    %7381 = vmatprep.subr.mxu0 0.0
    %7382 = vmatpush2.msra.mxu0 0.0
    %7383 = vmatprep.subr.mxu0 0.0
    %7384 = vmatpush2.msra.mxu0 0.0
    %7385 = vmatprep.subr.mxu0 0.0
    %7386 = vmatpush2.msra.mxu0 0.0
    %7387 = vmatprep.subr.mxu0 0.0
    %7388 = vmatpush2.msra.mxu0 0.0
    %7389 = vmatprep.subr.mxu0 0.0
    %7390 = vmatpush2.msra.mxu0 0.0
    %7391 = vmatprep.subr.mxu0 0.0
    %7392 = vmatpush2.msra.mxu0 0.0
    %7393 = vmatprep.subr.mxu0 0.0
    %7394 = vmatpush2.msra.mxu0 0.0
    %7395 = vmatprep.subr.mxu0 0.0
    %7396 = vmatpush2.msra.mxu0 0.0
    %7397 = vmatprep.subr.mxu0 0.0
    %7398 = vmatpush2.msra.mxu0 0.0
    %7399 = vmatprep.subr.mxu0 0.0
    %7400 = vmatpush2.msra.mxu0 0.0
    %7401 = vmatprep.subr.mxu0 0.0
    %7402 = vmatpush2.msra.mxu0 0.0
    %7403 = vmatprep.mubr.f32.mxu0 0.0
    %7404 = vmatmul.mubr.f32.gmra.mxu0 %v7334
    %v7405 = vpop.f32.mrf.mxu0
    %v7406 = vadd.f32 %v7331, %v7405
    %v7407 = vpop.f32.mrf.mxu0
    %7408 = vmatprep.mubr.f32.mxu0 0.0
    %7409 = vmatmul.mubr.f32.gmra.mxu0 %v7337
    %v7410 = vpop.f32.mrf.mxu0
    %v7411 = vadd.f32 %v7331, %v7410
    %v7412 = vpop.f32.mrf.mxu0
    %7413 = vdwg.mxu0
    %7414 = vst [vmem:[#allocation3] sm:$0xff] %v7406
    %7415 = vst [vmem:[#allocation3 + $0x8] sm:$0xff] %v7411
    // Predicated region
    $region58: #{tpu_custom_call.1} parent=1 // pred_check
      _
    $region59: #{tpu_custom_call.1} parent=1 // pred_check_branch
      %7417 = sbr.rel (0) target = $region61
    $region60: #{tpu_custom_call.1} parent=1 // pred_region
      %s7419 = ssub.s32 256, 256
      %7420 = vsyncadd [#allocation4], %s7419
      %s7421 = sshll.u32 [#allocation3], 4
      %s7422 = int_to_ptr.vmem [resolvable:$true] %s7421
      %7427 = dma.vmem_to_hbm [thread:$0]  %s7422, 256, %s14, [#allocation4], 128, 128, 8
    $region61: #{tpu_custom_call.1} parent=1 // pred_fallthru
      _
    // Predicated region
    $region62: #{tpu_custom_call.1} parent=1 // pred_check
      _
    $region63: #{tpu_custom_call.1} parent=1 // pred_check_branch
      %7429 = sbr.rel (0) target = $region65
    $region64: #{tpu_custom_call.1} parent=1 // pred_region
      %7430 = dma.done [#allocation4], 256
    $region65: #{tpu_custom_call.1} parent=1 // pred_fallthru
      _
    %7431 = vsyncpa [#allocation4], 1

</llo_original>
